<compile_context>
chip_gen: v5e
topology: v5e:2x2
jax: 0.10.0
libtpu: 0.0.40
codegen_flags: <defaults>
</compile_context>

<pallas_src>
import functools

import jax
import jax.numpy as jnp
from jax.experimental import pallas as pl
from jax.experimental.pallas import tpu as pltpu


_VMEM = pl.BlockSpec(memory_space=pltpu.MemorySpace.VMEM)
_MXU_DTYPE = jnp.bfloat16   # matmul-operand dtype (set jnp.float32 for exact-f32 numerics)
_CPARAMS = pltpu.CompilerParams(vmem_limit_bytes=32 * 1024 * 1024)


def _round_up(x, m):
    return (x + m - 1) // m * m


# ----------------------------------------------------------------------------
# Kernel 1: fused  conv(3x3, reflect-pad) -> BatchNorm (training-mode batch
#           stats) -> 2x2 max-pool, one whole layer, gridless & VMEM-resident.
# a_ref rows are the four pool-window positions (0,0),(0,1),(1,0),(1,1), each
# occupying Mp (multiple of 8) rows; padded rows / padded channels are zero.
# ----------------------------------------------------------------------------
def conv_bn_pool_kernel(a_ref, w_ref, g_ref, beta_ref, o_ref, *, inv_m, eps, mp):
    # One MXU dispatch for all four pool positions.
    y = jnp.dot(a_ref[...], w_ref[...], preferred_element_type=jnp.float32)  # [4*Mp, Cp] f32

    # Single-pass BatchNorm batch statistics over all N*H*W conv outputs.
    # Padded rows are exactly zero (no conv bias) and inv_m uses the real
    # element count, so they do not perturb mean/var.
    s = jnp.sum(y, axis=0, keepdims=True)
    ss = jnp.sum(y * y, axis=0, keepdims=True)
    mean = s * inv_m
    var = jnp.maximum(ss * inv_m - mean * mean, 0.0)     # biased var; clamp f32 cancellation
    scale = g_ref[...] * jax.lax.rsqrt(var + eps)
    shift = beta_ref[...] - mean * scale

    # Affine on the stacked slab (valid for any sign of gamma), then 2x2
    # max-pool as three pairwise VPU maxima on sublane-aligned row slices.
    z = y * scale + shift
    z00 = z[0 * mp:1 * mp]
    z01 = z[1 * mp:2 * mp]
    z10 = z[2 * mp:3 * mp]
    z11 = z[3 * mp:4 * mp]
    o_ref[...] = jnp.maximum(jnp.maximum(z00, z01), jnp.maximum(z10, z11))


def conv_bn_pool(a, wf, g, beta, *, inv_m, eps, mp):
    cp = wf.shape[1]
    return pl.pallas_call(
        functools.partial(conv_bn_pool_kernel, inv_m=inv_m, eps=eps, mp=mp),
        out_shape=jax.ShapeDtypeStruct((mp, cp), jnp.float32),
        in_specs=[_VMEM] * 4,
        out_specs=_VMEM,
        compiler_params=_CPARAMS,
    )(a, wf, g, beta)


# ----------------------------------------------------------------------------
# Kernel 2: fused classifier  Linear+ReLU -> Linear+ReLU -> Linear
# ----------------------------------------------------------------------------
def mlp_kernel(x_ref, w1_ref, b1_ref, w2_ref, b2_ref, w3_ref, b3_ref, o_ref):
    h = jnp.dot(x_ref[...], w1_ref[...], preferred_element_type=jnp.float32) + b1_ref[...]
    h = jnp.maximum(h, 0.0).astype(_MXU_DTYPE)
    h = jnp.dot(h, w2_ref[...], preferred_element_type=jnp.float32) + b2_ref[...]
    h = jnp.maximum(h, 0.0).astype(_MXU_DTYPE)
    o_ref[...] = jnp.dot(h, w3_ref[...], preferred_element_type=jnp.float32) + b3_ref[...]


def classifier(x, w1, b1, w2, b2, w3, b3):
    M = x.shape[0]
    Nout = w3.shape[1]                      # 100
    Np = _round_up(Nout, 128)               # lane-dense final store
    w3p = jnp.pad(w3, ((0, 0), (0, Np - Nout))).astype(_MXU_DTYPE)
    b3p = jnp.pad(b3, (0, Np - Nout)).reshape(1, Np)
    out = pl.pallas_call(
        mlp_kernel,
        out_shape=jax.ShapeDtypeStruct((M, Np), jnp.float32),
        in_specs=[_VMEM] * 7,
        out_specs=_VMEM,
        compiler_params=_CPARAMS,
    )(x.astype(_MXU_DTYPE),
      w1.astype(_MXU_DTYPE), b1.reshape(1, -1),
      w2.astype(_MXU_DTYPE), b2.reshape(1, -1),
      w3p, b3p)
    return out[:, :Nout]


# ----------------------------------------------------------------------------
# Glue: reflect pad + per-pool-position im2col (quarter-size slabs, no full-size
# im2col intermediate), padding to TPU-friendly shapes. (XLA side)
# ----------------------------------------------------------------------------
def conv_block(x, w, gamma, beta, eps=1e-5):
    # x: [N,H,W,Cin], w: [3,3,Cin,Cout], gamma/beta: [Cout]
    N, H, W, Cin = x.shape
    Cout = w.shape[-1]
    Ho, Wo = H // 2, W // 2
    M4 = N * Ho * Wo
    Mp = max(8, _round_up(M4, 8))           # sublane-aligned position slabs
    K = 9 * Cin
    Kp = _round_up(K, 8)                    # layer 1: 27 -> 32
    Cp = _round_up(Cout, 128)               # lane-dense output store

    xp = jnp.pad(x, ((0, 0), (1, 1), (1, 1), (0, 0)), mode="reflect")

    # Build the im2col slab of each 2x2-pool-window position directly from xp
    # (quarter-size strided taps; avoids materializing the 9x full-size slab).
    slabs = []
    for p in range(2):
        for q in range(2):
            taps = [xp[:, p + dy: p + dy + 2 * Ho: 2, q + dx: q + dx + 2 * Wo: 2, :]
                    for dy in range(3) for dx in range(3)]
            a = jnp.concatenate(taps, axis=-1).reshape(M4, K)
            slabs.append(jnp.pad(a, ((0, Mp - M4), (0, Kp - K))))
    A = jnp.concatenate(slabs, axis=0).astype(_MXU_DTYPE)         # [4*Mp, Kp]

    wf = jnp.pad(w.reshape(K, Cout), ((0, Kp - K), (0, Cp - Cout))).astype(_MXU_DTYPE)
    g = jnp.pad(gamma, (0, Cp - Cout)).reshape(1, Cp)
    bt = jnp.pad(beta, (0, Cp - Cout)).reshape(1, Cp)

    out = conv_bn_pool(A, wf, g, bt, inv_m=1.0 / float(N * H * W), eps=eps, mp=Mp)
    return out[:M4, :Cout].reshape(N, Ho, Wo, Cout)


def init_params(key):
    convs, fcs = [], []
    for ci, co in [(3, 16), (16, 64), (64, 128), (128, 256), (256, 512)]:
        key, k1, k2 = jax.random.split(key, 3)
        w = jax.random.normal(k1, (3, 3, ci, co), jnp.float32) * (9 * ci) ** -0.5
        bias = jax.random.normal(k2, (co,), jnp.float32) * 0.01   # dead under train-mode BN
        gamma = jnp.ones((co,), jnp.float32)
        beta = jnp.zeros((co,), jnp.float32)
        convs.append((w, bias, gamma, beta))
    for di, do in [(512, 256), (256, 128), (128, 100)]:
        key, k1, k2 = jax.random.split(key, 3)
        w = jax.random.normal(k1, (di, do), jnp.float32) * di ** -0.5
        bias = jax.random.normal(k2, (do,), jnp.float32) * 0.01
        fcs.append((w, bias))
    return convs, fcs


@jax.jit
def forward(x_nchw, convs, fcs):
    x = jnp.transpose(x_nchw, (0, 2, 3, 1)).astype(jnp.float32)   # NCHW -> NHWC
    for (w, _b, g, bt) in convs:
        # conv bias _b is exactly cancelled by the training-mode BN mean subtraction.
        x = conv_block(x, w, g, bt)
    x = x.reshape(x.shape[0], -1)             # [N,1,1,512] -> [N,512] (== torch.flatten)
    (w1, b1), (w2, b2), (w3, b3) = fcs
    return classifier(x, w1, b1, w2, b2, w3, b3)


if __name__ == "__main__":
    key = jax.random.PRNGKey(0)
    pkey, xkey = jax.random.split(key)
    convs, fcs = init_params(pkey)
    # Forward implies 32x32 spatial input (5 x maxpool(2) -> 1x1x512 before flatten)
    x = jax.random.normal(xkey, (2, 3, 32, 32), jnp.float32)
    out = forward(x, convs, fcs)
    out = jax.block_until_ready(out)
    assert out.shape == (2, 100), out.shape
    print("KERNEL_OK")
</pallas_src>

<mosaic_0001>
module attributes {stable_mosaic.version = 11 : i64} {
  func.func @conv_bn_pool_kernel(%arg0: memref<2048x32xbf16, #tpu.memory_space<vmem>>, %arg1: memref<32x128xbf16, #tpu.memory_space<vmem>>, %arg2: memref<1x128xf32, #tpu.memory_space<vmem>>, %arg3: memref<1x128xf32, #tpu.memory_space<vmem>>, %arg4: memref<512x128xf32, #tpu.memory_space<vmem>>) attributes {dimension_semantics = [], scalar_prefetch = 0 : i64, scratch_operands = 0 : i64, tpu.core_type = #tpu.core_type<tc>} {
    %c0 = arith.constant 0 : index
    %c0_0 = arith.constant 0 : index
    %0 = vector.load %arg0[%c0, %c0_0] : memref<2048x32xbf16, #tpu.memory_space<vmem>>, vector<2048x32xbf16>
    %c0_1 = arith.constant 0 : index
    %c0_2 = arith.constant 0 : index
    %1 = vector.load %arg1[%c0_1, %c0_2] : memref<32x128xbf16, #tpu.memory_space<vmem>>, vector<32x128xbf16>
    %cst = arith.constant dense<0.000000e+00> : vector<2048x128xf32>
    %2 = tpu.matmul %0, %1, %cst {dimension_numbers = #tpu.dot_dimension_numbers<[1], [0], [0], [1], [0, 0, 1, 1], [], []>} : vector<2048x32xbf16>, vector<32x128xbf16>, vector<2048x128xf32> -> vector<2048x128xf32>
    %cst_3 = arith.constant dense<0.000000e+00> : vector<128xf32>
    %3 = vector.multi_reduction <add>, %2, %cst_3 [0] : vector<2048x128xf32> to vector<128xf32>
    %4 = vector.shape_cast %3 : vector<128xf32> to vector<1x128xf32>
    %5 = arith.mulf %2, %2 : vector<2048x128xf32>
    %cst_4 = arith.constant dense<0.000000e+00> : vector<128xf32>
    %6 = vector.multi_reduction <add>, %5, %cst_4 [0] : vector<2048x128xf32> to vector<128xf32>
    %7 = vector.shape_cast %6 : vector<128xf32> to vector<1x128xf32>
    %cst_5 = arith.constant 4.8828125E-4 : f32
    %8 = vector.broadcast %cst_5 : f32 to vector<1x128xf32>
    %9 = arith.mulf %4, %8 : vector<1x128xf32>
    %cst_6 = arith.constant 4.8828125E-4 : f32
    %10 = vector.broadcast %cst_6 : f32 to vector<1x128xf32>
    %11 = arith.mulf %7, %10 : vector<1x128xf32>
    %12 = arith.mulf %9, %9 : vector<1x128xf32>
    %13 = arith.subf %11, %12 : vector<1x128xf32>
    %cst_7 = arith.constant 0.000000e+00 : f32
    %14 = vector.broadcast %cst_7 : f32 to vector<1x128xf32>
    %15 = arith.maximumf %13, %14 : vector<1x128xf32>
    %c0_8 = arith.constant 0 : index
    %c0_9 = arith.constant 0 : index
    %16 = vector.load %arg2[%c0_8, %c0_9] : memref<1x128xf32, #tpu.memory_space<vmem>>, vector<1x128xf32>
    %cst_10 = arith.constant 9.99999974E-6 : f32
    %17 = vector.broadcast %cst_10 : f32 to vector<1x128xf32>
    %18 = arith.addf %15, %17 : vector<1x128xf32>
    %19 = math.rsqrt %18 : vector<1x128xf32>
    %20 = arith.mulf %16, %19 : vector<1x128xf32>
    %c0_11 = arith.constant 0 : index
    %c0_12 = arith.constant 0 : index
    %21 = vector.load %arg3[%c0_11, %c0_12] : memref<1x128xf32, #tpu.memory_space<vmem>>, vector<1x128xf32>
    %22 = arith.mulf %9, %20 : vector<1x128xf32>
    %23 = arith.subf %21, %22 : vector<1x128xf32>
    %24 = vector.broadcast %20 : vector<1x128xf32> to vector<2048x128xf32>
    %25 = arith.mulf %2, %24 : vector<2048x128xf32>
    %26 = vector.broadcast %23 : vector<1x128xf32> to vector<2048x128xf32>
    %27 = arith.addf %25, %26 : vector<2048x128xf32>
    %28 = vector.extract_strided_slice %27 {offsets = [0, 0], sizes = [512, 128], strides = [1, 1]} : vector<2048x128xf32> to vector<512x128xf32>
    %29 = vector.extract_strided_slice %27 {offsets = [512, 0], sizes = [512, 128], strides = [1, 1]} : vector<2048x128xf32> to vector<512x128xf32>
    %30 = vector.extract_strided_slice %27 {offsets = [1024, 0], sizes = [512, 128], strides = [1, 1]} : vector<2048x128xf32> to vector<512x128xf32>
    %31 = vector.extract_strided_slice %27 {offsets = [1536, 0], sizes = [512, 128], strides = [1, 1]} : vector<2048x128xf32> to vector<512x128xf32>
    %32 = arith.maximumf %28, %29 : vector<512x128xf32>
    %33 = arith.maximumf %30, %31 : vector<512x128xf32>
    %34 = arith.maximumf %32, %33 : vector<512x128xf32>
    %c0_13 = arith.constant 0 : index
    %c0_14 = arith.constant 0 : index
    %35 = vector.load %arg4[%c0_13, %c0_14] : memref<512x128xf32, #tpu.memory_space<vmem>>, vector<512x128xf32>
    tpu.vector_store %arg4[%c0_13, %c0_14], %34 {strides = array<i32>} : memref<512x128xf32, #tpu.memory_space<vmem>>, vector<512x128xf32>,
    return
  }
}

module attributes {stable_mosaic.version = 11 : i64} {
  func.func @conv_bn_pool_kernel(%arg0: memref<512x144xbf16, #tpu.memory_space<vmem>>, %arg1: memref<144x128xbf16, #tpu.memory_space<vmem>>, %arg2: memref<1x128xf32, #tpu.memory_space<vmem>>, %arg3: memref<1x128xf32, #tpu.memory_space<vmem>>, %arg4: memref<128x128xf32, #tpu.memory_space<vmem>>) attributes {dimension_semantics = [], scalar_prefetch = 0 : i64, scratch_operands = 0 : i64, tpu.core_type = #tpu.core_type<tc>} {
    %c0 = arith.constant 0 : index
    %c0_0 = arith.constant 0 : index
    %0 = vector.load %arg0[%c0, %c0_0] : memref<512x144xbf16, #tpu.memory_space<vmem>>, vector<512x144xbf16>
    %c0_1 = arith.constant 0 : index
    %c0_2 = arith.constant 0 : index
    %1 = vector.load %arg1[%c0_1, %c0_2] : memref<144x128xbf16, #tpu.memory_space<vmem>>, vector<144x128xbf16>
    %cst = arith.constant dense<0.000000e+00> : vector<512x128xf32>
    %2 = tpu.matmul %0, %1, %cst {dimension_numbers = #tpu.dot_dimension_numbers<[1], [0], [0], [1], [0, 0, 1, 1], [], []>} : vector<512x144xbf16>, vector<144x128xbf16>, vector<512x128xf32> -> vector<512x128xf32>
    %cst_3 = arith.constant dense<0.000000e+00> : vector<128xf32>
    %3 = vector.multi_reduction <add>, %2, %cst_3 [0] : vector<512x128xf32> to vector<128xf32>
    %4 = vector.shape_cast %3 : vector<128xf32> to vector<1x128xf32>
    %5 = arith.mulf %2, %2 : vector<512x128xf32>
    %cst_4 = arith.constant dense<0.000000e+00> : vector<128xf32>
    %6 = vector.multi_reduction <add>, %5, %cst_4 [0] : vector<512x128xf32> to vector<128xf32>
    %7 = vector.shape_cast %6 : vector<128xf32> to vector<1x128xf32>
    %cst_5 = arith.constant 0.001953125 : f32
    %8 = vector.broadcast %cst_5 : f32 to vector<1x128xf32>
    %9 = arith.mulf %4, %8 : vector<1x128xf32>
    %cst_6 = arith.constant 0.001953125 : f32
    %10 = vector.broadcast %cst_6 : f32 to vector<1x128xf32>
    %11 = arith.mulf %7, %10 : vector<1x128xf32>
    %12 = arith.mulf %9, %9 : vector<1x128xf32>
    %13 = arith.subf %11, %12 : vector<1x128xf32>
    %cst_7 = arith.constant 0.000000e+00 : f32
    %14 = vector.broadcast %cst_7 : f32 to vector<1x128xf32>
    %15 = arith.maximumf %13, %14 : vector<1x128xf32>
    %c0_8 = arith.constant 0 : index
    %c0_9 = arith.constant 0 : index
    %16 = vector.load %arg2[%c0_8, %c0_9] : memref<1x128xf32, #tpu.memory_space<vmem>>, vector<1x128xf32>
    %cst_10 = arith.constant 9.99999974E-6 : f32
    %17 = vector.broadcast %cst_10 : f32 to vector<1x128xf32>
    %18 = arith.addf %15, %17 : vector<1x128xf32>
    %19 = math.rsqrt %18 : vector<1x128xf32>
    %20 = arith.mulf %16, %19 : vector<1x128xf32>
    %c0_11 = arith.constant 0 : index
    %c0_12 = arith.constant 0 : index
    %21 = vector.load %arg3[%c0_11, %c0_12] : memref<1x128xf32, #tpu.memory_space<vmem>>, vector<1x128xf32>
    %22 = arith.mulf %9, %20 : vector<1x128xf32>
    %23 = arith.subf %21, %22 : vector<1x128xf32>
    %24 = vector.broadcast %20 : vector<1x128xf32> to vector<512x128xf32>
    %25 = arith.mulf %2, %24 : vector<512x128xf32>
    %26 = vector.broadcast %23 : vector<1x128xf32> to vector<512x128xf32>
    %27 = arith.addf %25, %26 : vector<512x128xf32>
    %28 = vector.extract_strided_slice %27 {offsets = [0, 0], sizes = [128, 128], strides = [1, 1]} : vector<512x128xf32> to vector<128x128xf32>
    %29 = vector.extract_strided_slice %27 {offsets = [128, 0], sizes = [128, 128], strides = [1, 1]} : vector<512x128xf32> to vector<128x128xf32>
    %30 = vector.extract_strided_slice %27 {offsets = [256, 0], sizes = [128, 128], strides = [1, 1]} : vector<512x128xf32> to vector<128x128xf32>
    %31 = vector.extract_strided_slice %27 {offsets = [384, 0], sizes = [128, 128], strides = [1, 1]} : vector<512x128xf32> to vector<128x128xf32>
    %32 = arith.maximumf %28, %29 : vector<128x128xf32>
    %33 = arith.maximumf %30, %31 : vector<128x128xf32>
    %34 = arith.maximumf %32, %33 : vector<128x128xf32>
    %c0_13 = arith.constant 0 : index
    %c0_14 = arith.constant 0 : index
    %35 = vector.load %arg4[%c0_13, %c0_14] : memref<128x128xf32, #tpu.memory_space<vmem>>, vector<128x128xf32>
    tpu.vector_store %arg4[%c0_13, %c0_14], %34 {strides = array<i32>} : memref<128x128xf32, #tpu.memory_space<vmem>>, vector<128x128xf32>,
    return
  }
}

module attributes {stable_mosaic.version = 11 : i64} {
  func.func @conv_bn_pool_kernel(%arg0: memref<128x576xbf16, #tpu.memory_space<vmem>>, %arg1: memref<576x128xbf16, #tpu.memory_space<vmem>>, %arg2: memref<1x128xf32, #tpu.memory_space<vmem>>, %arg3: memref<1x128xf32, #tpu.memory_space<vmem>>, %arg4: memref<32x128xf32, #tpu.memory_space<vmem>>) attributes {dimension_semantics = [], scalar_prefetch = 0 : i64, scratch_operands = 0 : i64, tpu.core_type = #tpu.core_type<tc>} {
    %c0 = arith.constant 0 : index
    %c0_0 = arith.constant 0 : index
    %0 = vector.load %arg0[%c0, %c0_0] : memref<128x576xbf16, #tpu.memory_space<vmem>>, vector<128x576xbf16>
    %c0_1 = arith.constant 0 : index
    %c0_2 = arith.constant 0 : index
    %1 = vector.load %arg1[%c0_1, %c0_2] : memref<576x128xbf16, #tpu.memory_space<vmem>>, vector<576x128xbf16>
    %cst = arith.constant dense<0.000000e+00> : vector<128x128xf32>
    %2 = tpu.matmul %0, %1, %cst {dimension_numbers = #tpu.dot_dimension_numbers<[1], [0], [0], [1], [0, 0, 1, 1], [], []>} : vector<128x576xbf16>, vector<576x128xbf16>, vector<128x128xf32> -> vector<128x128xf32>
    %cst_3 = arith.constant dense<0.000000e+00> : vector<128xf32>
    %3 = vector.multi_reduction <add>, %2, %cst_3 [0] : vector<128x128xf32> to vector<128xf32>
    %4 = vector.shape_cast %3 : vector<128xf32> to vector<1x128xf32>
    %5 = arith.mulf %2, %2 : vector<128x128xf32>
    %cst_4 = arith.constant dense<0.000000e+00> : vector<128xf32>
    %6 = vector.multi_reduction <add>, %5, %cst_4 [0] : vector<128x128xf32> to vector<128xf32>
    %7 = vector.shape_cast %6 : vector<128xf32> to vector<1x128xf32>
    %cst_5 = arith.constant 7.812500e-03 : f32
    %8 = vector.broadcast %cst_5 : f32 to vector<1x128xf32>
    %9 = arith.mulf %4, %8 : vector<1x128xf32>
    %cst_6 = arith.constant 7.812500e-03 : f32
    %10 = vector.broadcast %cst_6 : f32 to vector<1x128xf32>
    %11 = arith.mulf %7, %10 : vector<1x128xf32>
    %12 = arith.mulf %9, %9 : vector<1x128xf32>
    %13 = arith.subf %11, %12 : vector<1x128xf32>
    %cst_7 = arith.constant 0.000000e+00 : f32
    %14 = vector.broadcast %cst_7 : f32 to vector<1x128xf32>
    %15 = arith.maximumf %13, %14 : vector<1x128xf32>
    %c0_8 = arith.constant 0 : index
    %c0_9 = arith.constant 0 : index
    %16 = vector.load %arg2[%c0_8, %c0_9] : memref<1x128xf32, #tpu.memory_space<vmem>>, vector<1x128xf32>
    %cst_10 = arith.constant 9.99999974E-6 : f32
    %17 = vector.broadcast %cst_10 : f32 to vector<1x128xf32>
    %18 = arith.addf %15, %17 : vector<1x128xf32>
    %19 = math.rsqrt %18 : vector<1x128xf32>
    %20 = arith.mulf %16, %19 : vector<1x128xf32>
    %c0_11 = arith.constant 0 : index
    %c0_12 = arith.constant 0 : index
    %21 = vector.load %arg3[%c0_11, %c0_12] : memref<1x128xf32, #tpu.memory_space<vmem>>, vector<1x128xf32>
    %22 = arith.mulf %9, %20 : vector<1x128xf32>
    %23 = arith.subf %21, %22 : vector<1x128xf32>
    %24 = vector.broadcast %20 : vector<1x128xf32> to vector<128x128xf32>
    %25 = arith.mulf %2, %24 : vector<128x128xf32>
    %26 = vector.broadcast %23 : vector<1x128xf32> to vector<128x128xf32>
    %27 = arith.addf %25, %26 : vector<128x128xf32>
    %28 = vector.extract_strided_slice %27 {offsets = [0, 0], sizes = [32, 128], strides = [1, 1]} : vector<128x128xf32> to vector<32x128xf32>
    %29 = vector.extract_strided_slice %27 {offsets = [32, 0], sizes = [32, 128], strides = [1, 1]} : vector<128x128xf32> to vector<32x128xf32>
    %30 = vector.extract_strided_slice %27 {offsets = [64, 0], sizes = [32, 128], strides = [1, 1]} : vector<128x128xf32> to vector<32x128xf32>
    %31 = vector.extract_strided_slice %27 {offsets = [96, 0], sizes = [32, 128], strides = [1, 1]} : vector<128x128xf32> to vector<32x128xf32>
    %32 = arith.maximumf %28, %29 : vector<32x128xf32>
    %33 = arith.maximumf %30, %31 : vector<32x128xf32>
    %34 = arith.maximumf %32, %33 : vector<32x128xf32>
    %c0_13 = arith.constant 0 : index
    %c0_14 = arith.constant 0 : index
    %35 = vector.load %arg4[%c0_13, %c0_14] : memref<32x128xf32, #tpu.memory_space<vmem>>, vector<32x128xf32>
    tpu.vector_store %arg4[%c0_13, %c0_14], %34 {strides = array<i32>} : memref<32x128xf32, #tpu.memory_space<vmem>>, vector<32x128xf32>,
    return
  }
}

module attributes {stable_mosaic.version = 11 : i64} {
  func.func @conv_bn_pool_kernel(%arg0: memref<32x1152xbf16, #tpu.memory_space<vmem>>, %arg1: memref<1152x256xbf16, #tpu.memory_space<vmem>>, %arg2: memref<1x256xf32, #tpu.memory_space<vmem>>, %arg3: memref<1x256xf32, #tpu.memory_space<vmem>>, %arg4: memref<8x256xf32, #tpu.memory_space<vmem>>) attributes {dimension_semantics = [], scalar_prefetch = 0 : i64, scratch_operands = 0 : i64, tpu.core_type = #tpu.core_type<tc>} {
    %c0 = arith.constant 0 : index
    %c0_0 = arith.constant 0 : index
    %0 = vector.load %arg0[%c0, %c0_0] : memref<32x1152xbf16, #tpu.memory_space<vmem>>, vector<32x1152xbf16>
    %c0_1 = arith.constant 0 : index
    %c0_2 = arith.constant 0 : index
    %1 = vector.load %arg1[%c0_1, %c0_2] : memref<1152x256xbf16, #tpu.memory_space<vmem>>, vector<1152x256xbf16>
    %cst = arith.constant dense<0.000000e+00> : vector<32x256xf32>
    %2 = tpu.matmul %0, %1, %cst {dimension_numbers = #tpu.dot_dimension_numbers<[1], [0], [0], [1], [0, 0, 1, 1], [], []>} : vector<32x1152xbf16>, vector<1152x256xbf16>, vector<32x256xf32> -> vector<32x256xf32>
    %cst_3 = arith.constant dense<0.000000e+00> : vector<256xf32>
    %3 = vector.multi_reduction <add>, %2, %cst_3 [0] : vector<32x256xf32> to vector<256xf32>
    %4 = vector.shape_cast %3 : vector<256xf32> to vector<1x256xf32>
    %5 = arith.mulf %2, %2 : vector<32x256xf32>
    %cst_4 = arith.constant dense<0.000000e+00> : vector<256xf32>
    %6 = vector.multi_reduction <add>, %5, %cst_4 [0] : vector<32x256xf32> to vector<256xf32>
    %7 = vector.shape_cast %6 : vector<256xf32> to vector<1x256xf32>
    %cst_5 = arith.constant 3.125000e-02 : f32
    %8 = vector.broadcast %cst_5 : f32 to vector<1x256xf32>
    %9 = arith.mulf %4, %8 : vector<1x256xf32>
    %cst_6 = arith.constant 3.125000e-02 : f32
    %10 = vector.broadcast %cst_6 : f32 to vector<1x256xf32>
    %11 = arith.mulf %7, %10 : vector<1x256xf32>
    %12 = arith.mulf %9, %9 : vector<1x256xf32>
    %13 = arith.subf %11, %12 : vector<1x256xf32>
    %cst_7 = arith.constant 0.000000e+00 : f32
    %14 = vector.broadcast %cst_7 : f32 to vector<1x256xf32>
    %15 = arith.maximumf %13, %14 : vector<1x256xf32>
    %c0_8 = arith.constant 0 : index
    %c0_9 = arith.constant 0 : index
    %16 = vector.load %arg2[%c0_8, %c0_9] : memref<1x256xf32, #tpu.memory_space<vmem>>, vector<1x256xf32>
    %cst_10 = arith.constant 9.99999974E-6 : f32
    %17 = vector.broadcast %cst_10 : f32 to vector<1x256xf32>
    %18 = arith.addf %15, %17 : vector<1x256xf32>
    %19 = math.rsqrt %18 : vector<1x256xf32>
    %20 = arith.mulf %16, %19 : vector<1x256xf32>
    %c0_11 = arith.constant 0 : index
    %c0_12 = arith.constant 0 : index
    %21 = vector.load %arg3[%c0_11, %c0_12] : memref<1x256xf32, #tpu.memory_space<vmem>>, vector<1x256xf32>
    %22 = arith.mulf %9, %20 : vector<1x256xf32>
    %23 = arith.subf %21, %22 : vector<1x256xf32>
    %24 = vector.broadcast %20 : vector<1x256xf32> to vector<32x256xf32>
    %25 = arith.mulf %2, %24 : vector<32x256xf32>
    %26 = vector.broadcast %23 : vector<1x256xf32> to vector<32x256xf32>
    %27 = arith.addf %25, %26 : vector<32x256xf32>
    %28 = vector.extract_strided_slice %27 {offsets = [0, 0], sizes = [8, 256], strides = [1, 1]} : vector<32x256xf32> to vector<8x256xf32>
    %29 = vector.extract_strided_slice %27 {offsets = [8, 0], sizes = [8, 256], strides = [1, 1]} : vector<32x256xf32> to vector<8x256xf32>
    %30 = vector.extract_strided_slice %27 {offsets = [16, 0], sizes = [8, 256], strides = [1, 1]} : vector<32x256xf32> to vector<8x256xf32>
    %31 = vector.extract_strided_slice %27 {offsets = [24, 0], sizes = [8, 256], strides = [1, 1]} : vector<32x256xf32> to vector<8x256xf32>
    %32 = arith.maximumf %28, %29 : vector<8x256xf32>
    %33 = arith.maximumf %30, %31 : vector<8x256xf32>
    %34 = arith.maximumf %32, %33 : vector<8x256xf32>
    %c0_13 = arith.constant 0 : index
    %c0_14 = arith.constant 0 : index
    %35 = vector.load %arg4[%c0_13, %c0_14] : memref<8x256xf32, #tpu.memory_space<vmem>>, vector<8x256xf32>
    tpu.vector_store %arg4[%c0_13, %c0_14], %34 {strides = array<i32>} : memref<8x256xf32, #tpu.memory_space<vmem>>, vector<8x256xf32>,
    return
  }
}

module attributes {stable_mosaic.version = 11 : i64} {
  func.func @conv_bn_pool_kernel(%arg0: memref<32x2304xbf16, #tpu.memory_space<vmem>>, %arg1: memref<2304x512xbf16, #tpu.memory_space<vmem>>, %arg2: memref<1x512xf32, #tpu.memory_space<vmem>>, %arg3: memref<1x512xf32, #tpu.memory_space<vmem>>, %arg4: memref<8x512xf32, #tpu.memory_space<vmem>>) attributes {dimension_semantics = [], scalar_prefetch = 0 : i64, scratch_operands = 0 : i64, tpu.core_type = #tpu.core_type<tc>} {
    %c0 = arith.constant 0 : index
    %c0_0 = arith.constant 0 : index
    %0 = vector.load %arg0[%c0, %c0_0] : memref<32x2304xbf16, #tpu.memory_space<vmem>>, vector<32x2304xbf16>
    %c0_1 = arith.constant 0 : index
    %c0_2 = arith.constant 0 : index
    %1 = vector.load %arg1[%c0_1, %c0_2] : memref<2304x512xbf16, #tpu.memory_space<vmem>>, vector<2304x512xbf16>
    %cst = arith.constant dense<0.000000e+00> : vector<32x512xf32>
    %2 = tpu.matmul %0, %1, %cst {dimension_numbers = #tpu.dot_dimension_numbers<[1], [0], [0], [1], [0, 0, 1, 1], [], []>} : vector<32x2304xbf16>, vector<2304x512xbf16>, vector<32x512xf32> -> vector<32x512xf32>
    %cst_3 = arith.constant dense<0.000000e+00> : vector<512xf32>
    %3 = vector.multi_reduction <add>, %2, %cst_3 [0] : vector<32x512xf32> to vector<512xf32>
    %4 = vector.shape_cast %3 : vector<512xf32> to vector<1x512xf32>
    %5 = arith.mulf %2, %2 : vector<32x512xf32>
    %cst_4 = arith.constant dense<0.000000e+00> : vector<512xf32>
    %6 = vector.multi_reduction <add>, %5, %cst_4 [0] : vector<32x512xf32> to vector<512xf32>
    %7 = vector.shape_cast %6 : vector<512xf32> to vector<1x512xf32>
    %cst_5 = arith.constant 1.250000e-01 : f32
    %8 = vector.broadcast %cst_5 : f32 to vector<1x512xf32>
    %9 = arith.mulf %4, %8 : vector<1x512xf32>
    %cst_6 = arith.constant 1.250000e-01 : f32
    %10 = vector.broadcast %cst_6 : f32 to vector<1x512xf32>
    %11 = arith.mulf %7, %10 : vector<1x512xf32>
    %12 = arith.mulf %9, %9 : vector<1x512xf32>
    %13 = arith.subf %11, %12 : vector<1x512xf32>
    %cst_7 = arith.constant 0.000000e+00 : f32
    %14 = vector.broadcast %cst_7 : f32 to vector<1x512xf32>
    %15 = arith.maximumf %13, %14 : vector<1x512xf32>
    %c0_8 = arith.constant 0 : index
    %c0_9 = arith.constant 0 : index
    %16 = vector.load %arg2[%c0_8, %c0_9] : memref<1x512xf32, #tpu.memory_space<vmem>>, vector<1x512xf32>
    %cst_10 = arith.constant 9.99999974E-6 : f32
    %17 = vector.broadcast %cst_10 : f32 to vector<1x512xf32>
    %18 = arith.addf %15, %17 : vector<1x512xf32>
    %19 = math.rsqrt %18 : vector<1x512xf32>
    %20 = arith.mulf %16, %19 : vector<1x512xf32>
    %c0_11 = arith.constant 0 : index
    %c0_12 = arith.constant 0 : index
    %21 = vector.load %arg3[%c0_11, %c0_12] : memref<1x512xf32, #tpu.memory_space<vmem>>, vector<1x512xf32>
    %22 = arith.mulf %9, %20 : vector<1x512xf32>
    %23 = arith.subf %21, %22 : vector<1x512xf32>
    %24 = vector.broadcast %20 : vector<1x512xf32> to vector<32x512xf32>
    %25 = arith.mulf %2, %24 : vector<32x512xf32>
    %26 = vector.broadcast %23 : vector<1x512xf32> to vector<32x512xf32>
    %27 = arith.addf %25, %26 : vector<32x512xf32>
    %28 = vector.extract_strided_slice %27 {offsets = [0, 0], sizes = [8, 512], strides = [1, 1]} : vector<32x512xf32> to vector<8x512xf32>
    %29 = vector.extract_strided_slice %27 {offsets = [8, 0], sizes = [8, 512], strides = [1, 1]} : vector<32x512xf32> to vector<8x512xf32>
    %30 = vector.extract_strided_slice %27 {offsets = [16, 0], sizes = [8, 512], strides = [1, 1]} : vector<32x512xf32> to vector<8x512xf32>
    %31 = vector.extract_strided_slice %27 {offsets = [24, 0], sizes = [8, 512], strides = [1, 1]} : vector<32x512xf32> to vector<8x512xf32>
    %32 = arith.maximumf %28, %29 : vector<8x512xf32>
    %33 = arith.maximumf %30, %31 : vector<8x512xf32>
    %34 = arith.maximumf %32, %33 : vector<8x512xf32>
    %c0_13 = arith.constant 0 : index
    %c0_14 = arith.constant 0 : index
    %35 = vector.load %arg4[%c0_13, %c0_14] : memref<8x512xf32, #tpu.memory_space<vmem>>, vector<8x512xf32>
    tpu.vector_store %arg4[%c0_13, %c0_14], %34 {strides = array<i32>} : memref<8x512xf32, #tpu.memory_space<vmem>>, vector<8x512xf32>,
    return
  }
}

module attributes {stable_mosaic.version = 11 : i64} {
  func.func @mlp_kernel(%arg0: memref<2x512xbf16, #tpu.memory_space<vmem>>, %arg1: memref<512x256xbf16, #tpu.memory_space<vmem>>, %arg2: memref<1x256xf32, #tpu.memory_space<vmem>>, %arg3: memref<256x128xbf16, #tpu.memory_space<vmem>>, %arg4: memref<1x128xf32, #tpu.memory_space<vmem>>, %arg5: memref<128x128xbf16, #tpu.memory_space<vmem>>, %arg6: memref<1x128xf32, #tpu.memory_space<vmem>>, %arg7: memref<2x128xf32, #tpu.memory_space<vmem>>) attributes {dimension_semantics = [], scalar_prefetch = 0 : i64, scratch_operands = 0 : i64, tpu.core_type = #tpu.core_type<tc>} {
    %c0 = arith.constant 0 : index
    %c0_0 = arith.constant 0 : index
    %0 = vector.load %arg0[%c0, %c0_0] : memref<2x512xbf16, #tpu.memory_space<vmem>>, vector<2x512xbf16>
    %c0_1 = arith.constant 0 : index
    %c0_2 = arith.constant 0 : index
    %1 = vector.load %arg1[%c0_1, %c0_2] : memref<512x256xbf16, #tpu.memory_space<vmem>>, vector<512x256xbf16>
    %cst = arith.constant dense<0.000000e+00> : vector<2x256xf32>
    %2 = tpu.matmul %0, %1, %cst {dimension_numbers = #tpu.dot_dimension_numbers<[1], [0], [0], [1], [0, 0, 1, 1], [], []>} : vector<2x512xbf16>, vector<512x256xbf16>, vector<2x256xf32> -> vector<2x256xf32>
    %c0_3 = arith.constant 0 : index
    %c0_4 = arith.constant 0 : index
    %3 = vector.load %arg2[%c0_3, %c0_4] : memref<1x256xf32, #tpu.memory_space<vmem>>, vector<1x256xf32>
    %4 = vector.broadcast %3 : vector<1x256xf32> to vector<2x256xf32>
    %5 = arith.addf %2, %4 : vector<2x256xf32>
    %cst_5 = arith.constant 0.000000e+00 : f32
    %6 = vector.broadcast %cst_5 : f32 to vector<2x256xf32>
    %7 = arith.maximumf %5, %6 : vector<2x256xf32>
    %8 = arith.truncf %7 : vector<2x256xf32> to vector<2x256xbf16>
    %c0_6 = arith.constant 0 : index
    %c0_7 = arith.constant 0 : index
    %9 = vector.load %arg3[%c0_6, %c0_7] : memref<256x128xbf16, #tpu.memory_space<vmem>>, vector<256x128xbf16>
    %cst_8 = arith.constant dense<0.000000e+00> : vector<2x128xf32>
    %10 = tpu.matmul %8, %9, %cst_8 {dimension_numbers = #tpu.dot_dimension_numbers<[1], [0], [0], [1], [0, 0, 1, 1], [], []>} : vector<2x256xbf16>, vector<256x128xbf16>, vector<2x128xf32> -> vector<2x128xf32>
    %c0_9 = arith.constant 0 : index
    %c0_10 = arith.constant 0 : index
    %11 = vector.load %arg4[%c0_9, %c0_10] : memref<1x128xf32, #tpu.memory_space<vmem>>, vector<1x128xf32>
    %12 = vector.broadcast %11 : vector<1x128xf32> to vector<2x128xf32>
    %13 = arith.addf %10, %12 : vector<2x128xf32>
    %cst_11 = arith.constant 0.000000e+00 : f32
    %14 = vector.broadcast %cst_11 : f32 to vector<2x128xf32>
    %15 = arith.maximumf %13, %14 : vector<2x128xf32>
    %16 = arith.truncf %15 : vector<2x128xf32> to vector<2x128xbf16>
    %c0_12 = arith.constant 0 : index
    %c0_13 = arith.constant 0 : index
    %17 = vector.load %arg5[%c0_12, %c0_13] : memref<128x128xbf16, #tpu.memory_space<vmem>>, vector<128x128xbf16>
    %cst_14 = arith.constant dense<0.000000e+00> : vector<2x128xf32>
    %18 = tpu.matmul %16, %17, %cst_14 {dimension_numbers = #tpu.dot_dimension_numbers<[1], [0], [0], [1], [0, 0, 1, 1], [], []>} : vector<2x128xbf16>, vector<128x128xbf16>, vector<2x128xf32> -> vector<2x128xf32>
    %c0_15 = arith.constant 0 : index
    %c0_16 = arith.constant 0 : index
    %19 = vector.load %arg6[%c0_15, %c0_16] : memref<1x128xf32, #tpu.memory_space<vmem>>, vector<1x128xf32>
    %20 = vector.broadcast %19 : vector<1x128xf32> to vector<2x128xf32>
    %21 = arith.addf %18, %20 : vector<2x128xf32>
    %c0_17 = arith.constant 0 : index
    %c0_18 = arith.constant 0 : index
    %22 = vector.load %arg7[%c0_17, %c0_18] : memref<2x128xf32, #tpu.memory_space<vmem>>, vector<2x128xf32>
    tpu.vector_store %arg7[%c0_17, %c0_18], %21 {strides = array<i32>} : memref<2x128xf32, #tpu.memory_space<vmem>>, vector<2x128xf32>,
    return
  }
}

</mosaic_0001>

<llo_original>
// kernel: forward.6
$region0: #{forward.6}
  #allocation0 [shape = 'u32[]', space=smem, size = 0x4, offset = 0x4, fixed_abs, tag = 'smem constant byte address 0x4 - core index']
  #allocation1 [shape = 'u32[72,128]{1,0:T(1,128)}', space=vmem, size = 0x9000, scoped, tag = 'internal scratch']
  %s0 = inlined_call_operand.vmem [shape: bf16[2048,32], index: 0, kind: input, shape index: {}]
  %s1 = inlined_call_operand.vmem [shape: bf16[32,128], index: 1, kind: input, shape index: {}]
  %s2 = inlined_call_operand.vmem [shape: f32[1,128], index: 2, kind: input, shape index: {}]
  %s3 = inlined_call_operand.vmem [shape: f32[1,128], index: 3, kind: input, shape index: {}]
  %s4 = inlined_call_operand.vmem [shape: f32[512,128], index: 4, kind: output, shape index: {}]
  %s5 = sld [smem:[#allocation0]]
  $region26: #{forward.6} parent=0
    _
  %s7 = ssub.s32 1, %s5
  %s8 = scalar_select 0, %s7, %s5
  // Predicated region
  $region2: #{forward.6} parent=0 // pred_check
    _
  $region3: #{forward.6} parent=0 // pred_check_branch
    %10 = sbr.rel (0) target = $region5
  $region4: #{forward.6} parent=0 // pred_region
    _
  $region5: #{forward.6} parent=0 // pred_fallthru
    _
  // Predicated region
  $region6: #{forward.6} parent=0 // pred_check
    _
  $region7: #{forward.6} parent=0 // pred_check_branch
    %12 = sbr.rel (0) target = $region9
  $region8: #{forward.6} parent=0 // pred_region
    _
  $region9: #{forward.6} parent=0 // pred_fallthru
    _
  // Predicated region
  $region10: #{forward.6} parent=0 // pred_check
    _
  $region11: #{forward.6} parent=0 // pred_check_branch
    %14 = sbr.rel (0) target = $region13
  $region12: #{forward.6} parent=0 // pred_region
    _
  $region13: #{forward.6} parent=0 // pred_fallthru
    _
  // Predicated region
  $region14: #{forward.6} parent=0 // pred_check
    _
  $region15: #{forward.6} parent=0 // pred_check_branch
    %16 = sbr.rel (0) target = $region17
  $region16: #{forward.6} parent=0 // pred_region
    _
  $region17: #{forward.6} parent=0 // pred_fallthru
    _
  %v18 = vld [vmem:[%s0] sm:$0xf]
  %v19 = vld [vmem:[%s0 + $0x4] sm:$0xf]
  %v20 = vld [vmem:[%s0 + $0x8] sm:$0xf]
  %v21 = vld [vmem:[%s0 + $0xc] sm:$0xf]
  %v22 = vld [vmem:[%s0 + $0x10] sm:$0xf]
  %v23 = vld [vmem:[%s0 + $0x14] sm:$0xf]
  %v24 = vld [vmem:[%s0 + $0x18] sm:$0xf]
  %v25 = vld [vmem:[%s0 + $0x1c] sm:$0xf]
  %v26 = vld [vmem:[%s0 + $0x20] sm:$0xf]
  %v27 = vld [vmem:[%s0 + $0x24] sm:$0xf]
  %v28 = vld [vmem:[%s0 + $0x28] sm:$0xf]
  %v29 = vld [vmem:[%s0 + $0x2c] sm:$0xf]
  %v30 = vld [vmem:[%s0 + $0x30] sm:$0xf]
  %v31 = vld [vmem:[%s0 + $0x34] sm:$0xf]
  %v32 = vld [vmem:[%s0 + $0x38] sm:$0xf]
  %v33 = vld [vmem:[%s0 + $0x3c] sm:$0xf]
  %v34 = vld [vmem:[%s0 + $0x40] sm:$0xf]
  %v35 = vld [vmem:[%s0 + $0x44] sm:$0xf]
  %v36 = vld [vmem:[%s0 + $0x48] sm:$0xf]
  %v37 = vld [vmem:[%s0 + $0x4c] sm:$0xf]
  %v38 = vld [vmem:[%s0 + $0x50] sm:$0xf]
  %v39 = vld [vmem:[%s0 + $0x54] sm:$0xf]
  %v40 = vld [vmem:[%s0 + $0x58] sm:$0xf]
  %v41 = vld [vmem:[%s0 + $0x5c] sm:$0xf]
  %v42 = vld [vmem:[%s0 + $0x60] sm:$0xf]
  %v43 = vld [vmem:[%s0 + $0x64] sm:$0xf]
  %v44 = vld [vmem:[%s0 + $0x68] sm:$0xf]
  %v45 = vld [vmem:[%s0 + $0x6c] sm:$0xf]
  %v46 = vld [vmem:[%s0 + $0x70] sm:$0xf]
  %v47 = vld [vmem:[%s0 + $0x74] sm:$0xf]
  %v48 = vld [vmem:[%s0 + $0x78] sm:$0xf]
  %v49 = vld [vmem:[%s0 + $0x7c] sm:$0xf]
  %v50 = vld [vmem:[%s0 + $0x80] sm:$0xf]
  %v51 = vld [vmem:[%s0 + $0x84] sm:$0xf]
  %v52 = vld [vmem:[%s0 + $0x88] sm:$0xf]
  %v53 = vld [vmem:[%s0 + $0x8c] sm:$0xf]
  %v54 = vld [vmem:[%s0 + $0x90] sm:$0xf]
  %v55 = vld [vmem:[%s0 + $0x94] sm:$0xf]
  %v56 = vld [vmem:[%s0 + $0x98] sm:$0xf]
  %v57 = vld [vmem:[%s0 + $0x9c] sm:$0xf]
  %v58 = vld [vmem:[%s0 + $0xa0] sm:$0xf]
  %v59 = vld [vmem:[%s0 + $0xa4] sm:$0xf]
  %v60 = vld [vmem:[%s0 + $0xa8] sm:$0xf]
  %v61 = vld [vmem:[%s0 + $0xac] sm:$0xf]
  %v62 = vld [vmem:[%s0 + $0xb0] sm:$0xf]
  %v63 = vld [vmem:[%s0 + $0xb4] sm:$0xf]
  %v64 = vld [vmem:[%s0 + $0xb8] sm:$0xf]
  %v65 = vld [vmem:[%s0 + $0xbc] sm:$0xf]
  %v66 = vld [vmem:[%s0 + $0xc0] sm:$0xf]
  %v67 = vld [vmem:[%s0 + $0xc4] sm:$0xf]
  %v68 = vld [vmem:[%s0 + $0xc8] sm:$0xf]
  %v69 = vld [vmem:[%s0 + $0xcc] sm:$0xf]
  %v70 = vld [vmem:[%s0 + $0xd0] sm:$0xf]
  %v71 = vld [vmem:[%s0 + $0xd4] sm:$0xf]
  %v72 = vld [vmem:[%s0 + $0xd8] sm:$0xf]
  %v73 = vld [vmem:[%s0 + $0xdc] sm:$0xf]
  %v74 = vld [vmem:[%s0 + $0xe0] sm:$0xf]
  %v75 = vld [vmem:[%s0 + $0xe4] sm:$0xf]
  %v76 = vld [vmem:[%s0 + $0xe8] sm:$0xf]
  %v77 = vld [vmem:[%s0 + $0xec] sm:$0xf]
  %v78 = vld [vmem:[%s0 + $0xf0] sm:$0xf]
  %v79 = vld [vmem:[%s0 + $0xf4] sm:$0xf]
  %v80 = vld [vmem:[%s0 + $0xf8] sm:$0xf]
  %v81 = vld [vmem:[%s0 + $0xfc] sm:$0xf]
  %v82 = vld [vmem:[%s0 + $0x100] sm:$0xf]
  %v83 = vld [vmem:[%s0 + $0x104] sm:$0xf]
  %v84 = vld [vmem:[%s0 + $0x108] sm:$0xf]
  %v85 = vld [vmem:[%s0 + $0x10c] sm:$0xf]
  %v86 = vld [vmem:[%s0 + $0x110] sm:$0xf]
  %v87 = vld [vmem:[%s0 + $0x114] sm:$0xf]
  %v88 = vld [vmem:[%s0 + $0x118] sm:$0xf]
  %v89 = vld [vmem:[%s0 + $0x11c] sm:$0xf]
  %v90 = vld [vmem:[%s0 + $0x120] sm:$0xf]
  %v91 = vld [vmem:[%s0 + $0x124] sm:$0xf]
  %v92 = vld [vmem:[%s0 + $0x128] sm:$0xf]
  %v93 = vld [vmem:[%s0 + $0x12c] sm:$0xf]
  %v94 = vld [vmem:[%s0 + $0x130] sm:$0xf]
  %v95 = vld [vmem:[%s0 + $0x134] sm:$0xf]
  %v96 = vld [vmem:[%s0 + $0x138] sm:$0xf]
  %v97 = vld [vmem:[%s0 + $0x13c] sm:$0xf]
  %v98 = vld [vmem:[%s0 + $0x140] sm:$0xf]
  %v99 = vld [vmem:[%s0 + $0x144] sm:$0xf]
  %v100 = vld [vmem:[%s0 + $0x148] sm:$0xf]
  %v101 = vld [vmem:[%s0 + $0x14c] sm:$0xf]
  %v102 = vld [vmem:[%s0 + $0x150] sm:$0xf]
  %v103 = vld [vmem:[%s0 + $0x154] sm:$0xf]
  %v104 = vld [vmem:[%s0 + $0x158] sm:$0xf]
  %v105 = vld [vmem:[%s0 + $0x15c] sm:$0xf]
  %v106 = vld [vmem:[%s0 + $0x160] sm:$0xf]
  %v107 = vld [vmem:[%s0 + $0x164] sm:$0xf]
  %v108 = vld [vmem:[%s0 + $0x168] sm:$0xf]
  %v109 = vld [vmem:[%s0 + $0x16c] sm:$0xf]
  %v110 = vld [vmem:[%s0 + $0x170] sm:$0xf]
  %v111 = vld [vmem:[%s0 + $0x174] sm:$0xf]
  %v112 = vld [vmem:[%s0 + $0x178] sm:$0xf]
  %v113 = vld [vmem:[%s0 + $0x17c] sm:$0xf]
  %v114 = vld [vmem:[%s0 + $0x180] sm:$0xf]
  %v115 = vld [vmem:[%s0 + $0x184] sm:$0xf]
  %v116 = vld [vmem:[%s0 + $0x188] sm:$0xf]
  %v117 = vld [vmem:[%s0 + $0x18c] sm:$0xf]
  %v118 = vld [vmem:[%s0 + $0x190] sm:$0xf]
  %v119 = vld [vmem:[%s0 + $0x194] sm:$0xf]
  %v120 = vld [vmem:[%s0 + $0x198] sm:$0xf]
  %v121 = vld [vmem:[%s0 + $0x19c] sm:$0xf]
  %v122 = vld [vmem:[%s0 + $0x1a0] sm:$0xf]
  %v123 = vld [vmem:[%s0 + $0x1a4] sm:$0xf]
  %v124 = vld [vmem:[%s0 + $0x1a8] sm:$0xf]
  %v125 = vld [vmem:[%s0 + $0x1ac] sm:$0xf]
  %v126 = vld [vmem:[%s0 + $0x1b0] sm:$0xf]
  %v127 = vld [vmem:[%s0 + $0x1b4] sm:$0xf]
  %v128 = vld [vmem:[%s0 + $0x1b8] sm:$0xf]
  %v129 = vld [vmem:[%s0 + $0x1bc] sm:$0xf]
  %v130 = vld [vmem:[%s0 + $0x1c0] sm:$0xf]
  %v131 = vld [vmem:[%s0 + $0x1c4] sm:$0xf]
  %v132 = vld [vmem:[%s0 + $0x1c8] sm:$0xf]
  %v133 = vld [vmem:[%s0 + $0x1cc] sm:$0xf]
  %v134 = vld [vmem:[%s0 + $0x1d0] sm:$0xf]
  %v135 = vld [vmem:[%s0 + $0x1d4] sm:$0xf]
  %v136 = vld [vmem:[%s0 + $0x1d8] sm:$0xf]
  %v137 = vld [vmem:[%s0 + $0x1dc] sm:$0xf]
  %v138 = vld [vmem:[%s0 + $0x1e0] sm:$0xf]
  %v139 = vld [vmem:[%s0 + $0x1e4] sm:$0xf]
  %v140 = vld [vmem:[%s0 + $0x1e8] sm:$0xf]
  %v141 = vld [vmem:[%s0 + $0x1ec] sm:$0xf]
  %v142 = vld [vmem:[%s0 + $0x1f0] sm:$0xf]
  %v143 = vld [vmem:[%s0 + $0x1f4] sm:$0xf]
  %v144 = vld [vmem:[%s0 + $0x1f8] sm:$0xf]
  %v145 = vld [vmem:[%s0 + $0x1fc] sm:$0xf]
  %v146 = vld [vmem:[%s0 + $0x200] sm:$0xf]
  %v147 = vld [vmem:[%s0 + $0x204] sm:$0xf]
  %v148 = vld [vmem:[%s0 + $0x208] sm:$0xf]
  %v149 = vld [vmem:[%s0 + $0x20c] sm:$0xf]
  %v150 = vld [vmem:[%s0 + $0x210] sm:$0xf]
  %v151 = vld [vmem:[%s0 + $0x214] sm:$0xf]
  %v152 = vld [vmem:[%s0 + $0x218] sm:$0xf]
  %v153 = vld [vmem:[%s0 + $0x21c] sm:$0xf]
  %v154 = vld [vmem:[%s0 + $0x220] sm:$0xf]
  %v155 = vld [vmem:[%s0 + $0x224] sm:$0xf]
  %v156 = vld [vmem:[%s0 + $0x228] sm:$0xf]
  %v157 = vld [vmem:[%s0 + $0x22c] sm:$0xf]
  %v158 = vld [vmem:[%s0 + $0x230] sm:$0xf]
  %v159 = vld [vmem:[%s0 + $0x234] sm:$0xf]
  %v160 = vld [vmem:[%s0 + $0x238] sm:$0xf]
  %v161 = vld [vmem:[%s0 + $0x23c] sm:$0xf]
  %v162 = vld [vmem:[%s0 + $0x240] sm:$0xf]
  %v163 = vld [vmem:[%s0 + $0x244] sm:$0xf]
  %v164 = vld [vmem:[%s0 + $0x248] sm:$0xf]
  %v165 = vld [vmem:[%s0 + $0x24c] sm:$0xf]
  %v166 = vld [vmem:[%s0 + $0x250] sm:$0xf]
  %v167 = vld [vmem:[%s0 + $0x254] sm:$0xf]
  %v168 = vld [vmem:[%s0 + $0x258] sm:$0xf]
  %v169 = vld [vmem:[%s0 + $0x25c] sm:$0xf]
  %v170 = vld [vmem:[%s0 + $0x260] sm:$0xf]
  %v171 = vld [vmem:[%s0 + $0x264] sm:$0xf]
  %v172 = vld [vmem:[%s0 + $0x268] sm:$0xf]
  %v173 = vld [vmem:[%s0 + $0x26c] sm:$0xf]
  %v174 = vld [vmem:[%s0 + $0x270] sm:$0xf]
  %v175 = vld [vmem:[%s0 + $0x274] sm:$0xf]
  %v176 = vld [vmem:[%s0 + $0x278] sm:$0xf]
  %v177 = vld [vmem:[%s0 + $0x27c] sm:$0xf]
  %v178 = vld [vmem:[%s0 + $0x280] sm:$0xf]
  %v179 = vld [vmem:[%s0 + $0x284] sm:$0xf]
  %v180 = vld [vmem:[%s0 + $0x288] sm:$0xf]
  %v181 = vld [vmem:[%s0 + $0x28c] sm:$0xf]
  %v182 = vld [vmem:[%s0 + $0x290] sm:$0xf]
  %v183 = vld [vmem:[%s0 + $0x294] sm:$0xf]
  %v184 = vld [vmem:[%s0 + $0x298] sm:$0xf]
  %v185 = vld [vmem:[%s0 + $0x29c] sm:$0xf]
  %v186 = vld [vmem:[%s0 + $0x2a0] sm:$0xf]
  %v187 = vld [vmem:[%s0 + $0x2a4] sm:$0xf]
  %v188 = vld [vmem:[%s0 + $0x2a8] sm:$0xf]
  %v189 = vld [vmem:[%s0 + $0x2ac] sm:$0xf]
  %v190 = vld [vmem:[%s0 + $0x2b0] sm:$0xf]
  %v191 = vld [vmem:[%s0 + $0x2b4] sm:$0xf]
  %v192 = vld [vmem:[%s0 + $0x2b8] sm:$0xf]
  %v193 = vld [vmem:[%s0 + $0x2bc] sm:$0xf]
  %v194 = vld [vmem:[%s0 + $0x2c0] sm:$0xf]
  %v195 = vld [vmem:[%s0 + $0x2c4] sm:$0xf]
  %v196 = vld [vmem:[%s0 + $0x2c8] sm:$0xf]
  %v197 = vld [vmem:[%s0 + $0x2cc] sm:$0xf]
  %v198 = vld [vmem:[%s0 + $0x2d0] sm:$0xf]
  %v199 = vld [vmem:[%s0 + $0x2d4] sm:$0xf]
  %v200 = vld [vmem:[%s0 + $0x2d8] sm:$0xf]
  %v201 = vld [vmem:[%s0 + $0x2dc] sm:$0xf]
  %v202 = vld [vmem:[%s0 + $0x2e0] sm:$0xf]
  %v203 = vld [vmem:[%s0 + $0x2e4] sm:$0xf]
  %v204 = vld [vmem:[%s0 + $0x2e8] sm:$0xf]
  %v205 = vld [vmem:[%s0 + $0x2ec] sm:$0xf]
  %v206 = vld [vmem:[%s0 + $0x2f0] sm:$0xf]
  %v207 = vld [vmem:[%s0 + $0x2f4] sm:$0xf]
  %v208 = vld [vmem:[%s0 + $0x2f8] sm:$0xf]
  %v209 = vld [vmem:[%s0 + $0x2fc] sm:$0xf]
  %v210 = vld [vmem:[%s0 + $0x300] sm:$0xf]
  %v211 = vld [vmem:[%s0 + $0x304] sm:$0xf]
  %v212 = vld [vmem:[%s0 + $0x308] sm:$0xf]
  %v213 = vld [vmem:[%s0 + $0x30c] sm:$0xf]
  %v214 = vld [vmem:[%s0 + $0x310] sm:$0xf]
  %v215 = vld [vmem:[%s0 + $0x314] sm:$0xf]
  %v216 = vld [vmem:[%s0 + $0x318] sm:$0xf]
  %v217 = vld [vmem:[%s0 + $0x31c] sm:$0xf]
  %v218 = vld [vmem:[%s0 + $0x320] sm:$0xf]
  %v219 = vld [vmem:[%s0 + $0x324] sm:$0xf]
  %v220 = vld [vmem:[%s0 + $0x328] sm:$0xf]
  %v221 = vld [vmem:[%s0 + $0x32c] sm:$0xf]
  %v222 = vld [vmem:[%s0 + $0x330] sm:$0xf]
  %v223 = vld [vmem:[%s0 + $0x334] sm:$0xf]
  %v224 = vld [vmem:[%s0 + $0x338] sm:$0xf]
  %v225 = vld [vmem:[%s0 + $0x33c] sm:$0xf]
  %v226 = vld [vmem:[%s0 + $0x340] sm:$0xf]
  %v227 = vld [vmem:[%s0 + $0x344] sm:$0xf]
  %v228 = vld [vmem:[%s0 + $0x348] sm:$0xf]
  %v229 = vld [vmem:[%s0 + $0x34c] sm:$0xf]
  %v230 = vld [vmem:[%s0 + $0x350] sm:$0xf]
  %v231 = vld [vmem:[%s0 + $0x354] sm:$0xf]
  %v232 = vld [vmem:[%s0 + $0x358] sm:$0xf]
  %v233 = vld [vmem:[%s0 + $0x35c] sm:$0xf]
  %v234 = vld [vmem:[%s0 + $0x360] sm:$0xf]
  %v235 = vld [vmem:[%s0 + $0x364] sm:$0xf]
  %v236 = vld [vmem:[%s0 + $0x368] sm:$0xf]
  %v237 = vld [vmem:[%s0 + $0x36c] sm:$0xf]
  %v238 = vld [vmem:[%s0 + $0x370] sm:$0xf]
  %v239 = vld [vmem:[%s0 + $0x374] sm:$0xf]
  %v240 = vld [vmem:[%s0 + $0x378] sm:$0xf]
  %v241 = vld [vmem:[%s0 + $0x37c] sm:$0xf]
  %v242 = vld [vmem:[%s0 + $0x380] sm:$0xf]
  %v243 = vld [vmem:[%s0 + $0x384] sm:$0xf]
  %v244 = vld [vmem:[%s0 + $0x388] sm:$0xf]
  %v245 = vld [vmem:[%s0 + $0x38c] sm:$0xf]
  %v246 = vld [vmem:[%s0 + $0x390] sm:$0xf]
  %v247 = vld [vmem:[%s0 + $0x394] sm:$0xf]
  %v248 = vld [vmem:[%s0 + $0x398] sm:$0xf]
  %v249 = vld [vmem:[%s0 + $0x39c] sm:$0xf]
  %v250 = vld [vmem:[%s0 + $0x3a0] sm:$0xf]
  %v251 = vld [vmem:[%s0 + $0x3a4] sm:$0xf]
  %v252 = vld [vmem:[%s0 + $0x3a8] sm:$0xf]
  %v253 = vld [vmem:[%s0 + $0x3ac] sm:$0xf]
  %v254 = vld [vmem:[%s0 + $0x3b0] sm:$0xf]
  %v255 = vld [vmem:[%s0 + $0x3b4] sm:$0xf]
  %v256 = vld [vmem:[%s0 + $0x3b8] sm:$0xf]
  %v257 = vld [vmem:[%s0 + $0x3bc] sm:$0xf]
  %v258 = vld [vmem:[%s0 + $0x3c0] sm:$0xf]
  %v259 = vld [vmem:[%s0 + $0x3c4] sm:$0xf]
  %v260 = vld [vmem:[%s0 + $0x3c8] sm:$0xf]
  %v261 = vld [vmem:[%s0 + $0x3cc] sm:$0xf]
  %v262 = vld [vmem:[%s0 + $0x3d0] sm:$0xf]
  %v263 = vld [vmem:[%s0 + $0x3d4] sm:$0xf]
  %v264 = vld [vmem:[%s0 + $0x3d8] sm:$0xf]
  %v265 = vld [vmem:[%s0 + $0x3dc] sm:$0xf]
  %v266 = vld [vmem:[%s0 + $0x3e0] sm:$0xf]
  %v267 = vld [vmem:[%s0 + $0x3e4] sm:$0xf]
  %v268 = vld [vmem:[%s0 + $0x3e8] sm:$0xf]
  %v269 = vld [vmem:[%s0 + $0x3ec] sm:$0xf]
  %v270 = vld [vmem:[%s0 + $0x3f0] sm:$0xf]
  %v271 = vld [vmem:[%s0 + $0x3f4] sm:$0xf]
  %v272 = vld [vmem:[%s0 + $0x3f8] sm:$0xf]
  %v273 = vld [vmem:[%s0 + $0x3fc] sm:$0xf]
  %v274 = vld [vmem:[%s1] sm:$0xf]
  %v275 = vld [vmem:[%s1 + $0x4] sm:$0xf]
  %v276 = vld [vmem:[%s1 + $0x8] sm:$0xf]
  %v277 = vld [vmem:[%s1 + $0xc] sm:$0xf]
  %v534 = vunpack.c.l.b16 %v18
  %v535 = vunpack.c.l.b16 %v19
  %v536 = vunpack.c.l.b16 %v20
  %v537 = vunpack.c.l.b16 %v21
  %v538 = vunpack.c.l.b16 %v22
  %v539 = vunpack.c.l.b16 %v23
  %v540 = vunpack.c.l.b16 %v24
  %v541 = vunpack.c.l.b16 %v25
  %v542 = vunpack.c.l.b16 %v26
  %v543 = vunpack.c.l.b16 %v27
  %v544 = vunpack.c.l.b16 %v28
  %v545 = vunpack.c.l.b16 %v29
  %v546 = vunpack.c.l.b16 %v30
  %v547 = vunpack.c.l.b16 %v31
  %v548 = vunpack.c.l.b16 %v32
  %v549 = vunpack.c.l.b16 %v33
  %v550 = vunpack.c.l.b16 %v34
  %v551 = vunpack.c.l.b16 %v35
  %v552 = vunpack.c.l.b16 %v36
  %v553 = vunpack.c.l.b16 %v37
  %v554 = vunpack.c.l.b16 %v38
  %v555 = vunpack.c.l.b16 %v39
  %v556 = vunpack.c.l.b16 %v40
  %v557 = vunpack.c.l.b16 %v41
  %v558 = vunpack.c.l.b16 %v42
  %v559 = vunpack.c.l.b16 %v43
  %v560 = vunpack.c.l.b16 %v44
  %v561 = vunpack.c.l.b16 %v45
  %v562 = vunpack.c.l.b16 %v46
  %v563 = vunpack.c.l.b16 %v47
  %v564 = vunpack.c.l.b16 %v48
  %v565 = vunpack.c.l.b16 %v49
  %v566 = vunpack.c.l.b16 %v50
  %v567 = vunpack.c.l.b16 %v51
  %v568 = vunpack.c.l.b16 %v52
  %v569 = vunpack.c.l.b16 %v53
  %v570 = vunpack.c.l.b16 %v54
  %v571 = vunpack.c.l.b16 %v55
  %v572 = vunpack.c.l.b16 %v56
  %v573 = vunpack.c.l.b16 %v57
  %v574 = vunpack.c.l.b16 %v58
  %v575 = vunpack.c.l.b16 %v59
  %v576 = vunpack.c.l.b16 %v60
  %v577 = vunpack.c.l.b16 %v61
  %v578 = vunpack.c.l.b16 %v62
  %v579 = vunpack.c.l.b16 %v63
  %v580 = vunpack.c.l.b16 %v64
  %v581 = vunpack.c.l.b16 %v65
  %v582 = vunpack.c.l.b16 %v66
  %v583 = vunpack.c.l.b16 %v67
  %v584 = vunpack.c.l.b16 %v68
  %v585 = vunpack.c.l.b16 %v69
  %v586 = vunpack.c.l.b16 %v70
  %v587 = vunpack.c.l.b16 %v71
  %v588 = vunpack.c.l.b16 %v72
  %v589 = vunpack.c.l.b16 %v73
  %v590 = vunpack.c.l.b16 %v74
  %v591 = vunpack.c.l.b16 %v75
  %v592 = vunpack.c.l.b16 %v76
  %v593 = vunpack.c.l.b16 %v77
  %v594 = vunpack.c.l.b16 %v78
  %v595 = vunpack.c.l.b16 %v79
  %v596 = vunpack.c.l.b16 %v80
  %v597 = vunpack.c.l.b16 %v81
  %v598 = vunpack.c.l.b16 %v82
  %v599 = vunpack.c.l.b16 %v83
  %v600 = vunpack.c.l.b16 %v84
  %v601 = vunpack.c.l.b16 %v85
  %v602 = vunpack.c.l.b16 %v86
  %v603 = vunpack.c.l.b16 %v87
  %v604 = vunpack.c.l.b16 %v88
  %v605 = vunpack.c.l.b16 %v89
  %v606 = vunpack.c.l.b16 %v90
  %v607 = vunpack.c.l.b16 %v91
  %v608 = vunpack.c.l.b16 %v92
  %v609 = vunpack.c.l.b16 %v93
  %v610 = vunpack.c.l.b16 %v94
  %v611 = vunpack.c.l.b16 %v95
  %v612 = vunpack.c.l.b16 %v96
  %v613 = vunpack.c.l.b16 %v97
  %v614 = vunpack.c.l.b16 %v98
  %v615 = vunpack.c.l.b16 %v99
  %v616 = vunpack.c.l.b16 %v100
  %v617 = vunpack.c.l.b16 %v101
  %v618 = vunpack.c.l.b16 %v102
  %v619 = vunpack.c.l.b16 %v103
  %v620 = vunpack.c.l.b16 %v104
  %v621 = vunpack.c.l.b16 %v105
  %v622 = vunpack.c.l.b16 %v106
  %v623 = vunpack.c.l.b16 %v107
  %v624 = vunpack.c.l.b16 %v108
  %v625 = vunpack.c.l.b16 %v109
  %v626 = vunpack.c.l.b16 %v110
  %v627 = vunpack.c.l.b16 %v111
  %v628 = vunpack.c.l.b16 %v112
  %v629 = vunpack.c.l.b16 %v113
  %v630 = vunpack.c.l.b16 %v114
  %v631 = vunpack.c.l.b16 %v115
  %v632 = vunpack.c.l.b16 %v116
  %v633 = vunpack.c.l.b16 %v117
  %v634 = vunpack.c.l.b16 %v118
  %v635 = vunpack.c.l.b16 %v119
  %v636 = vunpack.c.l.b16 %v120
  %v637 = vunpack.c.l.b16 %v121
  %v638 = vunpack.c.l.b16 %v122
  %v639 = vunpack.c.l.b16 %v123
  %v640 = vunpack.c.l.b16 %v124
  %v641 = vunpack.c.l.b16 %v125
  %v642 = vunpack.c.l.b16 %v126
  %v643 = vunpack.c.l.b16 %v127
  %v644 = vunpack.c.l.b16 %v128
  %v645 = vunpack.c.l.b16 %v129
  %v646 = vunpack.c.l.b16 %v130
  %v647 = vunpack.c.l.b16 %v131
  %v648 = vunpack.c.l.b16 %v132
  %v649 = vunpack.c.l.b16 %v133
  %v650 = vunpack.c.l.b16 %v134
  %v651 = vunpack.c.l.b16 %v135
  %v652 = vunpack.c.l.b16 %v136
  %v653 = vunpack.c.l.b16 %v137
  %v654 = vunpack.c.l.b16 %v138
  %v655 = vunpack.c.l.b16 %v139
  %v656 = vunpack.c.l.b16 %v140
  %v657 = vunpack.c.l.b16 %v141
  %v658 = vunpack.c.l.b16 %v142
  %v659 = vunpack.c.l.b16 %v143
  %v660 = vunpack.c.l.b16 %v144
  %v661 = vunpack.c.l.b16 %v145
  %v662 = vunpack.c.l.b16 %v146
  %v663 = vunpack.c.l.b16 %v147
  %v664 = vunpack.c.l.b16 %v148
  %v665 = vunpack.c.l.b16 %v149
  %v666 = vunpack.c.l.b16 %v150
  %v667 = vunpack.c.l.b16 %v151
  %v668 = vunpack.c.l.b16 %v152
  %v669 = vunpack.c.l.b16 %v153
  %v670 = vunpack.c.l.b16 %v154
  %v671 = vunpack.c.l.b16 %v155
  %v672 = vunpack.c.l.b16 %v156
  %v673 = vunpack.c.l.b16 %v157
  %v674 = vunpack.c.l.b16 %v158
  %v675 = vunpack.c.l.b16 %v159
  %v676 = vunpack.c.l.b16 %v160
  %v677 = vunpack.c.l.b16 %v161
  %v678 = vunpack.c.l.b16 %v162
  %v679 = vunpack.c.l.b16 %v163
  %v680 = vunpack.c.l.b16 %v164
  %v681 = vunpack.c.l.b16 %v165
  %v682 = vunpack.c.l.b16 %v166
  %v683 = vunpack.c.l.b16 %v167
  %v684 = vunpack.c.l.b16 %v168
  %v685 = vunpack.c.l.b16 %v169
  %v686 = vunpack.c.l.b16 %v170
  %v687 = vunpack.c.l.b16 %v171
  %v688 = vunpack.c.l.b16 %v172
  %v689 = vunpack.c.l.b16 %v173
  %v690 = vunpack.c.l.b16 %v174
  %v691 = vunpack.c.l.b16 %v175
  %v692 = vunpack.c.l.b16 %v176
  %v693 = vunpack.c.l.b16 %v177
  %v694 = vunpack.c.l.b16 %v178
  %v695 = vunpack.c.l.b16 %v179
  %v696 = vunpack.c.l.b16 %v180
  %v697 = vunpack.c.l.b16 %v181
  %v698 = vunpack.c.l.b16 %v182
  %v699 = vunpack.c.l.b16 %v183
  %v700 = vunpack.c.l.b16 %v184
  %v701 = vunpack.c.l.b16 %v185
  %v702 = vunpack.c.l.b16 %v186
  %v703 = vunpack.c.l.b16 %v187
  %v704 = vunpack.c.l.b16 %v188
  %v705 = vunpack.c.l.b16 %v189
  %v706 = vunpack.c.l.b16 %v190
  %v707 = vunpack.c.l.b16 %v191
  %v708 = vunpack.c.l.b16 %v192
  %v709 = vunpack.c.l.b16 %v193
  %v710 = vunpack.c.l.b16 %v194
  %v711 = vunpack.c.l.b16 %v195
  %v712 = vunpack.c.l.b16 %v196
  %v713 = vunpack.c.l.b16 %v197
  %v714 = vunpack.c.l.b16 %v198
  %v715 = vunpack.c.l.b16 %v199
  %v716 = vunpack.c.l.b16 %v200
  %v717 = vunpack.c.l.b16 %v201
  %v718 = vunpack.c.l.b16 %v202
  %v719 = vunpack.c.l.b16 %v203
  %v720 = vunpack.c.l.b16 %v204
  %v721 = vunpack.c.l.b16 %v205
  %v722 = vunpack.c.l.b16 %v206
  %v723 = vunpack.c.l.b16 %v207
  %v724 = vunpack.c.l.b16 %v208
  %v725 = vunpack.c.l.b16 %v209
  %v726 = vunpack.c.l.b16 %v210
  %v727 = vunpack.c.l.b16 %v211
  %v728 = vunpack.c.l.b16 %v212
  %v729 = vunpack.c.l.b16 %v213
  %v730 = vunpack.c.l.b16 %v214
  %v731 = vunpack.c.l.b16 %v215
  %v732 = vunpack.c.l.b16 %v216
  %v733 = vunpack.c.l.b16 %v217
  %v734 = vunpack.c.l.b16 %v218
  %v735 = vunpack.c.l.b16 %v219
  %v736 = vunpack.c.l.b16 %v220
  %v737 = vunpack.c.l.b16 %v221
  %v738 = vunpack.c.l.b16 %v222
  %v739 = vunpack.c.l.b16 %v223
  %v740 = vunpack.c.l.b16 %v224
  %v741 = vunpack.c.l.b16 %v225
  %v742 = vunpack.c.l.b16 %v226
  %v743 = vunpack.c.l.b16 %v227
  %v744 = vunpack.c.l.b16 %v228
  %v745 = vunpack.c.l.b16 %v229
  %v746 = vunpack.c.l.b16 %v230
  %v747 = vunpack.c.l.b16 %v231
  %v748 = vunpack.c.l.b16 %v232
  %v749 = vunpack.c.l.b16 %v233
  %v750 = vunpack.c.l.b16 %v234
  %v751 = vunpack.c.l.b16 %v235
  %v752 = vunpack.c.l.b16 %v236
  %v753 = vunpack.c.l.b16 %v237
  %v754 = vunpack.c.l.b16 %v238
  %v755 = vunpack.c.l.b16 %v239
  %v756 = vunpack.c.l.b16 %v240
  %v757 = vunpack.c.l.b16 %v241
  %v758 = vunpack.c.l.b16 %v242
  %v759 = vunpack.c.l.b16 %v243
  %v760 = vunpack.c.l.b16 %v244
  %v761 = vunpack.c.l.b16 %v245
  %v762 = vunpack.c.l.b16 %v246
  %v763 = vunpack.c.l.b16 %v247
  %v764 = vunpack.c.l.b16 %v248
  %v765 = vunpack.c.l.b16 %v249
  %v766 = vunpack.c.l.b16 %v250
  %v767 = vunpack.c.l.b16 %v251
  %v768 = vunpack.c.l.b16 %v252
  %v769 = vunpack.c.l.b16 %v253
  %v770 = vunpack.c.l.b16 %v254
  %v771 = vunpack.c.l.b16 %v255
  %v772 = vunpack.c.l.b16 %v256
  %v773 = vunpack.c.l.b16 %v257
  %v774 = vunpack.c.l.b16 %v258
  %v775 = vunpack.c.l.b16 %v259
  %v776 = vunpack.c.l.b16 %v260
  %v777 = vunpack.c.l.b16 %v261
  %v778 = vunpack.c.l.b16 %v262
  %v779 = vunpack.c.l.b16 %v263
  %v780 = vunpack.c.l.b16 %v264
  %v781 = vunpack.c.l.b16 %v265
  %v782 = vunpack.c.l.b16 %v266
  %v783 = vunpack.c.l.b16 %v267
  %v784 = vunpack.c.l.b16 %v268
  %v785 = vunpack.c.l.b16 %v269
  %v786 = vunpack.c.l.b16 %v270
  %v787 = vunpack.c.l.b16 %v271
  %v788 = vunpack.c.l.b16 %v272
  %v789 = vunpack.c.l.b16 %v273
  %v790 = vpack.c.b16 %v535, %v534
  %v791 = vpack.c.b16 %v537, %v536
  %v792 = vpack.c.b16 %v539, %v538
  %v793 = vpack.c.b16 %v541, %v540
  %v794 = vpack.c.b16 %v543, %v542
  %v795 = vpack.c.b16 %v545, %v544
  %v796 = vpack.c.b16 %v547, %v546
  %v797 = vpack.c.b16 %v549, %v548
  %v798 = vpack.c.b16 %v551, %v550
  %v799 = vpack.c.b16 %v553, %v552
  %v800 = vpack.c.b16 %v555, %v554
  %v801 = vpack.c.b16 %v557, %v556
  %v802 = vpack.c.b16 %v559, %v558
  %v803 = vpack.c.b16 %v561, %v560
  %v804 = vpack.c.b16 %v563, %v562
  %v805 = vpack.c.b16 %v565, %v564
  %v806 = vpack.c.b16 %v567, %v566
  %v807 = vpack.c.b16 %v569, %v568
  %v808 = vpack.c.b16 %v571, %v570
  %v809 = vpack.c.b16 %v573, %v572
  %v810 = vpack.c.b16 %v575, %v574
  %v811 = vpack.c.b16 %v577, %v576
  %v812 = vpack.c.b16 %v579, %v578
  %v813 = vpack.c.b16 %v581, %v580
  %v814 = vpack.c.b16 %v583, %v582
  %v815 = vpack.c.b16 %v585, %v584
  %v816 = vpack.c.b16 %v587, %v586
  %v817 = vpack.c.b16 %v589, %v588
  %v818 = vpack.c.b16 %v591, %v590
  %v819 = vpack.c.b16 %v593, %v592
  %v820 = vpack.c.b16 %v595, %v594
  %v821 = vpack.c.b16 %v597, %v596
  %v822 = vpack.c.b16 %v599, %v598
  %v823 = vpack.c.b16 %v601, %v600
  %v824 = vpack.c.b16 %v603, %v602
  %v825 = vpack.c.b16 %v605, %v604
  %v826 = vpack.c.b16 %v607, %v606
  %v827 = vpack.c.b16 %v609, %v608
  %v828 = vpack.c.b16 %v611, %v610
  %v829 = vpack.c.b16 %v613, %v612
  %v830 = vpack.c.b16 %v615, %v614
  %v831 = vpack.c.b16 %v617, %v616
  %v832 = vpack.c.b16 %v619, %v618
  %v833 = vpack.c.b16 %v621, %v620
  %v834 = vpack.c.b16 %v623, %v622
  %v835 = vpack.c.b16 %v625, %v624
  %v836 = vpack.c.b16 %v627, %v626
  %v837 = vpack.c.b16 %v629, %v628
  %v838 = vpack.c.b16 %v631, %v630
  %v839 = vpack.c.b16 %v633, %v632
  %v840 = vpack.c.b16 %v635, %v634
  %v841 = vpack.c.b16 %v637, %v636
  %v842 = vpack.c.b16 %v639, %v638
  %v843 = vpack.c.b16 %v641, %v640
  %v844 = vpack.c.b16 %v643, %v642
  %v845 = vpack.c.b16 %v645, %v644
  %v846 = vpack.c.b16 %v647, %v646
  %v847 = vpack.c.b16 %v649, %v648
  %v848 = vpack.c.b16 %v651, %v650
  %v849 = vpack.c.b16 %v653, %v652
  %v850 = vpack.c.b16 %v655, %v654
  %v851 = vpack.c.b16 %v657, %v656
  %v852 = vpack.c.b16 %v659, %v658
  %v853 = vpack.c.b16 %v661, %v660
  %v854 = vpack.c.b16 %v663, %v662
  %v855 = vpack.c.b16 %v665, %v664
  %v856 = vpack.c.b16 %v667, %v666
  %v857 = vpack.c.b16 %v669, %v668
  %v858 = vpack.c.b16 %v671, %v670
  %v859 = vpack.c.b16 %v673, %v672
  %v860 = vpack.c.b16 %v675, %v674
  %v861 = vpack.c.b16 %v677, %v676
  %v862 = vpack.c.b16 %v679, %v678
  %v863 = vpack.c.b16 %v681, %v680
  %v864 = vpack.c.b16 %v683, %v682
  %v865 = vpack.c.b16 %v685, %v684
  %v866 = vpack.c.b16 %v687, %v686
  %v867 = vpack.c.b16 %v689, %v688
  %v868 = vpack.c.b16 %v691, %v690
  %v869 = vpack.c.b16 %v693, %v692
  %v870 = vpack.c.b16 %v695, %v694
  %v871 = vpack.c.b16 %v697, %v696
  %v872 = vpack.c.b16 %v699, %v698
  %v873 = vpack.c.b16 %v701, %v700
  %v874 = vpack.c.b16 %v703, %v702
  %v875 = vpack.c.b16 %v705, %v704
  %v876 = vpack.c.b16 %v707, %v706
  %v877 = vpack.c.b16 %v709, %v708
  %v878 = vpack.c.b16 %v711, %v710
  %v879 = vpack.c.b16 %v713, %v712
  %v880 = vpack.c.b16 %v715, %v714
  %v881 = vpack.c.b16 %v717, %v716
  %v882 = vpack.c.b16 %v719, %v718
  %v883 = vpack.c.b16 %v721, %v720
  %v884 = vpack.c.b16 %v723, %v722
  %v885 = vpack.c.b16 %v725, %v724
  %v886 = vpack.c.b16 %v727, %v726
  %v887 = vpack.c.b16 %v729, %v728
  %v888 = vpack.c.b16 %v731, %v730
  %v889 = vpack.c.b16 %v733, %v732
  %v890 = vpack.c.b16 %v735, %v734
  %v891 = vpack.c.b16 %v737, %v736
  %v892 = vpack.c.b16 %v739, %v738
  %v893 = vpack.c.b16 %v741, %v740
  %v894 = vpack.c.b16 %v743, %v742
  %v895 = vpack.c.b16 %v745, %v744
  %v896 = vpack.c.b16 %v747, %v746
  %v897 = vpack.c.b16 %v749, %v748
  %v898 = vpack.c.b16 %v751, %v750
  %v899 = vpack.c.b16 %v753, %v752
  %v900 = vpack.c.b16 %v755, %v754
  %v901 = vpack.c.b16 %v757, %v756
  %v902 = vpack.c.b16 %v759, %v758
  %v903 = vpack.c.b16 %v761, %v760
  %v904 = vpack.c.b16 %v763, %v762
  %v905 = vpack.c.b16 %v765, %v764
  %v906 = vpack.c.b16 %v767, %v766
  %v907 = vpack.c.b16 %v769, %v768
  %v908 = vpack.c.b16 %v771, %v770
  %v909 = vpack.c.b16 %v773, %v772
  %v910 = vpack.c.b16 %v775, %v774
  %v911 = vpack.c.b16 %v777, %v776
  %v912 = vpack.c.b16 %v779, %v778
  %v913 = vpack.c.b16 %v781, %v780
  %v914 = vpack.c.b16 %v783, %v782
  %v915 = vpack.c.b16 %v785, %v784
  %v916 = vpack.c.b16 %v787, %v786
  %v917 = vpack.c.b16 %v789, %v788
  %v922 = vunpack.c.l.b16 %v274
  %v923 = vunpack.c.l.b16 %v275
  %v924 = vunpack.c.l.b16 %v276
  %v925 = vunpack.c.l.b16 %v277
  %v926 = vpack.c.b16 %v923, %v922
  %v927 = vpack.c.b16 %v925, %v924
  %vm930 = vcmask 261120
  %v932 = vsel %vm930, %v790, 0
  %v935 = vsel %vm930, %v791, 0
  %v938 = vsel %vm930, %v792, 0
  %v941 = vsel %vm930, %v793, 0
  %v944 = vsel %vm930, %v794, 0
  %v947 = vsel %vm930, %v795, 0
  %v950 = vsel %vm930, %v796, 0
  %v953 = vsel %vm930, %v797, 0
  %v956 = vsel %vm930, %v798, 0
  %v959 = vsel %vm930, %v799, 0
  %v962 = vsel %vm930, %v800, 0
  %v965 = vsel %vm930, %v801, 0
  %v968 = vsel %vm930, %v802, 0
  %v971 = vsel %vm930, %v803, 0
  %v974 = vsel %vm930, %v804, 0
  %v977 = vsel %vm930, %v805, 0
  %v980 = vsel %vm930, %v806, 0
  %v983 = vsel %vm930, %v807, 0
  %v986 = vsel %vm930, %v808, 0
  %v989 = vsel %vm930, %v809, 0
  %v992 = vsel %vm930, %v810, 0
  %v995 = vsel %vm930, %v811, 0
  %v998 = vsel %vm930, %v812, 0
  %v1001 = vsel %vm930, %v813, 0
  %v1004 = vsel %vm930, %v814, 0
  %v1007 = vsel %vm930, %v815, 0
  %v1010 = vsel %vm930, %v816, 0
  %v1013 = vsel %vm930, %v817, 0
  %v1016 = vsel %vm930, %v818, 0
  %v1019 = vsel %vm930, %v819, 0
  %v1022 = vsel %vm930, %v820, 0
  %v1025 = vsel %vm930, %v821, 0
  %v1028 = vsel %vm930, %v822, 0
  %v1031 = vsel %vm930, %v823, 0
  %v1034 = vsel %vm930, %v824, 0
  %v1037 = vsel %vm930, %v825, 0
  %v1040 = vsel %vm930, %v826, 0
  %v1043 = vsel %vm930, %v827, 0
  %v1046 = vsel %vm930, %v828, 0
  %v1049 = vsel %vm930, %v829, 0
  %v1052 = vsel %vm930, %v830, 0
  %v1055 = vsel %vm930, %v831, 0
  %v1058 = vsel %vm930, %v832, 0
  %v1061 = vsel %vm930, %v833, 0
  %v1064 = vsel %vm930, %v834, 0
  %v1067 = vsel %vm930, %v835, 0
  %v1070 = vsel %vm930, %v836, 0
  %v1073 = vsel %vm930, %v837, 0
  %v1076 = vsel %vm930, %v838, 0
  %v1079 = vsel %vm930, %v839, 0
  %v1082 = vsel %vm930, %v840, 0
  %v1085 = vsel %vm930, %v841, 0
  %v1088 = vsel %vm930, %v842, 0
  %v1091 = vsel %vm930, %v843, 0
  %v1094 = vsel %vm930, %v844, 0
  %v1097 = vsel %vm930, %v845, 0
  %v1100 = vsel %vm930, %v846, 0
  %v1103 = vsel %vm930, %v847, 0
  %v1106 = vsel %vm930, %v848, 0
  %v1109 = vsel %vm930, %v849, 0
  %v1112 = vsel %vm930, %v850, 0
  %v1115 = vsel %vm930, %v851, 0
  %v1118 = vsel %vm930, %v852, 0
  %v1121 = vsel %vm930, %v853, 0
  %v1124 = vsel %vm930, %v854, 0
  %v1127 = vsel %vm930, %v855, 0
  %v1130 = vsel %vm930, %v856, 0
  %v1133 = vsel %vm930, %v857, 0
  %v1136 = vsel %vm930, %v858, 0
  %v1139 = vsel %vm930, %v859, 0
  %v1142 = vsel %vm930, %v860, 0
  %v1145 = vsel %vm930, %v861, 0
  %v1148 = vsel %vm930, %v862, 0
  %v1151 = vsel %vm930, %v863, 0
  %v1154 = vsel %vm930, %v864, 0
  %v1157 = vsel %vm930, %v865, 0
  %v1160 = vsel %vm930, %v866, 0
  %v1163 = vsel %vm930, %v867, 0
  %v1166 = vsel %vm930, %v868, 0
  %v1169 = vsel %vm930, %v869, 0
  %v1172 = vsel %vm930, %v870, 0
  %v1175 = vsel %vm930, %v871, 0
  %v1178 = vsel %vm930, %v872, 0
  %v1181 = vsel %vm930, %v873, 0
  %v1184 = vsel %vm930, %v874, 0
  %v1187 = vsel %vm930, %v875, 0
  %v1190 = vsel %vm930, %v876, 0
  %v1193 = vsel %vm930, %v877, 0
  %v1196 = vsel %vm930, %v878, 0
  %v1199 = vsel %vm930, %v879, 0
  %v1202 = vsel %vm930, %v880, 0
  %v1205 = vsel %vm930, %v881, 0
  %v1208 = vsel %vm930, %v882, 0
  %v1211 = vsel %vm930, %v883, 0
  %v1214 = vsel %vm930, %v884, 0
  %v1217 = vsel %vm930, %v885, 0
  %v1220 = vsel %vm930, %v886, 0
  %v1223 = vsel %vm930, %v887, 0
  %v1226 = vsel %vm930, %v888, 0
  %v1229 = vsel %vm930, %v889, 0
  %v1232 = vsel %vm930, %v890, 0
  %v1235 = vsel %vm930, %v891, 0
  %v1238 = vsel %vm930, %v892, 0
  %v1241 = vsel %vm930, %v893, 0
  %v1244 = vsel %vm930, %v894, 0
  %v1247 = vsel %vm930, %v895, 0
  %v1250 = vsel %vm930, %v896, 0
  %v1253 = vsel %vm930, %v897, 0
  %v1256 = vsel %vm930, %v898, 0
  %v1259 = vsel %vm930, %v899, 0
  %v1262 = vsel %vm930, %v900, 0
  %v1265 = vsel %vm930, %v901, 0
  %v1268 = vsel %vm930, %v902, 0
  %v1271 = vsel %vm930, %v903, 0
  %v1274 = vsel %vm930, %v904, 0
  %v1277 = vsel %vm930, %v905, 0
  %v1280 = vsel %vm930, %v906, 0
  %v1283 = vsel %vm930, %v907, 0
  %v1286 = vsel %vm930, %v908, 0
  %v1289 = vsel %vm930, %v909, 0
  %v1292 = vsel %vm930, %v910, 0
  %v1295 = vsel %vm930, %v911, 0
  %v1298 = vsel %vm930, %v912, 0
  %v1301 = vsel %vm930, %v913, 0
  %v1304 = vsel %vm930, %v914, 0
  %v1307 = vsel %vm930, %v915, 0
  %v1310 = vsel %vm930, %v916, 0
  %v1313 = vsel %vm930, %v917, 0
  %1315 = vmatpush.bf16.msra.mxu0 0
  %1316 = vmatpush.bf16.msra.mxu0 0
  %1317 = vmatpush.bf16.msra.mxu0 0
  %1318 = vmatpush.bf16.msra.mxu0 0
  %1319 = vmatpush.bf16.msra.mxu0 0
  %1320 = vmatpush.bf16.msra.mxu0 0
  %1321 = vmatpush.bf16.msra.mxu0 %v927
  %1322 = vmatpush.bf16.msra.mxu0 %v926
  %1323 = vmatmul.bf16.gmra.mxu0 %v932
  %v1324 = vpop.f32.mrf.mxu0
  %v1325 = vadd.f32 0.0, %v1324
  %v1326 = vpop.f32.mrf.mxu0
  %v1327 = vadd.f32 0.0, %v1326
  %1328 = vmatmul.bf16.gmra.mxu0 %v935
  %v1329 = vpop.f32.mrf.mxu0
  %v1330 = vadd.f32 0.0, %v1329
  %v1331 = vpop.f32.mrf.mxu0
  %v1332 = vadd.f32 0.0, %v1331
  %1333 = vmatmul.bf16.gmra.mxu0 %v938
  %v1334 = vpop.f32.mrf.mxu0
  %v1335 = vadd.f32 0.0, %v1334
  %v1336 = vpop.f32.mrf.mxu0
  %v1337 = vadd.f32 0.0, %v1336
  %1338 = vmatmul.bf16.gmra.mxu0 %v941
  %v1339 = vpop.f32.mrf.mxu0
  %v1340 = vadd.f32 0.0, %v1339
  %v1341 = vpop.f32.mrf.mxu0
  %v1342 = vadd.f32 0.0, %v1341
  %1343 = vmatmul.bf16.gmra.mxu0 %v944
  %v1344 = vpop.f32.mrf.mxu0
  %v1345 = vadd.f32 0.0, %v1344
  %v1346 = vpop.f32.mrf.mxu0
  %v1347 = vadd.f32 0.0, %v1346
  %1348 = vmatmul.bf16.gmra.mxu0 %v947
  %v1349 = vpop.f32.mrf.mxu0
  %v1350 = vadd.f32 0.0, %v1349
  %v1351 = vpop.f32.mrf.mxu0
  %v1352 = vadd.f32 0.0, %v1351
  %1353 = vmatmul.bf16.gmra.mxu0 %v950
  %v1354 = vpop.f32.mrf.mxu0
  %v1355 = vadd.f32 0.0, %v1354
  %v1356 = vpop.f32.mrf.mxu0
  %v1357 = vadd.f32 0.0, %v1356
  %1358 = vmatmul.bf16.gmra.mxu0 %v953
  %v1359 = vpop.f32.mrf.mxu0
  %v1360 = vadd.f32 0.0, %v1359
  %v1361 = vpop.f32.mrf.mxu0
  %v1362 = vadd.f32 0.0, %v1361
  %1363 = vmatmul.bf16.gmra.mxu0 %v956
  %v1364 = vpop.f32.mrf.mxu0
  %v1365 = vadd.f32 0.0, %v1364
  %v1366 = vpop.f32.mrf.mxu0
  %v1367 = vadd.f32 0.0, %v1366
  %1368 = vmatmul.bf16.gmra.mxu0 %v959
  %v1369 = vpop.f32.mrf.mxu0
  %v1370 = vadd.f32 0.0, %v1369
  %v1371 = vpop.f32.mrf.mxu0
  %v1372 = vadd.f32 0.0, %v1371
  %1373 = vmatmul.bf16.gmra.mxu0 %v962
  %v1374 = vpop.f32.mrf.mxu0
  %v1375 = vadd.f32 0.0, %v1374
  %v1376 = vpop.f32.mrf.mxu0
  %v1377 = vadd.f32 0.0, %v1376
  %1378 = vmatmul.bf16.gmra.mxu0 %v965
  %v1379 = vpop.f32.mrf.mxu0
  %v1380 = vadd.f32 0.0, %v1379
  %v1381 = vpop.f32.mrf.mxu0
  %v1382 = vadd.f32 0.0, %v1381
  %1383 = vmatmul.bf16.gmra.mxu0 %v968
  %v1384 = vpop.f32.mrf.mxu0
  %v1385 = vadd.f32 0.0, %v1384
  %v1386 = vpop.f32.mrf.mxu0
  %v1387 = vadd.f32 0.0, %v1386
  %1388 = vmatmul.bf16.gmra.mxu0 %v971
  %v1389 = vpop.f32.mrf.mxu0
  %v1390 = vadd.f32 0.0, %v1389
  %v1391 = vpop.f32.mrf.mxu0
  %v1392 = vadd.f32 0.0, %v1391
  %1393 = vmatmul.bf16.gmra.mxu0 %v974
  %v1394 = vpop.f32.mrf.mxu0
  %v1395 = vadd.f32 0.0, %v1394
  %v1396 = vpop.f32.mrf.mxu0
  %v1397 = vadd.f32 0.0, %v1396
  %1398 = vmatmul.bf16.gmra.mxu0 %v977
  %v1399 = vpop.f32.mrf.mxu0
  %v1400 = vadd.f32 0.0, %v1399
  %v1401 = vpop.f32.mrf.mxu0
  %v1402 = vadd.f32 0.0, %v1401
  %1403 = vmatmul.bf16.gmra.mxu0 %v980
  %v1404 = vpop.f32.mrf.mxu0
  %v1405 = vadd.f32 0.0, %v1404
  %v1406 = vpop.f32.mrf.mxu0
  %v1407 = vadd.f32 0.0, %v1406
  %1408 = vmatmul.bf16.gmra.mxu0 %v983
  %v1409 = vpop.f32.mrf.mxu0
  %v1410 = vadd.f32 0.0, %v1409
  %v1411 = vpop.f32.mrf.mxu0
  %v1412 = vadd.f32 0.0, %v1411
  %1413 = vmatmul.bf16.gmra.mxu0 %v986
  %v1414 = vpop.f32.mrf.mxu0
  %v1415 = vadd.f32 0.0, %v1414
  %v1416 = vpop.f32.mrf.mxu0
  %v1417 = vadd.f32 0.0, %v1416
  %1418 = vmatmul.bf16.gmra.mxu0 %v989
  %v1419 = vpop.f32.mrf.mxu0
  %v1420 = vadd.f32 0.0, %v1419
  %v1421 = vpop.f32.mrf.mxu0
  %v1422 = vadd.f32 0.0, %v1421
  %1423 = vmatmul.bf16.gmra.mxu0 %v992
  %v1424 = vpop.f32.mrf.mxu0
  %v1425 = vadd.f32 0.0, %v1424
  %v1426 = vpop.f32.mrf.mxu0
  %v1427 = vadd.f32 0.0, %v1426
  %1428 = vmatmul.bf16.gmra.mxu0 %v995
  %v1429 = vpop.f32.mrf.mxu0
  %v1430 = vadd.f32 0.0, %v1429
  %v1431 = vpop.f32.mrf.mxu0
  %v1432 = vadd.f32 0.0, %v1431
  %1433 = vmatmul.bf16.gmra.mxu0 %v998
  %v1434 = vpop.f32.mrf.mxu0
  %v1435 = vadd.f32 0.0, %v1434
  %v1436 = vpop.f32.mrf.mxu0
  %v1437 = vadd.f32 0.0, %v1436
  %1438 = vmatmul.bf16.gmra.mxu0 %v1001
  %v1439 = vpop.f32.mrf.mxu0
  %v1440 = vadd.f32 0.0, %v1439
  %v1441 = vpop.f32.mrf.mxu0
  %v1442 = vadd.f32 0.0, %v1441
  %1443 = vmatmul.bf16.gmra.mxu0 %v1004
  %v1444 = vpop.f32.mrf.mxu0
  %v1445 = vadd.f32 0.0, %v1444
  %v1446 = vpop.f32.mrf.mxu0
  %v1447 = vadd.f32 0.0, %v1446
  %1448 = vmatmul.bf16.gmra.mxu0 %v1007
  %v1449 = vpop.f32.mrf.mxu0
  %v1450 = vadd.f32 0.0, %v1449
  %v1451 = vpop.f32.mrf.mxu0
  %v1452 = vadd.f32 0.0, %v1451
  %1453 = vmatmul.bf16.gmra.mxu0 %v1010
  %v1454 = vpop.f32.mrf.mxu0
  %v1455 = vadd.f32 0.0, %v1454
  %v1456 = vpop.f32.mrf.mxu0
  %v1457 = vadd.f32 0.0, %v1456
  %1458 = vmatmul.bf16.gmra.mxu0 %v1013
  %v1459 = vpop.f32.mrf.mxu0
  %v1460 = vadd.f32 0.0, %v1459
  %v1461 = vpop.f32.mrf.mxu0
  %v1462 = vadd.f32 0.0, %v1461
  %1463 = vmatmul.bf16.gmra.mxu0 %v1016
  %v1464 = vpop.f32.mrf.mxu0
  %v1465 = vadd.f32 0.0, %v1464
  %v1466 = vpop.f32.mrf.mxu0
  %v1467 = vadd.f32 0.0, %v1466
  %1468 = vmatmul.bf16.gmra.mxu0 %v1019
  %v1469 = vpop.f32.mrf.mxu0
  %v1470 = vadd.f32 0.0, %v1469
  %v1471 = vpop.f32.mrf.mxu0
  %v1472 = vadd.f32 0.0, %v1471
  %1473 = vmatmul.bf16.gmra.mxu0 %v1022
  %v1474 = vpop.f32.mrf.mxu0
  %v1475 = vadd.f32 0.0, %v1474
  %v1476 = vpop.f32.mrf.mxu0
  %v1477 = vadd.f32 0.0, %v1476
  %1478 = vmatmul.bf16.gmra.mxu0 %v1025
  %v1479 = vpop.f32.mrf.mxu0
  %v1480 = vadd.f32 0.0, %v1479
  %v1481 = vpop.f32.mrf.mxu0
  %v1482 = vadd.f32 0.0, %v1481
  %1483 = vmatmul.bf16.gmra.mxu0 %v1028
  %v1484 = vpop.f32.mrf.mxu0
  %v1485 = vadd.f32 0.0, %v1484
  %v1486 = vpop.f32.mrf.mxu0
  %v1487 = vadd.f32 0.0, %v1486
  %1488 = vmatmul.bf16.gmra.mxu0 %v1031
  %v1489 = vpop.f32.mrf.mxu0
  %v1490 = vadd.f32 0.0, %v1489
  %v1491 = vpop.f32.mrf.mxu0
  %v1492 = vadd.f32 0.0, %v1491
  %1493 = vmatmul.bf16.gmra.mxu0 %v1034
  %v1494 = vpop.f32.mrf.mxu0
  %v1495 = vadd.f32 0.0, %v1494
  %v1496 = vpop.f32.mrf.mxu0
  %v1497 = vadd.f32 0.0, %v1496
  %1498 = vmatmul.bf16.gmra.mxu0 %v1037
  %v1499 = vpop.f32.mrf.mxu0
  %v1500 = vadd.f32 0.0, %v1499
  %v1501 = vpop.f32.mrf.mxu0
  %v1502 = vadd.f32 0.0, %v1501
  %1503 = vmatmul.bf16.gmra.mxu0 %v1040
  %v1504 = vpop.f32.mrf.mxu0
  %v1505 = vadd.f32 0.0, %v1504
  %v1506 = vpop.f32.mrf.mxu0
  %v1507 = vadd.f32 0.0, %v1506
  %1508 = vmatmul.bf16.gmra.mxu0 %v1043
  %v1509 = vpop.f32.mrf.mxu0
  %v1510 = vadd.f32 0.0, %v1509
  %v1511 = vpop.f32.mrf.mxu0
  %v1512 = vadd.f32 0.0, %v1511
  %1513 = vmatmul.bf16.gmra.mxu0 %v1046
  %v1514 = vpop.f32.mrf.mxu0
  %v1515 = vadd.f32 0.0, %v1514
  %v1516 = vpop.f32.mrf.mxu0
  %v1517 = vadd.f32 0.0, %v1516
  %1518 = vmatmul.bf16.gmra.mxu0 %v1049
  %v1519 = vpop.f32.mrf.mxu0
  %v1520 = vadd.f32 0.0, %v1519
  %v1521 = vpop.f32.mrf.mxu0
  %v1522 = vadd.f32 0.0, %v1521
  %1523 = vmatmul.bf16.gmra.mxu0 %v1052
  %v1524 = vpop.f32.mrf.mxu0
  %v1525 = vadd.f32 0.0, %v1524
  %v1526 = vpop.f32.mrf.mxu0
  %v1527 = vadd.f32 0.0, %v1526
  %1528 = vmatmul.bf16.gmra.mxu0 %v1055
  %v1529 = vpop.f32.mrf.mxu0
  %v1530 = vadd.f32 0.0, %v1529
  %v1531 = vpop.f32.mrf.mxu0
  %v1532 = vadd.f32 0.0, %v1531
  %1533 = vmatmul.bf16.gmra.mxu0 %v1058
  %v1534 = vpop.f32.mrf.mxu0
  %v1535 = vadd.f32 0.0, %v1534
  %v1536 = vpop.f32.mrf.mxu0
  %v1537 = vadd.f32 0.0, %v1536
  %1538 = vmatmul.bf16.gmra.mxu0 %v1061
  %v1539 = vpop.f32.mrf.mxu0
  %v1540 = vadd.f32 0.0, %v1539
  %v1541 = vpop.f32.mrf.mxu0
  %v1542 = vadd.f32 0.0, %v1541
  %1543 = vmatmul.bf16.gmra.mxu0 %v1064
  %v1544 = vpop.f32.mrf.mxu0
  %v1545 = vadd.f32 0.0, %v1544
  %v1546 = vpop.f32.mrf.mxu0
  %v1547 = vadd.f32 0.0, %v1546
  %1548 = vmatmul.bf16.gmra.mxu0 %v1067
  %v1549 = vpop.f32.mrf.mxu0
  %v1550 = vadd.f32 0.0, %v1549
  %v1551 = vpop.f32.mrf.mxu0
  %v1552 = vadd.f32 0.0, %v1551
  %1553 = vmatmul.bf16.gmra.mxu0 %v1070
  %v1554 = vpop.f32.mrf.mxu0
  %v1555 = vadd.f32 0.0, %v1554
  %v1556 = vpop.f32.mrf.mxu0
  %v1557 = vadd.f32 0.0, %v1556
  %1558 = vmatmul.bf16.gmra.mxu0 %v1073
  %v1559 = vpop.f32.mrf.mxu0
  %v1560 = vadd.f32 0.0, %v1559
  %v1561 = vpop.f32.mrf.mxu0
  %v1562 = vadd.f32 0.0, %v1561
  %1563 = vmatmul.bf16.gmra.mxu0 %v1076
  %v1564 = vpop.f32.mrf.mxu0
  %v1565 = vadd.f32 0.0, %v1564
  %v1566 = vpop.f32.mrf.mxu0
  %v1567 = vadd.f32 0.0, %v1566
  %1568 = vmatmul.bf16.gmra.mxu0 %v1079
  %v1569 = vpop.f32.mrf.mxu0
  %v1570 = vadd.f32 0.0, %v1569
  %v1571 = vpop.f32.mrf.mxu0
  %v1572 = vadd.f32 0.0, %v1571
  %1573 = vmatmul.bf16.gmra.mxu0 %v1082
  %v1574 = vpop.f32.mrf.mxu0
  %v1575 = vadd.f32 0.0, %v1574
  %v1576 = vpop.f32.mrf.mxu0
  %v1577 = vadd.f32 0.0, %v1576
  %1578 = vmatmul.bf16.gmra.mxu0 %v1085
  %v1579 = vpop.f32.mrf.mxu0
  %v1580 = vadd.f32 0.0, %v1579
  %v1581 = vpop.f32.mrf.mxu0
  %v1582 = vadd.f32 0.0, %v1581
  %1583 = vmatmul.bf16.gmra.mxu0 %v1088
  %v1584 = vpop.f32.mrf.mxu0
  %v1585 = vadd.f32 0.0, %v1584
  %v1586 = vpop.f32.mrf.mxu0
  %v1587 = vadd.f32 0.0, %v1586
  %1588 = vmatmul.bf16.gmra.mxu0 %v1091
  %v1589 = vpop.f32.mrf.mxu0
  %v1590 = vadd.f32 0.0, %v1589
  %v1591 = vpop.f32.mrf.mxu0
  %v1592 = vadd.f32 0.0, %v1591
  %1593 = vmatmul.bf16.gmra.mxu0 %v1094
  %v1594 = vpop.f32.mrf.mxu0
  %v1595 = vadd.f32 0.0, %v1594
  %v1596 = vpop.f32.mrf.mxu0
  %v1597 = vadd.f32 0.0, %v1596
  %1598 = vmatmul.bf16.gmra.mxu0 %v1097
  %v1599 = vpop.f32.mrf.mxu0
  %v1600 = vadd.f32 0.0, %v1599
  %v1601 = vpop.f32.mrf.mxu0
  %v1602 = vadd.f32 0.0, %v1601
  %1603 = vmatmul.bf16.gmra.mxu0 %v1100
  %v1604 = vpop.f32.mrf.mxu0
  %v1605 = vadd.f32 0.0, %v1604
  %v1606 = vpop.f32.mrf.mxu0
  %v1607 = vadd.f32 0.0, %v1606
  %1608 = vmatmul.bf16.gmra.mxu0 %v1103
  %v1609 = vpop.f32.mrf.mxu0
  %v1610 = vadd.f32 0.0, %v1609
  %v1611 = vpop.f32.mrf.mxu0
  %v1612 = vadd.f32 0.0, %v1611
  %1613 = vmatmul.bf16.gmra.mxu0 %v1106
  %v1614 = vpop.f32.mrf.mxu0
  %v1615 = vadd.f32 0.0, %v1614
  %v1616 = vpop.f32.mrf.mxu0
  %v1617 = vadd.f32 0.0, %v1616
  %1618 = vmatmul.bf16.gmra.mxu0 %v1109
  %v1619 = vpop.f32.mrf.mxu0
  %v1620 = vadd.f32 0.0, %v1619
  %v1621 = vpop.f32.mrf.mxu0
  %v1622 = vadd.f32 0.0, %v1621
  %1623 = vmatmul.bf16.gmra.mxu0 %v1112
  %v1624 = vpop.f32.mrf.mxu0
  %v1625 = vadd.f32 0.0, %v1624
  %v1626 = vpop.f32.mrf.mxu0
  %v1627 = vadd.f32 0.0, %v1626
  %1628 = vmatmul.bf16.gmra.mxu0 %v1115
  %v1629 = vpop.f32.mrf.mxu0
  %v1630 = vadd.f32 0.0, %v1629
  %v1631 = vpop.f32.mrf.mxu0
  %v1632 = vadd.f32 0.0, %v1631
  %1633 = vmatmul.bf16.gmra.mxu0 %v1118
  %v1634 = vpop.f32.mrf.mxu0
  %v1635 = vadd.f32 0.0, %v1634
  %v1636 = vpop.f32.mrf.mxu0
  %v1637 = vadd.f32 0.0, %v1636
  %1638 = vmatmul.bf16.gmra.mxu0 %v1121
  %v1639 = vpop.f32.mrf.mxu0
  %v1640 = vadd.f32 0.0, %v1639
  %v1641 = vpop.f32.mrf.mxu0
  %v1642 = vadd.f32 0.0, %v1641
  %1643 = vmatmul.bf16.gmra.mxu0 %v1124
  %v1644 = vpop.f32.mrf.mxu0
  %v1645 = vadd.f32 0.0, %v1644
  %v1646 = vpop.f32.mrf.mxu0
  %v1647 = vadd.f32 0.0, %v1646
  %1648 = vmatmul.bf16.gmra.mxu0 %v1127
  %v1649 = vpop.f32.mrf.mxu0
  %v1650 = vadd.f32 0.0, %v1649
  %v1651 = vpop.f32.mrf.mxu0
  %v1652 = vadd.f32 0.0, %v1651
  %1653 = vmatmul.bf16.gmra.mxu0 %v1130
  %v1654 = vpop.f32.mrf.mxu0
  %v1655 = vadd.f32 0.0, %v1654
  %v1656 = vpop.f32.mrf.mxu0
  %v1657 = vadd.f32 0.0, %v1656
  %1658 = vmatmul.bf16.gmra.mxu0 %v1133
  %v1659 = vpop.f32.mrf.mxu0
  %v1660 = vadd.f32 0.0, %v1659
  %v1661 = vpop.f32.mrf.mxu0
  %v1662 = vadd.f32 0.0, %v1661
  %1663 = vmatmul.bf16.gmra.mxu0 %v1136
  %v1664 = vpop.f32.mrf.mxu0
  %v1665 = vadd.f32 0.0, %v1664
  %v1666 = vpop.f32.mrf.mxu0
  %v1667 = vadd.f32 0.0, %v1666
  %1668 = vmatmul.bf16.gmra.mxu0 %v1139
  %v1669 = vpop.f32.mrf.mxu0
  %v1670 = vadd.f32 0.0, %v1669
  %v1671 = vpop.f32.mrf.mxu0
  %v1672 = vadd.f32 0.0, %v1671
  %1673 = vmatmul.bf16.gmra.mxu0 %v1142
  %v1674 = vpop.f32.mrf.mxu0
  %v1675 = vadd.f32 0.0, %v1674
  %v1676 = vpop.f32.mrf.mxu0
  %v1677 = vadd.f32 0.0, %v1676
  %1678 = vmatmul.bf16.gmra.mxu0 %v1145
  %v1679 = vpop.f32.mrf.mxu0
  %v1680 = vadd.f32 0.0, %v1679
  %v1681 = vpop.f32.mrf.mxu0
  %v1682 = vadd.f32 0.0, %v1681
  %1683 = vmatmul.bf16.gmra.mxu0 %v1148
  %v1684 = vpop.f32.mrf.mxu0
  %v1685 = vadd.f32 0.0, %v1684
  %v1686 = vpop.f32.mrf.mxu0
  %v1687 = vadd.f32 0.0, %v1686
  %1688 = vmatmul.bf16.gmra.mxu0 %v1151
  %v1689 = vpop.f32.mrf.mxu0
  %v1690 = vadd.f32 0.0, %v1689
  %v1691 = vpop.f32.mrf.mxu0
  %v1692 = vadd.f32 0.0, %v1691
  %1693 = vmatmul.bf16.gmra.mxu0 %v1154
  %v1694 = vpop.f32.mrf.mxu0
  %v1695 = vadd.f32 0.0, %v1694
  %v1696 = vpop.f32.mrf.mxu0
  %v1697 = vadd.f32 0.0, %v1696
  %1698 = vmatmul.bf16.gmra.mxu0 %v1157
  %v1699 = vpop.f32.mrf.mxu0
  %v1700 = vadd.f32 0.0, %v1699
  %v1701 = vpop.f32.mrf.mxu0
  %v1702 = vadd.f32 0.0, %v1701
  %1703 = vmatmul.bf16.gmra.mxu0 %v1160
  %v1704 = vpop.f32.mrf.mxu0
  %v1705 = vadd.f32 0.0, %v1704
  %v1706 = vpop.f32.mrf.mxu0
  %v1707 = vadd.f32 0.0, %v1706
  %1708 = vmatmul.bf16.gmra.mxu0 %v1163
  %v1709 = vpop.f32.mrf.mxu0
  %v1710 = vadd.f32 0.0, %v1709
  %v1711 = vpop.f32.mrf.mxu0
  %v1712 = vadd.f32 0.0, %v1711
  %1713 = vmatmul.bf16.gmra.mxu0 %v1166
  %v1714 = vpop.f32.mrf.mxu0
  %v1715 = vadd.f32 0.0, %v1714
  %v1716 = vpop.f32.mrf.mxu0
  %v1717 = vadd.f32 0.0, %v1716
  %1718 = vmatmul.bf16.gmra.mxu0 %v1169
  %v1719 = vpop.f32.mrf.mxu0
  %v1720 = vadd.f32 0.0, %v1719
  %v1721 = vpop.f32.mrf.mxu0
  %v1722 = vadd.f32 0.0, %v1721
  %1723 = vmatmul.bf16.gmra.mxu0 %v1172
  %v1724 = vpop.f32.mrf.mxu0
  %v1725 = vadd.f32 0.0, %v1724
  %v1726 = vpop.f32.mrf.mxu0
  %v1727 = vadd.f32 0.0, %v1726
  %1728 = vmatmul.bf16.gmra.mxu0 %v1175
  %v1729 = vpop.f32.mrf.mxu0
  %v1730 = vadd.f32 0.0, %v1729
  %v1731 = vpop.f32.mrf.mxu0
  %v1732 = vadd.f32 0.0, %v1731
  %1733 = vmatmul.bf16.gmra.mxu0 %v1178
  %v1734 = vpop.f32.mrf.mxu0
  %v1735 = vadd.f32 0.0, %v1734
  %v1736 = vpop.f32.mrf.mxu0
  %v1737 = vadd.f32 0.0, %v1736
  %1738 = vmatmul.bf16.gmra.mxu0 %v1181
  %v1739 = vpop.f32.mrf.mxu0
  %v1740 = vadd.f32 0.0, %v1739
  %v1741 = vpop.f32.mrf.mxu0
  %v1742 = vadd.f32 0.0, %v1741
  %1743 = vmatmul.bf16.gmra.mxu0 %v1184
  %v1744 = vpop.f32.mrf.mxu0
  %v1745 = vadd.f32 0.0, %v1744
  %v1746 = vpop.f32.mrf.mxu0
  %v1747 = vadd.f32 0.0, %v1746
  %1748 = vmatmul.bf16.gmra.mxu0 %v1187
  %v1749 = vpop.f32.mrf.mxu0
  %v1750 = vadd.f32 0.0, %v1749
  %v1751 = vpop.f32.mrf.mxu0
  %v1752 = vadd.f32 0.0, %v1751
  %1753 = vmatmul.bf16.gmra.mxu0 %v1190
  %v1754 = vpop.f32.mrf.mxu0
  %v1755 = vadd.f32 0.0, %v1754
  %v1756 = vpop.f32.mrf.mxu0
  %v1757 = vadd.f32 0.0, %v1756
  %1758 = vmatmul.bf16.gmra.mxu0 %v1193
  %v1759 = vpop.f32.mrf.mxu0
  %v1760 = vadd.f32 0.0, %v1759
  %v1761 = vpop.f32.mrf.mxu0
  %v1762 = vadd.f32 0.0, %v1761
  %1763 = vmatmul.bf16.gmra.mxu0 %v1196
  %v1764 = vpop.f32.mrf.mxu0
  %v1765 = vadd.f32 0.0, %v1764
  %v1766 = vpop.f32.mrf.mxu0
  %v1767 = vadd.f32 0.0, %v1766
  %1768 = vmatmul.bf16.gmra.mxu0 %v1199
  %v1769 = vpop.f32.mrf.mxu0
  %v1770 = vadd.f32 0.0, %v1769
  %v1771 = vpop.f32.mrf.mxu0
  %v1772 = vadd.f32 0.0, %v1771
  %1773 = vmatmul.bf16.gmra.mxu0 %v1202
  %v1774 = vpop.f32.mrf.mxu0
  %v1775 = vadd.f32 0.0, %v1774
  %v1776 = vpop.f32.mrf.mxu0
  %v1777 = vadd.f32 0.0, %v1776
  %1778 = vmatmul.bf16.gmra.mxu0 %v1205
  %v1779 = vpop.f32.mrf.mxu0
  %v1780 = vadd.f32 0.0, %v1779
  %v1781 = vpop.f32.mrf.mxu0
  %v1782 = vadd.f32 0.0, %v1781
  %1783 = vmatmul.bf16.gmra.mxu0 %v1208
  %v1784 = vpop.f32.mrf.mxu0
  %v1785 = vadd.f32 0.0, %v1784
  %v1786 = vpop.f32.mrf.mxu0
  %v1787 = vadd.f32 0.0, %v1786
  %1788 = vmatmul.bf16.gmra.mxu0 %v1211
  %v1789 = vpop.f32.mrf.mxu0
  %v1790 = vadd.f32 0.0, %v1789
  %v1791 = vpop.f32.mrf.mxu0
  %v1792 = vadd.f32 0.0, %v1791
  %1793 = vmatmul.bf16.gmra.mxu0 %v1214
  %v1794 = vpop.f32.mrf.mxu0
  %v1795 = vadd.f32 0.0, %v1794
  %v1796 = vpop.f32.mrf.mxu0
  %v1797 = vadd.f32 0.0, %v1796
  %1798 = vmatmul.bf16.gmra.mxu0 %v1217
  %v1799 = vpop.f32.mrf.mxu0
  %v1800 = vadd.f32 0.0, %v1799
  %v1801 = vpop.f32.mrf.mxu0
  %v1802 = vadd.f32 0.0, %v1801
  %1803 = vmatmul.bf16.gmra.mxu0 %v1220
  %v1804 = vpop.f32.mrf.mxu0
  %v1805 = vadd.f32 0.0, %v1804
  %v1806 = vpop.f32.mrf.mxu0
  %v1807 = vadd.f32 0.0, %v1806
  %1808 = vmatmul.bf16.gmra.mxu0 %v1223
  %v1809 = vpop.f32.mrf.mxu0
  %v1810 = vadd.f32 0.0, %v1809
  %v1811 = vpop.f32.mrf.mxu0
  %v1812 = vadd.f32 0.0, %v1811
  %1813 = vmatmul.bf16.gmra.mxu0 %v1226
  %v1814 = vpop.f32.mrf.mxu0
  %v1815 = vadd.f32 0.0, %v1814
  %v1816 = vpop.f32.mrf.mxu0
  %v1817 = vadd.f32 0.0, %v1816
  %1818 = vmatmul.bf16.gmra.mxu0 %v1229
  %v1819 = vpop.f32.mrf.mxu0
  %v1820 = vadd.f32 0.0, %v1819
  %v1821 = vpop.f32.mrf.mxu0
  %v1822 = vadd.f32 0.0, %v1821
  %1823 = vmatmul.bf16.gmra.mxu0 %v1232
  %v1824 = vpop.f32.mrf.mxu0
  %v1825 = vadd.f32 0.0, %v1824
  %v1826 = vpop.f32.mrf.mxu0
  %v1827 = vadd.f32 0.0, %v1826
  %1828 = vmatmul.bf16.gmra.mxu0 %v1235
  %v1829 = vpop.f32.mrf.mxu0
  %v1830 = vadd.f32 0.0, %v1829
  %v1831 = vpop.f32.mrf.mxu0
  %v1832 = vadd.f32 0.0, %v1831
  %1833 = vmatmul.bf16.gmra.mxu0 %v1238
  %v1834 = vpop.f32.mrf.mxu0
  %v1835 = vadd.f32 0.0, %v1834
  %v1836 = vpop.f32.mrf.mxu0
  %v1837 = vadd.f32 0.0, %v1836
  %1838 = vmatmul.bf16.gmra.mxu0 %v1241
  %v1839 = vpop.f32.mrf.mxu0
  %v1840 = vadd.f32 0.0, %v1839
  %v1841 = vpop.f32.mrf.mxu0
  %v1842 = vadd.f32 0.0, %v1841
  %1843 = vmatmul.bf16.gmra.mxu0 %v1244
  %v1844 = vpop.f32.mrf.mxu0
  %v1845 = vadd.f32 0.0, %v1844
  %v1846 = vpop.f32.mrf.mxu0
  %v1847 = vadd.f32 0.0, %v1846
  %1848 = vmatmul.bf16.gmra.mxu0 %v1247
  %v1849 = vpop.f32.mrf.mxu0
  %v1850 = vadd.f32 0.0, %v1849
  %v1851 = vpop.f32.mrf.mxu0
  %v1852 = vadd.f32 0.0, %v1851
  %1853 = vmatmul.bf16.gmra.mxu0 %v1250
  %v1854 = vpop.f32.mrf.mxu0
  %v1855 = vadd.f32 0.0, %v1854
  %v1856 = vpop.f32.mrf.mxu0
  %v1857 = vadd.f32 0.0, %v1856
  %1858 = vmatmul.bf16.gmra.mxu0 %v1253
  %v1859 = vpop.f32.mrf.mxu0
  %v1860 = vadd.f32 0.0, %v1859
  %v1861 = vpop.f32.mrf.mxu0
  %v1862 = vadd.f32 0.0, %v1861
  %1863 = vmatmul.bf16.gmra.mxu0 %v1256
  %v1864 = vpop.f32.mrf.mxu0
  %v1865 = vadd.f32 0.0, %v1864
  %v1866 = vpop.f32.mrf.mxu0
  %v1867 = vadd.f32 0.0, %v1866
  %1868 = vmatmul.bf16.gmra.mxu0 %v1259
  %v1869 = vpop.f32.mrf.mxu0
  %v1870 = vadd.f32 0.0, %v1869
  %v1871 = vpop.f32.mrf.mxu0
  %v1872 = vadd.f32 0.0, %v1871
  %1873 = vmatmul.bf16.gmra.mxu0 %v1262
  %v1874 = vpop.f32.mrf.mxu0
  %v1875 = vadd.f32 0.0, %v1874
  %v1876 = vpop.f32.mrf.mxu0
  %v1877 = vadd.f32 0.0, %v1876
  %1878 = vmatmul.bf16.gmra.mxu0 %v1265
  %v1879 = vpop.f32.mrf.mxu0
  %v1880 = vadd.f32 0.0, %v1879
  %v1881 = vpop.f32.mrf.mxu0
  %v1882 = vadd.f32 0.0, %v1881
  %1883 = vmatmul.bf16.gmra.mxu0 %v1268
  %v1884 = vpop.f32.mrf.mxu0
  %v1885 = vadd.f32 0.0, %v1884
  %v1886 = vpop.f32.mrf.mxu0
  %v1887 = vadd.f32 0.0, %v1886
  %1888 = vmatmul.bf16.gmra.mxu0 %v1271
  %v1889 = vpop.f32.mrf.mxu0
  %v1890 = vadd.f32 0.0, %v1889
  %v1891 = vpop.f32.mrf.mxu0
  %v1892 = vadd.f32 0.0, %v1891
  %1893 = vmatmul.bf16.gmra.mxu0 %v1274
  %v1894 = vpop.f32.mrf.mxu0
  %v1895 = vadd.f32 0.0, %v1894
  %v1896 = vpop.f32.mrf.mxu0
  %v1897 = vadd.f32 0.0, %v1896
  %1898 = vmatmul.bf16.gmra.mxu0 %v1277
  %v1899 = vpop.f32.mrf.mxu0
  %v1900 = vadd.f32 0.0, %v1899
  %v1901 = vpop.f32.mrf.mxu0
  %v1902 = vadd.f32 0.0, %v1901
  %1903 = vmatmul.bf16.gmra.mxu0 %v1280
  %v1904 = vpop.f32.mrf.mxu0
  %v1905 = vadd.f32 0.0, %v1904
  %v1906 = vpop.f32.mrf.mxu0
  %v1907 = vadd.f32 0.0, %v1906
  %1908 = vmatmul.bf16.gmra.mxu0 %v1283
  %v1909 = vpop.f32.mrf.mxu0
  %v1910 = vadd.f32 0.0, %v1909
  %v1911 = vpop.f32.mrf.mxu0
  %v1912 = vadd.f32 0.0, %v1911
  %1913 = vmatmul.bf16.gmra.mxu0 %v1286
  %v1914 = vpop.f32.mrf.mxu0
  %v1915 = vadd.f32 0.0, %v1914
  %v1916 = vpop.f32.mrf.mxu0
  %v1917 = vadd.f32 0.0, %v1916
  %1918 = vmatmul.bf16.gmra.mxu0 %v1289
  %v1919 = vpop.f32.mrf.mxu0
  %v1920 = vadd.f32 0.0, %v1919
  %v1921 = vpop.f32.mrf.mxu0
  %v1922 = vadd.f32 0.0, %v1921
  %1923 = vmatmul.bf16.gmra.mxu0 %v1292
  %v1924 = vpop.f32.mrf.mxu0
  %v1925 = vadd.f32 0.0, %v1924
  %v1926 = vpop.f32.mrf.mxu0
  %v1927 = vadd.f32 0.0, %v1926
  %1928 = vmatmul.bf16.gmra.mxu0 %v1295
  %v1929 = vpop.f32.mrf.mxu0
  %v1930 = vadd.f32 0.0, %v1929
  %v1931 = vpop.f32.mrf.mxu0
  %v1932 = vadd.f32 0.0, %v1931
  %1933 = vmatmul.bf16.gmra.mxu0 %v1298
  %v1934 = vpop.f32.mrf.mxu0
  %v1935 = vadd.f32 0.0, %v1934
  %v1936 = vpop.f32.mrf.mxu0
  %v1937 = vadd.f32 0.0, %v1936
  %1938 = vmatmul.bf16.gmra.mxu0 %v1301
  %v1939 = vpop.f32.mrf.mxu0
  %v1940 = vadd.f32 0.0, %v1939
  %v1941 = vpop.f32.mrf.mxu0
  %v1942 = vadd.f32 0.0, %v1941
  %1943 = vmatmul.bf16.gmra.mxu0 %v1304
  %v1944 = vpop.f32.mrf.mxu0
  %v1945 = vadd.f32 0.0, %v1944
  %v1946 = vpop.f32.mrf.mxu0
  %v1947 = vadd.f32 0.0, %v1946
  %1948 = vmatmul.bf16.gmra.mxu0 %v1307
  %v1949 = vpop.f32.mrf.mxu0
  %v1950 = vadd.f32 0.0, %v1949
  %v1951 = vpop.f32.mrf.mxu0
  %v1952 = vadd.f32 0.0, %v1951
  %1953 = vmatmul.bf16.gmra.mxu0 %v1310
  %v1954 = vpop.f32.mrf.mxu0
  %v1955 = vadd.f32 0.0, %v1954
  %v1956 = vpop.f32.mrf.mxu0
  %v1957 = vadd.f32 0.0, %v1956
  %1958 = vmatmul.bf16.gmra.mxu0 %v1313
  %v1959 = vpop.f32.mrf.mxu0
  %v1960 = vadd.f32 0.0, %v1959
  %v1961 = vpop.f32.mrf.mxu0
  %v1962 = vadd.f32 0.0, %v1961
  %1963 = vdwg.mxu0
  %v1964 = vadd.f32 %v1325, %v1327
  %v1965 = vadd.f32 %v1964, %v1330
  %v1966 = vadd.f32 %v1965, %v1332
  %v1967 = vadd.f32 %v1966, %v1335
  %v1968 = vadd.f32 %v1967, %v1337
  %v1969 = vadd.f32 %v1968, %v1340
  %v1970 = vadd.f32 %v1969, %v1342
  %v1971 = vadd.f32 %v1970, %v1345
  %v1972 = vadd.f32 %v1971, %v1347
  %v1973 = vadd.f32 %v1972, %v1350
  %v1974 = vadd.f32 %v1973, %v1352
  %v1975 = vadd.f32 %v1974, %v1355
  %v1976 = vadd.f32 %v1975, %v1357
  %v1977 = vadd.f32 %v1976, %v1360
  %v1978 = vadd.f32 %v1977, %v1362
  %v1979 = vadd.f32 %v1978, %v1365
  %v1980 = vadd.f32 %v1979, %v1367
  %v1981 = vadd.f32 %v1980, %v1370
  %v1982 = vadd.f32 %v1981, %v1372
  %v1983 = vadd.f32 %v1982, %v1375
  %v1984 = vadd.f32 %v1983, %v1377
  %v1985 = vadd.f32 %v1984, %v1380
  %v1986 = vadd.f32 %v1985, %v1382
  %v1987 = vadd.f32 %v1986, %v1385
  %v1988 = vadd.f32 %v1987, %v1387
  %v1989 = vadd.f32 %v1988, %v1390
  %v1990 = vadd.f32 %v1989, %v1392
  %v1991 = vadd.f32 %v1990, %v1395
  %v1992 = vadd.f32 %v1991, %v1397
  %v1993 = vadd.f32 %v1992, %v1400
  %v1994 = vadd.f32 %v1993, %v1402
  %v1995 = vadd.f32 %v1994, %v1405
  %v1996 = vadd.f32 %v1995, %v1407
  %v1997 = vadd.f32 %v1996, %v1410
  %v1998 = vadd.f32 %v1997, %v1412
  %v1999 = vadd.f32 %v1998, %v1415
  %v2000 = vadd.f32 %v1999, %v1417
  %v2001 = vadd.f32 %v2000, %v1420
  %v2002 = vadd.f32 %v2001, %v1422
  %v2003 = vadd.f32 %v2002, %v1425
  %v2004 = vadd.f32 %v2003, %v1427
  %v2005 = vadd.f32 %v2004, %v1430
  %v2006 = vadd.f32 %v2005, %v1432
  %v2007 = vadd.f32 %v2006, %v1435
  %v2008 = vadd.f32 %v2007, %v1437
  %v2009 = vadd.f32 %v2008, %v1440
  %v2010 = vadd.f32 %v2009, %v1442
  %v2011 = vadd.f32 %v2010, %v1445
  %v2012 = vadd.f32 %v2011, %v1447
  %v2013 = vadd.f32 %v2012, %v1450
  %v2014 = vadd.f32 %v2013, %v1452
  %v2015 = vadd.f32 %v2014, %v1455
  %v2016 = vadd.f32 %v2015, %v1457
  %v2017 = vadd.f32 %v2016, %v1460
  %v2018 = vadd.f32 %v2017, %v1462
  %v2019 = vadd.f32 %v2018, %v1465
  %v2020 = vadd.f32 %v2019, %v1467
  %v2021 = vadd.f32 %v2020, %v1470
  %v2022 = vadd.f32 %v2021, %v1472
  %v2023 = vadd.f32 %v2022, %v1475
  %v2024 = vadd.f32 %v2023, %v1477
  %v2025 = vadd.f32 %v2024, %v1480
  %v2026 = vadd.f32 %v2025, %v1482
  %v2027 = vadd.f32 %v2026, %v1485
  %v2028 = vadd.f32 %v2027, %v1487
  %v2029 = vadd.f32 %v2028, %v1490
  %v2030 = vadd.f32 %v2029, %v1492
  %v2031 = vadd.f32 %v2030, %v1495
  %v2032 = vadd.f32 %v2031, %v1497
  %v2033 = vadd.f32 %v2032, %v1500
  %v2034 = vadd.f32 %v2033, %v1502
  %v2035 = vadd.f32 %v2034, %v1505
  %v2036 = vadd.f32 %v2035, %v1507
  %v2037 = vadd.f32 %v2036, %v1510
  %v2038 = vadd.f32 %v2037, %v1512
  %v2039 = vadd.f32 %v2038, %v1515
  %v2040 = vadd.f32 %v2039, %v1517
  %v2041 = vadd.f32 %v2040, %v1520
  %v2042 = vadd.f32 %v2041, %v1522
  %v2043 = vadd.f32 %v2042, %v1525
  %v2044 = vadd.f32 %v2043, %v1527
  %v2045 = vadd.f32 %v2044, %v1530
  %v2046 = vadd.f32 %v2045, %v1532
  %v2047 = vadd.f32 %v2046, %v1535
  %v2048 = vadd.f32 %v2047, %v1537
  %v2049 = vadd.f32 %v2048, %v1540
  %v2050 = vadd.f32 %v2049, %v1542
  %v2051 = vadd.f32 %v2050, %v1545
  %v2052 = vadd.f32 %v2051, %v1547
  %v2053 = vadd.f32 %v2052, %v1550
  %v2054 = vadd.f32 %v2053, %v1552
  %v2055 = vadd.f32 %v2054, %v1555
  %v2056 = vadd.f32 %v2055, %v1557
  %v2057 = vadd.f32 %v2056, %v1560
  %v2058 = vadd.f32 %v2057, %v1562
  %v2059 = vadd.f32 %v2058, %v1565
  %v2060 = vadd.f32 %v2059, %v1567
  %v2061 = vadd.f32 %v2060, %v1570
  %v2062 = vadd.f32 %v2061, %v1572
  %v2063 = vadd.f32 %v2062, %v1575
  %v2064 = vadd.f32 %v2063, %v1577
  %v2065 = vadd.f32 %v2064, %v1580
  %v2066 = vadd.f32 %v2065, %v1582
  %v2067 = vadd.f32 %v2066, %v1585
  %v2068 = vadd.f32 %v2067, %v1587
  %v2069 = vadd.f32 %v2068, %v1590
  %v2070 = vadd.f32 %v2069, %v1592
  %v2071 = vadd.f32 %v2070, %v1595
  %v2072 = vadd.f32 %v2071, %v1597
  %v2073 = vadd.f32 %v2072, %v1600
  %v2074 = vadd.f32 %v2073, %v1602
  %v2075 = vadd.f32 %v2074, %v1605
  %v2076 = vadd.f32 %v2075, %v1607
  %v2077 = vadd.f32 %v2076, %v1610
  %v2078 = vadd.f32 %v2077, %v1612
  %v2079 = vadd.f32 %v2078, %v1615
  %v2080 = vadd.f32 %v2079, %v1617
  %v2081 = vadd.f32 %v2080, %v1620
  %v2082 = vadd.f32 %v2081, %v1622
  %v2083 = vadd.f32 %v2082, %v1625
  %v2084 = vadd.f32 %v2083, %v1627
  %v2085 = vadd.f32 %v2084, %v1630
  %v2086 = vadd.f32 %v2085, %v1632
  %v2087 = vadd.f32 %v2086, %v1635
  %v2088 = vadd.f32 %v2087, %v1637
  %v2089 = vadd.f32 %v2088, %v1640
  %v2090 = vadd.f32 %v2089, %v1642
  %v2091 = vadd.f32 %v2090, %v1645
  %v2092 = vadd.f32 %v2091, %v1647
  %v2093 = vadd.f32 %v2092, %v1650
  %v2094 = vadd.f32 %v2093, %v1652
  %v2095 = vadd.f32 %v2094, %v1655
  %v2096 = vadd.f32 %v2095, %v1657
  %v2097 = vadd.f32 %v2096, %v1660
  %v2098 = vadd.f32 %v2097, %v1662
  %v2099 = vadd.f32 %v2098, %v1665
  %v2100 = vadd.f32 %v2099, %v1667
  %v2101 = vadd.f32 %v2100, %v1670
  %v2102 = vadd.f32 %v2101, %v1672
  %v2103 = vadd.f32 %v2102, %v1675
  %v2104 = vadd.f32 %v2103, %v1677
  %v2105 = vadd.f32 %v2104, %v1680
  %v2106 = vadd.f32 %v2105, %v1682
  %v2107 = vadd.f32 %v2106, %v1685
  %v2108 = vadd.f32 %v2107, %v1687
  %v2109 = vadd.f32 %v2108, %v1690
  %v2110 = vadd.f32 %v2109, %v1692
  %v2111 = vadd.f32 %v2110, %v1695
  %v2112 = vadd.f32 %v2111, %v1697
  %v2113 = vadd.f32 %v2112, %v1700
  %v2114 = vadd.f32 %v2113, %v1702
  %v2115 = vadd.f32 %v2114, %v1705
  %v2116 = vadd.f32 %v2115, %v1707
  %v2117 = vadd.f32 %v2116, %v1710
  %v2118 = vadd.f32 %v2117, %v1712
  %v2119 = vadd.f32 %v2118, %v1715
  %v2120 = vadd.f32 %v2119, %v1717
  %v2121 = vadd.f32 %v2120, %v1720
  %v2122 = vadd.f32 %v2121, %v1722
  %v2123 = vadd.f32 %v2122, %v1725
  %v2124 = vadd.f32 %v2123, %v1727
  %v2125 = vadd.f32 %v2124, %v1730
  %v2126 = vadd.f32 %v2125, %v1732
  %v2127 = vadd.f32 %v2126, %v1735
  %v2128 = vadd.f32 %v2127, %v1737
  %v2129 = vadd.f32 %v2128, %v1740
  %v2130 = vadd.f32 %v2129, %v1742
  %v2131 = vadd.f32 %v2130, %v1745
  %v2132 = vadd.f32 %v2131, %v1747
  %v2133 = vadd.f32 %v2132, %v1750
  %v2134 = vadd.f32 %v2133, %v1752
  %v2135 = vadd.f32 %v2134, %v1755
  %v2136 = vadd.f32 %v2135, %v1757
  %v2137 = vadd.f32 %v2136, %v1760
  %v2138 = vadd.f32 %v2137, %v1762
  %v2139 = vadd.f32 %v2138, %v1765
  %v2140 = vadd.f32 %v2139, %v1767
  %v2141 = vadd.f32 %v2140, %v1770
  %v2142 = vadd.f32 %v2141, %v1772
  %v2143 = vadd.f32 %v2142, %v1775
  %v2144 = vadd.f32 %v2143, %v1777
  %v2145 = vadd.f32 %v2144, %v1780
  %v2146 = vadd.f32 %v2145, %v1782
  %v2147 = vadd.f32 %v2146, %v1785
  %v2148 = vadd.f32 %v2147, %v1787
  %v2149 = vadd.f32 %v2148, %v1790
  %v2150 = vadd.f32 %v2149, %v1792
  %v2151 = vadd.f32 %v2150, %v1795
  %v2152 = vadd.f32 %v2151, %v1797
  %v2153 = vadd.f32 %v2152, %v1800
  %v2154 = vadd.f32 %v2153, %v1802
  %v2155 = vadd.f32 %v2154, %v1805
  %v2156 = vadd.f32 %v2155, %v1807
  %v2157 = vadd.f32 %v2156, %v1810
  %v2158 = vadd.f32 %v2157, %v1812
  %v2159 = vadd.f32 %v2158, %v1815
  %v2160 = vadd.f32 %v2159, %v1817
  %v2161 = vadd.f32 %v2160, %v1820
  %v2162 = vadd.f32 %v2161, %v1822
  %v2163 = vadd.f32 %v2162, %v1825
  %v2164 = vadd.f32 %v2163, %v1827
  %v2165 = vadd.f32 %v2164, %v1830
  %v2166 = vadd.f32 %v2165, %v1832
  %v2167 = vadd.f32 %v2166, %v1835
  %v2168 = vadd.f32 %v2167, %v1837
  %v2169 = vadd.f32 %v2168, %v1840
  %v2170 = vadd.f32 %v2169, %v1842
  %v2171 = vadd.f32 %v2170, %v1845
  %v2172 = vadd.f32 %v2171, %v1847
  %v2173 = vadd.f32 %v2172, %v1850
  %v2174 = vadd.f32 %v2173, %v1852
  %v2175 = vadd.f32 %v2174, %v1855
  %v2176 = vadd.f32 %v2175, %v1857
  %v2177 = vadd.f32 %v2176, %v1860
  %v2178 = vadd.f32 %v2177, %v1862
  %v2179 = vadd.f32 %v2178, %v1865
  %v2180 = vadd.f32 %v2179, %v1867
  %v2181 = vadd.f32 %v2180, %v1870
  %v2182 = vadd.f32 %v2181, %v1872
  %v2183 = vadd.f32 %v2182, %v1875
  %v2184 = vadd.f32 %v2183, %v1877
  %v2185 = vadd.f32 %v2184, %v1880
  %v2186 = vadd.f32 %v2185, %v1882
  %v2187 = vadd.f32 %v2186, %v1885
  %v2188 = vadd.f32 %v2187, %v1887
  %v2189 = vadd.f32 %v2188, %v1890
  %v2190 = vadd.f32 %v2189, %v1892
  %v2191 = vadd.f32 %v2190, %v1895
  %v2192 = vadd.f32 %v2191, %v1897
  %v2193 = vadd.f32 %v2192, %v1900
  %v2194 = vadd.f32 %v2193, %v1902
  %v2195 = vadd.f32 %v2194, %v1905
  %v2196 = vadd.f32 %v2195, %v1907
  %v2197 = vadd.f32 %v2196, %v1910
  %v2198 = vadd.f32 %v2197, %v1912
  %v2199 = vadd.f32 %v2198, %v1915
  %v2200 = vadd.f32 %v2199, %v1917
  %v2201 = vadd.f32 %v2200, %v1920
  %v2202 = vadd.f32 %v2201, %v1922
  %v2203 = vadd.f32 %v2202, %v1925
  %v2204 = vadd.f32 %v2203, %v1927
  %v2205 = vadd.f32 %v2204, %v1930
  %v2206 = vadd.f32 %v2205, %v1932
  %v2207 = vadd.f32 %v2206, %v1935
  %v2208 = vadd.f32 %v2207, %v1937
  %v2209 = vadd.f32 %v2208, %v1940
  %v2210 = vadd.f32 %v2209, %v1942
  %v2211 = vadd.f32 %v2210, %v1945
  %v2212 = vadd.f32 %v2211, %v1947
  %v2213 = vadd.f32 %v2212, %v1950
  %v2214 = vadd.f32 %v2213, %v1952
  %v2215 = vadd.f32 %v2214, %v1955
  %v2216 = vadd.f32 %v2215, %v1957
  %v2217 = vadd.f32 %v2216, %v1960
  %v2218 = vadd.f32 %v2217, %v1962
  %v2219 = vrot.slane %v2218, 4
  %v2220 = vadd.f32 %v2218, %v2219
  %v2221 = vrot.slane %v2220, 2
  %v2222 = vadd.f32 %v2220, %v2221
  %v2223 = vrot.slane %v2222, 1
  %v2224 = vadd.f32 %v2222, %v2223
  %v2225 = vmul.f32 %v1325, %v1325
  %v2226 = vmul.f32 %v1327, %v1327
  %v2227 = vmul.f32 %v1330, %v1330
  %v2228 = vmul.f32 %v1332, %v1332
  %v2229 = vmul.f32 %v1335, %v1335
  %v2230 = vmul.f32 %v1337, %v1337
  %v2231 = vmul.f32 %v1340, %v1340
  %v2232 = vmul.f32 %v1342, %v1342
  %v2233 = vmul.f32 %v1345, %v1345
  %v2234 = vmul.f32 %v1347, %v1347
  %v2235 = vmul.f32 %v1350, %v1350
  %v2236 = vmul.f32 %v1352, %v1352
  %v2237 = vmul.f32 %v1355, %v1355
  %v2238 = vmul.f32 %v1357, %v1357
  %v2239 = vmul.f32 %v1360, %v1360
  %v2240 = vmul.f32 %v1362, %v1362
  %v2241 = vmul.f32 %v1365, %v1365
  %v2242 = vmul.f32 %v1367, %v1367
  %v2243 = vmul.f32 %v1370, %v1370
  %v2244 = vmul.f32 %v1372, %v1372
  %v2245 = vmul.f32 %v1375, %v1375
  %v2246 = vmul.f32 %v1377, %v1377
  %v2247 = vmul.f32 %v1380, %v1380
  %v2248 = vmul.f32 %v1382, %v1382
  %v2249 = vmul.f32 %v1385, %v1385
  %v2250 = vmul.f32 %v1387, %v1387
  %v2251 = vmul.f32 %v1390, %v1390
  %v2252 = vmul.f32 %v1392, %v1392
  %v2253 = vmul.f32 %v1395, %v1395
  %v2254 = vmul.f32 %v1397, %v1397
  %v2255 = vmul.f32 %v1400, %v1400
  %v2256 = vmul.f32 %v1402, %v1402
  %v2257 = vmul.f32 %v1405, %v1405
  %v2258 = vmul.f32 %v1407, %v1407
  %v2259 = vmul.f32 %v1410, %v1410
  %v2260 = vmul.f32 %v1412, %v1412
  %v2261 = vmul.f32 %v1415, %v1415
  %v2262 = vmul.f32 %v1417, %v1417
  %v2263 = vmul.f32 %v1420, %v1420
  %v2264 = vmul.f32 %v1422, %v1422
  %v2265 = vmul.f32 %v1425, %v1425
  %v2266 = vmul.f32 %v1427, %v1427
  %v2267 = vmul.f32 %v1430, %v1430
  %v2268 = vmul.f32 %v1432, %v1432
  %v2269 = vmul.f32 %v1435, %v1435
  %v2270 = vmul.f32 %v1437, %v1437
  %v2271 = vmul.f32 %v1440, %v1440
  %v2272 = vmul.f32 %v1442, %v1442
  %v2273 = vmul.f32 %v1445, %v1445
  %v2274 = vmul.f32 %v1447, %v1447
  %v2275 = vmul.f32 %v1450, %v1450
  %v2276 = vmul.f32 %v1452, %v1452
  %v2277 = vmul.f32 %v1455, %v1455
  %v2278 = vmul.f32 %v1457, %v1457
  %v2279 = vmul.f32 %v1460, %v1460
  %v2280 = vmul.f32 %v1462, %v1462
  %v2281 = vmul.f32 %v1465, %v1465
  %v2282 = vmul.f32 %v1467, %v1467
  %v2283 = vmul.f32 %v1470, %v1470
  %v2284 = vmul.f32 %v1472, %v1472
  %v2285 = vmul.f32 %v1475, %v1475
  %v2286 = vmul.f32 %v1477, %v1477
  %v2287 = vmul.f32 %v1480, %v1480
  %v2288 = vmul.f32 %v1482, %v1482
  %v2289 = vmul.f32 %v1485, %v1485
  %v2290 = vmul.f32 %v1487, %v1487
  %v2291 = vmul.f32 %v1490, %v1490
  %v2292 = vmul.f32 %v1492, %v1492
  %v2293 = vmul.f32 %v1495, %v1495
  %v2294 = vmul.f32 %v1497, %v1497
  %v2295 = vmul.f32 %v1500, %v1500
  %v2296 = vmul.f32 %v1502, %v1502
  %v2297 = vmul.f32 %v1505, %v1505
  %v2298 = vmul.f32 %v1507, %v1507
  %v2299 = vmul.f32 %v1510, %v1510
  %v2300 = vmul.f32 %v1512, %v1512
  %v2301 = vmul.f32 %v1515, %v1515
  %v2302 = vmul.f32 %v1517, %v1517
  %v2303 = vmul.f32 %v1520, %v1520
  %v2304 = vmul.f32 %v1522, %v1522
  %v2305 = vmul.f32 %v1525, %v1525
  %v2306 = vmul.f32 %v1527, %v1527
  %v2307 = vmul.f32 %v1530, %v1530
  %v2308 = vmul.f32 %v1532, %v1532
  %v2309 = vmul.f32 %v1535, %v1535
  %v2310 = vmul.f32 %v1537, %v1537
  %v2311 = vmul.f32 %v1540, %v1540
  %v2312 = vmul.f32 %v1542, %v1542
  %v2313 = vmul.f32 %v1545, %v1545
  %v2314 = vmul.f32 %v1547, %v1547
  %v2315 = vmul.f32 %v1550, %v1550
  %v2316 = vmul.f32 %v1552, %v1552
  %v2317 = vmul.f32 %v1555, %v1555
  %v2318 = vmul.f32 %v1557, %v1557
  %v2319 = vmul.f32 %v1560, %v1560
  %v2320 = vmul.f32 %v1562, %v1562
  %v2321 = vmul.f32 %v1565, %v1565
  %v2322 = vmul.f32 %v1567, %v1567
  %v2323 = vmul.f32 %v1570, %v1570
  %v2324 = vmul.f32 %v1572, %v1572
  %v2325 = vmul.f32 %v1575, %v1575
  %v2326 = vmul.f32 %v1577, %v1577
  %v2327 = vmul.f32 %v1580, %v1580
  %v2328 = vmul.f32 %v1582, %v1582
  %v2329 = vmul.f32 %v1585, %v1585
  %v2330 = vmul.f32 %v1587, %v1587
  %v2331 = vmul.f32 %v1590, %v1590
  %v2332 = vmul.f32 %v1592, %v1592
  %v2333 = vmul.f32 %v1595, %v1595
  %v2334 = vmul.f32 %v1597, %v1597
  %v2335 = vmul.f32 %v1600, %v1600
  %v2336 = vmul.f32 %v1602, %v1602
  %v2337 = vmul.f32 %v1605, %v1605
  %v2338 = vmul.f32 %v1607, %v1607
  %v2339 = vmul.f32 %v1610, %v1610
  %v2340 = vmul.f32 %v1612, %v1612
  %v2341 = vmul.f32 %v1615, %v1615
  %v2342 = vmul.f32 %v1617, %v1617
  %v2343 = vmul.f32 %v1620, %v1620
  %v2344 = vmul.f32 %v1622, %v1622
  %v2345 = vmul.f32 %v1625, %v1625
  %v2346 = vmul.f32 %v1627, %v1627
  %v2347 = vmul.f32 %v1630, %v1630
  %v2348 = vmul.f32 %v1632, %v1632
  %v2349 = vmul.f32 %v1635, %v1635
  %v2350 = vmul.f32 %v1637, %v1637
  %v2351 = vmul.f32 %v1640, %v1640
  %v2352 = vmul.f32 %v1642, %v1642
  %v2353 = vmul.f32 %v1645, %v1645
  %v2354 = vmul.f32 %v1647, %v1647
  %v2355 = vmul.f32 %v1650, %v1650
  %v2356 = vmul.f32 %v1652, %v1652
  %v2357 = vmul.f32 %v1655, %v1655
  %v2358 = vmul.f32 %v1657, %v1657
  %v2359 = vmul.f32 %v1660, %v1660
  %v2360 = vmul.f32 %v1662, %v1662
  %v2361 = vmul.f32 %v1665, %v1665
  %v2362 = vmul.f32 %v1667, %v1667
  %v2363 = vmul.f32 %v1670, %v1670
  %v2364 = vmul.f32 %v1672, %v1672
  %v2365 = vmul.f32 %v1675, %v1675
  %v2366 = vmul.f32 %v1677, %v1677
  %v2367 = vmul.f32 %v1680, %v1680
  %v2368 = vmul.f32 %v1682, %v1682
  %v2369 = vmul.f32 %v1685, %v1685
  %v2370 = vmul.f32 %v1687, %v1687
  %v2371 = vmul.f32 %v1690, %v1690
  %v2372 = vmul.f32 %v1692, %v1692
  %v2373 = vmul.f32 %v1695, %v1695
  %v2374 = vmul.f32 %v1697, %v1697
  %v2375 = vmul.f32 %v1700, %v1700
  %v2376 = vmul.f32 %v1702, %v1702
  %v2377 = vmul.f32 %v1705, %v1705
  %v2378 = vmul.f32 %v1707, %v1707
  %v2379 = vmul.f32 %v1710, %v1710
  %v2380 = vmul.f32 %v1712, %v1712
  %v2381 = vmul.f32 %v1715, %v1715
  %v2382 = vmul.f32 %v1717, %v1717
  %v2383 = vmul.f32 %v1720, %v1720
  %v2384 = vmul.f32 %v1722, %v1722
  %v2385 = vmul.f32 %v1725, %v1725
  %v2386 = vmul.f32 %v1727, %v1727
  %v2387 = vmul.f32 %v1730, %v1730
  %v2388 = vmul.f32 %v1732, %v1732
  %v2389 = vmul.f32 %v1735, %v1735
  %v2390 = vmul.f32 %v1737, %v1737
  %v2391 = vmul.f32 %v1740, %v1740
  %v2392 = vmul.f32 %v1742, %v1742
  %v2393 = vmul.f32 %v1745, %v1745
  %v2394 = vmul.f32 %v1747, %v1747
  %v2395 = vmul.f32 %v1750, %v1750
  %v2396 = vmul.f32 %v1752, %v1752
  %v2397 = vmul.f32 %v1755, %v1755
  %v2398 = vmul.f32 %v1757, %v1757
  %v2399 = vmul.f32 %v1760, %v1760
  %v2400 = vmul.f32 %v1762, %v1762
  %v2401 = vmul.f32 %v1765, %v1765
  %v2402 = vmul.f32 %v1767, %v1767
  %v2403 = vmul.f32 %v1770, %v1770
  %v2404 = vmul.f32 %v1772, %v1772
  %v2405 = vmul.f32 %v1775, %v1775
  %v2406 = vmul.f32 %v1777, %v1777
  %v2407 = vmul.f32 %v1780, %v1780
  %v2408 = vmul.f32 %v1782, %v1782
  %v2409 = vmul.f32 %v1785, %v1785
  %v2410 = vmul.f32 %v1787, %v1787
  %v2411 = vmul.f32 %v1790, %v1790
  %v2412 = vmul.f32 %v1792, %v1792
  %v2413 = vmul.f32 %v1795, %v1795
  %v2414 = vmul.f32 %v1797, %v1797
  %v2415 = vmul.f32 %v1800, %v1800
  %v2416 = vmul.f32 %v1802, %v1802
  %v2417 = vmul.f32 %v1805, %v1805
  %v2418 = vmul.f32 %v1807, %v1807
  %v2419 = vmul.f32 %v1810, %v1810
  %v2420 = vmul.f32 %v1812, %v1812
  %v2421 = vmul.f32 %v1815, %v1815
  %v2422 = vmul.f32 %v1817, %v1817
  %v2423 = vmul.f32 %v1820, %v1820
  %v2424 = vmul.f32 %v1822, %v1822
  %v2425 = vmul.f32 %v1825, %v1825
  %v2426 = vmul.f32 %v1827, %v1827
  %v2427 = vmul.f32 %v1830, %v1830
  %v2428 = vmul.f32 %v1832, %v1832
  %v2429 = vmul.f32 %v1835, %v1835
  %v2430 = vmul.f32 %v1837, %v1837
  %v2431 = vmul.f32 %v1840, %v1840
  %v2432 = vmul.f32 %v1842, %v1842
  %v2433 = vmul.f32 %v1845, %v1845
  %v2434 = vmul.f32 %v1847, %v1847
  %v2435 = vmul.f32 %v1850, %v1850
  %v2436 = vmul.f32 %v1852, %v1852
  %v2437 = vmul.f32 %v1855, %v1855
  %v2438 = vmul.f32 %v1857, %v1857
  %v2439 = vmul.f32 %v1860, %v1860
  %v2440 = vmul.f32 %v1862, %v1862
  %v2441 = vmul.f32 %v1865, %v1865
  %v2442 = vmul.f32 %v1867, %v1867
  %v2443 = vmul.f32 %v1870, %v1870
  %v2444 = vmul.f32 %v1872, %v1872
  %v2445 = vmul.f32 %v1875, %v1875
  %v2446 = vmul.f32 %v1877, %v1877
  %v2447 = vmul.f32 %v1880, %v1880
  %v2448 = vmul.f32 %v1882, %v1882
  %v2449 = vmul.f32 %v1885, %v1885
  %v2450 = vmul.f32 %v1887, %v1887
  %v2451 = vmul.f32 %v1890, %v1890
  %v2452 = vmul.f32 %v1892, %v1892
  %v2453 = vmul.f32 %v1895, %v1895
  %v2454 = vmul.f32 %v1897, %v1897
  %v2455 = vmul.f32 %v1900, %v1900
  %v2456 = vmul.f32 %v1902, %v1902
  %v2457 = vmul.f32 %v1905, %v1905
  %v2458 = vmul.f32 %v1907, %v1907
  %v2459 = vmul.f32 %v1910, %v1910
  %v2460 = vmul.f32 %v1912, %v1912
  %v2461 = vmul.f32 %v1915, %v1915
  %v2462 = vmul.f32 %v1917, %v1917
  %v2463 = vmul.f32 %v1920, %v1920
  %v2464 = vmul.f32 %v1922, %v1922
  %v2465 = vmul.f32 %v1925, %v1925
  %v2466 = vmul.f32 %v1927, %v1927
  %v2467 = vmul.f32 %v1930, %v1930
  %v2468 = vmul.f32 %v1932, %v1932
  %v2469 = vmul.f32 %v1935, %v1935
  %v2470 = vmul.f32 %v1937, %v1937
  %v2471 = vmul.f32 %v1940, %v1940
  %v2472 = vmul.f32 %v1942, %v1942
  %v2473 = vmul.f32 %v1945, %v1945
  %v2474 = vmul.f32 %v1947, %v1947
  %v2475 = vmul.f32 %v1950, %v1950
  %v2476 = vmul.f32 %v1952, %v1952
  %v2477 = vmul.f32 %v1955, %v1955
  %v2478 = vmul.f32 %v1957, %v1957
  %v2479 = vmul.f32 %v1960, %v1960
  %v2480 = vmul.f32 %v1962, %v1962
  %v2481 = vadd.f32 %v2225, %v2226
  %v2482 = vadd.f32 %v2481, %v2227
  %v2483 = vadd.f32 %v2482, %v2228
  %v2484 = vadd.f32 %v2483, %v2229
  %v2485 = vadd.f32 %v2484, %v2230
  %v2486 = vadd.f32 %v2485, %v2231
  %v2487 = vadd.f32 %v2486, %v2232
  %v2488 = vadd.f32 %v2487, %v2233
  %v2489 = vadd.f32 %v2488, %v2234
  %v2490 = vadd.f32 %v2489, %v2235
  %v2491 = vadd.f32 %v2490, %v2236
  %v2492 = vadd.f32 %v2491, %v2237
  %v2493 = vadd.f32 %v2492, %v2238
  %v2494 = vadd.f32 %v2493, %v2239
  %v2495 = vadd.f32 %v2494, %v2240
  %v2496 = vadd.f32 %v2495, %v2241
  %v2497 = vadd.f32 %v2496, %v2242
  %v2498 = vadd.f32 %v2497, %v2243
  %v2499 = vadd.f32 %v2498, %v2244
  %v2500 = vadd.f32 %v2499, %v2245
  %v2501 = vadd.f32 %v2500, %v2246
  %v2502 = vadd.f32 %v2501, %v2247
  %v2503 = vadd.f32 %v2502, %v2248
  %v2504 = vadd.f32 %v2503, %v2249
  %v2505 = vadd.f32 %v2504, %v2250
  %v2506 = vadd.f32 %v2505, %v2251
  %v2507 = vadd.f32 %v2506, %v2252
  %v2508 = vadd.f32 %v2507, %v2253
  %v2509 = vadd.f32 %v2508, %v2254
  %v2510 = vadd.f32 %v2509, %v2255
  %v2511 = vadd.f32 %v2510, %v2256
  %v2512 = vadd.f32 %v2511, %v2257
  %v2513 = vadd.f32 %v2512, %v2258
  %v2514 = vadd.f32 %v2513, %v2259
  %v2515 = vadd.f32 %v2514, %v2260
  %v2516 = vadd.f32 %v2515, %v2261
  %v2517 = vadd.f32 %v2516, %v2262
  %v2518 = vadd.f32 %v2517, %v2263
  %v2519 = vadd.f32 %v2518, %v2264
  %v2520 = vadd.f32 %v2519, %v2265
  %v2521 = vadd.f32 %v2520, %v2266
  %v2522 = vadd.f32 %v2521, %v2267
  %v2523 = vadd.f32 %v2522, %v2268
  %v2524 = vadd.f32 %v2523, %v2269
  %v2525 = vadd.f32 %v2524, %v2270
  %v2526 = vadd.f32 %v2525, %v2271
  %v2527 = vadd.f32 %v2526, %v2272
  %v2528 = vadd.f32 %v2527, %v2273
  %v2529 = vadd.f32 %v2528, %v2274
  %v2530 = vadd.f32 %v2529, %v2275
  %v2531 = vadd.f32 %v2530, %v2276
  %v2532 = vadd.f32 %v2531, %v2277
  %v2533 = vadd.f32 %v2532, %v2278
  %v2534 = vadd.f32 %v2533, %v2279
  %v2535 = vadd.f32 %v2534, %v2280
  %v2536 = vadd.f32 %v2535, %v2281
  %v2537 = vadd.f32 %v2536, %v2282
  %v2538 = vadd.f32 %v2537, %v2283
  %v2539 = vadd.f32 %v2538, %v2284
  %v2540 = vadd.f32 %v2539, %v2285
  %v2541 = vadd.f32 %v2540, %v2286
  %v2542 = vadd.f32 %v2541, %v2287
  %v2543 = vadd.f32 %v2542, %v2288
  %v2544 = vadd.f32 %v2543, %v2289
  %v2545 = vadd.f32 %v2544, %v2290
  %v2546 = vadd.f32 %v2545, %v2291
  %v2547 = vadd.f32 %v2546, %v2292
  %v2548 = vadd.f32 %v2547, %v2293
  %v2549 = vadd.f32 %v2548, %v2294
  %v2550 = vadd.f32 %v2549, %v2295
  %v2551 = vadd.f32 %v2550, %v2296
  %v2552 = vadd.f32 %v2551, %v2297
  %v2553 = vadd.f32 %v2552, %v2298
  %v2554 = vadd.f32 %v2553, %v2299
  %v2555 = vadd.f32 %v2554, %v2300
  %v2556 = vadd.f32 %v2555, %v2301
  %v2557 = vadd.f32 %v2556, %v2302
  %v2558 = vadd.f32 %v2557, %v2303
  %v2559 = vadd.f32 %v2558, %v2304
  %v2560 = vadd.f32 %v2559, %v2305
  %v2561 = vadd.f32 %v2560, %v2306
  %v2562 = vadd.f32 %v2561, %v2307
  %v2563 = vadd.f32 %v2562, %v2308
  %v2564 = vadd.f32 %v2563, %v2309
  %v2565 = vadd.f32 %v2564, %v2310
  %v2566 = vadd.f32 %v2565, %v2311
  %v2567 = vadd.f32 %v2566, %v2312
  %v2568 = vadd.f32 %v2567, %v2313
  %v2569 = vadd.f32 %v2568, %v2314
  %v2570 = vadd.f32 %v2569, %v2315
  %v2571 = vadd.f32 %v2570, %v2316
  %v2572 = vadd.f32 %v2571, %v2317
  %v2573 = vadd.f32 %v2572, %v2318
  %v2574 = vadd.f32 %v2573, %v2319
  %v2575 = vadd.f32 %v2574, %v2320
  %v2576 = vadd.f32 %v2575, %v2321
  %v2577 = vadd.f32 %v2576, %v2322
  %v2578 = vadd.f32 %v2577, %v2323
  %v2579 = vadd.f32 %v2578, %v2324
  %v2580 = vadd.f32 %v2579, %v2325
  %v2581 = vadd.f32 %v2580, %v2326
  %v2582 = vadd.f32 %v2581, %v2327
  %v2583 = vadd.f32 %v2582, %v2328
  %v2584 = vadd.f32 %v2583, %v2329
  %v2585 = vadd.f32 %v2584, %v2330
  %v2586 = vadd.f32 %v2585, %v2331
  %v2587 = vadd.f32 %v2586, %v2332
  %v2588 = vadd.f32 %v2587, %v2333
  %v2589 = vadd.f32 %v2588, %v2334
  %v2590 = vadd.f32 %v2589, %v2335
  %v2591 = vadd.f32 %v2590, %v2336
  %v2592 = vadd.f32 %v2591, %v2337
  %v2593 = vadd.f32 %v2592, %v2338
  %v2594 = vadd.f32 %v2593, %v2339
  %v2595 = vadd.f32 %v2594, %v2340
  %v2596 = vadd.f32 %v2595, %v2341
  %v2597 = vadd.f32 %v2596, %v2342
  %v2598 = vadd.f32 %v2597, %v2343
  %v2599 = vadd.f32 %v2598, %v2344
  %v2600 = vadd.f32 %v2599, %v2345
  %v2601 = vadd.f32 %v2600, %v2346
  %v2602 = vadd.f32 %v2601, %v2347
  %v2603 = vadd.f32 %v2602, %v2348
  %v2604 = vadd.f32 %v2603, %v2349
  %v2605 = vadd.f32 %v2604, %v2350
  %v2606 = vadd.f32 %v2605, %v2351
  %v2607 = vadd.f32 %v2606, %v2352
  %v2608 = vadd.f32 %v2607, %v2353
  %v2609 = vadd.f32 %v2608, %v2354
  %v2610 = vadd.f32 %v2609, %v2355
  %v2611 = vadd.f32 %v2610, %v2356
  %v2612 = vadd.f32 %v2611, %v2357
  %v2613 = vadd.f32 %v2612, %v2358
  %v2614 = vadd.f32 %v2613, %v2359
  %v2615 = vadd.f32 %v2614, %v2360
  %v2616 = vadd.f32 %v2615, %v2361
  %v2617 = vadd.f32 %v2616, %v2362
  %v2618 = vadd.f32 %v2617, %v2363
  %v2619 = vadd.f32 %v2618, %v2364
  %v2620 = vadd.f32 %v2619, %v2365
  %v2621 = vadd.f32 %v2620, %v2366
  %v2622 = vadd.f32 %v2621, %v2367
  %v2623 = vadd.f32 %v2622, %v2368
  %v2624 = vadd.f32 %v2623, %v2369
  %v2625 = vadd.f32 %v2624, %v2370
  %v2626 = vadd.f32 %v2625, %v2371
  %v2627 = vadd.f32 %v2626, %v2372
  %v2628 = vadd.f32 %v2627, %v2373
  %v2629 = vadd.f32 %v2628, %v2374
  %v2630 = vadd.f32 %v2629, %v2375
  %v2631 = vadd.f32 %v2630, %v2376
  %v2632 = vadd.f32 %v2631, %v2377
  %v2633 = vadd.f32 %v2632, %v2378
  %v2634 = vadd.f32 %v2633, %v2379
  %v2635 = vadd.f32 %v2634, %v2380
  %v2636 = vadd.f32 %v2635, %v2381
  %v2637 = vadd.f32 %v2636, %v2382
  %v2638 = vadd.f32 %v2637, %v2383
  %v2639 = vadd.f32 %v2638, %v2384
  %v2640 = vadd.f32 %v2639, %v2385
  %v2641 = vadd.f32 %v2640, %v2386
  %v2642 = vadd.f32 %v2641, %v2387
  %v2643 = vadd.f32 %v2642, %v2388
  %v2644 = vadd.f32 %v2643, %v2389
  %v2645 = vadd.f32 %v2644, %v2390
  %v2646 = vadd.f32 %v2645, %v2391
  %v2647 = vadd.f32 %v2646, %v2392
  %v2648 = vadd.f32 %v2647, %v2393
  %v2649 = vadd.f32 %v2648, %v2394
  %v2650 = vadd.f32 %v2649, %v2395
  %v2651 = vadd.f32 %v2650, %v2396
  %v2652 = vadd.f32 %v2651, %v2397
  %v2653 = vadd.f32 %v2652, %v2398
  %v2654 = vadd.f32 %v2653, %v2399
  %v2655 = vadd.f32 %v2654, %v2400
  %v2656 = vadd.f32 %v2655, %v2401
  %v2657 = vadd.f32 %v2656, %v2402
  %v2658 = vadd.f32 %v2657, %v2403
  %v2659 = vadd.f32 %v2658, %v2404
  %v2660 = vadd.f32 %v2659, %v2405
  %v2661 = vadd.f32 %v2660, %v2406
  %v2662 = vadd.f32 %v2661, %v2407
  %v2663 = vadd.f32 %v2662, %v2408
  %v2664 = vadd.f32 %v2663, %v2409
  %v2665 = vadd.f32 %v2664, %v2410
  %v2666 = vadd.f32 %v2665, %v2411
  %v2667 = vadd.f32 %v2666, %v2412
  %v2668 = vadd.f32 %v2667, %v2413
  %v2669 = vadd.f32 %v2668, %v2414
  %v2670 = vadd.f32 %v2669, %v2415
  %v2671 = vadd.f32 %v2670, %v2416
  %v2672 = vadd.f32 %v2671, %v2417
  %v2673 = vadd.f32 %v2672, %v2418
  %v2674 = vadd.f32 %v2673, %v2419
  %v2675 = vadd.f32 %v2674, %v2420
  %v2676 = vadd.f32 %v2675, %v2421
  %v2677 = vadd.f32 %v2676, %v2422
  %v2678 = vadd.f32 %v2677, %v2423
  %v2679 = vadd.f32 %v2678, %v2424
  %v2680 = vadd.f32 %v2679, %v2425
  %v2681 = vadd.f32 %v2680, %v2426
  %v2682 = vadd.f32 %v2681, %v2427
  %v2683 = vadd.f32 %v2682, %v2428
  %v2684 = vadd.f32 %v2683, %v2429
  %v2685 = vadd.f32 %v2684, %v2430
  %v2686 = vadd.f32 %v2685, %v2431
  %v2687 = vadd.f32 %v2686, %v2432
  %v2688 = vadd.f32 %v2687, %v2433
  %v2689 = vadd.f32 %v2688, %v2434
  %v2690 = vadd.f32 %v2689, %v2435
  %v2691 = vadd.f32 %v2690, %v2436
  %v2692 = vadd.f32 %v2691, %v2437
  %v2693 = vadd.f32 %v2692, %v2438
  %v2694 = vadd.f32 %v2693, %v2439
  %v2695 = vadd.f32 %v2694, %v2440
  %v2696 = vadd.f32 %v2695, %v2441
  %v2697 = vadd.f32 %v2696, %v2442
  %v2698 = vadd.f32 %v2697, %v2443
  %v2699 = vadd.f32 %v2698, %v2444
  %v2700 = vadd.f32 %v2699, %v2445
  %v2701 = vadd.f32 %v2700, %v2446
  %v2702 = vadd.f32 %v2701, %v2447
  %v2703 = vadd.f32 %v2702, %v2448
  %v2704 = vadd.f32 %v2703, %v2449
  %v2705 = vadd.f32 %v2704, %v2450
  %v2706 = vadd.f32 %v2705, %v2451
  %v2707 = vadd.f32 %v2706, %v2452
  %v2708 = vadd.f32 %v2707, %v2453
  %v2709 = vadd.f32 %v2708, %v2454
  %v2710 = vadd.f32 %v2709, %v2455
  %v2711 = vadd.f32 %v2710, %v2456
  %v2712 = vadd.f32 %v2711, %v2457
  %v2713 = vadd.f32 %v2712, %v2458
  %v2714 = vadd.f32 %v2713, %v2459
  %v2715 = vadd.f32 %v2714, %v2460
  %v2716 = vadd.f32 %v2715, %v2461
  %v2717 = vadd.f32 %v2716, %v2462
  %v2718 = vadd.f32 %v2717, %v2463
  %v2719 = vadd.f32 %v2718, %v2464
  %v2720 = vadd.f32 %v2719, %v2465
  %v2721 = vadd.f32 %v2720, %v2466
  %v2722 = vadd.f32 %v2721, %v2467
  %v2723 = vadd.f32 %v2722, %v2468
  %v2724 = vadd.f32 %v2723, %v2469
  %v2725 = vadd.f32 %v2724, %v2470
  %v2726 = vadd.f32 %v2725, %v2471
  %v2727 = vadd.f32 %v2726, %v2472
  %v2728 = vadd.f32 %v2727, %v2473
  %v2729 = vadd.f32 %v2728, %v2474
  %v2730 = vadd.f32 %v2729, %v2475
  %v2731 = vadd.f32 %v2730, %v2476
  %v2732 = vadd.f32 %v2731, %v2477
  %v2733 = vadd.f32 %v2732, %v2478
  %v2734 = vadd.f32 %v2733, %v2479
  %v2735 = vadd.f32 %v2734, %v2480
  %v2736 = vrot.slane %v2735, 4
  %v2737 = vadd.f32 %v2735, %v2736
  %v2738 = vrot.slane %v2737, 2
  %v2739 = vadd.f32 %v2737, %v2738
  %v2740 = vrot.slane %v2739, 1
  %v2741 = vadd.f32 %v2739, %v2740
  %v2742 = vmul.f32 %v2224, 0.00048828125
  %v2743 = vmul.f32 %v2741, 0.00048828125
  %v2744 = vmul.f32 %v2742, %v2742
  %v2745 = vsub.f32 %v2743, %v2744
  %v2746 = vmax.f32 %v2745, 0.0
  %v2747 = vld [vmem:[%s2] sm:$0x1]
  %v2748 = vadd.f32 %v2746, 1e-05
  %v2749 = vrsqrt.pop %v2748
  %v2750 = vmul.f32 %v2749, %v2748
  %v2751 = vmul.f32 %v2750, %v2749
  %v2752 = vmul.f32 0.5, %v2751
  %v2753 = vsub.f32 1.5, %v2752
  %v2754 = vmul.f32 %v2749, %v2753
  %vm2755 = vweird.f32 %v2748
  %vm2756 = vweird.f32 %v2749
  %vm2757 = vmor %vm2755, %vm2756
  %v2758 = vsel %vm2757, %v2749, %v2754
  %v2759 = vmul.f32 %v2747, %v2758
  %v2760 = vld [vmem:[%s3] sm:$0x1]
  %v2761 = vmul.f32 %v2742, %v2759
  %v2762 = vsub.f32 %v2760, %v2761
  %v2764 = vperm.slane %v2759, 0
  %v2766 = vmul.f32 %v1325, %v2764
  %v2767 = vmul.f32 %v1327, %v2764
  %v2768 = vmul.f32 %v1330, %v2764
  %v2769 = vmul.f32 %v1332, %v2764
  %v2770 = vmul.f32 %v1335, %v2764
  %v2771 = vmul.f32 %v1337, %v2764
  %v2772 = vmul.f32 %v1340, %v2764
  %v2773 = vmul.f32 %v1342, %v2764
  %v2774 = vmul.f32 %v1345, %v2764
  %v2775 = vmul.f32 %v1347, %v2764
  %v2776 = vmul.f32 %v1350, %v2764
  %v2777 = vmul.f32 %v1352, %v2764
  %v2778 = vmul.f32 %v1355, %v2764
  %v2779 = vmul.f32 %v1357, %v2764
  %v2780 = vmul.f32 %v1360, %v2764
  %v2781 = vmul.f32 %v1362, %v2764
  %v2782 = vmul.f32 %v1365, %v2764
  %v2783 = vmul.f32 %v1367, %v2764
  %v2784 = vmul.f32 %v1370, %v2764
  %v2785 = vmul.f32 %v1372, %v2764
  %v2786 = vmul.f32 %v1375, %v2764
  %v2787 = vmul.f32 %v1377, %v2764
  %v2788 = vmul.f32 %v1380, %v2764
  %v2789 = vmul.f32 %v1382, %v2764
  %v2790 = vmul.f32 %v1385, %v2764
  %v2791 = vmul.f32 %v1387, %v2764
  %v2792 = vmul.f32 %v1390, %v2764
  %v2793 = vmul.f32 %v1392, %v2764
  %v2794 = vmul.f32 %v1395, %v2764
  %v2795 = vmul.f32 %v1397, %v2764
  %v2796 = vmul.f32 %v1400, %v2764
  %v2797 = vmul.f32 %v1402, %v2764
  %v2798 = vmul.f32 %v1405, %v2764
  %v2799 = vmul.f32 %v1407, %v2764
  %v2800 = vmul.f32 %v1410, %v2764
  %v2801 = vmul.f32 %v1412, %v2764
  %v2802 = vmul.f32 %v1415, %v2764
  %v2803 = vmul.f32 %v1417, %v2764
  %v2804 = vmul.f32 %v1420, %v2764
  %v2805 = vmul.f32 %v1422, %v2764
  %v2806 = vmul.f32 %v1425, %v2764
  %v2807 = vmul.f32 %v1427, %v2764
  %v2808 = vmul.f32 %v1430, %v2764
  %v2809 = vmul.f32 %v1432, %v2764
  %v2810 = vmul.f32 %v1435, %v2764
  %v2811 = vmul.f32 %v1437, %v2764
  %v2812 = vmul.f32 %v1440, %v2764
  %v2813 = vmul.f32 %v1442, %v2764
  %v2814 = vmul.f32 %v1445, %v2764
  %v2815 = vmul.f32 %v1447, %v2764
  %v2816 = vmul.f32 %v1450, %v2764
  %v2817 = vmul.f32 %v1452, %v2764
  %v2818 = vmul.f32 %v1455, %v2764
  %v2819 = vmul.f32 %v1457, %v2764
  %v2820 = vmul.f32 %v1460, %v2764
  %v2821 = vmul.f32 %v1462, %v2764
  %v2822 = vmul.f32 %v1465, %v2764
  %v2823 = vmul.f32 %v1467, %v2764
  %v2824 = vmul.f32 %v1470, %v2764
  %v2825 = vmul.f32 %v1472, %v2764
  %v2826 = vmul.f32 %v1475, %v2764
  %v2827 = vmul.f32 %v1477, %v2764
  %v2828 = vmul.f32 %v1480, %v2764
  %v2829 = vmul.f32 %v1482, %v2764
  %v2830 = vmul.f32 %v1485, %v2764
  %v2831 = vmul.f32 %v1487, %v2764
  %v2832 = vmul.f32 %v1490, %v2764
  %v2833 = vmul.f32 %v1492, %v2764
  %v2834 = vmul.f32 %v1495, %v2764
  %v2835 = vmul.f32 %v1497, %v2764
  %v2836 = vmul.f32 %v1500, %v2764
  %v2837 = vmul.f32 %v1502, %v2764
  %v2838 = vmul.f32 %v1505, %v2764
  %v2839 = vmul.f32 %v1507, %v2764
  %v2840 = vmul.f32 %v1510, %v2764
  %v2841 = vmul.f32 %v1512, %v2764
  %v2842 = vmul.f32 %v1515, %v2764
  %v2843 = vmul.f32 %v1517, %v2764
  %v2844 = vmul.f32 %v1520, %v2764
  %v2845 = vmul.f32 %v1522, %v2764
  %v2846 = vmul.f32 %v1525, %v2764
  %v2847 = vmul.f32 %v1527, %v2764
  %v2848 = vmul.f32 %v1530, %v2764
  %v2849 = vmul.f32 %v1532, %v2764
  %v2850 = vmul.f32 %v1535, %v2764
  %v2851 = vmul.f32 %v1537, %v2764
  %v2852 = vmul.f32 %v1540, %v2764
  %v2853 = vmul.f32 %v1542, %v2764
  %v2854 = vmul.f32 %v1545, %v2764
  %v2855 = vmul.f32 %v1547, %v2764
  %v2856 = vmul.f32 %v1550, %v2764
  %v2857 = vmul.f32 %v1552, %v2764
  %v2858 = vmul.f32 %v1555, %v2764
  %v2859 = vmul.f32 %v1557, %v2764
  %v2860 = vmul.f32 %v1560, %v2764
  %v2861 = vmul.f32 %v1562, %v2764
  %v2862 = vmul.f32 %v1565, %v2764
  %v2863 = vmul.f32 %v1567, %v2764
  %v2864 = vmul.f32 %v1570, %v2764
  %v2865 = vmul.f32 %v1572, %v2764
  %v2866 = vmul.f32 %v1575, %v2764
  %v2867 = vmul.f32 %v1577, %v2764
  %v2868 = vmul.f32 %v1580, %v2764
  %v2869 = vmul.f32 %v1582, %v2764
  %v2870 = vmul.f32 %v1585, %v2764
  %v2871 = vmul.f32 %v1587, %v2764
  %v2872 = vmul.f32 %v1590, %v2764
  %v2873 = vmul.f32 %v1592, %v2764
  %v2874 = vmul.f32 %v1595, %v2764
  %v2875 = vmul.f32 %v1597, %v2764
  %v2876 = vmul.f32 %v1600, %v2764
  %v2877 = vmul.f32 %v1602, %v2764
  %v2878 = vmul.f32 %v1605, %v2764
  %v2879 = vmul.f32 %v1607, %v2764
  %v2880 = vmul.f32 %v1610, %v2764
  %v2881 = vmul.f32 %v1612, %v2764
  %v2882 = vmul.f32 %v1615, %v2764
  %v2883 = vmul.f32 %v1617, %v2764
  %v2884 = vmul.f32 %v1620, %v2764
  %v2885 = vmul.f32 %v1622, %v2764
  %v2886 = vmul.f32 %v1625, %v2764
  %v2887 = vmul.f32 %v1627, %v2764
  %v2888 = vmul.f32 %v1630, %v2764
  %v2889 = vmul.f32 %v1632, %v2764
  %v2890 = vmul.f32 %v1635, %v2764
  %v2891 = vmul.f32 %v1637, %v2764
  %v2892 = vmul.f32 %v1640, %v2764
  %v2893 = vmul.f32 %v1642, %v2764
  %v2894 = vmul.f32 %v1645, %v2764
  %v2895 = vmul.f32 %v1647, %v2764
  %v2896 = vmul.f32 %v1650, %v2764
  %v2897 = vmul.f32 %v1652, %v2764
  %v2898 = vmul.f32 %v1655, %v2764
  %v2899 = vmul.f32 %v1657, %v2764
  %v2900 = vmul.f32 %v1660, %v2764
  %v2901 = vmul.f32 %v1662, %v2764
  %v2902 = vmul.f32 %v1665, %v2764
  %v2903 = vmul.f32 %v1667, %v2764
  %v2904 = vmul.f32 %v1670, %v2764
  %v2905 = vmul.f32 %v1672, %v2764
  %v2906 = vmul.f32 %v1675, %v2764
  %v2907 = vmul.f32 %v1677, %v2764
  %v2908 = vmul.f32 %v1680, %v2764
  %v2909 = vmul.f32 %v1682, %v2764
  %v2910 = vmul.f32 %v1685, %v2764
  %v2911 = vmul.f32 %v1687, %v2764
  %v2912 = vmul.f32 %v1690, %v2764
  %v2913 = vmul.f32 %v1692, %v2764
  %v2914 = vmul.f32 %v1695, %v2764
  %v2915 = vmul.f32 %v1697, %v2764
  %v2916 = vmul.f32 %v1700, %v2764
  %v2917 = vmul.f32 %v1702, %v2764
  %v2918 = vmul.f32 %v1705, %v2764
  %v2919 = vmul.f32 %v1707, %v2764
  %v2920 = vmul.f32 %v1710, %v2764
  %v2921 = vmul.f32 %v1712, %v2764
  %v2922 = vmul.f32 %v1715, %v2764
  %v2923 = vmul.f32 %v1717, %v2764
  %v2924 = vmul.f32 %v1720, %v2764
  %v2925 = vmul.f32 %v1722, %v2764
  %v2926 = vmul.f32 %v1725, %v2764
  %v2927 = vmul.f32 %v1727, %v2764
  %v2928 = vmul.f32 %v1730, %v2764
  %v2929 = vmul.f32 %v1732, %v2764
  %v2930 = vmul.f32 %v1735, %v2764
  %v2931 = vmul.f32 %v1737, %v2764
  %v2932 = vmul.f32 %v1740, %v2764
  %v2933 = vmul.f32 %v1742, %v2764
  %v2934 = vmul.f32 %v1745, %v2764
  %v2935 = vmul.f32 %v1747, %v2764
  %v2936 = vmul.f32 %v1750, %v2764
  %v2937 = vmul.f32 %v1752, %v2764
  %v2938 = vmul.f32 %v1755, %v2764
  %v2939 = vmul.f32 %v1757, %v2764
  %v2940 = vmul.f32 %v1760, %v2764
  %v2941 = vmul.f32 %v1762, %v2764
  %v2942 = vmul.f32 %v1765, %v2764
  %v2943 = vmul.f32 %v1767, %v2764
  %v2944 = vmul.f32 %v1770, %v2764
  %v2945 = vmul.f32 %v1772, %v2764
  %v2946 = vmul.f32 %v1775, %v2764
  %v2947 = vmul.f32 %v1777, %v2764
  %v2948 = vmul.f32 %v1780, %v2764
  %v2949 = vmul.f32 %v1782, %v2764
  %v2950 = vmul.f32 %v1785, %v2764
  %v2951 = vmul.f32 %v1787, %v2764
  %v2952 = vmul.f32 %v1790, %v2764
  %v2953 = vmul.f32 %v1792, %v2764
  %v2954 = vmul.f32 %v1795, %v2764
  %v2955 = vmul.f32 %v1797, %v2764
  %v2956 = vmul.f32 %v1800, %v2764
  %v2957 = vmul.f32 %v1802, %v2764
  %v2958 = vmul.f32 %v1805, %v2764
  %v2959 = vmul.f32 %v1807, %v2764
  %v2960 = vmul.f32 %v1810, %v2764
  %v2961 = vmul.f32 %v1812, %v2764
  %v2962 = vmul.f32 %v1815, %v2764
  %v2963 = vmul.f32 %v1817, %v2764
  %v2964 = vmul.f32 %v1820, %v2764
  %v2965 = vmul.f32 %v1822, %v2764
  %v2966 = vmul.f32 %v1825, %v2764
  %v2967 = vmul.f32 %v1827, %v2764
  %v2968 = vmul.f32 %v1830, %v2764
  %v2969 = vmul.f32 %v1832, %v2764
  %v2970 = vmul.f32 %v1835, %v2764
  %v2971 = vmul.f32 %v1837, %v2764
  %v2972 = vmul.f32 %v1840, %v2764
  %v2973 = vmul.f32 %v1842, %v2764
  %v2974 = vmul.f32 %v1845, %v2764
  %v2975 = vmul.f32 %v1847, %v2764
  %v2976 = vmul.f32 %v1850, %v2764
  %v2977 = vmul.f32 %v1852, %v2764
  %v2978 = vmul.f32 %v1855, %v2764
  %v2979 = vmul.f32 %v1857, %v2764
  %v2980 = vmul.f32 %v1860, %v2764
  %v2981 = vmul.f32 %v1862, %v2764
  %v2982 = vmul.f32 %v1865, %v2764
  %v2983 = vmul.f32 %v1867, %v2764
  %v2984 = vmul.f32 %v1870, %v2764
  %v2985 = vmul.f32 %v1872, %v2764
  %v2986 = vmul.f32 %v1875, %v2764
  %v2987 = vmul.f32 %v1877, %v2764
  %v2988 = vmul.f32 %v1880, %v2764
  %v2989 = vmul.f32 %v1882, %v2764
  %v2990 = vmul.f32 %v1885, %v2764
  %v2991 = vmul.f32 %v1887, %v2764
  %v2992 = vmul.f32 %v1890, %v2764
  %v2993 = vmul.f32 %v1892, %v2764
  %v2994 = vmul.f32 %v1895, %v2764
  %v2995 = vmul.f32 %v1897, %v2764
  %v2996 = vmul.f32 %v1900, %v2764
  %v2997 = vmul.f32 %v1902, %v2764
  %v2998 = vmul.f32 %v1905, %v2764
  %v2999 = vmul.f32 %v1907, %v2764
  %v3000 = vmul.f32 %v1910, %v2764
  %v3001 = vmul.f32 %v1912, %v2764
  %v3002 = vmul.f32 %v1915, %v2764
  %v3003 = vmul.f32 %v1917, %v2764
  %v3004 = vmul.f32 %v1920, %v2764
  %v3005 = vmul.f32 %v1922, %v2764
  %v3006 = vmul.f32 %v1925, %v2764
  %v3007 = vmul.f32 %v1927, %v2764
  %v3008 = vmul.f32 %v1930, %v2764
  %v3009 = vmul.f32 %v1932, %v2764
  %v3010 = vmul.f32 %v1935, %v2764
  %v3011 = vmul.f32 %v1937, %v2764
  %v3012 = vmul.f32 %v1940, %v2764
  %v3013 = vmul.f32 %v1942, %v2764
  %v3014 = vmul.f32 %v1945, %v2764
  %v3015 = vmul.f32 %v1947, %v2764
  %v3016 = vmul.f32 %v1950, %v2764
  %v3017 = vmul.f32 %v1952, %v2764
  %v3018 = vmul.f32 %v1955, %v2764
  %v3019 = vmul.f32 %v1957, %v2764
  %v3020 = vmul.f32 %v1960, %v2764
  %v3021 = vmul.f32 %v1962, %v2764
  %v3023 = vperm.slane %v2762, 0
  %v3025 = vadd.f32 %v2766, %v3023
  %v3026 = vadd.f32 %v2767, %v3023
  %v3027 = vadd.f32 %v2768, %v3023
  %v3028 = vadd.f32 %v2769, %v3023
  %v3029 = vadd.f32 %v2770, %v3023
  %v3030 = vadd.f32 %v2771, %v3023
  %v3031 = vadd.f32 %v2772, %v3023
  %v3032 = vadd.f32 %v2773, %v3023
  %v3033 = vadd.f32 %v2774, %v3023
  %v3034 = vadd.f32 %v2775, %v3023
  %v3035 = vadd.f32 %v2776, %v3023
  %v3036 = vadd.f32 %v2777, %v3023
  %v3037 = vadd.f32 %v2778, %v3023
  %v3038 = vadd.f32 %v2779, %v3023
  %v3039 = vadd.f32 %v2780, %v3023
  %v3040 = vadd.f32 %v2781, %v3023
  %v3041 = vadd.f32 %v2782, %v3023
  %v3042 = vadd.f32 %v2783, %v3023
  %v3043 = vadd.f32 %v2784, %v3023
  %v3044 = vadd.f32 %v2785, %v3023
  %v3045 = vadd.f32 %v2786, %v3023
  %v3046 = vadd.f32 %v2787, %v3023
  %v3047 = vadd.f32 %v2788, %v3023
  %v3048 = vadd.f32 %v2789, %v3023
  %v3049 = vadd.f32 %v2790, %v3023
  %v3050 = vadd.f32 %v2791, %v3023
  %v3051 = vadd.f32 %v2792, %v3023
  %v3052 = vadd.f32 %v2793, %v3023
  %v3053 = vadd.f32 %v2794, %v3023
  %v3054 = vadd.f32 %v2795, %v3023
  %v3055 = vadd.f32 %v2796, %v3023
  %v3056 = vadd.f32 %v2797, %v3023
  %v3057 = vadd.f32 %v2798, %v3023
  %v3058 = vadd.f32 %v2799, %v3023
  %v3059 = vadd.f32 %v2800, %v3023
  %v3060 = vadd.f32 %v2801, %v3023
  %v3061 = vadd.f32 %v2802, %v3023
  %v3062 = vadd.f32 %v2803, %v3023
  %v3063 = vadd.f32 %v2804, %v3023
  %v3064 = vadd.f32 %v2805, %v3023
  %v3065 = vadd.f32 %v2806, %v3023
  %v3066 = vadd.f32 %v2807, %v3023
  %v3067 = vadd.f32 %v2808, %v3023
  %v3068 = vadd.f32 %v2809, %v3023
  %v3069 = vadd.f32 %v2810, %v3023
  %v3070 = vadd.f32 %v2811, %v3023
  %v3071 = vadd.f32 %v2812, %v3023
  %v3072 = vadd.f32 %v2813, %v3023
  %v3073 = vadd.f32 %v2814, %v3023
  %v3074 = vadd.f32 %v2815, %v3023
  %v3075 = vadd.f32 %v2816, %v3023
  %v3076 = vadd.f32 %v2817, %v3023
  %v3077 = vadd.f32 %v2818, %v3023
  %v3078 = vadd.f32 %v2819, %v3023
  %v3079 = vadd.f32 %v2820, %v3023
  %v3080 = vadd.f32 %v2821, %v3023
  %v3081 = vadd.f32 %v2822, %v3023
  %v3082 = vadd.f32 %v2823, %v3023
  %v3083 = vadd.f32 %v2824, %v3023
  %v3084 = vadd.f32 %v2825, %v3023
  %v3085 = vadd.f32 %v2826, %v3023
  %v3086 = vadd.f32 %v2827, %v3023
  %v3087 = vadd.f32 %v2828, %v3023
  %v3088 = vadd.f32 %v2829, %v3023
  %v3089 = vadd.f32 %v2830, %v3023
  %v3090 = vadd.f32 %v2831, %v3023
  %v3091 = vadd.f32 %v2832, %v3023
  %v3092 = vadd.f32 %v2833, %v3023
  %v3093 = vadd.f32 %v2834, %v3023
  %v3094 = vadd.f32 %v2835, %v3023
  %v3095 = vadd.f32 %v2836, %v3023
  %v3096 = vadd.f32 %v2837, %v3023
  %v3097 = vadd.f32 %v2838, %v3023
  %v3098 = vadd.f32 %v2839, %v3023
  %v3099 = vadd.f32 %v2840, %v3023
  %v3100 = vadd.f32 %v2841, %v3023
  %v3101 = vadd.f32 %v2842, %v3023
  %v3102 = vadd.f32 %v2843, %v3023
  %v3103 = vadd.f32 %v2844, %v3023
  %v3104 = vadd.f32 %v2845, %v3023
  %v3105 = vadd.f32 %v2846, %v3023
  %v3106 = vadd.f32 %v2847, %v3023
  %v3107 = vadd.f32 %v2848, %v3023
  %v3108 = vadd.f32 %v2849, %v3023
  %v3109 = vadd.f32 %v2850, %v3023
  %v3110 = vadd.f32 %v2851, %v3023
  %v3111 = vadd.f32 %v2852, %v3023
  %v3112 = vadd.f32 %v2853, %v3023
  %v3113 = vadd.f32 %v2854, %v3023
  %v3114 = vadd.f32 %v2855, %v3023
  %v3115 = vadd.f32 %v2856, %v3023
  %v3116 = vadd.f32 %v2857, %v3023
  %v3117 = vadd.f32 %v2858, %v3023
  %v3118 = vadd.f32 %v2859, %v3023
  %v3119 = vadd.f32 %v2860, %v3023
  %v3120 = vadd.f32 %v2861, %v3023
  %v3121 = vadd.f32 %v2862, %v3023
  %v3122 = vadd.f32 %v2863, %v3023
  %v3123 = vadd.f32 %v2864, %v3023
  %v3124 = vadd.f32 %v2865, %v3023
  %v3125 = vadd.f32 %v2866, %v3023
  %v3126 = vadd.f32 %v2867, %v3023
  %v3127 = vadd.f32 %v2868, %v3023
  %v3128 = vadd.f32 %v2869, %v3023
  %v3129 = vadd.f32 %v2870, %v3023
  %v3130 = vadd.f32 %v2871, %v3023
  %v3131 = vadd.f32 %v2872, %v3023
  %v3132 = vadd.f32 %v2873, %v3023
  %v3133 = vadd.f32 %v2874, %v3023
  %v3134 = vadd.f32 %v2875, %v3023
  %v3135 = vadd.f32 %v2876, %v3023
  %v3136 = vadd.f32 %v2877, %v3023
  %v3137 = vadd.f32 %v2878, %v3023
  %v3138 = vadd.f32 %v2879, %v3023
  %v3139 = vadd.f32 %v2880, %v3023
  %v3140 = vadd.f32 %v2881, %v3023
  %v3141 = vadd.f32 %v2882, %v3023
  %v3142 = vadd.f32 %v2883, %v3023
  %v3143 = vadd.f32 %v2884, %v3023
  %v3144 = vadd.f32 %v2885, %v3023
  %v3145 = vadd.f32 %v2886, %v3023
  %v3146 = vadd.f32 %v2887, %v3023
  %v3147 = vadd.f32 %v2888, %v3023
  %v3148 = vadd.f32 %v2889, %v3023
  %v3149 = vadd.f32 %v2890, %v3023
  %v3150 = vadd.f32 %v2891, %v3023
  %v3151 = vadd.f32 %v2892, %v3023
  %v3152 = vadd.f32 %v2893, %v3023
  %v3153 = vadd.f32 %v2894, %v3023
  %v3154 = vadd.f32 %v2895, %v3023
  %v3155 = vadd.f32 %v2896, %v3023
  %v3156 = vadd.f32 %v2897, %v3023
  %v3157 = vadd.f32 %v2898, %v3023
  %v3158 = vadd.f32 %v2899, %v3023
  %v3159 = vadd.f32 %v2900, %v3023
  %v3160 = vadd.f32 %v2901, %v3023
  %v3161 = vadd.f32 %v2902, %v3023
  %v3162 = vadd.f32 %v2903, %v3023
  %v3163 = vadd.f32 %v2904, %v3023
  %v3164 = vadd.f32 %v2905, %v3023
  %v3165 = vadd.f32 %v2906, %v3023
  %v3166 = vadd.f32 %v2907, %v3023
  %v3167 = vadd.f32 %v2908, %v3023
  %v3168 = vadd.f32 %v2909, %v3023
  %v3169 = vadd.f32 %v2910, %v3023
  %v3170 = vadd.f32 %v2911, %v3023
  %v3171 = vadd.f32 %v2912, %v3023
  %v3172 = vadd.f32 %v2913, %v3023
  %v3173 = vadd.f32 %v2914, %v3023
  %v3174 = vadd.f32 %v2915, %v3023
  %v3175 = vadd.f32 %v2916, %v3023
  %v3176 = vadd.f32 %v2917, %v3023
  %v3177 = vadd.f32 %v2918, %v3023
  %v3178 = vadd.f32 %v2919, %v3023
  %v3179 = vadd.f32 %v2920, %v3023
  %v3180 = vadd.f32 %v2921, %v3023
  %v3181 = vadd.f32 %v2922, %v3023
  %v3182 = vadd.f32 %v2923, %v3023
  %v3183 = vadd.f32 %v2924, %v3023
  %v3184 = vadd.f32 %v2925, %v3023
  %v3185 = vadd.f32 %v2926, %v3023
  %v3186 = vadd.f32 %v2927, %v3023
  %v3187 = vadd.f32 %v2928, %v3023
  %v3188 = vadd.f32 %v2929, %v3023
  %v3189 = vadd.f32 %v2930, %v3023
  %v3190 = vadd.f32 %v2931, %v3023
  %v3191 = vadd.f32 %v2932, %v3023
  %v3192 = vadd.f32 %v2933, %v3023
  %v3193 = vadd.f32 %v2934, %v3023
  %v3194 = vadd.f32 %v2935, %v3023
  %v3195 = vadd.f32 %v2936, %v3023
  %v3196 = vadd.f32 %v2937, %v3023
  %v3197 = vadd.f32 %v2938, %v3023
  %v3198 = vadd.f32 %v2939, %v3023
  %v3199 = vadd.f32 %v2940, %v3023
  %v3200 = vadd.f32 %v2941, %v3023
  %v3201 = vadd.f32 %v2942, %v3023
  %v3202 = vadd.f32 %v2943, %v3023
  %v3203 = vadd.f32 %v2944, %v3023
  %v3204 = vadd.f32 %v2945, %v3023
  %v3205 = vadd.f32 %v2946, %v3023
  %v3206 = vadd.f32 %v2947, %v3023
  %v3207 = vadd.f32 %v2948, %v3023
  %v3208 = vadd.f32 %v2949, %v3023
  %v3209 = vadd.f32 %v2950, %v3023
  %v3210 = vadd.f32 %v2951, %v3023
  %v3211 = vadd.f32 %v2952, %v3023
  %v3212 = vadd.f32 %v2953, %v3023
  %v3213 = vadd.f32 %v2954, %v3023
  %v3214 = vadd.f32 %v2955, %v3023
  %v3215 = vadd.f32 %v2956, %v3023
  %v3216 = vadd.f32 %v2957, %v3023
  %v3217 = vadd.f32 %v2958, %v3023
  %v3218 = vadd.f32 %v2959, %v3023
  %v3219 = vadd.f32 %v2960, %v3023
  %v3220 = vadd.f32 %v2961, %v3023
  %v3221 = vadd.f32 %v2962, %v3023
  %v3222 = vadd.f32 %v2963, %v3023
  %v3223 = vadd.f32 %v2964, %v3023
  %v3224 = vadd.f32 %v2965, %v3023
  %v3225 = vadd.f32 %v2966, %v3023
  %v3226 = vadd.f32 %v2967, %v3023
  %v3227 = vadd.f32 %v2968, %v3023
  %v3228 = vadd.f32 %v2969, %v3023
  %v3229 = vadd.f32 %v2970, %v3023
  %v3230 = vadd.f32 %v2971, %v3023
  %v3231 = vadd.f32 %v2972, %v3023
  %v3232 = vadd.f32 %v2973, %v3023
  %v3233 = vadd.f32 %v2974, %v3023
  %v3234 = vadd.f32 %v2975, %v3023
  %v3235 = vadd.f32 %v2976, %v3023
  %v3236 = vadd.f32 %v2977, %v3023
  %v3237 = vadd.f32 %v2978, %v3023
  %v3238 = vadd.f32 %v2979, %v3023
  %v3239 = vadd.f32 %v2980, %v3023
  %v3240 = vadd.f32 %v2981, %v3023
  %v3241 = vadd.f32 %v2982, %v3023
  %v3242 = vadd.f32 %v2983, %v3023
  %v3243 = vadd.f32 %v2984, %v3023
  %v3244 = vadd.f32 %v2985, %v3023
  %v3245 = vadd.f32 %v2986, %v3023
  %v3246 = vadd.f32 %v2987, %v3023
  %v3247 = vadd.f32 %v2988, %v3023
  %v3248 = vadd.f32 %v2989, %v3023
  %v3249 = vadd.f32 %v2990, %v3023
  %v3250 = vadd.f32 %v2991, %v3023
  %v3251 = vadd.f32 %v2992, %v3023
  %v3252 = vadd.f32 %v2993, %v3023
  %v3253 = vadd.f32 %v2994, %v3023
  %v3254 = vadd.f32 %v2995, %v3023
  %v3255 = vadd.f32 %v2996, %v3023
  %v3256 = vadd.f32 %v2997, %v3023
  %v3257 = vadd.f32 %v2998, %v3023
  %v3258 = vadd.f32 %v2999, %v3023
  %v3259 = vadd.f32 %v3000, %v3023
  %v3260 = vadd.f32 %v3001, %v3023
  %v3261 = vadd.f32 %v3002, %v3023
  %v3262 = vadd.f32 %v3003, %v3023
  %v3263 = vadd.f32 %v3004, %v3023
  %v3264 = vadd.f32 %v3005, %v3023
  %v3265 = vadd.f32 %v3006, %v3023
  %v3266 = vadd.f32 %v3007, %v3023
  %v3267 = vadd.f32 %v3008, %v3023
  %v3268 = vadd.f32 %v3009, %v3023
  %v3269 = vadd.f32 %v3010, %v3023
  %v3270 = vadd.f32 %v3011, %v3023
  %v3271 = vadd.f32 %v3012, %v3023
  %v3272 = vadd.f32 %v3013, %v3023
  %v3273 = vadd.f32 %v3014, %v3023
  %v3274 = vadd.f32 %v3015, %v3023
  %v3275 = vadd.f32 %v3016, %v3023
  %v3276 = vadd.f32 %v3017, %v3023
  %v3277 = vadd.f32 %v3018, %v3023
  %v3278 = vadd.f32 %v3019, %v3023
  %v3279 = vadd.f32 %v3020, %v3023
  %v3280 = vadd.f32 %v3021, %v3023
  %v3281 = vmax.f32 %v3025, %v3089
  %v3282 = vmax.f32 %v3026, %v3090
  %v3283 = vmax.f32 %v3027, %v3091
  %v3284 = vmax.f32 %v3028, %v3092
  %v3285 = vmax.f32 %v3029, %v3093
  %v3286 = vmax.f32 %v3030, %v3094
  %v3287 = vmax.f32 %v3031, %v3095
  %v3288 = vmax.f32 %v3032, %v3096
  %v3289 = vmax.f32 %v3033, %v3097
  %v3290 = vmax.f32 %v3034, %v3098
  %v3291 = vmax.f32 %v3035, %v3099
  %v3292 = vmax.f32 %v3036, %v3100
  %v3293 = vmax.f32 %v3037, %v3101
  %v3294 = vmax.f32 %v3038, %v3102
  %v3295 = vmax.f32 %v3039, %v3103
  %v3296 = vmax.f32 %v3040, %v3104
  %v3297 = vmax.f32 %v3041, %v3105
  %v3298 = vmax.f32 %v3042, %v3106
  %v3299 = vmax.f32 %v3043, %v3107
  %v3300 = vmax.f32 %v3044, %v3108
  %v3301 = vmax.f32 %v3045, %v3109
  %v3302 = vmax.f32 %v3046, %v3110
  %v3303 = vmax.f32 %v3047, %v3111
  %v3304 = vmax.f32 %v3048, %v3112
  %v3305 = vmax.f32 %v3049, %v3113
  %v3306 = vmax.f32 %v3050, %v3114
  %v3307 = vmax.f32 %v3051, %v3115
  %v3308 = vmax.f32 %v3052, %v3116
  %v3309 = vmax.f32 %v3053, %v3117
  %v3310 = vmax.f32 %v3054, %v3118
  %v3311 = vmax.f32 %v3055, %v3119
  %v3312 = vmax.f32 %v3056, %v3120
  %v3313 = vmax.f32 %v3057, %v3121
  %v3314 = vmax.f32 %v3058, %v3122
  %v3315 = vmax.f32 %v3059, %v3123
  %v3316 = vmax.f32 %v3060, %v3124
  %v3317 = vmax.f32 %v3061, %v3125
  %v3318 = vmax.f32 %v3062, %v3126
  %v3319 = vmax.f32 %v3063, %v3127
  %v3320 = vmax.f32 %v3064, %v3128
  %v3321 = vmax.f32 %v3065, %v3129
  %v3322 = vmax.f32 %v3066, %v3130
  %v3323 = vmax.f32 %v3067, %v3131
  %v3324 = vmax.f32 %v3068, %v3132
  %v3325 = vmax.f32 %v3069, %v3133
  %v3326 = vmax.f32 %v3070, %v3134
  %v3327 = vmax.f32 %v3071, %v3135
  %v3328 = vmax.f32 %v3072, %v3136
  %v3329 = vmax.f32 %v3073, %v3137
  %v3330 = vmax.f32 %v3074, %v3138
  %v3331 = vmax.f32 %v3075, %v3139
  %v3332 = vmax.f32 %v3076, %v3140
  %v3333 = vmax.f32 %v3077, %v3141
  %v3334 = vmax.f32 %v3078, %v3142
  %v3335 = vmax.f32 %v3079, %v3143
  %v3336 = vmax.f32 %v3080, %v3144
  %v3337 = vmax.f32 %v3081, %v3145
  %v3338 = vmax.f32 %v3082, %v3146
  %v3339 = vmax.f32 %v3083, %v3147
  %v3340 = vmax.f32 %v3084, %v3148
  %v3341 = vmax.f32 %v3085, %v3149
  %v3342 = vmax.f32 %v3086, %v3150
  %v3343 = vmax.f32 %v3087, %v3151
  %v3344 = vmax.f32 %v3088, %v3152
  %v3345 = vmax.f32 %v3153, %v3217
  %v3346 = vmax.f32 %v3154, %v3218
  %v3347 = vmax.f32 %v3155, %v3219
  %v3348 = vmax.f32 %v3156, %v3220
  %v3349 = vmax.f32 %v3157, %v3221
  %v3350 = vmax.f32 %v3158, %v3222
  %v3351 = vmax.f32 %v3159, %v3223
  %v3352 = vmax.f32 %v3160, %v3224
  %v3353 = vmax.f32 %v3161, %v3225
  %v3354 = vmax.f32 %v3162, %v3226
  %v3355 = vmax.f32 %v3163, %v3227
  %v3356 = vmax.f32 %v3164, %v3228
  %v3357 = vmax.f32 %v3165, %v3229
  %v3358 = vmax.f32 %v3166, %v3230
  %v3359 = vmax.f32 %v3167, %v3231
  %v3360 = vmax.f32 %v3168, %v3232
  %v3361 = vmax.f32 %v3169, %v3233
  %v3362 = vmax.f32 %v3170, %v3234
  %v3363 = vmax.f32 %v3171, %v3235
  %v3364 = vmax.f32 %v3172, %v3236
  %v3365 = vmax.f32 %v3173, %v3237
  %v3366 = vmax.f32 %v3174, %v3238
  %v3367 = vmax.f32 %v3175, %v3239
  %v3368 = vmax.f32 %v3176, %v3240
  %v3369 = vmax.f32 %v3177, %v3241
  %v3370 = vmax.f32 %v3178, %v3242
  %v3371 = vmax.f32 %v3179, %v3243
  %v3372 = vmax.f32 %v3180, %v3244
  %v3373 = vmax.f32 %v3181, %v3245
  %v3374 = vmax.f32 %v3182, %v3246
  %v3375 = vmax.f32 %v3183, %v3247
  %v3376 = vmax.f32 %v3184, %v3248
  %v3377 = vmax.f32 %v3185, %v3249
  %v3378 = vmax.f32 %v3186, %v3250
  %v3379 = vmax.f32 %v3187, %v3251
  %v3380 = vmax.f32 %v3188, %v3252
  %v3381 = vmax.f32 %v3189, %v3253
  %v3382 = vmax.f32 %v3190, %v3254
  %v3383 = vmax.f32 %v3191, %v3255
  %v3384 = vmax.f32 %v3192, %v3256
  %v3385 = vmax.f32 %v3193, %v3257
  %v3386 = vmax.f32 %v3194, %v3258
  %v3387 = vmax.f32 %v3195, %v3259
  %v3388 = vmax.f32 %v3196, %v3260
  %v3389 = vmax.f32 %v3197, %v3261
  %v3390 = vmax.f32 %v3198, %v3262
  %v3391 = vmax.f32 %v3199, %v3263
  %v3392 = vmax.f32 %v3200, %v3264
  %v3393 = vmax.f32 %v3201, %v3265
  %v3394 = vmax.f32 %v3202, %v3266
  %v3395 = vmax.f32 %v3203, %v3267
  %v3396 = vmax.f32 %v3204, %v3268
  %v3397 = vmax.f32 %v3205, %v3269
  %v3398 = vmax.f32 %v3206, %v3270
  %v3399 = vmax.f32 %v3207, %v3271
  %v3400 = vmax.f32 %v3208, %v3272
  %v3401 = vmax.f32 %v3209, %v3273
  %v3402 = vmax.f32 %v3210, %v3274
  %v3403 = vmax.f32 %v3211, %v3275
  %v3404 = vmax.f32 %v3212, %v3276
  %v3405 = vmax.f32 %v3213, %v3277
  %v3406 = vmax.f32 %v3214, %v3278
  %v3407 = vmax.f32 %v3215, %v3279
  %v3408 = vmax.f32 %v3216, %v3280
  %v3409 = vmax.f32 %v3281, %v3345
  %v3410 = vmax.f32 %v3282, %v3346
  %v3411 = vmax.f32 %v3283, %v3347
  %v3412 = vmax.f32 %v3284, %v3348
  %v3413 = vmax.f32 %v3285, %v3349
  %v3414 = vmax.f32 %v3286, %v3350
  %v3415 = vmax.f32 %v3287, %v3351
  %v3416 = vmax.f32 %v3288, %v3352
  %v3417 = vmax.f32 %v3289, %v3353
  %v3418 = vmax.f32 %v3290, %v3354
  %v3419 = vmax.f32 %v3291, %v3355
  %v3420 = vmax.f32 %v3292, %v3356
  %v3421 = vmax.f32 %v3293, %v3357
  %v3422 = vmax.f32 %v3294, %v3358
  %v3423 = vmax.f32 %v3295, %v3359
  %v3424 = vmax.f32 %v3296, %v3360
  %v3425 = vmax.f32 %v3297, %v3361
  %v3426 = vmax.f32 %v3298, %v3362
  %v3427 = vmax.f32 %v3299, %v3363
  %v3428 = vmax.f32 %v3300, %v3364
  %v3429 = vmax.f32 %v3301, %v3365
  %v3430 = vmax.f32 %v3302, %v3366
  %v3431 = vmax.f32 %v3303, %v3367
  %v3432 = vmax.f32 %v3304, %v3368
  %v3433 = vmax.f32 %v3305, %v3369
  %v3434 = vmax.f32 %v3306, %v3370
  %v3435 = vmax.f32 %v3307, %v3371
  %v3436 = vmax.f32 %v3308, %v3372
  %v3437 = vmax.f32 %v3309, %v3373
  %v3438 = vmax.f32 %v3310, %v3374
  %v3439 = vmax.f32 %v3311, %v3375
  %v3440 = vmax.f32 %v3312, %v3376
  %v3441 = vmax.f32 %v3313, %v3377
  %v3442 = vmax.f32 %v3314, %v3378
  %v3443 = vmax.f32 %v3315, %v3379
  %v3444 = vmax.f32 %v3316, %v3380
  %v3445 = vmax.f32 %v3317, %v3381
  %v3446 = vmax.f32 %v3318, %v3382
  %v3447 = vmax.f32 %v3319, %v3383
  %v3448 = vmax.f32 %v3320, %v3384
  %v3449 = vmax.f32 %v3321, %v3385
  %v3450 = vmax.f32 %v3322, %v3386
  %v3451 = vmax.f32 %v3323, %v3387
  %v3452 = vmax.f32 %v3324, %v3388
  %v3453 = vmax.f32 %v3325, %v3389
  %v3454 = vmax.f32 %v3326, %v3390
  %v3455 = vmax.f32 %v3327, %v3391
  %v3456 = vmax.f32 %v3328, %v3392
  %v3457 = vmax.f32 %v3329, %v3393
  %v3458 = vmax.f32 %v3330, %v3394
  %v3459 = vmax.f32 %v3331, %v3395
  %v3460 = vmax.f32 %v3332, %v3396
  %v3461 = vmax.f32 %v3333, %v3397
  %v3462 = vmax.f32 %v3334, %v3398
  %v3463 = vmax.f32 %v3335, %v3399
  %v3464 = vmax.f32 %v3336, %v3400
  %v3465 = vmax.f32 %v3337, %v3401
  %v3466 = vmax.f32 %v3338, %v3402
  %v3467 = vmax.f32 %v3339, %v3403
  %v3468 = vmax.f32 %v3340, %v3404
  %v3469 = vmax.f32 %v3341, %v3405
  %v3470 = vmax.f32 %v3342, %v3406
  %v3471 = vmax.f32 %v3343, %v3407
  %v3472 = vmax.f32 %v3344, %v3408
  %3473 = vst [vmem:[%s4] sm:$0xff] %v3409
  %3474 = vst [vmem:[%s4 + $0x8] sm:$0xff] %v3410
  %3475 = vst [vmem:[%s4 + $0x10] sm:$0xff] %v3411
  %3476 = vst [vmem:[%s4 + $0x18] sm:$0xff] %v3412
  %3477 = vst [vmem:[%s4 + $0x20] sm:$0xff] %v3413
  %3478 = vst [vmem:[%s4 + $0x28] sm:$0xff] %v3414
  %3479 = vst [vmem:[%s4 + $0x30] sm:$0xff] %v3415
  %3480 = vst [vmem:[%s4 + $0x38] sm:$0xff] %v3416
  %3481 = vst [vmem:[%s4 + $0x40] sm:$0xff] %v3417
  %3482 = vst [vmem:[%s4 + $0x48] sm:$0xff] %v3418
  %3483 = vst [vmem:[%s4 + $0x50] sm:$0xff] %v3419
  %3484 = vst [vmem:[%s4 + $0x58] sm:$0xff] %v3420
  %3485 = vst [vmem:[%s4 + $0x60] sm:$0xff] %v3421
  %3486 = vst [vmem:[%s4 + $0x68] sm:$0xff] %v3422
  %3487 = vst [vmem:[%s4 + $0x70] sm:$0xff] %v3423
  %3488 = vst [vmem:[%s4 + $0x78] sm:$0xff] %v3424
  %3489 = vst [vmem:[%s4 + $0x80] sm:$0xff] %v3425
  %3490 = vst [vmem:[%s4 + $0x88] sm:$0xff] %v3426
  %3491 = vst [vmem:[%s4 + $0x90] sm:$0xff] %v3427
  %3492 = vst [vmem:[%s4 + $0x98] sm:$0xff] %v3428
  %3493 = vst [vmem:[%s4 + $0xa0] sm:$0xff] %v3429
  %3494 = vst [vmem:[%s4 + $0xa8] sm:$0xff] %v3430
  %3495 = vst [vmem:[%s4 + $0xb0] sm:$0xff] %v3431
  %3496 = vst [vmem:[%s4 + $0xb8] sm:$0xff] %v3432
  %3497 = vst [vmem:[%s4 + $0xc0] sm:$0xff] %v3433
  %3498 = vst [vmem:[%s4 + $0xc8] sm:$0xff] %v3434
  %3499 = vst [vmem:[%s4 + $0xd0] sm:$0xff] %v3435
  %3500 = vst [vmem:[%s4 + $0xd8] sm:$0xff] %v3436
  %3501 = vst [vmem:[%s4 + $0xe0] sm:$0xff] %v3437
  %3502 = vst [vmem:[%s4 + $0xe8] sm:$0xff] %v3438
  %3503 = vst [vmem:[%s4 + $0xf0] sm:$0xff] %v3439
  %3504 = vst [vmem:[%s4 + $0xf8] sm:$0xff] %v3440
  %3505 = vst [vmem:[%s4 + $0x100] sm:$0xff] %v3441
  %3506 = vst [vmem:[%s4 + $0x108] sm:$0xff] %v3442
  %3507 = vst [vmem:[%s4 + $0x110] sm:$0xff] %v3443
  %3508 = vst [vmem:[%s4 + $0x118] sm:$0xff] %v3444
  %3509 = vst [vmem:[%s4 + $0x120] sm:$0xff] %v3445
  %3510 = vst [vmem:[%s4 + $0x128] sm:$0xff] %v3446
  %3511 = vst [vmem:[%s4 + $0x130] sm:$0xff] %v3447
  %3512 = vst [vmem:[%s4 + $0x138] sm:$0xff] %v3448
  %3513 = vst [vmem:[%s4 + $0x140] sm:$0xff] %v3449
  %3514 = vst [vmem:[%s4 + $0x148] sm:$0xff] %v3450
  %3515 = vst [vmem:[%s4 + $0x150] sm:$0xff] %v3451
  %3516 = vst [vmem:[%s4 + $0x158] sm:$0xff] %v3452
  %3517 = vst [vmem:[%s4 + $0x160] sm:$0xff] %v3453
  %3518 = vst [vmem:[%s4 + $0x168] sm:$0xff] %v3454
  %3519 = vst [vmem:[%s4 + $0x170] sm:$0xff] %v3455
  %3520 = vst [vmem:[%s4 + $0x178] sm:$0xff] %v3456
  %3521 = vst [vmem:[%s4 + $0x180] sm:$0xff] %v3457
  %3522 = vst [vmem:[%s4 + $0x188] sm:$0xff] %v3458
  %3523 = vst [vmem:[%s4 + $0x190] sm:$0xff] %v3459
  %3524 = vst [vmem:[%s4 + $0x198] sm:$0xff] %v3460
  %3525 = vst [vmem:[%s4 + $0x1a0] sm:$0xff] %v3461
  %3526 = vst [vmem:[%s4 + $0x1a8] sm:$0xff] %v3462
  %3527 = vst [vmem:[%s4 + $0x1b0] sm:$0xff] %v3463
  %3528 = vst [vmem:[%s4 + $0x1b8] sm:$0xff] %v3464
  %3529 = vst [vmem:[%s4 + $0x1c0] sm:$0xff] %v3465
  %3530 = vst [vmem:[%s4 + $0x1c8] sm:$0xff] %v3466
  %3531 = vst [vmem:[%s4 + $0x1d0] sm:$0xff] %v3467
  %3532 = vst [vmem:[%s4 + $0x1d8] sm:$0xff] %v3468
  %3533 = vst [vmem:[%s4 + $0x1e0] sm:$0xff] %v3469
  %3534 = vst [vmem:[%s4 + $0x1e8] sm:$0xff] %v3470
  %3535 = vst [vmem:[%s4 + $0x1f0] sm:$0xff] %v3471
  %3536 = vst [vmem:[%s4 + $0x1f8] sm:$0xff] %v3472
  // Predicated region
  $region18: #{forward.6} parent=0 // pred_check
    _
  $region19: #{forward.6} parent=0 // pred_check_branch
    %3538 = sbr.rel (0) target = $region21
  $region20: #{forward.6} parent=0 // pred_region
    _
  $region21: #{forward.6} parent=0 // pred_fallthru
    _
  // Predicated region
  $region22: #{forward.6} parent=0 // pred_check
    _
  $region23: #{forward.6} parent=0 // pred_check_branch
    %3540 = sbr.rel (0) target = $region25
  $region24: #{forward.6} parent=0 // pred_region
    _
  $region25: #{forward.6} parent=0 // pred_fallthru
    _

// kernel: forward.7
$region0: #{forward.7}
  #allocation0 [shape = 'u32[]', space=smem, size = 0x4, offset = 0x4, fixed_abs, tag = 'smem constant byte address 0x4 - core index']
  #allocation1 [shape = 'u32[72,128]{1,0:T(1,128)}', space=vmem, size = 0x9000, scoped, tag = 'internal scratch']
  %s0 = inlined_call_operand.vmem [shape: bf16[512,144], index: 0, kind: input, shape index: {}]
  %s1 = inlined_call_operand.vmem [shape: bf16[144,128], index: 1, kind: input, shape index: {}]
  %s2 = inlined_call_operand.vmem [shape: f32[1,128], index: 2, kind: input, shape index: {}]
  %s3 = inlined_call_operand.vmem [shape: f32[1,128], index: 3, kind: input, shape index: {}]
  %s4 = inlined_call_operand.vmem [shape: f32[128,128], index: 4, kind: output, shape index: {}]
  %s5 = sld [smem:[#allocation0]]
  $region26: #{forward.7} parent=0
    _
  %s7 = ssub.s32 1, %s5
  %s8 = scalar_select 0, %s7, %s5
  // Predicated region
  $region2: #{forward.7} parent=0 // pred_check
    _
  $region3: #{forward.7} parent=0 // pred_check_branch
    %10 = sbr.rel (0) target = $region5
  $region4: #{forward.7} parent=0 // pred_region
    _
  $region5: #{forward.7} parent=0 // pred_fallthru
    _
  // Predicated region
  $region6: #{forward.7} parent=0 // pred_check
    _
  $region7: #{forward.7} parent=0 // pred_check_branch
    %12 = sbr.rel (0) target = $region9
  $region8: #{forward.7} parent=0 // pred_region
    _
  $region9: #{forward.7} parent=0 // pred_fallthru
    _
  // Predicated region
  $region10: #{forward.7} parent=0 // pred_check
    _
  $region11: #{forward.7} parent=0 // pred_check_branch
    %14 = sbr.rel (0) target = $region13
  $region12: #{forward.7} parent=0 // pred_region
    _
  $region13: #{forward.7} parent=0 // pred_fallthru
    _
  // Predicated region
  $region14: #{forward.7} parent=0 // pred_check
    _
  $region15: #{forward.7} parent=0 // pred_check_branch
    %16 = sbr.rel (0) target = $region17
  $region16: #{forward.7} parent=0 // pred_region
    _
  $region17: #{forward.7} parent=0 // pred_fallthru
    _
  %v18 = vld [vmem:[%s0] sm:$0xff]
  %v19 = vld [vmem:[%s0 + $0x8] sm:$0xff]
  %v20 = vld [vmem:[%s0 + $0x10] sm:$0xff]
  %v21 = vld [vmem:[%s0 + $0x18] sm:$0xff]
  %v22 = vld [vmem:[%s0 + $0x20] sm:$0xff]
  %v23 = vld [vmem:[%s0 + $0x28] sm:$0xff]
  %v24 = vld [vmem:[%s0 + $0x30] sm:$0xff]
  %v25 = vld [vmem:[%s0 + $0x38] sm:$0xff]
  %v26 = vld [vmem:[%s0 + $0x40] sm:$0xff]
  %v27 = vld [vmem:[%s0 + $0x48] sm:$0xff]
  %v28 = vld [vmem:[%s0 + $0x50] sm:$0xff]
  %v29 = vld [vmem:[%s0 + $0x58] sm:$0xff]
  %v30 = vld [vmem:[%s0 + $0x60] sm:$0xff]
  %v31 = vld [vmem:[%s0 + $0x68] sm:$0xff]
  %v32 = vld [vmem:[%s0 + $0x70] sm:$0xff]
  %v33 = vld [vmem:[%s0 + $0x78] sm:$0xff]
  %v34 = vld [vmem:[%s0 + $0x80] sm:$0xff]
  %v35 = vld [vmem:[%s0 + $0x88] sm:$0xff]
  %v36 = vld [vmem:[%s0 + $0x90] sm:$0xff]
  %v37 = vld [vmem:[%s0 + $0x98] sm:$0xff]
  %v38 = vld [vmem:[%s0 + $0xa0] sm:$0xff]
  %v39 = vld [vmem:[%s0 + $0xa8] sm:$0xff]
  %v40 = vld [vmem:[%s0 + $0xb0] sm:$0xff]
  %v41 = vld [vmem:[%s0 + $0xb8] sm:$0xff]
  %v42 = vld [vmem:[%s0 + $0xc0] sm:$0xff]
  %v43 = vld [vmem:[%s0 + $0xc8] sm:$0xff]
  %v44 = vld [vmem:[%s0 + $0xd0] sm:$0xff]
  %v45 = vld [vmem:[%s0 + $0xd8] sm:$0xff]
  %v46 = vld [vmem:[%s0 + $0xe0] sm:$0xff]
  %v47 = vld [vmem:[%s0 + $0xe8] sm:$0xff]
  %v48 = vld [vmem:[%s0 + $0xf0] sm:$0xff]
  %v49 = vld [vmem:[%s0 + $0xf8] sm:$0xff]
  %v50 = vld [vmem:[%s0 + $0x100] sm:$0xff]
  %v51 = vld [vmem:[%s0 + $0x108] sm:$0xff]
  %v52 = vld [vmem:[%s0 + $0x110] sm:$0xff]
  %v53 = vld [vmem:[%s0 + $0x118] sm:$0xff]
  %v54 = vld [vmem:[%s0 + $0x120] sm:$0xff]
  %v55 = vld [vmem:[%s0 + $0x128] sm:$0xff]
  %v56 = vld [vmem:[%s0 + $0x130] sm:$0xff]
  %v57 = vld [vmem:[%s0 + $0x138] sm:$0xff]
  %v58 = vld [vmem:[%s0 + $0x140] sm:$0xff]
  %v59 = vld [vmem:[%s0 + $0x148] sm:$0xff]
  %v60 = vld [vmem:[%s0 + $0x150] sm:$0xff]
  %v61 = vld [vmem:[%s0 + $0x158] sm:$0xff]
  %v62 = vld [vmem:[%s0 + $0x160] sm:$0xff]
  %v63 = vld [vmem:[%s0 + $0x168] sm:$0xff]
  %v64 = vld [vmem:[%s0 + $0x170] sm:$0xff]
  %v65 = vld [vmem:[%s0 + $0x178] sm:$0xff]
  %v66 = vld [vmem:[%s0 + $0x180] sm:$0xff]
  %v67 = vld [vmem:[%s0 + $0x188] sm:$0xff]
  %v68 = vld [vmem:[%s0 + $0x190] sm:$0xff]
  %v69 = vld [vmem:[%s0 + $0x198] sm:$0xff]
  %v70 = vld [vmem:[%s0 + $0x1a0] sm:$0xff]
  %v71 = vld [vmem:[%s0 + $0x1a8] sm:$0xff]
  %v72 = vld [vmem:[%s0 + $0x1b0] sm:$0xff]
  %v73 = vld [vmem:[%s0 + $0x1b8] sm:$0xff]
  %v74 = vld [vmem:[%s0 + $0x1c0] sm:$0xff]
  %v75 = vld [vmem:[%s0 + $0x1c8] sm:$0xff]
  %v76 = vld [vmem:[%s0 + $0x1d0] sm:$0xff]
  %v77 = vld [vmem:[%s0 + $0x1d8] sm:$0xff]
  %v78 = vld [vmem:[%s0 + $0x1e0] sm:$0xff]
  %v79 = vld [vmem:[%s0 + $0x1e8] sm:$0xff]
  %v80 = vld [vmem:[%s0 + $0x1f0] sm:$0xff]
  %v81 = vld [vmem:[%s0 + $0x1f8] sm:$0xff]
  %v82 = vld [vmem:[%s1] sm:$0xf]
  %v83 = vld [vmem:[%s1 + $0x4] sm:$0xf]
  %v84 = vld [vmem:[%s1 + $0x8] sm:$0xf]
  %v85 = vld [vmem:[%s1 + $0xc] sm:$0xf]
  %v86 = vld [vmem:[%s1 + $0x10] sm:$0xf]
  %v87 = vld [vmem:[%s1 + $0x14] sm:$0xf]
  %v88 = vld [vmem:[%s1 + $0x18] sm:$0xf]
  %v89 = vld [vmem:[%s1 + $0x1c] sm:$0xf]
  %v90 = vld [vmem:[%s1 + $0x20] sm:$0xf]
  %v91 = vld [vmem:[%s1 + $0x24] sm:$0xf]
  %v92 = vld [vmem:[%s1 + $0x28] sm:$0xf]
  %v93 = vld [vmem:[%s1 + $0x2c] sm:$0xf]
  %v94 = vld [vmem:[%s1 + $0x30] sm:$0xf]
  %v95 = vld [vmem:[%s1 + $0x34] sm:$0xf]
  %v96 = vld [vmem:[%s1 + $0x38] sm:$0xf]
  %v97 = vld [vmem:[%s1 + $0x3c] sm:$0xf]
  %v98 = vld [vmem:[%s1 + $0x40] sm:$0xf]
  %v99 = vld [vmem:[%s1 + $0x44] sm:$0xf]
  %v164 = vunpack.c.l.b16 %v18
  %v165 = vunpack.c.h.b16 %v18
  %v166 = vunpack.c.l.b16 %v19
  %v167 = vunpack.c.h.b16 %v19
  %v168 = vunpack.c.l.b16 %v20
  %v169 = vunpack.c.h.b16 %v20
  %v170 = vunpack.c.l.b16 %v21
  %v171 = vunpack.c.h.b16 %v21
  %v172 = vunpack.c.l.b16 %v22
  %v173 = vunpack.c.h.b16 %v22
  %v174 = vunpack.c.l.b16 %v23
  %v175 = vunpack.c.h.b16 %v23
  %v176 = vunpack.c.l.b16 %v24
  %v177 = vunpack.c.h.b16 %v24
  %v178 = vunpack.c.l.b16 %v25
  %v179 = vunpack.c.h.b16 %v25
  %v180 = vunpack.c.l.b16 %v26
  %v181 = vunpack.c.h.b16 %v26
  %v182 = vunpack.c.l.b16 %v27
  %v183 = vunpack.c.h.b16 %v27
  %v184 = vunpack.c.l.b16 %v28
  %v185 = vunpack.c.h.b16 %v28
  %v186 = vunpack.c.l.b16 %v29
  %v187 = vunpack.c.h.b16 %v29
  %v188 = vunpack.c.l.b16 %v30
  %v189 = vunpack.c.h.b16 %v30
  %v190 = vunpack.c.l.b16 %v31
  %v191 = vunpack.c.h.b16 %v31
  %v192 = vunpack.c.l.b16 %v32
  %v193 = vunpack.c.h.b16 %v32
  %v194 = vunpack.c.l.b16 %v33
  %v195 = vunpack.c.h.b16 %v33
  %v196 = vunpack.c.l.b16 %v34
  %v197 = vunpack.c.h.b16 %v34
  %v198 = vunpack.c.l.b16 %v35
  %v199 = vunpack.c.h.b16 %v35
  %v200 = vunpack.c.l.b16 %v36
  %v201 = vunpack.c.h.b16 %v36
  %v202 = vunpack.c.l.b16 %v37
  %v203 = vunpack.c.h.b16 %v37
  %v204 = vunpack.c.l.b16 %v38
  %v205 = vunpack.c.h.b16 %v38
  %v206 = vunpack.c.l.b16 %v39
  %v207 = vunpack.c.h.b16 %v39
  %v208 = vunpack.c.l.b16 %v40
  %v209 = vunpack.c.h.b16 %v40
  %v210 = vunpack.c.l.b16 %v41
  %v211 = vunpack.c.h.b16 %v41
  %v212 = vunpack.c.l.b16 %v42
  %v213 = vunpack.c.h.b16 %v42
  %v214 = vunpack.c.l.b16 %v43
  %v215 = vunpack.c.h.b16 %v43
  %v216 = vunpack.c.l.b16 %v44
  %v217 = vunpack.c.h.b16 %v44
  %v218 = vunpack.c.l.b16 %v45
  %v219 = vunpack.c.h.b16 %v45
  %v220 = vunpack.c.l.b16 %v46
  %v221 = vunpack.c.h.b16 %v46
  %v222 = vunpack.c.l.b16 %v47
  %v223 = vunpack.c.h.b16 %v47
  %v224 = vunpack.c.l.b16 %v48
  %v225 = vunpack.c.h.b16 %v48
  %v226 = vunpack.c.l.b16 %v49
  %v227 = vunpack.c.h.b16 %v49
  %v228 = vunpack.c.l.b16 %v50
  %v229 = vunpack.c.h.b16 %v50
  %v230 = vunpack.c.l.b16 %v51
  %v231 = vunpack.c.h.b16 %v51
  %v232 = vunpack.c.l.b16 %v52
  %v233 = vunpack.c.h.b16 %v52
  %v234 = vunpack.c.l.b16 %v53
  %v235 = vunpack.c.h.b16 %v53
  %v236 = vunpack.c.l.b16 %v54
  %v237 = vunpack.c.h.b16 %v54
  %v238 = vunpack.c.l.b16 %v55
  %v239 = vunpack.c.h.b16 %v55
  %v240 = vunpack.c.l.b16 %v56
  %v241 = vunpack.c.h.b16 %v56
  %v242 = vunpack.c.l.b16 %v57
  %v243 = vunpack.c.h.b16 %v57
  %v244 = vunpack.c.l.b16 %v58
  %v245 = vunpack.c.h.b16 %v58
  %v246 = vunpack.c.l.b16 %v59
  %v247 = vunpack.c.h.b16 %v59
  %v248 = vunpack.c.l.b16 %v60
  %v249 = vunpack.c.h.b16 %v60
  %v250 = vunpack.c.l.b16 %v61
  %v251 = vunpack.c.h.b16 %v61
  %v252 = vunpack.c.l.b16 %v62
  %v253 = vunpack.c.h.b16 %v62
  %v254 = vunpack.c.l.b16 %v63
  %v255 = vunpack.c.h.b16 %v63
  %v256 = vunpack.c.l.b16 %v64
  %v257 = vunpack.c.h.b16 %v64
  %v258 = vunpack.c.l.b16 %v65
  %v259 = vunpack.c.h.b16 %v65
  %v260 = vunpack.c.l.b16 %v66
  %v261 = vunpack.c.h.b16 %v66
  %v262 = vunpack.c.l.b16 %v67
  %v263 = vunpack.c.h.b16 %v67
  %v264 = vunpack.c.l.b16 %v68
  %v265 = vunpack.c.h.b16 %v68
  %v266 = vunpack.c.l.b16 %v69
  %v267 = vunpack.c.h.b16 %v69
  %v268 = vunpack.c.l.b16 %v70
  %v269 = vunpack.c.h.b16 %v70
  %v270 = vunpack.c.l.b16 %v71
  %v271 = vunpack.c.h.b16 %v71
  %v272 = vunpack.c.l.b16 %v72
  %v273 = vunpack.c.h.b16 %v72
  %v274 = vunpack.c.l.b16 %v73
  %v275 = vunpack.c.h.b16 %v73
  %v276 = vunpack.c.l.b16 %v74
  %v277 = vunpack.c.h.b16 %v74
  %v278 = vunpack.c.l.b16 %v75
  %v279 = vunpack.c.h.b16 %v75
  %v280 = vunpack.c.l.b16 %v76
  %v281 = vunpack.c.h.b16 %v76
  %v282 = vunpack.c.l.b16 %v77
  %v283 = vunpack.c.h.b16 %v77
  %v284 = vunpack.c.l.b16 %v78
  %v285 = vunpack.c.h.b16 %v78
  %v286 = vunpack.c.l.b16 %v79
  %v287 = vunpack.c.h.b16 %v79
  %v288 = vunpack.c.l.b16 %v80
  %v289 = vunpack.c.h.b16 %v80
  %v290 = vunpack.c.l.b16 %v81
  %v291 = vunpack.c.h.b16 %v81
  %v292 = vpack.c.b16 %v166, %v164
  %v293 = vpack.c.b16 %v167, %v165
  %v294 = vpack.c.b16 %v170, %v168
  %v295 = vpack.c.b16 %v171, %v169
  %v296 = vpack.c.b16 %v174, %v172
  %v297 = vpack.c.b16 %v175, %v173
  %v298 = vpack.c.b16 %v178, %v176
  %v299 = vpack.c.b16 %v179, %v177
  %v300 = vpack.c.b16 %v182, %v180
  %v301 = vpack.c.b16 %v183, %v181
  %v302 = vpack.c.b16 %v186, %v184
  %v303 = vpack.c.b16 %v187, %v185
  %v304 = vpack.c.b16 %v190, %v188
  %v305 = vpack.c.b16 %v191, %v189
  %v306 = vpack.c.b16 %v194, %v192
  %v307 = vpack.c.b16 %v195, %v193
  %v308 = vpack.c.b16 %v198, %v196
  %v309 = vpack.c.b16 %v199, %v197
  %v310 = vpack.c.b16 %v202, %v200
  %v311 = vpack.c.b16 %v203, %v201
  %v312 = vpack.c.b16 %v206, %v204
  %v313 = vpack.c.b16 %v207, %v205
  %v314 = vpack.c.b16 %v210, %v208
  %v315 = vpack.c.b16 %v211, %v209
  %v316 = vpack.c.b16 %v214, %v212
  %v317 = vpack.c.b16 %v215, %v213
  %v318 = vpack.c.b16 %v218, %v216
  %v319 = vpack.c.b16 %v219, %v217
  %v320 = vpack.c.b16 %v222, %v220
  %v321 = vpack.c.b16 %v223, %v221
  %v322 = vpack.c.b16 %v226, %v224
  %v323 = vpack.c.b16 %v227, %v225
  %v324 = vpack.c.b16 %v230, %v228
  %v325 = vpack.c.b16 %v231, %v229
  %v326 = vpack.c.b16 %v234, %v232
  %v327 = vpack.c.b16 %v235, %v233
  %v328 = vpack.c.b16 %v238, %v236
  %v329 = vpack.c.b16 %v239, %v237
  %v330 = vpack.c.b16 %v242, %v240
  %v331 = vpack.c.b16 %v243, %v241
  %v332 = vpack.c.b16 %v246, %v244
  %v333 = vpack.c.b16 %v247, %v245
  %v334 = vpack.c.b16 %v250, %v248
  %v335 = vpack.c.b16 %v251, %v249
  %v336 = vpack.c.b16 %v254, %v252
  %v337 = vpack.c.b16 %v255, %v253
  %v338 = vpack.c.b16 %v258, %v256
  %v339 = vpack.c.b16 %v259, %v257
  %v340 = vpack.c.b16 %v262, %v260
  %v341 = vpack.c.b16 %v263, %v261
  %v342 = vpack.c.b16 %v266, %v264
  %v343 = vpack.c.b16 %v267, %v265
  %v344 = vpack.c.b16 %v270, %v268
  %v345 = vpack.c.b16 %v271, %v269
  %v346 = vpack.c.b16 %v274, %v272
  %v347 = vpack.c.b16 %v275, %v273
  %v348 = vpack.c.b16 %v278, %v276
  %v349 = vpack.c.b16 %v279, %v277
  %v350 = vpack.c.b16 %v282, %v280
  %v351 = vpack.c.b16 %v283, %v281
  %v352 = vpack.c.b16 %v286, %v284
  %v353 = vpack.c.b16 %v287, %v285
  %v354 = vpack.c.b16 %v290, %v288
  %v355 = vpack.c.b16 %v291, %v289
  %v406 = vunpack.c.l.b16 %v82
  %v407 = vunpack.c.l.b16 %v83
  %v408 = vunpack.c.l.b16 %v84
  %v409 = vunpack.c.l.b16 %v85
  %v410 = vunpack.c.l.b16 %v86
  %v411 = vunpack.c.l.b16 %v87
  %v412 = vunpack.c.l.b16 %v88
  %v413 = vunpack.c.l.b16 %v89
  %v414 = vunpack.c.l.b16 %v90
  %v415 = vunpack.c.l.b16 %v91
  %v416 = vunpack.c.l.b16 %v92
  %v417 = vunpack.c.l.b16 %v93
  %v418 = vunpack.c.l.b16 %v94
  %v419 = vunpack.c.l.b16 %v95
  %v420 = vunpack.c.l.b16 %v96
  %v421 = vunpack.c.l.b16 %v97
  %v422 = vunpack.c.l.b16 %v98
  %v423 = vunpack.c.l.b16 %v99
  %v424 = vpack.c.b16 %v407, %v406
  %v425 = vpack.c.b16 %v409, %v408
  %v426 = vpack.c.b16 %v411, %v410
  %v427 = vpack.c.b16 %v413, %v412
  %v428 = vpack.c.b16 %v415, %v414
  %v429 = vpack.c.b16 %v417, %v416
  %v430 = vpack.c.b16 %v419, %v418
  %v431 = vpack.c.b16 %v421, %v420
  %v432 = vpack.c.b16 %v423, %v422
  %vm442 = vcmask 130048
  %v444 = vsel %vm442, %v293, 0
  %v447 = vsel %vm442, %v295, 0
  %v450 = vsel %vm442, %v297, 0
  %v453 = vsel %vm442, %v299, 0
  %v456 = vsel %vm442, %v301, 0
  %v459 = vsel %vm442, %v303, 0
  %v462 = vsel %vm442, %v305, 0
  %v465 = vsel %vm442, %v307, 0
  %v468 = vsel %vm442, %v309, 0
  %v471 = vsel %vm442, %v311, 0
  %v474 = vsel %vm442, %v313, 0
  %v477 = vsel %vm442, %v315, 0
  %v480 = vsel %vm442, %v317, 0
  %v483 = vsel %vm442, %v319, 0
  %v486 = vsel %vm442, %v321, 0
  %v489 = vsel %vm442, %v323, 0
  %v492 = vsel %vm442, %v325, 0
  %v495 = vsel %vm442, %v327, 0
  %v498 = vsel %vm442, %v329, 0
  %v501 = vsel %vm442, %v331, 0
  %v504 = vsel %vm442, %v333, 0
  %v507 = vsel %vm442, %v335, 0
  %v510 = vsel %vm442, %v337, 0
  %v513 = vsel %vm442, %v339, 0
  %v516 = vsel %vm442, %v341, 0
  %v519 = vsel %vm442, %v343, 0
  %v522 = vsel %vm442, %v345, 0
  %v525 = vsel %vm442, %v347, 0
  %v528 = vsel %vm442, %v349, 0
  %v531 = vsel %vm442, %v351, 0
  %v534 = vsel %vm442, %v353, 0
  %v537 = vsel %vm442, %v355, 0
  %539 = vmatpush.bf16.msra.mxu0 %v431
  %540 = vmatpush.bf16.msra.mxu0 %v430
  %541 = vmatpush.bf16.msra.mxu0 %v429
  %542 = vmatpush.bf16.msra.mxu0 %v428
  %543 = vmatpush.bf16.msra.mxu0 %v427
  %544 = vmatpush.bf16.msra.mxu0 %v426
  %545 = vmatpush.bf16.msra.mxu0 %v425
  %546 = vmatpush.bf16.msra.mxu0 %v424
  %547 = vmatmul.bf16.gmra.mxu0 %v292
  %v548 = vpop.f32.mrf.mxu0
  %v549 = vadd.f32 0.0, %v548
  %v550 = vpop.f32.mrf.mxu0
  %v551 = vadd.f32 0.0, %v550
  %552 = vmatmul.bf16.gmra.mxu0 %v294
  %v553 = vpop.f32.mrf.mxu0
  %v554 = vadd.f32 0.0, %v553
  %v555 = vpop.f32.mrf.mxu0
  %v556 = vadd.f32 0.0, %v555
  %557 = vmatmul.bf16.gmra.mxu0 %v296
  %v558 = vpop.f32.mrf.mxu0
  %v559 = vadd.f32 0.0, %v558
  %v560 = vpop.f32.mrf.mxu0
  %v561 = vadd.f32 0.0, %v560
  %562 = vmatmul.bf16.gmra.mxu0 %v298
  %v563 = vpop.f32.mrf.mxu0
  %v564 = vadd.f32 0.0, %v563
  %v565 = vpop.f32.mrf.mxu0
  %v566 = vadd.f32 0.0, %v565
  %567 = vmatmul.bf16.gmra.mxu0 %v300
  %v568 = vpop.f32.mrf.mxu0
  %v569 = vadd.f32 0.0, %v568
  %v570 = vpop.f32.mrf.mxu0
  %v571 = vadd.f32 0.0, %v570
  %572 = vmatmul.bf16.gmra.mxu0 %v302
  %v573 = vpop.f32.mrf.mxu0
  %v574 = vadd.f32 0.0, %v573
  %v575 = vpop.f32.mrf.mxu0
  %v576 = vadd.f32 0.0, %v575
  %577 = vmatmul.bf16.gmra.mxu0 %v304
  %v578 = vpop.f32.mrf.mxu0
  %v579 = vadd.f32 0.0, %v578
  %v580 = vpop.f32.mrf.mxu0
  %v581 = vadd.f32 0.0, %v580
  %582 = vmatmul.bf16.gmra.mxu0 %v306
  %v583 = vpop.f32.mrf.mxu0
  %v584 = vadd.f32 0.0, %v583
  %v585 = vpop.f32.mrf.mxu0
  %v586 = vadd.f32 0.0, %v585
  %587 = vmatmul.bf16.gmra.mxu0 %v308
  %v588 = vpop.f32.mrf.mxu0
  %v589 = vadd.f32 0.0, %v588
  %v590 = vpop.f32.mrf.mxu0
  %v591 = vadd.f32 0.0, %v590
  %592 = vmatmul.bf16.gmra.mxu0 %v310
  %v593 = vpop.f32.mrf.mxu0
  %v594 = vadd.f32 0.0, %v593
  %v595 = vpop.f32.mrf.mxu0
  %v596 = vadd.f32 0.0, %v595
  %597 = vmatmul.bf16.gmra.mxu0 %v312
  %v598 = vpop.f32.mrf.mxu0
  %v599 = vadd.f32 0.0, %v598
  %v600 = vpop.f32.mrf.mxu0
  %v601 = vadd.f32 0.0, %v600
  %602 = vmatmul.bf16.gmra.mxu0 %v314
  %v603 = vpop.f32.mrf.mxu0
  %v604 = vadd.f32 0.0, %v603
  %v605 = vpop.f32.mrf.mxu0
  %v606 = vadd.f32 0.0, %v605
  %607 = vmatmul.bf16.gmra.mxu0 %v316
  %v608 = vpop.f32.mrf.mxu0
  %v609 = vadd.f32 0.0, %v608
  %v610 = vpop.f32.mrf.mxu0
  %v611 = vadd.f32 0.0, %v610
  %612 = vmatmul.bf16.gmra.mxu0 %v318
  %v613 = vpop.f32.mrf.mxu0
  %v614 = vadd.f32 0.0, %v613
  %v615 = vpop.f32.mrf.mxu0
  %v616 = vadd.f32 0.0, %v615
  %617 = vmatmul.bf16.gmra.mxu0 %v320
  %v618 = vpop.f32.mrf.mxu0
  %v619 = vadd.f32 0.0, %v618
  %v620 = vpop.f32.mrf.mxu0
  %v621 = vadd.f32 0.0, %v620
  %622 = vmatmul.bf16.gmra.mxu0 %v322
  %v623 = vpop.f32.mrf.mxu0
  %v624 = vadd.f32 0.0, %v623
  %v625 = vpop.f32.mrf.mxu0
  %v626 = vadd.f32 0.0, %v625
  %627 = vmatmul.bf16.gmra.mxu0 %v324
  %v628 = vpop.f32.mrf.mxu0
  %v629 = vadd.f32 0.0, %v628
  %v630 = vpop.f32.mrf.mxu0
  %v631 = vadd.f32 0.0, %v630
  %632 = vmatmul.bf16.gmra.mxu0 %v326
  %v633 = vpop.f32.mrf.mxu0
  %v634 = vadd.f32 0.0, %v633
  %v635 = vpop.f32.mrf.mxu0
  %v636 = vadd.f32 0.0, %v635
  %637 = vmatmul.bf16.gmra.mxu0 %v328
  %v638 = vpop.f32.mrf.mxu0
  %v639 = vadd.f32 0.0, %v638
  %v640 = vpop.f32.mrf.mxu0
  %v641 = vadd.f32 0.0, %v640
  %642 = vmatmul.bf16.gmra.mxu0 %v330
  %v643 = vpop.f32.mrf.mxu0
  %v644 = vadd.f32 0.0, %v643
  %v645 = vpop.f32.mrf.mxu0
  %v646 = vadd.f32 0.0, %v645
  %647 = vmatmul.bf16.gmra.mxu0 %v332
  %v648 = vpop.f32.mrf.mxu0
  %v649 = vadd.f32 0.0, %v648
  %v650 = vpop.f32.mrf.mxu0
  %v651 = vadd.f32 0.0, %v650
  %652 = vmatmul.bf16.gmra.mxu0 %v334
  %v653 = vpop.f32.mrf.mxu0
  %v654 = vadd.f32 0.0, %v653
  %v655 = vpop.f32.mrf.mxu0
  %v656 = vadd.f32 0.0, %v655
  %657 = vmatmul.bf16.gmra.mxu0 %v336
  %v658 = vpop.f32.mrf.mxu0
  %v659 = vadd.f32 0.0, %v658
  %v660 = vpop.f32.mrf.mxu0
  %v661 = vadd.f32 0.0, %v660
  %662 = vmatmul.bf16.gmra.mxu0 %v338
  %v663 = vpop.f32.mrf.mxu0
  %v664 = vadd.f32 0.0, %v663
  %v665 = vpop.f32.mrf.mxu0
  %v666 = vadd.f32 0.0, %v665
  %667 = vmatmul.bf16.gmra.mxu0 %v340
  %v668 = vpop.f32.mrf.mxu0
  %v669 = vadd.f32 0.0, %v668
  %v670 = vpop.f32.mrf.mxu0
  %v671 = vadd.f32 0.0, %v670
  %672 = vmatmul.bf16.gmra.mxu0 %v342
  %v673 = vpop.f32.mrf.mxu0
  %v674 = vadd.f32 0.0, %v673
  %v675 = vpop.f32.mrf.mxu0
  %v676 = vadd.f32 0.0, %v675
  %677 = vmatmul.bf16.gmra.mxu0 %v344
  %v678 = vpop.f32.mrf.mxu0
  %v679 = vadd.f32 0.0, %v678
  %v680 = vpop.f32.mrf.mxu0
  %v681 = vadd.f32 0.0, %v680
  %682 = vmatmul.bf16.gmra.mxu0 %v346
  %v683 = vpop.f32.mrf.mxu0
  %v684 = vadd.f32 0.0, %v683
  %v685 = vpop.f32.mrf.mxu0
  %v686 = vadd.f32 0.0, %v685
  %687 = vmatmul.bf16.gmra.mxu0 %v348
  %v688 = vpop.f32.mrf.mxu0
  %v689 = vadd.f32 0.0, %v688
  %v690 = vpop.f32.mrf.mxu0
  %v691 = vadd.f32 0.0, %v690
  %692 = vmatmul.bf16.gmra.mxu0 %v350
  %v693 = vpop.f32.mrf.mxu0
  %v694 = vadd.f32 0.0, %v693
  %v695 = vpop.f32.mrf.mxu0
  %v696 = vadd.f32 0.0, %v695
  %697 = vmatmul.bf16.gmra.mxu0 %v352
  %v698 = vpop.f32.mrf.mxu0
  %v699 = vadd.f32 0.0, %v698
  %v700 = vpop.f32.mrf.mxu0
  %v701 = vadd.f32 0.0, %v700
  %702 = vmatmul.bf16.gmra.mxu0 %v354
  %v703 = vpop.f32.mrf.mxu0
  %v704 = vadd.f32 0.0, %v703
  %v705 = vpop.f32.mrf.mxu0
  %v706 = vadd.f32 0.0, %v705
  %707 = vdwg.mxu0
  %708 = vmatpush.bf16.msra.mxu0 0
  %709 = vmatpush.bf16.msra.mxu0 0
  %710 = vmatpush.bf16.msra.mxu0 0
  %711 = vmatpush.bf16.msra.mxu0 0
  %712 = vmatpush.bf16.msra.mxu0 0
  %713 = vmatpush.bf16.msra.mxu0 0
  %714 = vmatpush.bf16.msra.mxu0 0
  %715 = vmatpush.bf16.msra.mxu0 %v432
  %716 = vmatmul.bf16.gmra.mxu0 %v444
  %v717 = vpop.f32.mrf.mxu0
  %v718 = vadd.f32 %v549, %v717
  %v719 = vpop.f32.mrf.mxu0
  %v720 = vadd.f32 %v551, %v719
  %721 = vmatmul.bf16.gmra.mxu0 %v447
  %v722 = vpop.f32.mrf.mxu0
  %v723 = vadd.f32 %v554, %v722
  %v724 = vpop.f32.mrf.mxu0
  %v725 = vadd.f32 %v556, %v724
  %726 = vmatmul.bf16.gmra.mxu0 %v450
  %v727 = vpop.f32.mrf.mxu0
  %v728 = vadd.f32 %v559, %v727
  %v729 = vpop.f32.mrf.mxu0
  %v730 = vadd.f32 %v561, %v729
  %731 = vmatmul.bf16.gmra.mxu0 %v453
  %v732 = vpop.f32.mrf.mxu0
  %v733 = vadd.f32 %v564, %v732
  %v734 = vpop.f32.mrf.mxu0
  %v735 = vadd.f32 %v566, %v734
  %736 = vmatmul.bf16.gmra.mxu0 %v456
  %v737 = vpop.f32.mrf.mxu0
  %v738 = vadd.f32 %v569, %v737
  %v739 = vpop.f32.mrf.mxu0
  %v740 = vadd.f32 %v571, %v739
  %741 = vmatmul.bf16.gmra.mxu0 %v459
  %v742 = vpop.f32.mrf.mxu0
  %v743 = vadd.f32 %v574, %v742
  %v744 = vpop.f32.mrf.mxu0
  %v745 = vadd.f32 %v576, %v744
  %746 = vmatmul.bf16.gmra.mxu0 %v462
  %v747 = vpop.f32.mrf.mxu0
  %v748 = vadd.f32 %v579, %v747
  %v749 = vpop.f32.mrf.mxu0
  %v750 = vadd.f32 %v581, %v749
  %751 = vmatmul.bf16.gmra.mxu0 %v465
  %v752 = vpop.f32.mrf.mxu0
  %v753 = vadd.f32 %v584, %v752
  %v754 = vpop.f32.mrf.mxu0
  %v755 = vadd.f32 %v586, %v754
  %756 = vmatmul.bf16.gmra.mxu0 %v468
  %v757 = vpop.f32.mrf.mxu0
  %v758 = vadd.f32 %v589, %v757
  %v759 = vpop.f32.mrf.mxu0
  %v760 = vadd.f32 %v591, %v759
  %761 = vmatmul.bf16.gmra.mxu0 %v471
  %v762 = vpop.f32.mrf.mxu0
  %v763 = vadd.f32 %v594, %v762
  %v764 = vpop.f32.mrf.mxu0
  %v765 = vadd.f32 %v596, %v764
  %766 = vmatmul.bf16.gmra.mxu0 %v474
  %v767 = vpop.f32.mrf.mxu0
  %v768 = vadd.f32 %v599, %v767
  %v769 = vpop.f32.mrf.mxu0
  %v770 = vadd.f32 %v601, %v769
  %771 = vmatmul.bf16.gmra.mxu0 %v477
  %v772 = vpop.f32.mrf.mxu0
  %v773 = vadd.f32 %v604, %v772
  %v774 = vpop.f32.mrf.mxu0
  %v775 = vadd.f32 %v606, %v774
  %776 = vmatmul.bf16.gmra.mxu0 %v480
  %v777 = vpop.f32.mrf.mxu0
  %v778 = vadd.f32 %v609, %v777
  %v779 = vpop.f32.mrf.mxu0
  %v780 = vadd.f32 %v611, %v779
  %781 = vmatmul.bf16.gmra.mxu0 %v483
  %v782 = vpop.f32.mrf.mxu0
  %v783 = vadd.f32 %v614, %v782
  %v784 = vpop.f32.mrf.mxu0
  %v785 = vadd.f32 %v616, %v784
  %786 = vmatmul.bf16.gmra.mxu0 %v486
  %v787 = vpop.f32.mrf.mxu0
  %v788 = vadd.f32 %v619, %v787
  %v789 = vpop.f32.mrf.mxu0
  %v790 = vadd.f32 %v621, %v789
  %791 = vmatmul.bf16.gmra.mxu0 %v489
  %v792 = vpop.f32.mrf.mxu0
  %v793 = vadd.f32 %v624, %v792
  %v794 = vpop.f32.mrf.mxu0
  %v795 = vadd.f32 %v626, %v794
  %796 = vmatmul.bf16.gmra.mxu0 %v492
  %v797 = vpop.f32.mrf.mxu0
  %v798 = vadd.f32 %v629, %v797
  %v799 = vpop.f32.mrf.mxu0
  %v800 = vadd.f32 %v631, %v799
  %801 = vmatmul.bf16.gmra.mxu0 %v495
  %v802 = vpop.f32.mrf.mxu0
  %v803 = vadd.f32 %v634, %v802
  %v804 = vpop.f32.mrf.mxu0
  %v805 = vadd.f32 %v636, %v804
  %806 = vmatmul.bf16.gmra.mxu0 %v498
  %v807 = vpop.f32.mrf.mxu0
  %v808 = vadd.f32 %v639, %v807
  %v809 = vpop.f32.mrf.mxu0
  %v810 = vadd.f32 %v641, %v809
  %811 = vmatmul.bf16.gmra.mxu0 %v501
  %v812 = vpop.f32.mrf.mxu0
  %v813 = vadd.f32 %v644, %v812
  %v814 = vpop.f32.mrf.mxu0
  %v815 = vadd.f32 %v646, %v814
  %816 = vmatmul.bf16.gmra.mxu0 %v504
  %v817 = vpop.f32.mrf.mxu0
  %v818 = vadd.f32 %v649, %v817
  %v819 = vpop.f32.mrf.mxu0
  %v820 = vadd.f32 %v651, %v819
  %821 = vmatmul.bf16.gmra.mxu0 %v507
  %v822 = vpop.f32.mrf.mxu0
  %v823 = vadd.f32 %v654, %v822
  %v824 = vpop.f32.mrf.mxu0
  %v825 = vadd.f32 %v656, %v824
  %826 = vmatmul.bf16.gmra.mxu0 %v510
  %v827 = vpop.f32.mrf.mxu0
  %v828 = vadd.f32 %v659, %v827
  %v829 = vpop.f32.mrf.mxu0
  %v830 = vadd.f32 %v661, %v829
  %831 = vmatmul.bf16.gmra.mxu0 %v513
  %v832 = vpop.f32.mrf.mxu0
  %v833 = vadd.f32 %v664, %v832
  %v834 = vpop.f32.mrf.mxu0
  %v835 = vadd.f32 %v666, %v834
  %836 = vmatmul.bf16.gmra.mxu0 %v516
  %v837 = vpop.f32.mrf.mxu0
  %v838 = vadd.f32 %v669, %v837
  %v839 = vpop.f32.mrf.mxu0
  %v840 = vadd.f32 %v671, %v839
  %841 = vmatmul.bf16.gmra.mxu0 %v519
  %v842 = vpop.f32.mrf.mxu0
  %v843 = vadd.f32 %v674, %v842
  %v844 = vpop.f32.mrf.mxu0
  %v845 = vadd.f32 %v676, %v844
  %846 = vmatmul.bf16.gmra.mxu0 %v522
  %v847 = vpop.f32.mrf.mxu0
  %v848 = vadd.f32 %v679, %v847
  %v849 = vpop.f32.mrf.mxu0
  %v850 = vadd.f32 %v681, %v849
  %851 = vmatmul.bf16.gmra.mxu0 %v525
  %v852 = vpop.f32.mrf.mxu0
  %v853 = vadd.f32 %v684, %v852
  %v854 = vpop.f32.mrf.mxu0
  %v855 = vadd.f32 %v686, %v854
  %856 = vmatmul.bf16.gmra.mxu0 %v528
  %v857 = vpop.f32.mrf.mxu0
  %v858 = vadd.f32 %v689, %v857
  %v859 = vpop.f32.mrf.mxu0
  %v860 = vadd.f32 %v691, %v859
  %861 = vmatmul.bf16.gmra.mxu0 %v531
  %v862 = vpop.f32.mrf.mxu0
  %v863 = vadd.f32 %v694, %v862
  %v864 = vpop.f32.mrf.mxu0
  %v865 = vadd.f32 %v696, %v864
  %866 = vmatmul.bf16.gmra.mxu0 %v534
  %v867 = vpop.f32.mrf.mxu0
  %v868 = vadd.f32 %v699, %v867
  %v869 = vpop.f32.mrf.mxu0
  %v870 = vadd.f32 %v701, %v869
  %871 = vmatmul.bf16.gmra.mxu0 %v537
  %v872 = vpop.f32.mrf.mxu0
  %v873 = vadd.f32 %v704, %v872
  %v874 = vpop.f32.mrf.mxu0
  %v875 = vadd.f32 %v706, %v874
  %876 = vdwg.mxu0
  %v877 = vadd.f32 %v718, %v720
  %v878 = vadd.f32 %v877, %v723
  %v879 = vadd.f32 %v878, %v725
  %v880 = vadd.f32 %v879, %v728
  %v881 = vadd.f32 %v880, %v730
  %v882 = vadd.f32 %v881, %v733
  %v883 = vadd.f32 %v882, %v735
  %v884 = vadd.f32 %v883, %v738
  %v885 = vadd.f32 %v884, %v740
  %v886 = vadd.f32 %v885, %v743
  %v887 = vadd.f32 %v886, %v745
  %v888 = vadd.f32 %v887, %v748
  %v889 = vadd.f32 %v888, %v750
  %v890 = vadd.f32 %v889, %v753
  %v891 = vadd.f32 %v890, %v755
  %v892 = vadd.f32 %v891, %v758
  %v893 = vadd.f32 %v892, %v760
  %v894 = vadd.f32 %v893, %v763
  %v895 = vadd.f32 %v894, %v765
  %v896 = vadd.f32 %v895, %v768
  %v897 = vadd.f32 %v896, %v770
  %v898 = vadd.f32 %v897, %v773
  %v899 = vadd.f32 %v898, %v775
  %v900 = vadd.f32 %v899, %v778
  %v901 = vadd.f32 %v900, %v780
  %v902 = vadd.f32 %v901, %v783
  %v903 = vadd.f32 %v902, %v785
  %v904 = vadd.f32 %v903, %v788
  %v905 = vadd.f32 %v904, %v790
  %v906 = vadd.f32 %v905, %v793
  %v907 = vadd.f32 %v906, %v795
  %v908 = vadd.f32 %v907, %v798
  %v909 = vadd.f32 %v908, %v800
  %v910 = vadd.f32 %v909, %v803
  %v911 = vadd.f32 %v910, %v805
  %v912 = vadd.f32 %v911, %v808
  %v913 = vadd.f32 %v912, %v810
  %v914 = vadd.f32 %v913, %v813
  %v915 = vadd.f32 %v914, %v815
  %v916 = vadd.f32 %v915, %v818
  %v917 = vadd.f32 %v916, %v820
  %v918 = vadd.f32 %v917, %v823
  %v919 = vadd.f32 %v918, %v825
  %v920 = vadd.f32 %v919, %v828
  %v921 = vadd.f32 %v920, %v830
  %v922 = vadd.f32 %v921, %v833
  %v923 = vadd.f32 %v922, %v835
  %v924 = vadd.f32 %v923, %v838
  %v925 = vadd.f32 %v924, %v840
  %v926 = vadd.f32 %v925, %v843
  %v927 = vadd.f32 %v926, %v845
  %v928 = vadd.f32 %v927, %v848
  %v929 = vadd.f32 %v928, %v850
  %v930 = vadd.f32 %v929, %v853
  %v931 = vadd.f32 %v930, %v855
  %v932 = vadd.f32 %v931, %v858
  %v933 = vadd.f32 %v932, %v860
  %v934 = vadd.f32 %v933, %v863
  %v935 = vadd.f32 %v934, %v865
  %v936 = vadd.f32 %v935, %v868
  %v937 = vadd.f32 %v936, %v870
  %v938 = vadd.f32 %v937, %v873
  %v939 = vadd.f32 %v938, %v875
  %v940 = vrot.slane %v939, 4
  %v941 = vadd.f32 %v939, %v940
  %v942 = vrot.slane %v941, 2
  %v943 = vadd.f32 %v941, %v942
  %v944 = vrot.slane %v943, 1
  %v945 = vadd.f32 %v943, %v944
  %v946 = vmul.f32 %v718, %v718
  %v947 = vmul.f32 %v720, %v720
  %v948 = vmul.f32 %v723, %v723
  %v949 = vmul.f32 %v725, %v725
  %v950 = vmul.f32 %v728, %v728
  %v951 = vmul.f32 %v730, %v730
  %v952 = vmul.f32 %v733, %v733
  %v953 = vmul.f32 %v735, %v735
  %v954 = vmul.f32 %v738, %v738
  %v955 = vmul.f32 %v740, %v740
  %v956 = vmul.f32 %v743, %v743
  %v957 = vmul.f32 %v745, %v745
  %v958 = vmul.f32 %v748, %v748
  %v959 = vmul.f32 %v750, %v750
  %v960 = vmul.f32 %v753, %v753
  %v961 = vmul.f32 %v755, %v755
  %v962 = vmul.f32 %v758, %v758
  %v963 = vmul.f32 %v760, %v760
  %v964 = vmul.f32 %v763, %v763
  %v965 = vmul.f32 %v765, %v765
  %v966 = vmul.f32 %v768, %v768
  %v967 = vmul.f32 %v770, %v770
  %v968 = vmul.f32 %v773, %v773
  %v969 = vmul.f32 %v775, %v775
  %v970 = vmul.f32 %v778, %v778
  %v971 = vmul.f32 %v780, %v780
  %v972 = vmul.f32 %v783, %v783
  %v973 = vmul.f32 %v785, %v785
  %v974 = vmul.f32 %v788, %v788
  %v975 = vmul.f32 %v790, %v790
  %v976 = vmul.f32 %v793, %v793
  %v977 = vmul.f32 %v795, %v795
  %v978 = vmul.f32 %v798, %v798
  %v979 = vmul.f32 %v800, %v800
  %v980 = vmul.f32 %v803, %v803
  %v981 = vmul.f32 %v805, %v805
  %v982 = vmul.f32 %v808, %v808
  %v983 = vmul.f32 %v810, %v810
  %v984 = vmul.f32 %v813, %v813
  %v985 = vmul.f32 %v815, %v815
  %v986 = vmul.f32 %v818, %v818
  %v987 = vmul.f32 %v820, %v820
  %v988 = vmul.f32 %v823, %v823
  %v989 = vmul.f32 %v825, %v825
  %v990 = vmul.f32 %v828, %v828
  %v991 = vmul.f32 %v830, %v830
  %v992 = vmul.f32 %v833, %v833
  %v993 = vmul.f32 %v835, %v835
  %v994 = vmul.f32 %v838, %v838
  %v995 = vmul.f32 %v840, %v840
  %v996 = vmul.f32 %v843, %v843
  %v997 = vmul.f32 %v845, %v845
  %v998 = vmul.f32 %v848, %v848
  %v999 = vmul.f32 %v850, %v850
  %v1000 = vmul.f32 %v853, %v853
  %v1001 = vmul.f32 %v855, %v855
  %v1002 = vmul.f32 %v858, %v858
  %v1003 = vmul.f32 %v860, %v860
  %v1004 = vmul.f32 %v863, %v863
  %v1005 = vmul.f32 %v865, %v865
  %v1006 = vmul.f32 %v868, %v868
  %v1007 = vmul.f32 %v870, %v870
  %v1008 = vmul.f32 %v873, %v873
  %v1009 = vmul.f32 %v875, %v875
  %v1010 = vadd.f32 %v946, %v947
  %v1011 = vadd.f32 %v1010, %v948
  %v1012 = vadd.f32 %v1011, %v949
  %v1013 = vadd.f32 %v1012, %v950
  %v1014 = vadd.f32 %v1013, %v951
  %v1015 = vadd.f32 %v1014, %v952
  %v1016 = vadd.f32 %v1015, %v953
  %v1017 = vadd.f32 %v1016, %v954
  %v1018 = vadd.f32 %v1017, %v955
  %v1019 = vadd.f32 %v1018, %v956
  %v1020 = vadd.f32 %v1019, %v957
  %v1021 = vadd.f32 %v1020, %v958
  %v1022 = vadd.f32 %v1021, %v959
  %v1023 = vadd.f32 %v1022, %v960
  %v1024 = vadd.f32 %v1023, %v961
  %v1025 = vadd.f32 %v1024, %v962
  %v1026 = vadd.f32 %v1025, %v963
  %v1027 = vadd.f32 %v1026, %v964
  %v1028 = vadd.f32 %v1027, %v965
  %v1029 = vadd.f32 %v1028, %v966
  %v1030 = vadd.f32 %v1029, %v967
  %v1031 = vadd.f32 %v1030, %v968
  %v1032 = vadd.f32 %v1031, %v969
  %v1033 = vadd.f32 %v1032, %v970
  %v1034 = vadd.f32 %v1033, %v971
  %v1035 = vadd.f32 %v1034, %v972
  %v1036 = vadd.f32 %v1035, %v973
  %v1037 = vadd.f32 %v1036, %v974
  %v1038 = vadd.f32 %v1037, %v975
  %v1039 = vadd.f32 %v1038, %v976
  %v1040 = vadd.f32 %v1039, %v977
  %v1041 = vadd.f32 %v1040, %v978
  %v1042 = vadd.f32 %v1041, %v979
  %v1043 = vadd.f32 %v1042, %v980
  %v1044 = vadd.f32 %v1043, %v981
  %v1045 = vadd.f32 %v1044, %v982
  %v1046 = vadd.f32 %v1045, %v983
  %v1047 = vadd.f32 %v1046, %v984
  %v1048 = vadd.f32 %v1047, %v985
  %v1049 = vadd.f32 %v1048, %v986
  %v1050 = vadd.f32 %v1049, %v987
  %v1051 = vadd.f32 %v1050, %v988
  %v1052 = vadd.f32 %v1051, %v989
  %v1053 = vadd.f32 %v1052, %v990
  %v1054 = vadd.f32 %v1053, %v991
  %v1055 = vadd.f32 %v1054, %v992
  %v1056 = vadd.f32 %v1055, %v993
  %v1057 = vadd.f32 %v1056, %v994
  %v1058 = vadd.f32 %v1057, %v995
  %v1059 = vadd.f32 %v1058, %v996
  %v1060 = vadd.f32 %v1059, %v997
  %v1061 = vadd.f32 %v1060, %v998
  %v1062 = vadd.f32 %v1061, %v999
  %v1063 = vadd.f32 %v1062, %v1000
  %v1064 = vadd.f32 %v1063, %v1001
  %v1065 = vadd.f32 %v1064, %v1002
  %v1066 = vadd.f32 %v1065, %v1003
  %v1067 = vadd.f32 %v1066, %v1004
  %v1068 = vadd.f32 %v1067, %v1005
  %v1069 = vadd.f32 %v1068, %v1006
  %v1070 = vadd.f32 %v1069, %v1007
  %v1071 = vadd.f32 %v1070, %v1008
  %v1072 = vadd.f32 %v1071, %v1009
  %v1073 = vrot.slane %v1072, 4
  %v1074 = vadd.f32 %v1072, %v1073
  %v1075 = vrot.slane %v1074, 2
  %v1076 = vadd.f32 %v1074, %v1075
  %v1077 = vrot.slane %v1076, 1
  %v1078 = vadd.f32 %v1076, %v1077
  %v1079 = vmul.f32 %v945, 0.001953125
  %v1080 = vmul.f32 %v1078, 0.001953125
  %v1081 = vmul.f32 %v1079, %v1079
  %v1082 = vsub.f32 %v1080, %v1081
  %v1083 = vmax.f32 %v1082, 0.0
  %v1084 = vld [vmem:[%s2] sm:$0x1]
  %v1085 = vadd.f32 %v1083, 1e-05
  %v1086 = vrsqrt.pop %v1085
  %v1087 = vmul.f32 %v1086, %v1085
  %v1088 = vmul.f32 %v1087, %v1086
  %v1089 = vmul.f32 0.5, %v1088
  %v1090 = vsub.f32 1.5, %v1089
  %v1091 = vmul.f32 %v1086, %v1090
  %vm1092 = vweird.f32 %v1085
  %vm1093 = vweird.f32 %v1086
  %vm1094 = vmor %vm1092, %vm1093
  %v1095 = vsel %vm1094, %v1086, %v1091
  %v1096 = vmul.f32 %v1084, %v1095
  %v1097 = vld [vmem:[%s3] sm:$0x1]
  %v1098 = vmul.f32 %v1079, %v1096
  %v1099 = vsub.f32 %v1097, %v1098
  %v1101 = vperm.slane %v1096, 0
  %v1103 = vmul.f32 %v718, %v1101
  %v1104 = vmul.f32 %v720, %v1101
  %v1105 = vmul.f32 %v723, %v1101
  %v1106 = vmul.f32 %v725, %v1101
  %v1107 = vmul.f32 %v728, %v1101
  %v1108 = vmul.f32 %v730, %v1101
  %v1109 = vmul.f32 %v733, %v1101
  %v1110 = vmul.f32 %v735, %v1101
  %v1111 = vmul.f32 %v738, %v1101
  %v1112 = vmul.f32 %v740, %v1101
  %v1113 = vmul.f32 %v743, %v1101
  %v1114 = vmul.f32 %v745, %v1101
  %v1115 = vmul.f32 %v748, %v1101
  %v1116 = vmul.f32 %v750, %v1101
  %v1117 = vmul.f32 %v753, %v1101
  %v1118 = vmul.f32 %v755, %v1101
  %v1119 = vmul.f32 %v758, %v1101
  %v1120 = vmul.f32 %v760, %v1101
  %v1121 = vmul.f32 %v763, %v1101
  %v1122 = vmul.f32 %v765, %v1101
  %v1123 = vmul.f32 %v768, %v1101
  %v1124 = vmul.f32 %v770, %v1101
  %v1125 = vmul.f32 %v773, %v1101
  %v1126 = vmul.f32 %v775, %v1101
  %v1127 = vmul.f32 %v778, %v1101
  %v1128 = vmul.f32 %v780, %v1101
  %v1129 = vmul.f32 %v783, %v1101
  %v1130 = vmul.f32 %v785, %v1101
  %v1131 = vmul.f32 %v788, %v1101
  %v1132 = vmul.f32 %v790, %v1101
  %v1133 = vmul.f32 %v793, %v1101
  %v1134 = vmul.f32 %v795, %v1101
  %v1135 = vmul.f32 %v798, %v1101
  %v1136 = vmul.f32 %v800, %v1101
  %v1137 = vmul.f32 %v803, %v1101
  %v1138 = vmul.f32 %v805, %v1101
  %v1139 = vmul.f32 %v808, %v1101
  %v1140 = vmul.f32 %v810, %v1101
  %v1141 = vmul.f32 %v813, %v1101
  %v1142 = vmul.f32 %v815, %v1101
  %v1143 = vmul.f32 %v818, %v1101
  %v1144 = vmul.f32 %v820, %v1101
  %v1145 = vmul.f32 %v823, %v1101
  %v1146 = vmul.f32 %v825, %v1101
  %v1147 = vmul.f32 %v828, %v1101
  %v1148 = vmul.f32 %v830, %v1101
  %v1149 = vmul.f32 %v833, %v1101
  %v1150 = vmul.f32 %v835, %v1101
  %v1151 = vmul.f32 %v838, %v1101
  %v1152 = vmul.f32 %v840, %v1101
  %v1153 = vmul.f32 %v843, %v1101
  %v1154 = vmul.f32 %v845, %v1101
  %v1155 = vmul.f32 %v848, %v1101
  %v1156 = vmul.f32 %v850, %v1101
  %v1157 = vmul.f32 %v853, %v1101
  %v1158 = vmul.f32 %v855, %v1101
  %v1159 = vmul.f32 %v858, %v1101
  %v1160 = vmul.f32 %v860, %v1101
  %v1161 = vmul.f32 %v863, %v1101
  %v1162 = vmul.f32 %v865, %v1101
  %v1163 = vmul.f32 %v868, %v1101
  %v1164 = vmul.f32 %v870, %v1101
  %v1165 = vmul.f32 %v873, %v1101
  %v1166 = vmul.f32 %v875, %v1101
  %v1168 = vperm.slane %v1099, 0
  %v1170 = vadd.f32 %v1103, %v1168
  %v1171 = vadd.f32 %v1104, %v1168
  %v1172 = vadd.f32 %v1105, %v1168
  %v1173 = vadd.f32 %v1106, %v1168
  %v1174 = vadd.f32 %v1107, %v1168
  %v1175 = vadd.f32 %v1108, %v1168
  %v1176 = vadd.f32 %v1109, %v1168
  %v1177 = vadd.f32 %v1110, %v1168
  %v1178 = vadd.f32 %v1111, %v1168
  %v1179 = vadd.f32 %v1112, %v1168
  %v1180 = vadd.f32 %v1113, %v1168
  %v1181 = vadd.f32 %v1114, %v1168
  %v1182 = vadd.f32 %v1115, %v1168
  %v1183 = vadd.f32 %v1116, %v1168
  %v1184 = vadd.f32 %v1117, %v1168
  %v1185 = vadd.f32 %v1118, %v1168
  %v1186 = vadd.f32 %v1119, %v1168
  %v1187 = vadd.f32 %v1120, %v1168
  %v1188 = vadd.f32 %v1121, %v1168
  %v1189 = vadd.f32 %v1122, %v1168
  %v1190 = vadd.f32 %v1123, %v1168
  %v1191 = vadd.f32 %v1124, %v1168
  %v1192 = vadd.f32 %v1125, %v1168
  %v1193 = vadd.f32 %v1126, %v1168
  %v1194 = vadd.f32 %v1127, %v1168
  %v1195 = vadd.f32 %v1128, %v1168
  %v1196 = vadd.f32 %v1129, %v1168
  %v1197 = vadd.f32 %v1130, %v1168
  %v1198 = vadd.f32 %v1131, %v1168
  %v1199 = vadd.f32 %v1132, %v1168
  %v1200 = vadd.f32 %v1133, %v1168
  %v1201 = vadd.f32 %v1134, %v1168
  %v1202 = vadd.f32 %v1135, %v1168
  %v1203 = vadd.f32 %v1136, %v1168
  %v1204 = vadd.f32 %v1137, %v1168
  %v1205 = vadd.f32 %v1138, %v1168
  %v1206 = vadd.f32 %v1139, %v1168
  %v1207 = vadd.f32 %v1140, %v1168
  %v1208 = vadd.f32 %v1141, %v1168
  %v1209 = vadd.f32 %v1142, %v1168
  %v1210 = vadd.f32 %v1143, %v1168
  %v1211 = vadd.f32 %v1144, %v1168
  %v1212 = vadd.f32 %v1145, %v1168
  %v1213 = vadd.f32 %v1146, %v1168
  %v1214 = vadd.f32 %v1147, %v1168
  %v1215 = vadd.f32 %v1148, %v1168
  %v1216 = vadd.f32 %v1149, %v1168
  %v1217 = vadd.f32 %v1150, %v1168
  %v1218 = vadd.f32 %v1151, %v1168
  %v1219 = vadd.f32 %v1152, %v1168
  %v1220 = vadd.f32 %v1153, %v1168
  %v1221 = vadd.f32 %v1154, %v1168
  %v1222 = vadd.f32 %v1155, %v1168
  %v1223 = vadd.f32 %v1156, %v1168
  %v1224 = vadd.f32 %v1157, %v1168
  %v1225 = vadd.f32 %v1158, %v1168
  %v1226 = vadd.f32 %v1159, %v1168
  %v1227 = vadd.f32 %v1160, %v1168
  %v1228 = vadd.f32 %v1161, %v1168
  %v1229 = vadd.f32 %v1162, %v1168
  %v1230 = vadd.f32 %v1163, %v1168
  %v1231 = vadd.f32 %v1164, %v1168
  %v1232 = vadd.f32 %v1165, %v1168
  %v1233 = vadd.f32 %v1166, %v1168
  %v1234 = vmax.f32 %v1170, %v1186
  %v1235 = vmax.f32 %v1171, %v1187
  %v1236 = vmax.f32 %v1172, %v1188
  %v1237 = vmax.f32 %v1173, %v1189
  %v1238 = vmax.f32 %v1174, %v1190
  %v1239 = vmax.f32 %v1175, %v1191
  %v1240 = vmax.f32 %v1176, %v1192
  %v1241 = vmax.f32 %v1177, %v1193
  %v1242 = vmax.f32 %v1178, %v1194
  %v1243 = vmax.f32 %v1179, %v1195
  %v1244 = vmax.f32 %v1180, %v1196
  %v1245 = vmax.f32 %v1181, %v1197
  %v1246 = vmax.f32 %v1182, %v1198
  %v1247 = vmax.f32 %v1183, %v1199
  %v1248 = vmax.f32 %v1184, %v1200
  %v1249 = vmax.f32 %v1185, %v1201
  %v1250 = vmax.f32 %v1202, %v1218
  %v1251 = vmax.f32 %v1203, %v1219
  %v1252 = vmax.f32 %v1204, %v1220
  %v1253 = vmax.f32 %v1205, %v1221
  %v1254 = vmax.f32 %v1206, %v1222
  %v1255 = vmax.f32 %v1207, %v1223
  %v1256 = vmax.f32 %v1208, %v1224
  %v1257 = vmax.f32 %v1209, %v1225
  %v1258 = vmax.f32 %v1210, %v1226
  %v1259 = vmax.f32 %v1211, %v1227
  %v1260 = vmax.f32 %v1212, %v1228
  %v1261 = vmax.f32 %v1213, %v1229
  %v1262 = vmax.f32 %v1214, %v1230
  %v1263 = vmax.f32 %v1215, %v1231
  %v1264 = vmax.f32 %v1216, %v1232
  %v1265 = vmax.f32 %v1217, %v1233
  %v1266 = vmax.f32 %v1234, %v1250
  %v1267 = vmax.f32 %v1235, %v1251
  %v1268 = vmax.f32 %v1236, %v1252
  %v1269 = vmax.f32 %v1237, %v1253
  %v1270 = vmax.f32 %v1238, %v1254
  %v1271 = vmax.f32 %v1239, %v1255
  %v1272 = vmax.f32 %v1240, %v1256
  %v1273 = vmax.f32 %v1241, %v1257
  %v1274 = vmax.f32 %v1242, %v1258
  %v1275 = vmax.f32 %v1243, %v1259
  %v1276 = vmax.f32 %v1244, %v1260
  %v1277 = vmax.f32 %v1245, %v1261
  %v1278 = vmax.f32 %v1246, %v1262
  %v1279 = vmax.f32 %v1247, %v1263
  %v1280 = vmax.f32 %v1248, %v1264
  %v1281 = vmax.f32 %v1249, %v1265
  %1282 = vst [vmem:[%s4] sm:$0xff] %v1266
  %1283 = vst [vmem:[%s4 + $0x8] sm:$0xff] %v1267
  %1284 = vst [vmem:[%s4 + $0x10] sm:$0xff] %v1268
  %1285 = vst [vmem:[%s4 + $0x18] sm:$0xff] %v1269
  %1286 = vst [vmem:[%s4 + $0x20] sm:$0xff] %v1270
  %1287 = vst [vmem:[%s4 + $0x28] sm:$0xff] %v1271
  %1288 = vst [vmem:[%s4 + $0x30] sm:$0xff] %v1272
  %1289 = vst [vmem:[%s4 + $0x38] sm:$0xff] %v1273
  %1290 = vst [vmem:[%s4 + $0x40] sm:$0xff] %v1274
  %1291 = vst [vmem:[%s4 + $0x48] sm:$0xff] %v1275
  %1292 = vst [vmem:[%s4 + $0x50] sm:$0xff] %v1276
  %1293 = vst [vmem:[%s4 + $0x58] sm:$0xff] %v1277
  %1294 = vst [vmem:[%s4 + $0x60] sm:$0xff] %v1278
  %1295 = vst [vmem:[%s4 + $0x68] sm:$0xff] %v1279
  %1296 = vst [vmem:[%s4 + $0x70] sm:$0xff] %v1280
  %1297 = vst [vmem:[%s4 + $0x78] sm:$0xff] %v1281
  // Predicated region
  $region18: #{forward.7} parent=0 // pred_check
    _
  $region19: #{forward.7} parent=0 // pred_check_branch
    %1299 = sbr.rel (0) target = $region21
  $region20: #{forward.7} parent=0 // pred_region
    _
  $region21: #{forward.7} parent=0 // pred_fallthru
    _
  // Predicated region
  $region22: #{forward.7} parent=0 // pred_check
    _
  $region23: #{forward.7} parent=0 // pred_check_branch
    %1301 = sbr.rel (0) target = $region25
  $region24: #{forward.7} parent=0 // pred_region
    _
  $region25: #{forward.7} parent=0 // pred_fallthru
    _

// kernel: forward.8
$region0: #{forward.8}
  #allocation0 [shape = 'u32[]', space=smem, size = 0x4, offset = 0x4, fixed_abs, tag = 'smem constant byte address 0x4 - core index']
  #allocation1 [shape = 'u32[72,128]{1,0:T(1,128)}', space=vmem, size = 0x9000, scoped, tag = 'internal scratch']
  %s0 = inlined_call_operand.vmem [shape: bf16[128,576], index: 0, kind: input, shape index: {}]
  %s1 = inlined_call_operand.vmem [shape: bf16[576,128], index: 1, kind: input, shape index: {}]
  %s2 = inlined_call_operand.vmem [shape: f32[1,128], index: 2, kind: input, shape index: {}]
  %s3 = inlined_call_operand.vmem [shape: f32[1,128], index: 3, kind: input, shape index: {}]
  %s4 = inlined_call_operand.vmem [shape: f32[32,128], index: 4, kind: output, shape index: {}]
  %s5 = sld [smem:[#allocation0]]
  $region26: #{forward.8} parent=0
    _
  %s7 = ssub.s32 1, %s5
  %s8 = scalar_select 0, %s7, %s5
  // Predicated region
  $region2: #{forward.8} parent=0 // pred_check
    _
  $region3: #{forward.8} parent=0 // pred_check_branch
    %10 = sbr.rel (0) target = $region5
  $region4: #{forward.8} parent=0 // pred_region
    _
  $region5: #{forward.8} parent=0 // pred_fallthru
    _
  // Predicated region
  $region6: #{forward.8} parent=0 // pred_check
    _
  $region7: #{forward.8} parent=0 // pred_check_branch
    %12 = sbr.rel (0) target = $region9
  $region8: #{forward.8} parent=0 // pred_region
    _
  $region9: #{forward.8} parent=0 // pred_fallthru
    _
  // Predicated region
  $region10: #{forward.8} parent=0 // pred_check
    _
  $region11: #{forward.8} parent=0 // pred_check_branch
    %14 = sbr.rel (0) target = $region13
  $region12: #{forward.8} parent=0 // pred_region
    _
  $region13: #{forward.8} parent=0 // pred_fallthru
    _
  // Predicated region
  $region14: #{forward.8} parent=0 // pred_check
    _
  $region15: #{forward.8} parent=0 // pred_check_branch
    %16 = sbr.rel (0) target = $region17
  $region16: #{forward.8} parent=0 // pred_region
    _
  $region17: #{forward.8} parent=0 // pred_fallthru
    _
  %v18 = vld [vmem:[%s0] sm:$0xff]
  %v19 = vld [vmem:[%s0 + $0x8] sm:$0xff]
  %v20 = vld [vmem:[%s0 + $0x10] sm:$0xf]
  %v21 = vld [vmem:[%s0 + $0x14] sm:$0xff]
  %v22 = vld [vmem:[%s0 + $0x1c] sm:$0xff]
  %v23 = vld [vmem:[%s0 + $0x24] sm:$0xf]
  %v24 = vld [vmem:[%s0 + $0x28] sm:$0xff]
  %v25 = vld [vmem:[%s0 + $0x30] sm:$0xff]
  %v26 = vld [vmem:[%s0 + $0x38] sm:$0xf]
  %v27 = vld [vmem:[%s0 + $0x3c] sm:$0xff]
  %v28 = vld [vmem:[%s0 + $0x44] sm:$0xff]
  %v29 = vld [vmem:[%s0 + $0x4c] sm:$0xf]
  %v30 = vld [vmem:[%s0 + $0x50] sm:$0xff]
  %v31 = vld [vmem:[%s0 + $0x58] sm:$0xff]
  %v32 = vld [vmem:[%s0 + $0x60] sm:$0xf]
  %v33 = vld [vmem:[%s0 + $0x64] sm:$0xff]
  %v34 = vld [vmem:[%s0 + $0x6c] sm:$0xff]
  %v35 = vld [vmem:[%s0 + $0x74] sm:$0xf]
  %v36 = vld [vmem:[%s0 + $0x78] sm:$0xff]
  %v37 = vld [vmem:[%s0 + $0x80] sm:$0xff]
  %v38 = vld [vmem:[%s0 + $0x88] sm:$0xf]
  %v39 = vld [vmem:[%s0 + $0x8c] sm:$0xff]
  %v40 = vld [vmem:[%s0 + $0x94] sm:$0xff]
  %v41 = vld [vmem:[%s0 + $0x9c] sm:$0xf]
  %v42 = vld [vmem:[%s0 + $0xa0] sm:$0xff]
  %v43 = vld [vmem:[%s0 + $0xa8] sm:$0xff]
  %v44 = vld [vmem:[%s0 + $0xb0] sm:$0xf]
  %v45 = vld [vmem:[%s0 + $0xb4] sm:$0xff]
  %v46 = vld [vmem:[%s0 + $0xbc] sm:$0xff]
  %v47 = vld [vmem:[%s0 + $0xc4] sm:$0xf]
  %v48 = vld [vmem:[%s0 + $0xc8] sm:$0xff]
  %v49 = vld [vmem:[%s0 + $0xd0] sm:$0xff]
  %v50 = vld [vmem:[%s0 + $0xd8] sm:$0xf]
  %v51 = vld [vmem:[%s0 + $0xdc] sm:$0xff]
  %v52 = vld [vmem:[%s0 + $0xe4] sm:$0xff]
  %v53 = vld [vmem:[%s0 + $0xec] sm:$0xf]
  %v54 = vld [vmem:[%s0 + $0xf0] sm:$0xff]
  %v55 = vld [vmem:[%s0 + $0xf8] sm:$0xff]
  %v56 = vld [vmem:[%s0 + $0x100] sm:$0xf]
  %v57 = vld [vmem:[%s0 + $0x104] sm:$0xff]
  %v58 = vld [vmem:[%s0 + $0x10c] sm:$0xff]
  %v59 = vld [vmem:[%s0 + $0x114] sm:$0xf]
  %v60 = vld [vmem:[%s0 + $0x118] sm:$0xff]
  %v61 = vld [vmem:[%s0 + $0x120] sm:$0xff]
  %v62 = vld [vmem:[%s0 + $0x128] sm:$0xf]
  %v63 = vld [vmem:[%s0 + $0x12c] sm:$0xff]
  %v64 = vld [vmem:[%s0 + $0x134] sm:$0xff]
  %v65 = vld [vmem:[%s0 + $0x13c] sm:$0xf]
  %v66 = vld [vmem:[%s1] sm:$0xf]
  %v67 = vld [vmem:[%s1 + $0x4] sm:$0xf]
  %v68 = vld [vmem:[%s1 + $0x8] sm:$0xf]
  %v69 = vld [vmem:[%s1 + $0xc] sm:$0xf]
  %v70 = vld [vmem:[%s1 + $0x10] sm:$0xf]
  %v71 = vld [vmem:[%s1 + $0x14] sm:$0xf]
  %v72 = vld [vmem:[%s1 + $0x18] sm:$0xf]
  %v73 = vld [vmem:[%s1 + $0x1c] sm:$0xf]
  %v74 = vld [vmem:[%s1 + $0x20] sm:$0xf]
  %v75 = vld [vmem:[%s1 + $0x24] sm:$0xf]
  %v76 = vld [vmem:[%s1 + $0x28] sm:$0xf]
  %v77 = vld [vmem:[%s1 + $0x2c] sm:$0xf]
  %v78 = vld [vmem:[%s1 + $0x30] sm:$0xf]
  %v79 = vld [vmem:[%s1 + $0x34] sm:$0xf]
  %v80 = vld [vmem:[%s1 + $0x38] sm:$0xf]
  %v81 = vld [vmem:[%s1 + $0x3c] sm:$0xf]
  %v82 = vld [vmem:[%s1 + $0x40] sm:$0xf]
  %v83 = vld [vmem:[%s1 + $0x44] sm:$0xf]
  %v84 = vld [vmem:[%s1 + $0x48] sm:$0xf]
  %v85 = vld [vmem:[%s1 + $0x4c] sm:$0xf]
  %v86 = vld [vmem:[%s1 + $0x50] sm:$0xf]
  %v87 = vld [vmem:[%s1 + $0x54] sm:$0xf]
  %v88 = vld [vmem:[%s1 + $0x58] sm:$0xf]
  %v89 = vld [vmem:[%s1 + $0x5c] sm:$0xf]
  %v90 = vld [vmem:[%s1 + $0x60] sm:$0xf]
  %v91 = vld [vmem:[%s1 + $0x64] sm:$0xf]
  %v92 = vld [vmem:[%s1 + $0x68] sm:$0xf]
  %v93 = vld [vmem:[%s1 + $0x6c] sm:$0xf]
  %v94 = vld [vmem:[%s1 + $0x70] sm:$0xf]
  %v95 = vld [vmem:[%s1 + $0x74] sm:$0xf]
  %v96 = vld [vmem:[%s1 + $0x78] sm:$0xf]
  %v97 = vld [vmem:[%s1 + $0x7c] sm:$0xf]
  %v98 = vld [vmem:[%s1 + $0x80] sm:$0xf]
  %v99 = vld [vmem:[%s1 + $0x84] sm:$0xf]
  %v100 = vld [vmem:[%s1 + $0x88] sm:$0xf]
  %v101 = vld [vmem:[%s1 + $0x8c] sm:$0xf]
  %v102 = vld [vmem:[%s1 + $0x90] sm:$0xf]
  %v103 = vld [vmem:[%s1 + $0x94] sm:$0xf]
  %v104 = vld [vmem:[%s1 + $0x98] sm:$0xf]
  %v105 = vld [vmem:[%s1 + $0x9c] sm:$0xf]
  %v106 = vld [vmem:[%s1 + $0xa0] sm:$0xf]
  %v107 = vld [vmem:[%s1 + $0xa4] sm:$0xf]
  %v108 = vld [vmem:[%s1 + $0xa8] sm:$0xf]
  %v109 = vld [vmem:[%s1 + $0xac] sm:$0xf]
  %v110 = vld [vmem:[%s1 + $0xb0] sm:$0xf]
  %v111 = vld [vmem:[%s1 + $0xb4] sm:$0xf]
  %v112 = vld [vmem:[%s1 + $0xb8] sm:$0xf]
  %v113 = vld [vmem:[%s1 + $0xbc] sm:$0xf]
  %v114 = vld [vmem:[%s1 + $0xc0] sm:$0xf]
  %v115 = vld [vmem:[%s1 + $0xc4] sm:$0xf]
  %v116 = vld [vmem:[%s1 + $0xc8] sm:$0xf]
  %v117 = vld [vmem:[%s1 + $0xcc] sm:$0xf]
  %v118 = vld [vmem:[%s1 + $0xd0] sm:$0xf]
  %v119 = vld [vmem:[%s1 + $0xd4] sm:$0xf]
  %v120 = vld [vmem:[%s1 + $0xd8] sm:$0xf]
  %v121 = vld [vmem:[%s1 + $0xdc] sm:$0xf]
  %v122 = vld [vmem:[%s1 + $0xe0] sm:$0xf]
  %v123 = vld [vmem:[%s1 + $0xe4] sm:$0xf]
  %v124 = vld [vmem:[%s1 + $0xe8] sm:$0xf]
  %v125 = vld [vmem:[%s1 + $0xec] sm:$0xf]
  %v126 = vld [vmem:[%s1 + $0xf0] sm:$0xf]
  %v127 = vld [vmem:[%s1 + $0xf4] sm:$0xf]
  %v128 = vld [vmem:[%s1 + $0xf8] sm:$0xf]
  %v129 = vld [vmem:[%s1 + $0xfc] sm:$0xf]
  %v130 = vld [vmem:[%s1 + $0x100] sm:$0xf]
  %v131 = vld [vmem:[%s1 + $0x104] sm:$0xf]
  %v132 = vld [vmem:[%s1 + $0x108] sm:$0xf]
  %v133 = vld [vmem:[%s1 + $0x10c] sm:$0xf]
  %v134 = vld [vmem:[%s1 + $0x110] sm:$0xf]
  %v135 = vld [vmem:[%s1 + $0x114] sm:$0xf]
  %v136 = vld [vmem:[%s1 + $0x118] sm:$0xf]
  %v137 = vld [vmem:[%s1 + $0x11c] sm:$0xf]
  %v186 = vunpack.c.l.b16 %v18
  %v187 = vunpack.c.h.b16 %v18
  %v188 = vunpack.c.l.b16 %v19
  %v189 = vunpack.c.h.b16 %v19
  %v190 = vunpack.c.l.b16 %v20
  %v191 = vunpack.c.l.b16 %v21
  %v192 = vunpack.c.h.b16 %v21
  %v193 = vunpack.c.l.b16 %v22
  %v194 = vunpack.c.h.b16 %v22
  %v195 = vunpack.c.l.b16 %v23
  %v196 = vunpack.c.l.b16 %v24
  %v197 = vunpack.c.h.b16 %v24
  %v198 = vunpack.c.l.b16 %v25
  %v199 = vunpack.c.h.b16 %v25
  %v200 = vunpack.c.l.b16 %v26
  %v201 = vunpack.c.l.b16 %v27
  %v202 = vunpack.c.h.b16 %v27
  %v203 = vunpack.c.l.b16 %v28
  %v204 = vunpack.c.h.b16 %v28
  %v205 = vunpack.c.l.b16 %v29
  %v206 = vunpack.c.l.b16 %v30
  %v207 = vunpack.c.h.b16 %v30
  %v208 = vunpack.c.l.b16 %v31
  %v209 = vunpack.c.h.b16 %v31
  %v210 = vunpack.c.l.b16 %v32
  %v211 = vunpack.c.l.b16 %v33
  %v212 = vunpack.c.h.b16 %v33
  %v213 = vunpack.c.l.b16 %v34
  %v214 = vunpack.c.h.b16 %v34
  %v215 = vunpack.c.l.b16 %v35
  %v216 = vunpack.c.l.b16 %v36
  %v217 = vunpack.c.h.b16 %v36
  %v218 = vunpack.c.l.b16 %v37
  %v219 = vunpack.c.h.b16 %v37
  %v220 = vunpack.c.l.b16 %v38
  %v221 = vunpack.c.l.b16 %v39
  %v222 = vunpack.c.h.b16 %v39
  %v223 = vunpack.c.l.b16 %v40
  %v224 = vunpack.c.h.b16 %v40
  %v225 = vunpack.c.l.b16 %v41
  %v226 = vunpack.c.l.b16 %v42
  %v227 = vunpack.c.h.b16 %v42
  %v228 = vunpack.c.l.b16 %v43
  %v229 = vunpack.c.h.b16 %v43
  %v230 = vunpack.c.l.b16 %v44
  %v231 = vunpack.c.l.b16 %v45
  %v232 = vunpack.c.h.b16 %v45
  %v233 = vunpack.c.l.b16 %v46
  %v234 = vunpack.c.h.b16 %v46
  %v235 = vunpack.c.l.b16 %v47
  %v236 = vunpack.c.l.b16 %v48
  %v237 = vunpack.c.h.b16 %v48
  %v238 = vunpack.c.l.b16 %v49
  %v239 = vunpack.c.h.b16 %v49
  %v240 = vunpack.c.l.b16 %v50
  %v241 = vunpack.c.l.b16 %v51
  %v242 = vunpack.c.h.b16 %v51
  %v243 = vunpack.c.l.b16 %v52
  %v244 = vunpack.c.h.b16 %v52
  %v245 = vunpack.c.l.b16 %v53
  %v246 = vunpack.c.l.b16 %v54
  %v247 = vunpack.c.h.b16 %v54
  %v248 = vunpack.c.l.b16 %v55
  %v249 = vunpack.c.h.b16 %v55
  %v250 = vunpack.c.l.b16 %v56
  %v251 = vunpack.c.l.b16 %v57
  %v252 = vunpack.c.h.b16 %v57
  %v253 = vunpack.c.l.b16 %v58
  %v254 = vunpack.c.h.b16 %v58
  %v255 = vunpack.c.l.b16 %v59
  %v256 = vunpack.c.l.b16 %v60
  %v257 = vunpack.c.h.b16 %v60
  %v258 = vunpack.c.l.b16 %v61
  %v259 = vunpack.c.h.b16 %v61
  %v260 = vunpack.c.l.b16 %v62
  %v261 = vunpack.c.l.b16 %v63
  %v262 = vunpack.c.h.b16 %v63
  %v263 = vunpack.c.l.b16 %v64
  %v264 = vunpack.c.h.b16 %v64
  %v265 = vunpack.c.l.b16 %v65
  %v266 = vpack.c.b16 %v191, %v186
  %v267 = vpack.c.b16 %v192, %v187
  %v268 = vpack.c.b16 %v193, %v188
  %v269 = vpack.c.b16 %v194, %v189
  %v270 = vpack.c.b16 %v195, %v190
  %v271 = vpack.c.b16 %v201, %v196
  %v272 = vpack.c.b16 %v202, %v197
  %v273 = vpack.c.b16 %v203, %v198
  %v274 = vpack.c.b16 %v204, %v199
  %v275 = vpack.c.b16 %v205, %v200
  %v276 = vpack.c.b16 %v211, %v206
  %v277 = vpack.c.b16 %v212, %v207
  %v278 = vpack.c.b16 %v213, %v208
  %v279 = vpack.c.b16 %v214, %v209
  %v280 = vpack.c.b16 %v215, %v210
  %v281 = vpack.c.b16 %v221, %v216
  %v282 = vpack.c.b16 %v222, %v217
  %v283 = vpack.c.b16 %v223, %v218
  %v284 = vpack.c.b16 %v224, %v219
  %v285 = vpack.c.b16 %v225, %v220
  %v286 = vpack.c.b16 %v231, %v226
  %v287 = vpack.c.b16 %v232, %v227
  %v288 = vpack.c.b16 %v233, %v228
  %v289 = vpack.c.b16 %v234, %v229
  %v290 = vpack.c.b16 %v235, %v230
  %v291 = vpack.c.b16 %v241, %v236
  %v292 = vpack.c.b16 %v242, %v237
  %v293 = vpack.c.b16 %v243, %v238
  %v294 = vpack.c.b16 %v244, %v239
  %v295 = vpack.c.b16 %v245, %v240
  %v296 = vpack.c.b16 %v251, %v246
  %v297 = vpack.c.b16 %v252, %v247
  %v298 = vpack.c.b16 %v253, %v248
  %v299 = vpack.c.b16 %v254, %v249
  %v300 = vpack.c.b16 %v255, %v250
  %v301 = vpack.c.b16 %v261, %v256
  %v302 = vpack.c.b16 %v262, %v257
  %v303 = vpack.c.b16 %v263, %v258
  %v304 = vpack.c.b16 %v264, %v259
  %v305 = vpack.c.b16 %v265, %v260
  %v410 = vunpack.c.l.b16 %v66
  %v411 = vunpack.c.l.b16 %v67
  %v412 = vunpack.c.l.b16 %v68
  %v413 = vunpack.c.l.b16 %v69
  %v414 = vunpack.c.l.b16 %v70
  %v415 = vunpack.c.l.b16 %v71
  %v416 = vunpack.c.l.b16 %v72
  %v417 = vunpack.c.l.b16 %v73
  %v418 = vunpack.c.l.b16 %v74
  %v419 = vunpack.c.l.b16 %v75
  %v420 = vunpack.c.l.b16 %v76
  %v421 = vunpack.c.l.b16 %v77
  %v422 = vunpack.c.l.b16 %v78
  %v423 = vunpack.c.l.b16 %v79
  %v424 = vunpack.c.l.b16 %v80
  %v425 = vunpack.c.l.b16 %v81
  %v426 = vunpack.c.l.b16 %v82
  %v427 = vunpack.c.l.b16 %v83
  %v428 = vunpack.c.l.b16 %v84
  %v429 = vunpack.c.l.b16 %v85
  %v430 = vunpack.c.l.b16 %v86
  %v431 = vunpack.c.l.b16 %v87
  %v432 = vunpack.c.l.b16 %v88
  %v433 = vunpack.c.l.b16 %v89
  %v434 = vunpack.c.l.b16 %v90
  %v435 = vunpack.c.l.b16 %v91
  %v436 = vunpack.c.l.b16 %v92
  %v437 = vunpack.c.l.b16 %v93
  %v438 = vunpack.c.l.b16 %v94
  %v439 = vunpack.c.l.b16 %v95
  %v440 = vunpack.c.l.b16 %v96
  %v441 = vunpack.c.l.b16 %v97
  %v442 = vunpack.c.l.b16 %v98
  %v443 = vunpack.c.l.b16 %v99
  %v444 = vunpack.c.l.b16 %v100
  %v445 = vunpack.c.l.b16 %v101
  %v446 = vunpack.c.l.b16 %v102
  %v447 = vunpack.c.l.b16 %v103
  %v448 = vunpack.c.l.b16 %v104
  %v449 = vunpack.c.l.b16 %v105
  %v450 = vunpack.c.l.b16 %v106
  %v451 = vunpack.c.l.b16 %v107
  %v452 = vunpack.c.l.b16 %v108
  %v453 = vunpack.c.l.b16 %v109
  %v454 = vunpack.c.l.b16 %v110
  %v455 = vunpack.c.l.b16 %v111
  %v456 = vunpack.c.l.b16 %v112
  %v457 = vunpack.c.l.b16 %v113
  %v458 = vunpack.c.l.b16 %v114
  %v459 = vunpack.c.l.b16 %v115
  %v460 = vunpack.c.l.b16 %v116
  %v461 = vunpack.c.l.b16 %v117
  %v462 = vunpack.c.l.b16 %v118
  %v463 = vunpack.c.l.b16 %v119
  %v464 = vunpack.c.l.b16 %v120
  %v465 = vunpack.c.l.b16 %v121
  %v466 = vunpack.c.l.b16 %v122
  %v467 = vunpack.c.l.b16 %v123
  %v468 = vunpack.c.l.b16 %v124
  %v469 = vunpack.c.l.b16 %v125
  %v470 = vunpack.c.l.b16 %v126
  %v471 = vunpack.c.l.b16 %v127
  %v472 = vunpack.c.l.b16 %v128
  %v473 = vunpack.c.l.b16 %v129
  %v474 = vunpack.c.l.b16 %v130
  %v475 = vunpack.c.l.b16 %v131
  %v476 = vunpack.c.l.b16 %v132
  %v477 = vunpack.c.l.b16 %v133
  %v478 = vunpack.c.l.b16 %v134
  %v479 = vunpack.c.l.b16 %v135
  %v480 = vunpack.c.l.b16 %v136
  %v481 = vunpack.c.l.b16 %v137
  %v482 = vpack.c.b16 %v411, %v410
  %v483 = vpack.c.b16 %v413, %v412
  %v484 = vpack.c.b16 %v415, %v414
  %v485 = vpack.c.b16 %v417, %v416
  %v486 = vpack.c.b16 %v419, %v418
  %v487 = vpack.c.b16 %v421, %v420
  %v488 = vpack.c.b16 %v423, %v422
  %v489 = vpack.c.b16 %v425, %v424
  %v490 = vpack.c.b16 %v427, %v426
  %v491 = vpack.c.b16 %v429, %v428
  %v492 = vpack.c.b16 %v431, %v430
  %v493 = vpack.c.b16 %v433, %v432
  %v494 = vpack.c.b16 %v435, %v434
  %v495 = vpack.c.b16 %v437, %v436
  %v496 = vpack.c.b16 %v439, %v438
  %v497 = vpack.c.b16 %v441, %v440
  %v498 = vpack.c.b16 %v443, %v442
  %v499 = vpack.c.b16 %v445, %v444
  %v500 = vpack.c.b16 %v447, %v446
  %v501 = vpack.c.b16 %v449, %v448
  %v502 = vpack.c.b16 %v451, %v450
  %v503 = vpack.c.b16 %v453, %v452
  %v504 = vpack.c.b16 %v455, %v454
  %v505 = vpack.c.b16 %v457, %v456
  %v506 = vpack.c.b16 %v459, %v458
  %v507 = vpack.c.b16 %v461, %v460
  %v508 = vpack.c.b16 %v463, %v462
  %v509 = vpack.c.b16 %v465, %v464
  %v510 = vpack.c.b16 %v467, %v466
  %v511 = vpack.c.b16 %v469, %v468
  %v512 = vpack.c.b16 %v471, %v470
  %v513 = vpack.c.b16 %v473, %v472
  %v514 = vpack.c.b16 %v475, %v474
  %v515 = vpack.c.b16 %v477, %v476
  %v516 = vpack.c.b16 %v479, %v478
  %v517 = vpack.c.b16 %v481, %v480
  %vm554 = vcmask 523264
  %v556 = vsel %vm554, %v270, 0
  %v559 = vsel %vm554, %v275, 0
  %v562 = vsel %vm554, %v280, 0
  %v565 = vsel %vm554, %v285, 0
  %v568 = vsel %vm554, %v290, 0
  %v571 = vsel %vm554, %v295, 0
  %v574 = vsel %vm554, %v300, 0
  %v577 = vsel %vm554, %v305, 0
  %579 = vmatpush.bf16.msra.mxu0 %v489
  %580 = vmatpush.bf16.msra.mxu0 %v488
  %581 = vmatpush.bf16.msra.mxu0 %v487
  %582 = vmatpush.bf16.msra.mxu0 %v486
  %583 = vmatpush.bf16.msra.mxu0 %v485
  %584 = vmatpush.bf16.msra.mxu0 %v484
  %585 = vmatpush.bf16.msra.mxu0 %v483
  %586 = vmatpush.bf16.msra.mxu0 %v482
  %587 = vmatmul.bf16.gmra.mxu0 %v266
  %v588 = vpop.f32.mrf.mxu0
  %v589 = vadd.f32 0.0, %v588
  %v590 = vpop.f32.mrf.mxu0
  %v591 = vadd.f32 0.0, %v590
  %592 = vmatmul.bf16.gmra.mxu0 %v271
  %v593 = vpop.f32.mrf.mxu0
  %v594 = vadd.f32 0.0, %v593
  %v595 = vpop.f32.mrf.mxu0
  %v596 = vadd.f32 0.0, %v595
  %597 = vmatmul.bf16.gmra.mxu0 %v276
  %v598 = vpop.f32.mrf.mxu0
  %v599 = vadd.f32 0.0, %v598
  %v600 = vpop.f32.mrf.mxu0
  %v601 = vadd.f32 0.0, %v600
  %602 = vmatmul.bf16.gmra.mxu0 %v281
  %v603 = vpop.f32.mrf.mxu0
  %v604 = vadd.f32 0.0, %v603
  %v605 = vpop.f32.mrf.mxu0
  %v606 = vadd.f32 0.0, %v605
  %607 = vmatmul.bf16.gmra.mxu0 %v286
  %v608 = vpop.f32.mrf.mxu0
  %v609 = vadd.f32 0.0, %v608
  %v610 = vpop.f32.mrf.mxu0
  %v611 = vadd.f32 0.0, %v610
  %612 = vmatmul.bf16.gmra.mxu0 %v291
  %v613 = vpop.f32.mrf.mxu0
  %v614 = vadd.f32 0.0, %v613
  %v615 = vpop.f32.mrf.mxu0
  %v616 = vadd.f32 0.0, %v615
  %617 = vmatmul.bf16.gmra.mxu0 %v296
  %v618 = vpop.f32.mrf.mxu0
  %v619 = vadd.f32 0.0, %v618
  %v620 = vpop.f32.mrf.mxu0
  %v621 = vadd.f32 0.0, %v620
  %622 = vmatmul.bf16.gmra.mxu0 %v301
  %v623 = vpop.f32.mrf.mxu0
  %v624 = vadd.f32 0.0, %v623
  %v625 = vpop.f32.mrf.mxu0
  %v626 = vadd.f32 0.0, %v625
  %627 = vdwg.mxu0
  %628 = vmatpush.bf16.msra.mxu0 %v497
  %629 = vmatpush.bf16.msra.mxu0 %v496
  %630 = vmatpush.bf16.msra.mxu0 %v495
  %631 = vmatpush.bf16.msra.mxu0 %v494
  %632 = vmatpush.bf16.msra.mxu0 %v493
  %633 = vmatpush.bf16.msra.mxu0 %v492
  %634 = vmatpush.bf16.msra.mxu0 %v491
  %635 = vmatpush.bf16.msra.mxu0 %v490
  %636 = vmatmul.bf16.gmra.mxu0 %v267
  %v637 = vpop.f32.mrf.mxu0
  %v638 = vadd.f32 %v589, %v637
  %v639 = vpop.f32.mrf.mxu0
  %v640 = vadd.f32 %v591, %v639
  %641 = vmatmul.bf16.gmra.mxu0 %v272
  %v642 = vpop.f32.mrf.mxu0
  %v643 = vadd.f32 %v594, %v642
  %v644 = vpop.f32.mrf.mxu0
  %v645 = vadd.f32 %v596, %v644
  %646 = vmatmul.bf16.gmra.mxu0 %v277
  %v647 = vpop.f32.mrf.mxu0
  %v648 = vadd.f32 %v599, %v647
  %v649 = vpop.f32.mrf.mxu0
  %v650 = vadd.f32 %v601, %v649
  %651 = vmatmul.bf16.gmra.mxu0 %v282
  %v652 = vpop.f32.mrf.mxu0
  %v653 = vadd.f32 %v604, %v652
  %v654 = vpop.f32.mrf.mxu0
  %v655 = vadd.f32 %v606, %v654
  %656 = vmatmul.bf16.gmra.mxu0 %v287
  %v657 = vpop.f32.mrf.mxu0
  %v658 = vadd.f32 %v609, %v657
  %v659 = vpop.f32.mrf.mxu0
  %v660 = vadd.f32 %v611, %v659
  %661 = vmatmul.bf16.gmra.mxu0 %v292
  %v662 = vpop.f32.mrf.mxu0
  %v663 = vadd.f32 %v614, %v662
  %v664 = vpop.f32.mrf.mxu0
  %v665 = vadd.f32 %v616, %v664
  %666 = vmatmul.bf16.gmra.mxu0 %v297
  %v667 = vpop.f32.mrf.mxu0
  %v668 = vadd.f32 %v619, %v667
  %v669 = vpop.f32.mrf.mxu0
  %v670 = vadd.f32 %v621, %v669
  %671 = vmatmul.bf16.gmra.mxu0 %v302
  %v672 = vpop.f32.mrf.mxu0
  %v673 = vadd.f32 %v624, %v672
  %v674 = vpop.f32.mrf.mxu0
  %v675 = vadd.f32 %v626, %v674
  %676 = vdwg.mxu0
  %677 = vmatpush.bf16.msra.mxu0 %v505
  %678 = vmatpush.bf16.msra.mxu0 %v504
  %679 = vmatpush.bf16.msra.mxu0 %v503
  %680 = vmatpush.bf16.msra.mxu0 %v502
  %681 = vmatpush.bf16.msra.mxu0 %v501
  %682 = vmatpush.bf16.msra.mxu0 %v500
  %683 = vmatpush.bf16.msra.mxu0 %v499
  %684 = vmatpush.bf16.msra.mxu0 %v498
  %685 = vmatmul.bf16.gmra.mxu0 %v268
  %v686 = vpop.f32.mrf.mxu0
  %v687 = vadd.f32 %v638, %v686
  %v688 = vpop.f32.mrf.mxu0
  %v689 = vadd.f32 %v640, %v688
  %690 = vmatmul.bf16.gmra.mxu0 %v273
  %v691 = vpop.f32.mrf.mxu0
  %v692 = vadd.f32 %v643, %v691
  %v693 = vpop.f32.mrf.mxu0
  %v694 = vadd.f32 %v645, %v693
  %695 = vmatmul.bf16.gmra.mxu0 %v278
  %v696 = vpop.f32.mrf.mxu0
  %v697 = vadd.f32 %v648, %v696
  %v698 = vpop.f32.mrf.mxu0
  %v699 = vadd.f32 %v650, %v698
  %700 = vmatmul.bf16.gmra.mxu0 %v283
  %v701 = vpop.f32.mrf.mxu0
  %v702 = vadd.f32 %v653, %v701
  %v703 = vpop.f32.mrf.mxu0
  %v704 = vadd.f32 %v655, %v703
  %705 = vmatmul.bf16.gmra.mxu0 %v288
  %v706 = vpop.f32.mrf.mxu0
  %v707 = vadd.f32 %v658, %v706
  %v708 = vpop.f32.mrf.mxu0
  %v709 = vadd.f32 %v660, %v708
  %710 = vmatmul.bf16.gmra.mxu0 %v293
  %v711 = vpop.f32.mrf.mxu0
  %v712 = vadd.f32 %v663, %v711
  %v713 = vpop.f32.mrf.mxu0
  %v714 = vadd.f32 %v665, %v713
  %715 = vmatmul.bf16.gmra.mxu0 %v298
  %v716 = vpop.f32.mrf.mxu0
  %v717 = vadd.f32 %v668, %v716
  %v718 = vpop.f32.mrf.mxu0
  %v719 = vadd.f32 %v670, %v718
  %720 = vmatmul.bf16.gmra.mxu0 %v303
  %v721 = vpop.f32.mrf.mxu0
  %v722 = vadd.f32 %v673, %v721
  %v723 = vpop.f32.mrf.mxu0
  %v724 = vadd.f32 %v675, %v723
  %725 = vdwg.mxu0
  %726 = vmatpush.bf16.msra.mxu0 %v513
  %727 = vmatpush.bf16.msra.mxu0 %v512
  %728 = vmatpush.bf16.msra.mxu0 %v511
  %729 = vmatpush.bf16.msra.mxu0 %v510
  %730 = vmatpush.bf16.msra.mxu0 %v509
  %731 = vmatpush.bf16.msra.mxu0 %v508
  %732 = vmatpush.bf16.msra.mxu0 %v507
  %733 = vmatpush.bf16.msra.mxu0 %v506
  %734 = vmatmul.bf16.gmra.mxu0 %v269
  %v735 = vpop.f32.mrf.mxu0
  %v736 = vadd.f32 %v687, %v735
  %v737 = vpop.f32.mrf.mxu0
  %v738 = vadd.f32 %v689, %v737
  %739 = vmatmul.bf16.gmra.mxu0 %v274
  %v740 = vpop.f32.mrf.mxu0
  %v741 = vadd.f32 %v692, %v740
  %v742 = vpop.f32.mrf.mxu0
  %v743 = vadd.f32 %v694, %v742
  %744 = vmatmul.bf16.gmra.mxu0 %v279
  %v745 = vpop.f32.mrf.mxu0
  %v746 = vadd.f32 %v697, %v745
  %v747 = vpop.f32.mrf.mxu0
  %v748 = vadd.f32 %v699, %v747
  %749 = vmatmul.bf16.gmra.mxu0 %v284
  %v750 = vpop.f32.mrf.mxu0
  %v751 = vadd.f32 %v702, %v750
  %v752 = vpop.f32.mrf.mxu0
  %v753 = vadd.f32 %v704, %v752
  %754 = vmatmul.bf16.gmra.mxu0 %v289
  %v755 = vpop.f32.mrf.mxu0
  %v756 = vadd.f32 %v707, %v755
  %v757 = vpop.f32.mrf.mxu0
  %v758 = vadd.f32 %v709, %v757
  %759 = vmatmul.bf16.gmra.mxu0 %v294
  %v760 = vpop.f32.mrf.mxu0
  %v761 = vadd.f32 %v712, %v760
  %v762 = vpop.f32.mrf.mxu0
  %v763 = vadd.f32 %v714, %v762
  %764 = vmatmul.bf16.gmra.mxu0 %v299
  %v765 = vpop.f32.mrf.mxu0
  %v766 = vadd.f32 %v717, %v765
  %v767 = vpop.f32.mrf.mxu0
  %v768 = vadd.f32 %v719, %v767
  %769 = vmatmul.bf16.gmra.mxu0 %v304
  %v770 = vpop.f32.mrf.mxu0
  %v771 = vadd.f32 %v722, %v770
  %v772 = vpop.f32.mrf.mxu0
  %v773 = vadd.f32 %v724, %v772
  %774 = vdwg.mxu0
  %775 = vmatpush.bf16.msra.mxu0 0
  %776 = vmatpush.bf16.msra.mxu0 0
  %777 = vmatpush.bf16.msra.mxu0 0
  %778 = vmatpush.bf16.msra.mxu0 0
  %779 = vmatpush.bf16.msra.mxu0 %v517
  %780 = vmatpush.bf16.msra.mxu0 %v516
  %781 = vmatpush.bf16.msra.mxu0 %v515
  %782 = vmatpush.bf16.msra.mxu0 %v514
  %783 = vmatmul.bf16.gmra.mxu0 %v556
  %v784 = vpop.f32.mrf.mxu0
  %v785 = vadd.f32 %v736, %v784
  %v786 = vpop.f32.mrf.mxu0
  %v787 = vadd.f32 %v738, %v786
  %788 = vmatmul.bf16.gmra.mxu0 %v559
  %v789 = vpop.f32.mrf.mxu0
  %v790 = vadd.f32 %v741, %v789
  %v791 = vpop.f32.mrf.mxu0
  %v792 = vadd.f32 %v743, %v791
  %793 = vmatmul.bf16.gmra.mxu0 %v562
  %v794 = vpop.f32.mrf.mxu0
  %v795 = vadd.f32 %v746, %v794
  %v796 = vpop.f32.mrf.mxu0
  %v797 = vadd.f32 %v748, %v796
  %798 = vmatmul.bf16.gmra.mxu0 %v565
  %v799 = vpop.f32.mrf.mxu0
  %v800 = vadd.f32 %v751, %v799
  %v801 = vpop.f32.mrf.mxu0
  %v802 = vadd.f32 %v753, %v801
  %803 = vmatmul.bf16.gmra.mxu0 %v568
  %v804 = vpop.f32.mrf.mxu0
  %v805 = vadd.f32 %v756, %v804
  %v806 = vpop.f32.mrf.mxu0
  %v807 = vadd.f32 %v758, %v806
  %808 = vmatmul.bf16.gmra.mxu0 %v571
  %v809 = vpop.f32.mrf.mxu0
  %v810 = vadd.f32 %v761, %v809
  %v811 = vpop.f32.mrf.mxu0
  %v812 = vadd.f32 %v763, %v811
  %813 = vmatmul.bf16.gmra.mxu0 %v574
  %v814 = vpop.f32.mrf.mxu0
  %v815 = vadd.f32 %v766, %v814
  %v816 = vpop.f32.mrf.mxu0
  %v817 = vadd.f32 %v768, %v816
  %818 = vmatmul.bf16.gmra.mxu0 %v577
  %v819 = vpop.f32.mrf.mxu0
  %v820 = vadd.f32 %v771, %v819
  %v821 = vpop.f32.mrf.mxu0
  %v822 = vadd.f32 %v773, %v821
  %823 = vdwg.mxu0
  %v824 = vadd.f32 %v785, %v787
  %v825 = vadd.f32 %v824, %v790
  %v826 = vadd.f32 %v825, %v792
  %v827 = vadd.f32 %v826, %v795
  %v828 = vadd.f32 %v827, %v797
  %v829 = vadd.f32 %v828, %v800
  %v830 = vadd.f32 %v829, %v802
  %v831 = vadd.f32 %v830, %v805
  %v832 = vadd.f32 %v831, %v807
  %v833 = vadd.f32 %v832, %v810
  %v834 = vadd.f32 %v833, %v812
  %v835 = vadd.f32 %v834, %v815
  %v836 = vadd.f32 %v835, %v817
  %v837 = vadd.f32 %v836, %v820
  %v838 = vadd.f32 %v837, %v822
  %v839 = vrot.slane %v838, 4
  %v840 = vadd.f32 %v838, %v839
  %v841 = vrot.slane %v840, 2
  %v842 = vadd.f32 %v840, %v841
  %v843 = vrot.slane %v842, 1
  %v844 = vadd.f32 %v842, %v843
  %v845 = vmul.f32 %v785, %v785
  %v846 = vmul.f32 %v787, %v787
  %v847 = vmul.f32 %v790, %v790
  %v848 = vmul.f32 %v792, %v792
  %v849 = vmul.f32 %v795, %v795
  %v850 = vmul.f32 %v797, %v797
  %v851 = vmul.f32 %v800, %v800
  %v852 = vmul.f32 %v802, %v802
  %v853 = vmul.f32 %v805, %v805
  %v854 = vmul.f32 %v807, %v807
  %v855 = vmul.f32 %v810, %v810
  %v856 = vmul.f32 %v812, %v812
  %v857 = vmul.f32 %v815, %v815
  %v858 = vmul.f32 %v817, %v817
  %v859 = vmul.f32 %v820, %v820
  %v860 = vmul.f32 %v822, %v822
  %v861 = vadd.f32 %v845, %v846
  %v862 = vadd.f32 %v861, %v847
  %v863 = vadd.f32 %v862, %v848
  %v864 = vadd.f32 %v863, %v849
  %v865 = vadd.f32 %v864, %v850
  %v866 = vadd.f32 %v865, %v851
  %v867 = vadd.f32 %v866, %v852
  %v868 = vadd.f32 %v867, %v853
  %v869 = vadd.f32 %v868, %v854
  %v870 = vadd.f32 %v869, %v855
  %v871 = vadd.f32 %v870, %v856
  %v872 = vadd.f32 %v871, %v857
  %v873 = vadd.f32 %v872, %v858
  %v874 = vadd.f32 %v873, %v859
  %v875 = vadd.f32 %v874, %v860
  %v876 = vrot.slane %v875, 4
  %v877 = vadd.f32 %v875, %v876
  %v878 = vrot.slane %v877, 2
  %v879 = vadd.f32 %v877, %v878
  %v880 = vrot.slane %v879, 1
  %v881 = vadd.f32 %v879, %v880
  %v882 = vmul.f32 %v844, 0.0078125
  %v883 = vmul.f32 %v881, 0.0078125
  %v884 = vmul.f32 %v882, %v882
  %v885 = vsub.f32 %v883, %v884
  %v886 = vmax.f32 %v885, 0.0
  %v887 = vld [vmem:[%s2] sm:$0x1]
  %v888 = vadd.f32 %v886, 1e-05
  %v889 = vrsqrt.pop %v888
  %v890 = vmul.f32 %v889, %v888
  %v891 = vmul.f32 %v890, %v889
  %v892 = vmul.f32 0.5, %v891
  %v893 = vsub.f32 1.5, %v892
  %v894 = vmul.f32 %v889, %v893
  %vm895 = vweird.f32 %v888
  %vm896 = vweird.f32 %v889
  %vm897 = vmor %vm895, %vm896
  %v898 = vsel %vm897, %v889, %v894
  %v899 = vmul.f32 %v887, %v898
  %v900 = vld [vmem:[%s3] sm:$0x1]
  %v901 = vmul.f32 %v882, %v899
  %v902 = vsub.f32 %v900, %v901
  %v904 = vperm.slane %v899, 0
  %v906 = vmul.f32 %v785, %v904
  %v907 = vmul.f32 %v787, %v904
  %v908 = vmul.f32 %v790, %v904
  %v909 = vmul.f32 %v792, %v904
  %v910 = vmul.f32 %v795, %v904
  %v911 = vmul.f32 %v797, %v904
  %v912 = vmul.f32 %v800, %v904
  %v913 = vmul.f32 %v802, %v904
  %v914 = vmul.f32 %v805, %v904
  %v915 = vmul.f32 %v807, %v904
  %v916 = vmul.f32 %v810, %v904
  %v917 = vmul.f32 %v812, %v904
  %v918 = vmul.f32 %v815, %v904
  %v919 = vmul.f32 %v817, %v904
  %v920 = vmul.f32 %v820, %v904
  %v921 = vmul.f32 %v822, %v904
  %v923 = vperm.slane %v902, 0
  %v925 = vadd.f32 %v906, %v923
  %v926 = vadd.f32 %v907, %v923
  %v927 = vadd.f32 %v908, %v923
  %v928 = vadd.f32 %v909, %v923
  %v929 = vadd.f32 %v910, %v923
  %v930 = vadd.f32 %v911, %v923
  %v931 = vadd.f32 %v912, %v923
  %v932 = vadd.f32 %v913, %v923
  %v933 = vadd.f32 %v914, %v923
  %v934 = vadd.f32 %v915, %v923
  %v935 = vadd.f32 %v916, %v923
  %v936 = vadd.f32 %v917, %v923
  %v937 = vadd.f32 %v918, %v923
  %v938 = vadd.f32 %v919, %v923
  %v939 = vadd.f32 %v920, %v923
  %v940 = vadd.f32 %v921, %v923
  %v941 = vmax.f32 %v925, %v929
  %v942 = vmax.f32 %v926, %v930
  %v943 = vmax.f32 %v927, %v931
  %v944 = vmax.f32 %v928, %v932
  %v945 = vmax.f32 %v933, %v937
  %v946 = vmax.f32 %v934, %v938
  %v947 = vmax.f32 %v935, %v939
  %v948 = vmax.f32 %v936, %v940
  %v949 = vmax.f32 %v941, %v945
  %v950 = vmax.f32 %v942, %v946
  %v951 = vmax.f32 %v943, %v947
  %v952 = vmax.f32 %v944, %v948
  %953 = vst [vmem:[%s4] sm:$0xff] %v949
  %954 = vst [vmem:[%s4 + $0x8] sm:$0xff] %v950
  %955 = vst [vmem:[%s4 + $0x10] sm:$0xff] %v951
  %956 = vst [vmem:[%s4 + $0x18] sm:$0xff] %v952
  // Predicated region
  $region18: #{forward.8} parent=0 // pred_check
    _
  $region19: #{forward.8} parent=0 // pred_check_branch
    %958 = sbr.rel (0) target = $region21
  $region20: #{forward.8} parent=0 // pred_region
    _
  $region21: #{forward.8} parent=0 // pred_fallthru
    _
  // Predicated region
  $region22: #{forward.8} parent=0 // pred_check
    _
  $region23: #{forward.8} parent=0 // pred_check_branch
    %960 = sbr.rel (0) target = $region25
  $region24: #{forward.8} parent=0 // pred_region
    _
  $region25: #{forward.8} parent=0 // pred_fallthru
    _

// kernel: forward.9
$region0: #{forward.9}
  #allocation0 [shape = 'u32[]', space=smem, size = 0x4, offset = 0x4, fixed_abs, tag = 'smem constant byte address 0x4 - core index']
  #allocation1 [shape = 'u32[72,128]{1,0:T(1,128)}', space=vmem, size = 0x9000, scoped, tag = 'internal scratch']
  %s0 = inlined_call_operand.vmem [shape: bf16[32,1152], index: 0, kind: input, shape index: {}]
  %s1 = inlined_call_operand.vmem [shape: bf16[1152,256], index: 1, kind: input, shape index: {}]
  %s2 = inlined_call_operand.vmem [shape: f32[1,256], index: 2, kind: input, shape index: {}]
  %s3 = inlined_call_operand.vmem [shape: f32[1,256], index: 3, kind: input, shape index: {}]
  %s4 = inlined_call_operand.vmem [shape: f32[8,256], index: 4, kind: output, shape index: {}]
  %s5 = sld [smem:[#allocation0]]
  $region26: #{forward.9} parent=0
    _
  %s7 = ssub.s32 1, %s5
  %s8 = scalar_select 0, %s7, %s5
  // Predicated region
  $region2: #{forward.9} parent=0 // pred_check
    _
  $region3: #{forward.9} parent=0 // pred_check_branch
    %10 = sbr.rel (0) target = $region5
  $region4: #{forward.9} parent=0 // pred_region
    _
  $region5: #{forward.9} parent=0 // pred_fallthru
    _
  // Predicated region
  $region6: #{forward.9} parent=0 // pred_check
    _
  $region7: #{forward.9} parent=0 // pred_check_branch
    %12 = sbr.rel (0) target = $region9
  $region8: #{forward.9} parent=0 // pred_region
    _
  $region9: #{forward.9} parent=0 // pred_fallthru
    _
  // Predicated region
  $region10: #{forward.9} parent=0 // pred_check
    _
  $region11: #{forward.9} parent=0 // pred_check_branch
    %14 = sbr.rel (0) target = $region13
  $region12: #{forward.9} parent=0 // pred_region
    _
  $region13: #{forward.9} parent=0 // pred_fallthru
    _
  // Predicated region
  $region14: #{forward.9} parent=0 // pred_check
    _
  $region15: #{forward.9} parent=0 // pred_check_branch
    %16 = sbr.rel (0) target = $region17
  $region16: #{forward.9} parent=0 // pred_region
    _
  $region17: #{forward.9} parent=0 // pred_fallthru
    _
  %v17 = vld [vmem:[%s0] sm:$0xff]
  %v18 = vld [vmem:[%s0 + $0x8] sm:$0xff]
  %v19 = vld [vmem:[%s0 + $0x10] sm:$0xff]
  %v20 = vld [vmem:[%s0 + $0x18] sm:$0xff]
  %v21 = vld [vmem:[%s0 + $0x20] sm:$0xf]
  %v22 = vld [vmem:[%s0 + $0x24] sm:$0xff]
  %v23 = vld [vmem:[%s0 + $0x2c] sm:$0xff]
  %v24 = vld [vmem:[%s0 + $0x34] sm:$0xff]
  %v25 = vld [vmem:[%s0 + $0x3c] sm:$0xff]
  %v26 = vld [vmem:[%s0 + $0x44] sm:$0xf]
  %v27 = vld [vmem:[%s0 + $0x48] sm:$0xff]
  %v28 = vld [vmem:[%s0 + $0x50] sm:$0xff]
  %v29 = vld [vmem:[%s0 + $0x58] sm:$0xff]
  %v30 = vld [vmem:[%s0 + $0x60] sm:$0xff]
  %v31 = vld [vmem:[%s0 + $0x68] sm:$0xf]
  %v32 = vld [vmem:[%s0 + $0x6c] sm:$0xff]
  %v33 = vld [vmem:[%s0 + $0x74] sm:$0xff]
  %v34 = vld [vmem:[%s0 + $0x7c] sm:$0xff]
  %v35 = vld [vmem:[%s0 + $0x84] sm:$0xff]
  %v36 = vld [vmem:[%s0 + $0x8c] sm:$0xf]
  %v37 = vld [vmem:[%s1] sm:$0xff]
  %v38 = vld [vmem:[%s1 + $0x8] sm:$0xff]
  %v39 = vld [vmem:[%s1 + $0x10] sm:$0xff]
  %v40 = vld [vmem:[%s1 + $0x18] sm:$0xff]
  %v41 = vld [vmem:[%s1 + $0x20] sm:$0xff]
  %v42 = vld [vmem:[%s1 + $0x28] sm:$0xff]
  %v43 = vld [vmem:[%s1 + $0x30] sm:$0xff]
  %v44 = vld [vmem:[%s1 + $0x38] sm:$0xff]
  %v45 = vld [vmem:[%s1 + $0x40] sm:$0xff]
  %v46 = vld [vmem:[%s1 + $0x48] sm:$0xff]
  %v47 = vld [vmem:[%s1 + $0x50] sm:$0xff]
  %v48 = vld [vmem:[%s1 + $0x58] sm:$0xff]
  %v49 = vld [vmem:[%s1 + $0x60] sm:$0xff]
  %v50 = vld [vmem:[%s1 + $0x68] sm:$0xff]
  %v51 = vld [vmem:[%s1 + $0x70] sm:$0xff]
  %v52 = vld [vmem:[%s1 + $0x78] sm:$0xff]
  %v53 = vld [vmem:[%s1 + $0x80] sm:$0xff]
  %v54 = vld [vmem:[%s1 + $0x88] sm:$0xff]
  %v55 = vld [vmem:[%s1 + $0x90] sm:$0xff]
  %v56 = vld [vmem:[%s1 + $0x98] sm:$0xff]
  %v57 = vld [vmem:[%s1 + $0xa0] sm:$0xff]
  %v58 = vld [vmem:[%s1 + $0xa8] sm:$0xff]
  %v59 = vld [vmem:[%s1 + $0xb0] sm:$0xff]
  %v60 = vld [vmem:[%s1 + $0xb8] sm:$0xff]
  %v61 = vld [vmem:[%s1 + $0xc0] sm:$0xff]
  %v62 = vld [vmem:[%s1 + $0xc8] sm:$0xff]
  %v63 = vld [vmem:[%s1 + $0xd0] sm:$0xff]
  %v64 = vld [vmem:[%s1 + $0xd8] sm:$0xff]
  %v65 = vld [vmem:[%s1 + $0xe0] sm:$0xff]
  %v66 = vld [vmem:[%s1 + $0xe8] sm:$0xff]
  %v67 = vld [vmem:[%s1 + $0xf0] sm:$0xff]
  %v68 = vld [vmem:[%s1 + $0xf8] sm:$0xff]
  %v69 = vld [vmem:[%s1 + $0x100] sm:$0xff]
  %v70 = vld [vmem:[%s1 + $0x108] sm:$0xff]
  %v71 = vld [vmem:[%s1 + $0x110] sm:$0xff]
  %v72 = vld [vmem:[%s1 + $0x118] sm:$0xff]
  %v73 = vld [vmem:[%s1 + $0x120] sm:$0xff]
  %v74 = vld [vmem:[%s1 + $0x128] sm:$0xff]
  %v75 = vld [vmem:[%s1 + $0x130] sm:$0xff]
  %v76 = vld [vmem:[%s1 + $0x138] sm:$0xff]
  %v77 = vld [vmem:[%s1 + $0x140] sm:$0xff]
  %v78 = vld [vmem:[%s1 + $0x148] sm:$0xff]
  %v79 = vld [vmem:[%s1 + $0x150] sm:$0xff]
  %v80 = vld [vmem:[%s1 + $0x158] sm:$0xff]
  %v81 = vld [vmem:[%s1 + $0x160] sm:$0xff]
  %v82 = vld [vmem:[%s1 + $0x168] sm:$0xff]
  %v83 = vld [vmem:[%s1 + $0x170] sm:$0xff]
  %v84 = vld [vmem:[%s1 + $0x178] sm:$0xff]
  %v85 = vld [vmem:[%s1 + $0x180] sm:$0xff]
  %v86 = vld [vmem:[%s1 + $0x188] sm:$0xff]
  %v87 = vld [vmem:[%s1 + $0x190] sm:$0xff]
  %v88 = vld [vmem:[%s1 + $0x198] sm:$0xff]
  %v89 = vld [vmem:[%s1 + $0x1a0] sm:$0xff]
  %v90 = vld [vmem:[%s1 + $0x1a8] sm:$0xff]
  %v91 = vld [vmem:[%s1 + $0x1b0] sm:$0xff]
  %v92 = vld [vmem:[%s1 + $0x1b8] sm:$0xff]
  %v93 = vld [vmem:[%s1 + $0x1c0] sm:$0xff]
  %v94 = vld [vmem:[%s1 + $0x1c8] sm:$0xff]
  %v95 = vld [vmem:[%s1 + $0x1d0] sm:$0xff]
  %v96 = vld [vmem:[%s1 + $0x1d8] sm:$0xff]
  %v97 = vld [vmem:[%s1 + $0x1e0] sm:$0xff]
  %v98 = vld [vmem:[%s1 + $0x1e8] sm:$0xff]
  %v99 = vld [vmem:[%s1 + $0x1f0] sm:$0xff]
  %v100 = vld [vmem:[%s1 + $0x1f8] sm:$0xff]
  %v101 = vld [vmem:[%s1 + $0x200] sm:$0xff]
  %v102 = vld [vmem:[%s1 + $0x208] sm:$0xff]
  %v103 = vld [vmem:[%s1 + $0x210] sm:$0xff]
  %v104 = vld [vmem:[%s1 + $0x218] sm:$0xff]
  %v105 = vld [vmem:[%s1 + $0x220] sm:$0xff]
  %v106 = vld [vmem:[%s1 + $0x228] sm:$0xff]
  %v107 = vld [vmem:[%s1 + $0x230] sm:$0xff]
  %v108 = vld [vmem:[%s1 + $0x238] sm:$0xff]
  %v109 = vld [vmem:[%s1 + $0x240] sm:$0xff]
  %v110 = vld [vmem:[%s1 + $0x248] sm:$0xff]
  %v111 = vld [vmem:[%s1 + $0x250] sm:$0xff]
  %v112 = vld [vmem:[%s1 + $0x258] sm:$0xff]
  %v113 = vld [vmem:[%s1 + $0x260] sm:$0xff]
  %v114 = vld [vmem:[%s1 + $0x268] sm:$0xff]
  %v115 = vld [vmem:[%s1 + $0x270] sm:$0xff]
  %v116 = vld [vmem:[%s1 + $0x278] sm:$0xff]
  %v117 = vld [vmem:[%s1 + $0x280] sm:$0xff]
  %v118 = vld [vmem:[%s1 + $0x288] sm:$0xff]
  %v119 = vld [vmem:[%s1 + $0x290] sm:$0xff]
  %v120 = vld [vmem:[%s1 + $0x298] sm:$0xff]
  %v121 = vld [vmem:[%s1 + $0x2a0] sm:$0xff]
  %v122 = vld [vmem:[%s1 + $0x2a8] sm:$0xff]
  %v123 = vld [vmem:[%s1 + $0x2b0] sm:$0xff]
  %v124 = vld [vmem:[%s1 + $0x2b8] sm:$0xff]
  %v125 = vld [vmem:[%s1 + $0x2c0] sm:$0xff]
  %v126 = vld [vmem:[%s1 + $0x2c8] sm:$0xff]
  %v127 = vld [vmem:[%s1 + $0x2d0] sm:$0xff]
  %v128 = vld [vmem:[%s1 + $0x2d8] sm:$0xff]
  %v129 = vld [vmem:[%s1 + $0x2e0] sm:$0xff]
  %v130 = vld [vmem:[%s1 + $0x2e8] sm:$0xff]
  %v131 = vld [vmem:[%s1 + $0x2f0] sm:$0xff]
  %v132 = vld [vmem:[%s1 + $0x2f8] sm:$0xff]
  %v133 = vld [vmem:[%s1 + $0x300] sm:$0xff]
  %v134 = vld [vmem:[%s1 + $0x308] sm:$0xff]
  %v135 = vld [vmem:[%s1 + $0x310] sm:$0xff]
  %v136 = vld [vmem:[%s1 + $0x318] sm:$0xff]
  %v137 = vld [vmem:[%s1 + $0x320] sm:$0xff]
  %v138 = vld [vmem:[%s1 + $0x328] sm:$0xff]
  %v139 = vld [vmem:[%s1 + $0x330] sm:$0xff]
  %v140 = vld [vmem:[%s1 + $0x338] sm:$0xff]
  %v141 = vld [vmem:[%s1 + $0x340] sm:$0xff]
  %v142 = vld [vmem:[%s1 + $0x348] sm:$0xff]
  %v143 = vld [vmem:[%s1 + $0x350] sm:$0xff]
  %v144 = vld [vmem:[%s1 + $0x358] sm:$0xff]
  %v145 = vld [vmem:[%s1 + $0x360] sm:$0xff]
  %v146 = vld [vmem:[%s1 + $0x368] sm:$0xff]
  %v147 = vld [vmem:[%s1 + $0x370] sm:$0xff]
  %v148 = vld [vmem:[%s1 + $0x378] sm:$0xff]
  %v149 = vld [vmem:[%s1 + $0x380] sm:$0xff]
  %v150 = vld [vmem:[%s1 + $0x388] sm:$0xff]
  %v151 = vld [vmem:[%s1 + $0x390] sm:$0xff]
  %v152 = vld [vmem:[%s1 + $0x398] sm:$0xff]
  %v153 = vld [vmem:[%s1 + $0x3a0] sm:$0xff]
  %v154 = vld [vmem:[%s1 + $0x3a8] sm:$0xff]
  %v155 = vld [vmem:[%s1 + $0x3b0] sm:$0xff]
  %v156 = vld [vmem:[%s1 + $0x3b8] sm:$0xff]
  %v157 = vld [vmem:[%s1 + $0x3c0] sm:$0xff]
  %v158 = vld [vmem:[%s1 + $0x3c8] sm:$0xff]
  %v159 = vld [vmem:[%s1 + $0x3d0] sm:$0xff]
  %v160 = vld [vmem:[%s1 + $0x3d8] sm:$0xff]
  %v161 = vld [vmem:[%s1 + $0x3e0] sm:$0xff]
  %v162 = vld [vmem:[%s1 + $0x3e8] sm:$0xff]
  %v163 = vld [vmem:[%s1 + $0x3f0] sm:$0xff]
  %v164 = vld [vmem:[%s1 + $0x3f8] sm:$0xff]
  %v165 = vld [vmem:[%s1 + $0x400] sm:$0xff]
  %v166 = vld [vmem:[%s1 + $0x408] sm:$0xff]
  %v167 = vld [vmem:[%s1 + $0x410] sm:$0xff]
  %v168 = vld [vmem:[%s1 + $0x418] sm:$0xff]
  %v169 = vld [vmem:[%s1 + $0x420] sm:$0xff]
  %v170 = vld [vmem:[%s1 + $0x428] sm:$0xff]
  %v171 = vld [vmem:[%s1 + $0x430] sm:$0xff]
  %v172 = vld [vmem:[%s1 + $0x438] sm:$0xff]
  %v173 = vld [vmem:[%s1 + $0x440] sm:$0xff]
  %v174 = vld [vmem:[%s1 + $0x448] sm:$0xff]
  %v175 = vld [vmem:[%s1 + $0x450] sm:$0xff]
  %v176 = vld [vmem:[%s1 + $0x458] sm:$0xff]
  %v177 = vld [vmem:[%s1 + $0x460] sm:$0xff]
  %v178 = vld [vmem:[%s1 + $0x468] sm:$0xff]
  %v179 = vld [vmem:[%s1 + $0x470] sm:$0xff]
  %v180 = vld [vmem:[%s1 + $0x478] sm:$0xff]
  %v201 = vunpack.c.l.b16 %v17
  %v202 = vunpack.c.h.b16 %v17
  %v203 = vunpack.c.l.b16 %v18
  %v204 = vunpack.c.h.b16 %v18
  %v205 = vunpack.c.l.b16 %v19
  %v206 = vunpack.c.h.b16 %v19
  %v207 = vunpack.c.l.b16 %v20
  %v208 = vunpack.c.h.b16 %v20
  %v209 = vunpack.c.l.b16 %v21
  %v210 = vunpack.c.l.b16 %v22
  %v211 = vunpack.c.h.b16 %v22
  %v212 = vunpack.c.l.b16 %v23
  %v213 = vunpack.c.h.b16 %v23
  %v214 = vunpack.c.l.b16 %v24
  %v215 = vunpack.c.h.b16 %v24
  %v216 = vunpack.c.l.b16 %v25
  %v217 = vunpack.c.h.b16 %v25
  %v218 = vunpack.c.l.b16 %v26
  %v219 = vunpack.c.l.b16 %v27
  %v220 = vunpack.c.h.b16 %v27
  %v221 = vunpack.c.l.b16 %v28
  %v222 = vunpack.c.h.b16 %v28
  %v223 = vunpack.c.l.b16 %v29
  %v224 = vunpack.c.h.b16 %v29
  %v225 = vunpack.c.l.b16 %v30
  %v226 = vunpack.c.h.b16 %v30
  %v227 = vunpack.c.l.b16 %v31
  %v228 = vunpack.c.l.b16 %v32
  %v229 = vunpack.c.h.b16 %v32
  %v230 = vunpack.c.l.b16 %v33
  %v231 = vunpack.c.h.b16 %v33
  %v232 = vunpack.c.l.b16 %v34
  %v233 = vunpack.c.h.b16 %v34
  %v234 = vunpack.c.l.b16 %v35
  %v235 = vunpack.c.h.b16 %v35
  %v236 = vunpack.c.l.b16 %v36
  %v237 = vpack.c.b16 %v210, %v201
  %v238 = vpack.c.b16 %v211, %v202
  %v239 = vpack.c.b16 %v212, %v203
  %v240 = vpack.c.b16 %v213, %v204
  %v241 = vpack.c.b16 %v214, %v205
  %v242 = vpack.c.b16 %v215, %v206
  %v243 = vpack.c.b16 %v216, %v207
  %v244 = vpack.c.b16 %v217, %v208
  %v245 = vpack.c.b16 %v218, %v209
  %v246 = vpack.c.b16 %v228, %v219
  %v247 = vpack.c.b16 %v229, %v220
  %v248 = vpack.c.b16 %v230, %v221
  %v249 = vpack.c.b16 %v231, %v222
  %v250 = vpack.c.b16 %v232, %v223
  %v251 = vpack.c.b16 %v233, %v224
  %v252 = vpack.c.b16 %v234, %v225
  %v253 = vpack.c.b16 %v235, %v226
  %v254 = vpack.c.b16 %v236, %v227
  %v417 = vunpack.c.l.b16 %v37
  %v418 = vunpack.c.h.b16 %v37
  %v419 = vunpack.c.l.b16 %v38
  %v420 = vunpack.c.h.b16 %v38
  %v421 = vunpack.c.l.b16 %v39
  %v422 = vunpack.c.h.b16 %v39
  %v423 = vunpack.c.l.b16 %v40
  %v424 = vunpack.c.h.b16 %v40
  %v425 = vunpack.c.l.b16 %v41
  %v426 = vunpack.c.h.b16 %v41
  %v427 = vunpack.c.l.b16 %v42
  %v428 = vunpack.c.h.b16 %v42
  %v429 = vunpack.c.l.b16 %v43
  %v430 = vunpack.c.h.b16 %v43
  %v431 = vunpack.c.l.b16 %v44
  %v432 = vunpack.c.h.b16 %v44
  %v433 = vunpack.c.l.b16 %v45
  %v434 = vunpack.c.h.b16 %v45
  %v435 = vunpack.c.l.b16 %v46
  %v436 = vunpack.c.h.b16 %v46
  %v437 = vunpack.c.l.b16 %v47
  %v438 = vunpack.c.h.b16 %v47
  %v439 = vunpack.c.l.b16 %v48
  %v440 = vunpack.c.h.b16 %v48
  %v441 = vunpack.c.l.b16 %v49
  %v442 = vunpack.c.h.b16 %v49
  %v443 = vunpack.c.l.b16 %v50
  %v444 = vunpack.c.h.b16 %v50
  %v445 = vunpack.c.l.b16 %v51
  %v446 = vunpack.c.h.b16 %v51
  %v447 = vunpack.c.l.b16 %v52
  %v448 = vunpack.c.h.b16 %v52
  %v449 = vunpack.c.l.b16 %v53
  %v450 = vunpack.c.h.b16 %v53
  %v451 = vunpack.c.l.b16 %v54
  %v452 = vunpack.c.h.b16 %v54
  %v453 = vunpack.c.l.b16 %v55
  %v454 = vunpack.c.h.b16 %v55
  %v455 = vunpack.c.l.b16 %v56
  %v456 = vunpack.c.h.b16 %v56
  %v457 = vunpack.c.l.b16 %v57
  %v458 = vunpack.c.h.b16 %v57
  %v459 = vunpack.c.l.b16 %v58
  %v460 = vunpack.c.h.b16 %v58
  %v461 = vunpack.c.l.b16 %v59
  %v462 = vunpack.c.h.b16 %v59
  %v463 = vunpack.c.l.b16 %v60
  %v464 = vunpack.c.h.b16 %v60
  %v465 = vunpack.c.l.b16 %v61
  %v466 = vunpack.c.h.b16 %v61
  %v467 = vunpack.c.l.b16 %v62
  %v468 = vunpack.c.h.b16 %v62
  %v469 = vunpack.c.l.b16 %v63
  %v470 = vunpack.c.h.b16 %v63
  %v471 = vunpack.c.l.b16 %v64
  %v472 = vunpack.c.h.b16 %v64
  %v473 = vunpack.c.l.b16 %v65
  %v474 = vunpack.c.h.b16 %v65
  %v475 = vunpack.c.l.b16 %v66
  %v476 = vunpack.c.h.b16 %v66
  %v477 = vunpack.c.l.b16 %v67
  %v478 = vunpack.c.h.b16 %v67
  %v479 = vunpack.c.l.b16 %v68
  %v480 = vunpack.c.h.b16 %v68
  %v481 = vunpack.c.l.b16 %v69
  %v482 = vunpack.c.h.b16 %v69
  %v483 = vunpack.c.l.b16 %v70
  %v484 = vunpack.c.h.b16 %v70
  %v485 = vunpack.c.l.b16 %v71
  %v486 = vunpack.c.h.b16 %v71
  %v487 = vunpack.c.l.b16 %v72
  %v488 = vunpack.c.h.b16 %v72
  %v489 = vunpack.c.l.b16 %v73
  %v490 = vunpack.c.h.b16 %v73
  %v491 = vunpack.c.l.b16 %v74
  %v492 = vunpack.c.h.b16 %v74
  %v493 = vunpack.c.l.b16 %v75
  %v494 = vunpack.c.h.b16 %v75
  %v495 = vunpack.c.l.b16 %v76
  %v496 = vunpack.c.h.b16 %v76
  %v497 = vunpack.c.l.b16 %v77
  %v498 = vunpack.c.h.b16 %v77
  %v499 = vunpack.c.l.b16 %v78
  %v500 = vunpack.c.h.b16 %v78
  %v501 = vunpack.c.l.b16 %v79
  %v502 = vunpack.c.h.b16 %v79
  %v503 = vunpack.c.l.b16 %v80
  %v504 = vunpack.c.h.b16 %v80
  %v505 = vunpack.c.l.b16 %v81
  %v506 = vunpack.c.h.b16 %v81
  %v507 = vunpack.c.l.b16 %v82
  %v508 = vunpack.c.h.b16 %v82
  %v509 = vunpack.c.l.b16 %v83
  %v510 = vunpack.c.h.b16 %v83
  %v511 = vunpack.c.l.b16 %v84
  %v512 = vunpack.c.h.b16 %v84
  %v513 = vunpack.c.l.b16 %v85
  %v514 = vunpack.c.h.b16 %v85
  %v515 = vunpack.c.l.b16 %v86
  %v516 = vunpack.c.h.b16 %v86
  %v517 = vunpack.c.l.b16 %v87
  %v518 = vunpack.c.h.b16 %v87
  %v519 = vunpack.c.l.b16 %v88
  %v520 = vunpack.c.h.b16 %v88
  %v521 = vunpack.c.l.b16 %v89
  %v522 = vunpack.c.h.b16 %v89
  %v523 = vunpack.c.l.b16 %v90
  %v524 = vunpack.c.h.b16 %v90
  %v525 = vunpack.c.l.b16 %v91
  %v526 = vunpack.c.h.b16 %v91
  %v527 = vunpack.c.l.b16 %v92
  %v528 = vunpack.c.h.b16 %v92
  %v529 = vunpack.c.l.b16 %v93
  %v530 = vunpack.c.h.b16 %v93
  %v531 = vunpack.c.l.b16 %v94
  %v532 = vunpack.c.h.b16 %v94
  %v533 = vunpack.c.l.b16 %v95
  %v534 = vunpack.c.h.b16 %v95
  %v535 = vunpack.c.l.b16 %v96
  %v536 = vunpack.c.h.b16 %v96
  %v537 = vunpack.c.l.b16 %v97
  %v538 = vunpack.c.h.b16 %v97
  %v539 = vunpack.c.l.b16 %v98
  %v540 = vunpack.c.h.b16 %v98
  %v541 = vunpack.c.l.b16 %v99
  %v542 = vunpack.c.h.b16 %v99
  %v543 = vunpack.c.l.b16 %v100
  %v544 = vunpack.c.h.b16 %v100
  %v545 = vunpack.c.l.b16 %v101
  %v546 = vunpack.c.h.b16 %v101
  %v547 = vunpack.c.l.b16 %v102
  %v548 = vunpack.c.h.b16 %v102
  %v549 = vunpack.c.l.b16 %v103
  %v550 = vunpack.c.h.b16 %v103
  %v551 = vunpack.c.l.b16 %v104
  %v552 = vunpack.c.h.b16 %v104
  %v553 = vunpack.c.l.b16 %v105
  %v554 = vunpack.c.h.b16 %v105
  %v555 = vunpack.c.l.b16 %v106
  %v556 = vunpack.c.h.b16 %v106
  %v557 = vunpack.c.l.b16 %v107
  %v558 = vunpack.c.h.b16 %v107
  %v559 = vunpack.c.l.b16 %v108
  %v560 = vunpack.c.h.b16 %v108
  %v561 = vunpack.c.l.b16 %v109
  %v562 = vunpack.c.h.b16 %v109
  %v563 = vunpack.c.l.b16 %v110
  %v564 = vunpack.c.h.b16 %v110
  %v565 = vunpack.c.l.b16 %v111
  %v566 = vunpack.c.h.b16 %v111
  %v567 = vunpack.c.l.b16 %v112
  %v568 = vunpack.c.h.b16 %v112
  %v569 = vunpack.c.l.b16 %v113
  %v570 = vunpack.c.h.b16 %v113
  %v571 = vunpack.c.l.b16 %v114
  %v572 = vunpack.c.h.b16 %v114
  %v573 = vunpack.c.l.b16 %v115
  %v574 = vunpack.c.h.b16 %v115
  %v575 = vunpack.c.l.b16 %v116
  %v576 = vunpack.c.h.b16 %v116
  %v577 = vunpack.c.l.b16 %v117
  %v578 = vunpack.c.h.b16 %v117
  %v579 = vunpack.c.l.b16 %v118
  %v580 = vunpack.c.h.b16 %v118
  %v581 = vunpack.c.l.b16 %v119
  %v582 = vunpack.c.h.b16 %v119
  %v583 = vunpack.c.l.b16 %v120
  %v584 = vunpack.c.h.b16 %v120
  %v585 = vunpack.c.l.b16 %v121
  %v586 = vunpack.c.h.b16 %v121
  %v587 = vunpack.c.l.b16 %v122
  %v588 = vunpack.c.h.b16 %v122
  %v589 = vunpack.c.l.b16 %v123
  %v590 = vunpack.c.h.b16 %v123
  %v591 = vunpack.c.l.b16 %v124
  %v592 = vunpack.c.h.b16 %v124
  %v593 = vunpack.c.l.b16 %v125
  %v594 = vunpack.c.h.b16 %v125
  %v595 = vunpack.c.l.b16 %v126
  %v596 = vunpack.c.h.b16 %v126
  %v597 = vunpack.c.l.b16 %v127
  %v598 = vunpack.c.h.b16 %v127
  %v599 = vunpack.c.l.b16 %v128
  %v600 = vunpack.c.h.b16 %v128
  %v601 = vunpack.c.l.b16 %v129
  %v602 = vunpack.c.h.b16 %v129
  %v603 = vunpack.c.l.b16 %v130
  %v604 = vunpack.c.h.b16 %v130
  %v605 = vunpack.c.l.b16 %v131
  %v606 = vunpack.c.h.b16 %v131
  %v607 = vunpack.c.l.b16 %v132
  %v608 = vunpack.c.h.b16 %v132
  %v609 = vunpack.c.l.b16 %v133
  %v610 = vunpack.c.h.b16 %v133
  %v611 = vunpack.c.l.b16 %v134
  %v612 = vunpack.c.h.b16 %v134
  %v613 = vunpack.c.l.b16 %v135
  %v614 = vunpack.c.h.b16 %v135
  %v615 = vunpack.c.l.b16 %v136
  %v616 = vunpack.c.h.b16 %v136
  %v617 = vunpack.c.l.b16 %v137
  %v618 = vunpack.c.h.b16 %v137
  %v619 = vunpack.c.l.b16 %v138
  %v620 = vunpack.c.h.b16 %v138
  %v621 = vunpack.c.l.b16 %v139
  %v622 = vunpack.c.h.b16 %v139
  %v623 = vunpack.c.l.b16 %v140
  %v624 = vunpack.c.h.b16 %v140
  %v625 = vunpack.c.l.b16 %v141
  %v626 = vunpack.c.h.b16 %v141
  %v627 = vunpack.c.l.b16 %v142
  %v628 = vunpack.c.h.b16 %v142
  %v629 = vunpack.c.l.b16 %v143
  %v630 = vunpack.c.h.b16 %v143
  %v631 = vunpack.c.l.b16 %v144
  %v632 = vunpack.c.h.b16 %v144
  %v633 = vunpack.c.l.b16 %v145
  %v634 = vunpack.c.h.b16 %v145
  %v635 = vunpack.c.l.b16 %v146
  %v636 = vunpack.c.h.b16 %v146
  %v637 = vunpack.c.l.b16 %v147
  %v638 = vunpack.c.h.b16 %v147
  %v639 = vunpack.c.l.b16 %v148
  %v640 = vunpack.c.h.b16 %v148
  %v641 = vunpack.c.l.b16 %v149
  %v642 = vunpack.c.h.b16 %v149
  %v643 = vunpack.c.l.b16 %v150
  %v644 = vunpack.c.h.b16 %v150
  %v645 = vunpack.c.l.b16 %v151
  %v646 = vunpack.c.h.b16 %v151
  %v647 = vunpack.c.l.b16 %v152
  %v648 = vunpack.c.h.b16 %v152
  %v649 = vunpack.c.l.b16 %v153
  %v650 = vunpack.c.h.b16 %v153
  %v651 = vunpack.c.l.b16 %v154
  %v652 = vunpack.c.h.b16 %v154
  %v653 = vunpack.c.l.b16 %v155
  %v654 = vunpack.c.h.b16 %v155
  %v655 = vunpack.c.l.b16 %v156
  %v656 = vunpack.c.h.b16 %v156
  %v657 = vunpack.c.l.b16 %v157
  %v658 = vunpack.c.h.b16 %v157
  %v659 = vunpack.c.l.b16 %v158
  %v660 = vunpack.c.h.b16 %v158
  %v661 = vunpack.c.l.b16 %v159
  %v662 = vunpack.c.h.b16 %v159
  %v663 = vunpack.c.l.b16 %v160
  %v664 = vunpack.c.h.b16 %v160
  %v665 = vunpack.c.l.b16 %v161
  %v666 = vunpack.c.h.b16 %v161
  %v667 = vunpack.c.l.b16 %v162
  %v668 = vunpack.c.h.b16 %v162
  %v669 = vunpack.c.l.b16 %v163
  %v670 = vunpack.c.h.b16 %v163
  %v671 = vunpack.c.l.b16 %v164
  %v672 = vunpack.c.h.b16 %v164
  %v673 = vunpack.c.l.b16 %v165
  %v674 = vunpack.c.h.b16 %v165
  %v675 = vunpack.c.l.b16 %v166
  %v676 = vunpack.c.h.b16 %v166
  %v677 = vunpack.c.l.b16 %v167
  %v678 = vunpack.c.h.b16 %v167
  %v679 = vunpack.c.l.b16 %v168
  %v680 = vunpack.c.h.b16 %v168
  %v681 = vunpack.c.l.b16 %v169
  %v682 = vunpack.c.h.b16 %v169
  %v683 = vunpack.c.l.b16 %v170
  %v684 = vunpack.c.h.b16 %v170
  %v685 = vunpack.c.l.b16 %v171
  %v686 = vunpack.c.h.b16 %v171
  %v687 = vunpack.c.l.b16 %v172
  %v688 = vunpack.c.h.b16 %v172
  %v689 = vunpack.c.l.b16 %v173
  %v690 = vunpack.c.h.b16 %v173
  %v691 = vunpack.c.l.b16 %v174
  %v692 = vunpack.c.h.b16 %v174
  %v693 = vunpack.c.l.b16 %v175
  %v694 = vunpack.c.h.b16 %v175
  %v695 = vunpack.c.l.b16 %v176
  %v696 = vunpack.c.h.b16 %v176
  %v697 = vunpack.c.l.b16 %v177
  %v698 = vunpack.c.h.b16 %v177
  %v699 = vunpack.c.l.b16 %v178
  %v700 = vunpack.c.h.b16 %v178
  %v701 = vunpack.c.l.b16 %v179
  %v702 = vunpack.c.h.b16 %v179
  %v703 = vunpack.c.l.b16 %v180
  %v704 = vunpack.c.h.b16 %v180
  %v705 = vpack.c.b16 %v419, %v417
  %v706 = vpack.c.b16 %v420, %v418
  %v707 = vpack.c.b16 %v423, %v421
  %v708 = vpack.c.b16 %v424, %v422
  %v709 = vpack.c.b16 %v427, %v425
  %v710 = vpack.c.b16 %v428, %v426
  %v711 = vpack.c.b16 %v431, %v429
  %v712 = vpack.c.b16 %v432, %v430
  %v713 = vpack.c.b16 %v435, %v433
  %v714 = vpack.c.b16 %v436, %v434
  %v715 = vpack.c.b16 %v439, %v437
  %v716 = vpack.c.b16 %v440, %v438
  %v717 = vpack.c.b16 %v443, %v441
  %v718 = vpack.c.b16 %v444, %v442
  %v719 = vpack.c.b16 %v447, %v445
  %v720 = vpack.c.b16 %v448, %v446
  %v721 = vpack.c.b16 %v451, %v449
  %v722 = vpack.c.b16 %v452, %v450
  %v723 = vpack.c.b16 %v455, %v453
  %v724 = vpack.c.b16 %v456, %v454
  %v725 = vpack.c.b16 %v459, %v457
  %v726 = vpack.c.b16 %v460, %v458
  %v727 = vpack.c.b16 %v463, %v461
  %v728 = vpack.c.b16 %v464, %v462
  %v729 = vpack.c.b16 %v467, %v465
  %v730 = vpack.c.b16 %v468, %v466
  %v731 = vpack.c.b16 %v471, %v469
  %v732 = vpack.c.b16 %v472, %v470
  %v733 = vpack.c.b16 %v475, %v473
  %v734 = vpack.c.b16 %v476, %v474
  %v735 = vpack.c.b16 %v479, %v477
  %v736 = vpack.c.b16 %v480, %v478
  %v737 = vpack.c.b16 %v483, %v481
  %v738 = vpack.c.b16 %v484, %v482
  %v739 = vpack.c.b16 %v487, %v485
  %v740 = vpack.c.b16 %v488, %v486
  %v741 = vpack.c.b16 %v491, %v489
  %v742 = vpack.c.b16 %v492, %v490
  %v743 = vpack.c.b16 %v495, %v493
  %v744 = vpack.c.b16 %v496, %v494
  %v745 = vpack.c.b16 %v499, %v497
  %v746 = vpack.c.b16 %v500, %v498
  %v747 = vpack.c.b16 %v503, %v501
  %v748 = vpack.c.b16 %v504, %v502
  %v749 = vpack.c.b16 %v507, %v505
  %v750 = vpack.c.b16 %v508, %v506
  %v751 = vpack.c.b16 %v511, %v509
  %v752 = vpack.c.b16 %v512, %v510
  %v753 = vpack.c.b16 %v515, %v513
  %v754 = vpack.c.b16 %v516, %v514
  %v755 = vpack.c.b16 %v519, %v517
  %v756 = vpack.c.b16 %v520, %v518
  %v757 = vpack.c.b16 %v523, %v521
  %v758 = vpack.c.b16 %v524, %v522
  %v759 = vpack.c.b16 %v527, %v525
  %v760 = vpack.c.b16 %v528, %v526
  %v761 = vpack.c.b16 %v531, %v529
  %v762 = vpack.c.b16 %v532, %v530
  %v763 = vpack.c.b16 %v535, %v533
  %v764 = vpack.c.b16 %v536, %v534
  %v765 = vpack.c.b16 %v539, %v537
  %v766 = vpack.c.b16 %v540, %v538
  %v767 = vpack.c.b16 %v543, %v541
  %v768 = vpack.c.b16 %v544, %v542
  %v769 = vpack.c.b16 %v547, %v545
  %v770 = vpack.c.b16 %v548, %v546
  %v771 = vpack.c.b16 %v551, %v549
  %v772 = vpack.c.b16 %v552, %v550
  %v773 = vpack.c.b16 %v555, %v553
  %v774 = vpack.c.b16 %v556, %v554
  %v775 = vpack.c.b16 %v559, %v557
  %v776 = vpack.c.b16 %v560, %v558
  %v777 = vpack.c.b16 %v563, %v561
  %v778 = vpack.c.b16 %v564, %v562
  %v779 = vpack.c.b16 %v567, %v565
  %v780 = vpack.c.b16 %v568, %v566
  %v781 = vpack.c.b16 %v571, %v569
  %v782 = vpack.c.b16 %v572, %v570
  %v783 = vpack.c.b16 %v575, %v573
  %v784 = vpack.c.b16 %v576, %v574
  %v785 = vpack.c.b16 %v579, %v577
  %v786 = vpack.c.b16 %v580, %v578
  %v787 = vpack.c.b16 %v583, %v581
  %v788 = vpack.c.b16 %v584, %v582
  %v789 = vpack.c.b16 %v587, %v585
  %v790 = vpack.c.b16 %v588, %v586
  %v791 = vpack.c.b16 %v591, %v589
  %v792 = vpack.c.b16 %v592, %v590
  %v793 = vpack.c.b16 %v595, %v593
  %v794 = vpack.c.b16 %v596, %v594
  %v795 = vpack.c.b16 %v599, %v597
  %v796 = vpack.c.b16 %v600, %v598
  %v797 = vpack.c.b16 %v603, %v601
  %v798 = vpack.c.b16 %v604, %v602
  %v799 = vpack.c.b16 %v607, %v605
  %v800 = vpack.c.b16 %v608, %v606
  %v801 = vpack.c.b16 %v611, %v609
  %v802 = vpack.c.b16 %v612, %v610
  %v803 = vpack.c.b16 %v615, %v613
  %v804 = vpack.c.b16 %v616, %v614
  %v805 = vpack.c.b16 %v619, %v617
  %v806 = vpack.c.b16 %v620, %v618
  %v807 = vpack.c.b16 %v623, %v621
  %v808 = vpack.c.b16 %v624, %v622
  %v809 = vpack.c.b16 %v627, %v625
  %v810 = vpack.c.b16 %v628, %v626
  %v811 = vpack.c.b16 %v631, %v629
  %v812 = vpack.c.b16 %v632, %v630
  %v813 = vpack.c.b16 %v635, %v633
  %v814 = vpack.c.b16 %v636, %v634
  %v815 = vpack.c.b16 %v639, %v637
  %v816 = vpack.c.b16 %v640, %v638
  %v817 = vpack.c.b16 %v643, %v641
  %v818 = vpack.c.b16 %v644, %v642
  %v819 = vpack.c.b16 %v647, %v645
  %v820 = vpack.c.b16 %v648, %v646
  %v821 = vpack.c.b16 %v651, %v649
  %v822 = vpack.c.b16 %v652, %v650
  %v823 = vpack.c.b16 %v655, %v653
  %v824 = vpack.c.b16 %v656, %v654
  %v825 = vpack.c.b16 %v659, %v657
  %v826 = vpack.c.b16 %v660, %v658
  %v827 = vpack.c.b16 %v663, %v661
  %v828 = vpack.c.b16 %v664, %v662
  %v829 = vpack.c.b16 %v667, %v665
  %v830 = vpack.c.b16 %v668, %v666
  %v831 = vpack.c.b16 %v671, %v669
  %v832 = vpack.c.b16 %v672, %v670
  %v833 = vpack.c.b16 %v675, %v673
  %v834 = vpack.c.b16 %v676, %v674
  %v835 = vpack.c.b16 %v679, %v677
  %v836 = vpack.c.b16 %v680, %v678
  %v837 = vpack.c.b16 %v683, %v681
  %v838 = vpack.c.b16 %v684, %v682
  %v839 = vpack.c.b16 %v687, %v685
  %v840 = vpack.c.b16 %v688, %v686
  %v841 = vpack.c.b16 %v691, %v689
  %v842 = vpack.c.b16 %v692, %v690
  %v843 = vpack.c.b16 %v695, %v693
  %v844 = vpack.c.b16 %v696, %v694
  %v845 = vpack.c.b16 %v699, %v697
  %v846 = vpack.c.b16 %v700, %v698
  %v847 = vpack.c.b16 %v703, %v701
  %v848 = vpack.c.b16 %v704, %v702
  %993 = vmatpush.bf16.msra.mxu0 %v719
  %994 = vmatpush.bf16.msra.mxu0 %v717
  %995 = vmatpush.bf16.msra.mxu0 %v715
  %996 = vmatpush.bf16.msra.mxu0 %v713
  %997 = vmatpush.bf16.msra.mxu0 %v711
  %998 = vmatpush.bf16.msra.mxu0 %v709
  %999 = vmatpush.bf16.msra.mxu0 %v707
  %1000 = vmatpush.bf16.msra.mxu0 %v705
  %1001 = vmatmul.bf16.gmra.mxu0 %v237
  %v1002 = vpop.f32.mrf.mxu0
  %v1003 = vadd.f32 0.0, %v1002
  %v1004 = vpop.f32.mrf.mxu0
  %v1005 = vadd.f32 0.0, %v1004
  %1006 = vmatmul.bf16.gmra.mxu0 %v246
  %v1007 = vpop.f32.mrf.mxu0
  %v1008 = vadd.f32 0.0, %v1007
  %v1009 = vpop.f32.mrf.mxu0
  %v1010 = vadd.f32 0.0, %v1009
  %1011 = vdwg.mxu0
  %1012 = vmatpush.bf16.msra.mxu0 %v735
  %1013 = vmatpush.bf16.msra.mxu0 %v733
  %1014 = vmatpush.bf16.msra.mxu0 %v731
  %1015 = vmatpush.bf16.msra.mxu0 %v729
  %1016 = vmatpush.bf16.msra.mxu0 %v727
  %1017 = vmatpush.bf16.msra.mxu0 %v725
  %1018 = vmatpush.bf16.msra.mxu0 %v723
  %1019 = vmatpush.bf16.msra.mxu0 %v721
  %1020 = vmatmul.bf16.gmra.mxu0 %v238
  %v1021 = vpop.f32.mrf.mxu0
  %v1022 = vadd.f32 %v1003, %v1021
  %v1023 = vpop.f32.mrf.mxu0
  %v1024 = vadd.f32 %v1005, %v1023
  %1025 = vmatmul.bf16.gmra.mxu0 %v247
  %v1026 = vpop.f32.mrf.mxu0
  %v1027 = vadd.f32 %v1008, %v1026
  %v1028 = vpop.f32.mrf.mxu0
  %v1029 = vadd.f32 %v1010, %v1028
  %1030 = vdwg.mxu0
  %1031 = vmatpush.bf16.msra.mxu0 %v751
  %1032 = vmatpush.bf16.msra.mxu0 %v749
  %1033 = vmatpush.bf16.msra.mxu0 %v747
  %1034 = vmatpush.bf16.msra.mxu0 %v745
  %1035 = vmatpush.bf16.msra.mxu0 %v743
  %1036 = vmatpush.bf16.msra.mxu0 %v741
  %1037 = vmatpush.bf16.msra.mxu0 %v739
  %1038 = vmatpush.bf16.msra.mxu0 %v737
  %1039 = vmatmul.bf16.gmra.mxu0 %v239
  %v1040 = vpop.f32.mrf.mxu0
  %v1041 = vadd.f32 %v1022, %v1040
  %v1042 = vpop.f32.mrf.mxu0
  %v1043 = vadd.f32 %v1024, %v1042
  %1044 = vmatmul.bf16.gmra.mxu0 %v248
  %v1045 = vpop.f32.mrf.mxu0
  %v1046 = vadd.f32 %v1027, %v1045
  %v1047 = vpop.f32.mrf.mxu0
  %v1048 = vadd.f32 %v1029, %v1047
  %1049 = vdwg.mxu0
  %1050 = vmatpush.bf16.msra.mxu0 %v767
  %1051 = vmatpush.bf16.msra.mxu0 %v765
  %1052 = vmatpush.bf16.msra.mxu0 %v763
  %1053 = vmatpush.bf16.msra.mxu0 %v761
  %1054 = vmatpush.bf16.msra.mxu0 %v759
  %1055 = vmatpush.bf16.msra.mxu0 %v757
  %1056 = vmatpush.bf16.msra.mxu0 %v755
  %1057 = vmatpush.bf16.msra.mxu0 %v753
  %1058 = vmatmul.bf16.gmra.mxu0 %v240
  %v1059 = vpop.f32.mrf.mxu0
  %v1060 = vadd.f32 %v1041, %v1059
  %v1061 = vpop.f32.mrf.mxu0
  %v1062 = vadd.f32 %v1043, %v1061
  %1063 = vmatmul.bf16.gmra.mxu0 %v249
  %v1064 = vpop.f32.mrf.mxu0
  %v1065 = vadd.f32 %v1046, %v1064
  %v1066 = vpop.f32.mrf.mxu0
  %v1067 = vadd.f32 %v1048, %v1066
  %1068 = vdwg.mxu0
  %1069 = vmatpush.bf16.msra.mxu0 %v783
  %1070 = vmatpush.bf16.msra.mxu0 %v781
  %1071 = vmatpush.bf16.msra.mxu0 %v779
  %1072 = vmatpush.bf16.msra.mxu0 %v777
  %1073 = vmatpush.bf16.msra.mxu0 %v775
  %1074 = vmatpush.bf16.msra.mxu0 %v773
  %1075 = vmatpush.bf16.msra.mxu0 %v771
  %1076 = vmatpush.bf16.msra.mxu0 %v769
  %1077 = vmatmul.bf16.gmra.mxu0 %v241
  %v1078 = vpop.f32.mrf.mxu0
  %v1079 = vadd.f32 %v1060, %v1078
  %v1080 = vpop.f32.mrf.mxu0
  %v1081 = vadd.f32 %v1062, %v1080
  %1082 = vmatmul.bf16.gmra.mxu0 %v250
  %v1083 = vpop.f32.mrf.mxu0
  %v1084 = vadd.f32 %v1065, %v1083
  %v1085 = vpop.f32.mrf.mxu0
  %v1086 = vadd.f32 %v1067, %v1085
  %1087 = vdwg.mxu0
  %1088 = vmatpush.bf16.msra.mxu0 %v799
  %1089 = vmatpush.bf16.msra.mxu0 %v797
  %1090 = vmatpush.bf16.msra.mxu0 %v795
  %1091 = vmatpush.bf16.msra.mxu0 %v793
  %1092 = vmatpush.bf16.msra.mxu0 %v791
  %1093 = vmatpush.bf16.msra.mxu0 %v789
  %1094 = vmatpush.bf16.msra.mxu0 %v787
  %1095 = vmatpush.bf16.msra.mxu0 %v785
  %1096 = vmatmul.bf16.gmra.mxu0 %v242
  %v1097 = vpop.f32.mrf.mxu0
  %v1098 = vadd.f32 %v1079, %v1097
  %v1099 = vpop.f32.mrf.mxu0
  %v1100 = vadd.f32 %v1081, %v1099
  %1101 = vmatmul.bf16.gmra.mxu0 %v251
  %v1102 = vpop.f32.mrf.mxu0
  %v1103 = vadd.f32 %v1084, %v1102
  %v1104 = vpop.f32.mrf.mxu0
  %v1105 = vadd.f32 %v1086, %v1104
  %1106 = vdwg.mxu0
  %1107 = vmatpush.bf16.msra.mxu0 %v815
  %1108 = vmatpush.bf16.msra.mxu0 %v813
  %1109 = vmatpush.bf16.msra.mxu0 %v811
  %1110 = vmatpush.bf16.msra.mxu0 %v809
  %1111 = vmatpush.bf16.msra.mxu0 %v807
  %1112 = vmatpush.bf16.msra.mxu0 %v805
  %1113 = vmatpush.bf16.msra.mxu0 %v803
  %1114 = vmatpush.bf16.msra.mxu0 %v801
  %1115 = vmatmul.bf16.gmra.mxu0 %v243
  %v1116 = vpop.f32.mrf.mxu0
  %v1117 = vadd.f32 %v1098, %v1116
  %v1118 = vpop.f32.mrf.mxu0
  %v1119 = vadd.f32 %v1100, %v1118
  %1120 = vmatmul.bf16.gmra.mxu0 %v252
  %v1121 = vpop.f32.mrf.mxu0
  %v1122 = vadd.f32 %v1103, %v1121
  %v1123 = vpop.f32.mrf.mxu0
  %v1124 = vadd.f32 %v1105, %v1123
  %1125 = vdwg.mxu0
  %1126 = vmatpush.bf16.msra.mxu0 %v831
  %1127 = vmatpush.bf16.msra.mxu0 %v829
  %1128 = vmatpush.bf16.msra.mxu0 %v827
  %1129 = vmatpush.bf16.msra.mxu0 %v825
  %1130 = vmatpush.bf16.msra.mxu0 %v823
  %1131 = vmatpush.bf16.msra.mxu0 %v821
  %1132 = vmatpush.bf16.msra.mxu0 %v819
  %1133 = vmatpush.bf16.msra.mxu0 %v817
  %1134 = vmatmul.bf16.gmra.mxu0 %v244
  %v1135 = vpop.f32.mrf.mxu0
  %v1136 = vadd.f32 %v1117, %v1135
  %v1137 = vpop.f32.mrf.mxu0
  %v1138 = vadd.f32 %v1119, %v1137
  %1139 = vmatmul.bf16.gmra.mxu0 %v253
  %v1140 = vpop.f32.mrf.mxu0
  %v1141 = vadd.f32 %v1122, %v1140
  %v1142 = vpop.f32.mrf.mxu0
  %v1143 = vadd.f32 %v1124, %v1142
  %1144 = vdwg.mxu0
  %1145 = vmatpush.bf16.msra.mxu0 %v847
  %1146 = vmatpush.bf16.msra.mxu0 %v845
  %1147 = vmatpush.bf16.msra.mxu0 %v843
  %1148 = vmatpush.bf16.msra.mxu0 %v841
  %1149 = vmatpush.bf16.msra.mxu0 %v839
  %1150 = vmatpush.bf16.msra.mxu0 %v837
  %1151 = vmatpush.bf16.msra.mxu0 %v835
  %1152 = vmatpush.bf16.msra.mxu0 %v833
  %1153 = vmatmul.bf16.gmra.mxu0 %v245
  %v1154 = vpop.f32.mrf.mxu0
  %v1155 = vadd.f32 %v1136, %v1154
  %v1156 = vpop.f32.mrf.mxu0
  %v1157 = vadd.f32 %v1138, %v1156
  %1158 = vmatmul.bf16.gmra.mxu0 %v254
  %v1159 = vpop.f32.mrf.mxu0
  %v1160 = vadd.f32 %v1141, %v1159
  %v1161 = vpop.f32.mrf.mxu0
  %v1162 = vadd.f32 %v1143, %v1161
  %1163 = vdwg.mxu0
  %1164 = vmatpush.bf16.msra.mxu0 %v720
  %1165 = vmatpush.bf16.msra.mxu0 %v718
  %1166 = vmatpush.bf16.msra.mxu0 %v716
  %1167 = vmatpush.bf16.msra.mxu0 %v714
  %1168 = vmatpush.bf16.msra.mxu0 %v712
  %1169 = vmatpush.bf16.msra.mxu0 %v710
  %1170 = vmatpush.bf16.msra.mxu0 %v708
  %1171 = vmatpush.bf16.msra.mxu0 %v706
  %1172 = vmatmul.bf16.gmra.mxu0 %v237
  %v1173 = vpop.f32.mrf.mxu0
  %v1174 = vadd.f32 0.0, %v1173
  %v1175 = vpop.f32.mrf.mxu0
  %v1176 = vadd.f32 0.0, %v1175
  %1177 = vmatmul.bf16.gmra.mxu0 %v246
  %v1178 = vpop.f32.mrf.mxu0
  %v1179 = vadd.f32 0.0, %v1178
  %v1180 = vpop.f32.mrf.mxu0
  %v1181 = vadd.f32 0.0, %v1180
  %1182 = vdwg.mxu0
  %1183 = vmatpush.bf16.msra.mxu0 %v736
  %1184 = vmatpush.bf16.msra.mxu0 %v734
  %1185 = vmatpush.bf16.msra.mxu0 %v732
  %1186 = vmatpush.bf16.msra.mxu0 %v730
  %1187 = vmatpush.bf16.msra.mxu0 %v728
  %1188 = vmatpush.bf16.msra.mxu0 %v726
  %1189 = vmatpush.bf16.msra.mxu0 %v724
  %1190 = vmatpush.bf16.msra.mxu0 %v722
  %1191 = vmatmul.bf16.gmra.mxu0 %v238
  %v1192 = vpop.f32.mrf.mxu0
  %v1193 = vadd.f32 %v1174, %v1192
  %v1194 = vpop.f32.mrf.mxu0
  %v1195 = vadd.f32 %v1176, %v1194
  %1196 = vmatmul.bf16.gmra.mxu0 %v247
  %v1197 = vpop.f32.mrf.mxu0
  %v1198 = vadd.f32 %v1179, %v1197
  %v1199 = vpop.f32.mrf.mxu0
  %v1200 = vadd.f32 %v1181, %v1199
  %1201 = vdwg.mxu0
  %1202 = vmatpush.bf16.msra.mxu0 %v752
  %1203 = vmatpush.bf16.msra.mxu0 %v750
  %1204 = vmatpush.bf16.msra.mxu0 %v748
  %1205 = vmatpush.bf16.msra.mxu0 %v746
  %1206 = vmatpush.bf16.msra.mxu0 %v744
  %1207 = vmatpush.bf16.msra.mxu0 %v742
  %1208 = vmatpush.bf16.msra.mxu0 %v740
  %1209 = vmatpush.bf16.msra.mxu0 %v738
  %1210 = vmatmul.bf16.gmra.mxu0 %v239
  %v1211 = vpop.f32.mrf.mxu0
  %v1212 = vadd.f32 %v1193, %v1211
  %v1213 = vpop.f32.mrf.mxu0
  %v1214 = vadd.f32 %v1195, %v1213
  %1215 = vmatmul.bf16.gmra.mxu0 %v248
  %v1216 = vpop.f32.mrf.mxu0
  %v1217 = vadd.f32 %v1198, %v1216
  %v1218 = vpop.f32.mrf.mxu0
  %v1219 = vadd.f32 %v1200, %v1218
  %1220 = vdwg.mxu0
  %1221 = vmatpush.bf16.msra.mxu0 %v768
  %1222 = vmatpush.bf16.msra.mxu0 %v766
  %1223 = vmatpush.bf16.msra.mxu0 %v764
  %1224 = vmatpush.bf16.msra.mxu0 %v762
  %1225 = vmatpush.bf16.msra.mxu0 %v760
  %1226 = vmatpush.bf16.msra.mxu0 %v758
  %1227 = vmatpush.bf16.msra.mxu0 %v756
  %1228 = vmatpush.bf16.msra.mxu0 %v754
  %1229 = vmatmul.bf16.gmra.mxu0 %v240
  %v1230 = vpop.f32.mrf.mxu0
  %v1231 = vadd.f32 %v1212, %v1230
  %v1232 = vpop.f32.mrf.mxu0
  %v1233 = vadd.f32 %v1214, %v1232
  %1234 = vmatmul.bf16.gmra.mxu0 %v249
  %v1235 = vpop.f32.mrf.mxu0
  %v1236 = vadd.f32 %v1217, %v1235
  %v1237 = vpop.f32.mrf.mxu0
  %v1238 = vadd.f32 %v1219, %v1237
  %1239 = vdwg.mxu0
  %1240 = vmatpush.bf16.msra.mxu0 %v784
  %1241 = vmatpush.bf16.msra.mxu0 %v782
  %1242 = vmatpush.bf16.msra.mxu0 %v780
  %1243 = vmatpush.bf16.msra.mxu0 %v778
  %1244 = vmatpush.bf16.msra.mxu0 %v776
  %1245 = vmatpush.bf16.msra.mxu0 %v774
  %1246 = vmatpush.bf16.msra.mxu0 %v772
  %1247 = vmatpush.bf16.msra.mxu0 %v770
  %1248 = vmatmul.bf16.gmra.mxu0 %v241
  %v1249 = vpop.f32.mrf.mxu0
  %v1250 = vadd.f32 %v1231, %v1249
  %v1251 = vpop.f32.mrf.mxu0
  %v1252 = vadd.f32 %v1233, %v1251
  %1253 = vmatmul.bf16.gmra.mxu0 %v250
  %v1254 = vpop.f32.mrf.mxu0
  %v1255 = vadd.f32 %v1236, %v1254
  %v1256 = vpop.f32.mrf.mxu0
  %v1257 = vadd.f32 %v1238, %v1256
  %1258 = vdwg.mxu0
  %1259 = vmatpush.bf16.msra.mxu0 %v800
  %1260 = vmatpush.bf16.msra.mxu0 %v798
  %1261 = vmatpush.bf16.msra.mxu0 %v796
  %1262 = vmatpush.bf16.msra.mxu0 %v794
  %1263 = vmatpush.bf16.msra.mxu0 %v792
  %1264 = vmatpush.bf16.msra.mxu0 %v790
  %1265 = vmatpush.bf16.msra.mxu0 %v788
  %1266 = vmatpush.bf16.msra.mxu0 %v786
  %1267 = vmatmul.bf16.gmra.mxu0 %v242
  %v1268 = vpop.f32.mrf.mxu0
  %v1269 = vadd.f32 %v1250, %v1268
  %v1270 = vpop.f32.mrf.mxu0
  %v1271 = vadd.f32 %v1252, %v1270
  %1272 = vmatmul.bf16.gmra.mxu0 %v251
  %v1273 = vpop.f32.mrf.mxu0
  %v1274 = vadd.f32 %v1255, %v1273
  %v1275 = vpop.f32.mrf.mxu0
  %v1276 = vadd.f32 %v1257, %v1275
  %1277 = vdwg.mxu0
  %1278 = vmatpush.bf16.msra.mxu0 %v816
  %1279 = vmatpush.bf16.msra.mxu0 %v814
  %1280 = vmatpush.bf16.msra.mxu0 %v812
  %1281 = vmatpush.bf16.msra.mxu0 %v810
  %1282 = vmatpush.bf16.msra.mxu0 %v808
  %1283 = vmatpush.bf16.msra.mxu0 %v806
  %1284 = vmatpush.bf16.msra.mxu0 %v804
  %1285 = vmatpush.bf16.msra.mxu0 %v802
  %1286 = vmatmul.bf16.gmra.mxu0 %v243
  %v1287 = vpop.f32.mrf.mxu0
  %v1288 = vadd.f32 %v1269, %v1287
  %v1289 = vpop.f32.mrf.mxu0
  %v1290 = vadd.f32 %v1271, %v1289
  %1291 = vmatmul.bf16.gmra.mxu0 %v252
  %v1292 = vpop.f32.mrf.mxu0
  %v1293 = vadd.f32 %v1274, %v1292
  %v1294 = vpop.f32.mrf.mxu0
  %v1295 = vadd.f32 %v1276, %v1294
  %1296 = vdwg.mxu0
  %1297 = vmatpush.bf16.msra.mxu0 %v832
  %1298 = vmatpush.bf16.msra.mxu0 %v830
  %1299 = vmatpush.bf16.msra.mxu0 %v828
  %1300 = vmatpush.bf16.msra.mxu0 %v826
  %1301 = vmatpush.bf16.msra.mxu0 %v824
  %1302 = vmatpush.bf16.msra.mxu0 %v822
  %1303 = vmatpush.bf16.msra.mxu0 %v820
  %1304 = vmatpush.bf16.msra.mxu0 %v818
  %1305 = vmatmul.bf16.gmra.mxu0 %v244
  %v1306 = vpop.f32.mrf.mxu0
  %v1307 = vadd.f32 %v1288, %v1306
  %v1308 = vpop.f32.mrf.mxu0
  %v1309 = vadd.f32 %v1290, %v1308
  %1310 = vmatmul.bf16.gmra.mxu0 %v253
  %v1311 = vpop.f32.mrf.mxu0
  %v1312 = vadd.f32 %v1293, %v1311
  %v1313 = vpop.f32.mrf.mxu0
  %v1314 = vadd.f32 %v1295, %v1313
  %1315 = vdwg.mxu0
  %1316 = vmatpush.bf16.msra.mxu0 %v848
  %1317 = vmatpush.bf16.msra.mxu0 %v846
  %1318 = vmatpush.bf16.msra.mxu0 %v844
  %1319 = vmatpush.bf16.msra.mxu0 %v842
  %1320 = vmatpush.bf16.msra.mxu0 %v840
  %1321 = vmatpush.bf16.msra.mxu0 %v838
  %1322 = vmatpush.bf16.msra.mxu0 %v836
  %1323 = vmatpush.bf16.msra.mxu0 %v834
  %1324 = vmatmul.bf16.gmra.mxu0 %v245
  %v1325 = vpop.f32.mrf.mxu0
  %v1326 = vadd.f32 %v1307, %v1325
  %v1327 = vpop.f32.mrf.mxu0
  %v1328 = vadd.f32 %v1309, %v1327
  %1329 = vmatmul.bf16.gmra.mxu0 %v254
  %v1330 = vpop.f32.mrf.mxu0
  %v1331 = vadd.f32 %v1312, %v1330
  %v1332 = vpop.f32.mrf.mxu0
  %v1333 = vadd.f32 %v1314, %v1332
  %1334 = vdwg.mxu0
  %v1335 = vadd.f32 %v1155, %v1157
  %v1336 = vadd.f32 %v1335, %v1160
  %v1337 = vadd.f32 %v1336, %v1162
  %v1338 = vrot.slane %v1337, 4
  %v1339 = vadd.f32 %v1337, %v1338
  %v1340 = vrot.slane %v1339, 2
  %v1341 = vadd.f32 %v1339, %v1340
  %v1342 = vrot.slane %v1341, 1
  %v1343 = vadd.f32 %v1341, %v1342
  %v1344 = vadd.f32 %v1326, %v1328
  %v1345 = vadd.f32 %v1344, %v1331
  %v1346 = vadd.f32 %v1345, %v1333
  %v1347 = vrot.slane %v1346, 4
  %v1348 = vadd.f32 %v1346, %v1347
  %v1349 = vrot.slane %v1348, 2
  %v1350 = vadd.f32 %v1348, %v1349
  %v1351 = vrot.slane %v1350, 1
  %v1352 = vadd.f32 %v1350, %v1351
  %v1353 = vmul.f32 %v1155, %v1155
  %v1354 = vmul.f32 %v1326, %v1326
  %v1355 = vmul.f32 %v1157, %v1157
  %v1356 = vmul.f32 %v1328, %v1328
  %v1357 = vmul.f32 %v1160, %v1160
  %v1358 = vmul.f32 %v1331, %v1331
  %v1359 = vmul.f32 %v1162, %v1162
  %v1360 = vmul.f32 %v1333, %v1333
  %v1361 = vadd.f32 %v1353, %v1355
  %v1362 = vadd.f32 %v1361, %v1357
  %v1363 = vadd.f32 %v1362, %v1359
  %v1364 = vrot.slane %v1363, 4
  %v1365 = vadd.f32 %v1363, %v1364
  %v1366 = vrot.slane %v1365, 2
  %v1367 = vadd.f32 %v1365, %v1366
  %v1368 = vrot.slane %v1367, 1
  %v1369 = vadd.f32 %v1367, %v1368
  %v1370 = vadd.f32 %v1354, %v1356
  %v1371 = vadd.f32 %v1370, %v1358
  %v1372 = vadd.f32 %v1371, %v1360
  %v1373 = vrot.slane %v1372, 4
  %v1374 = vadd.f32 %v1372, %v1373
  %v1375 = vrot.slane %v1374, 2
  %v1376 = vadd.f32 %v1374, %v1375
  %v1377 = vrot.slane %v1376, 1
  %v1378 = vadd.f32 %v1376, %v1377
  %v1379 = vmul.f32 %v1343, 0.03125
  %v1380 = vmul.f32 %v1352, 0.03125
  %v1381 = vmul.f32 %v1369, 0.03125
  %v1382 = vmul.f32 %v1378, 0.03125
  %v1383 = vmul.f32 %v1379, %v1379
  %v1384 = vmul.f32 %v1380, %v1380
  %v1385 = vsub.f32 %v1381, %v1383
  %v1386 = vsub.f32 %v1382, %v1384
  %v1387 = vmax.f32 %v1385, 0.0
  %v1388 = vmax.f32 %v1386, 0.0
  %v1389 = vld [vmem:[%s2] sm:$0x3]
  %v1390 = vadd.f32 %v1387, 1e-05
  %v1391 = vadd.f32 %v1388, 1e-05
  %v1392 = vrsqrt.pop %v1390
  %v1393 = vmul.f32 %v1392, %v1390
  %v1394 = vmul.f32 %v1393, %v1392
  %v1395 = vmul.f32 0.5, %v1394
  %v1396 = vsub.f32 1.5, %v1395
  %v1397 = vmul.f32 %v1392, %v1396
  %vm1398 = vweird.f32 %v1390
  %vm1399 = vweird.f32 %v1392
  %vm1400 = vmor %vm1398, %vm1399
  %v1401 = vsel %vm1400, %v1392, %v1397
  %v1402 = vrsqrt.pop %v1391
  %v1403 = vmul.f32 %v1402, %v1391
  %v1404 = vmul.f32 %v1403, %v1402
  %v1405 = vmul.f32 0.5, %v1404
  %v1406 = vsub.f32 1.5, %v1405
  %v1407 = vmul.f32 %v1402, %v1406
  %vm1408 = vweird.f32 %v1391
  %vm1409 = vweird.f32 %v1402
  %vm1410 = vmor %vm1408, %vm1409
  %v1411 = vsel %vm1410, %v1402, %v1407
  %v1414 = vrot.slane %v1411, 7
  %vm1415 = vcmask 1040384
  %v1416 = vsel %vm1415, %v1401, %v1414
  %v1418 = vmul.f32 %v1389, %v1416
  %v1419 = vld [vmem:[%s3] sm:$0x3]
  %v1421 = vperm.slane %v1418, 0
  %v1422 = vperm.slane %v1418, 1
  %v1425 = vmul.f32 %v1379, %v1421
  %v1426 = vmul.f32 %v1380, %v1422
  %v1429 = vrot.slane %v1426, 7
  %v1430 = vsel %vm1415, %v1425, %v1429
  %v1432 = vsub.f32 %v1419, %v1430
  %v1433 = vmul.f32 %v1155, %v1421
  %v1434 = vmul.f32 %v1326, %v1422
  %v1435 = vmul.f32 %v1157, %v1421
  %v1436 = vmul.f32 %v1328, %v1422
  %v1437 = vmul.f32 %v1160, %v1421
  %v1438 = vmul.f32 %v1331, %v1422
  %v1439 = vmul.f32 %v1162, %v1421
  %v1440 = vmul.f32 %v1333, %v1422
  %v1442 = vperm.slane %v1432, 0
  %v1443 = vperm.slane %v1432, 1
  %v1446 = vadd.f32 %v1433, %v1442
  %v1447 = vadd.f32 %v1434, %v1443
  %v1448 = vadd.f32 %v1435, %v1442
  %v1449 = vadd.f32 %v1436, %v1443
  %v1450 = vadd.f32 %v1437, %v1442
  %v1451 = vadd.f32 %v1438, %v1443
  %v1452 = vadd.f32 %v1439, %v1442
  %v1453 = vadd.f32 %v1440, %v1443
  %v1454 = vmax.f32 %v1446, %v1448
  %v1455 = vmax.f32 %v1447, %v1449
  %v1456 = vmax.f32 %v1450, %v1452
  %v1457 = vmax.f32 %v1451, %v1453
  %v1458 = vmax.f32 %v1454, %v1456
  %v1459 = vmax.f32 %v1455, %v1457
  %1460 = vst [vmem:[%s4] sm:$0xff] %v1458
  %1461 = vst [vmem:[%s4 + $0x8] sm:$0xff] %v1459
  // Predicated region
  $region18: #{forward.9} parent=0 // pred_check
    _
  $region19: #{forward.9} parent=0 // pred_check_branch
    %1463 = sbr.rel (0) target = $region21
  $region20: #{forward.9} parent=0 // pred_region
    _
  $region21: #{forward.9} parent=0 // pred_fallthru
    _
  // Predicated region
  $region22: #{forward.9} parent=0 // pred_check
    _
  $region23: #{forward.9} parent=0 // pred_check_branch
    %1465 = sbr.rel (0) target = $region25
  $region24: #{forward.9} parent=0 // pred_region
    _
  $region25: #{forward.9} parent=0 // pred_fallthru
    _

// kernel: forward.11
$region0: #{forward.11}
  #allocation0 [shape = 'u32[]', space=smem, size = 0x4, offset = 0x4, fixed_abs, tag = 'smem constant byte address 0x4 - core index']
  #allocation1 [shape = 'u32[72,128]{1,0:T(1,128)}', space=vmem, size = 0x9000, scoped, tag = 'internal scratch']
  %s0 = inlined_call_operand.vmem [shape: bf16[2,512], index: 0, kind: input, shape index: {}]
  %s1 = inlined_call_operand.vmem [shape: bf16[512,256], index: 1, kind: input, shape index: {}]
  %s2 = inlined_call_operand.vmem [shape: f32[1,256], index: 2, kind: input, shape index: {}]
  %s3 = inlined_call_operand.vmem [shape: bf16[256,128], index: 3, kind: input, shape index: {}]
  %s4 = inlined_call_operand.vmem [shape: f32[1,128], index: 4, kind: input, shape index: {}]
  %s5 = inlined_call_operand.vmem [shape: bf16[128,128], index: 5, kind: input, shape index: {}]
  %s6 = inlined_call_operand.vmem [shape: f32[1,128], index: 6, kind: input, shape index: {}]
  %s7 = inlined_call_operand.hbm [shape: f32[2,128], index: 7, kind: output, shape index: {}]
  %s8 = sld [smem:[#allocation0]]
  $region38: #{forward.11} parent=0
    _
  %s10 = ssub.s32 1, %s8
  %s11 = scalar_select 0, %s10, %s8
  $region1: #{forward.11} parent=0
    #allocation2 [shape = 'u8[1024]{0}', space=vmem, size = 0x400, scoped, tag = 'output window, operand 0, single buffered']
    #allocation3 [shape = 's32[1]{0}', space=sflag, size = 0x4, scoped, tag = 'scoped memory for forward.11']
    %12 = vsyncpa [#allocation3], 0
    // Predicated region
    $region2: #{forward.11} parent=1 // pred_check
      _
    $region3: #{forward.11} parent=1 // pred_check_branch
      %14 = sbr.rel (0) target = $region5
    $region4: #{forward.11} parent=1 // pred_region
      _
    $region5: #{forward.11} parent=1 // pred_fallthru
      _
    // Predicated region
    $region6: #{forward.11} parent=1 // pred_check
      _
    $region7: #{forward.11} parent=1 // pred_check_branch
      %16 = sbr.rel (0) target = $region9
    $region8: #{forward.11} parent=1 // pred_region
      _
    $region9: #{forward.11} parent=1 // pred_fallthru
      _
    // Predicated region
    $region10: #{forward.11} parent=1 // pred_check
      _
    $region11: #{forward.11} parent=1 // pred_check_branch
      %18 = sbr.rel (0) target = $region13
    $region12: #{forward.11} parent=1 // pred_region
      _
    $region13: #{forward.11} parent=1 // pred_fallthru
      _
    // Predicated region
    $region14: #{forward.11} parent=1 // pred_check
      _
    $region15: #{forward.11} parent=1 // pred_check_branch
      %20 = sbr.rel (0) target = $region17
    $region16: #{forward.11} parent=1 // pred_region
      _
    $region17: #{forward.11} parent=1 // pred_fallthru
      _
    // Predicated region
    $region18: #{forward.11} parent=1 // pred_check
      _
    $region19: #{forward.11} parent=1 // pred_check_branch
      %22 = sbr.rel (0) target = $region21
    $region20: #{forward.11} parent=1 // pred_region
      _
    $region21: #{forward.11} parent=1 // pred_fallthru
      _
    // Predicated region
    $region22: #{forward.11} parent=1 // pred_check
      _
    $region23: #{forward.11} parent=1 // pred_check_branch
      %24 = sbr.rel (0) target = $region25
    $region24: #{forward.11} parent=1 // pred_region
      _
    $region25: #{forward.11} parent=1 // pred_fallthru
      _
    // Predicated region
    $region26: #{forward.11} parent=1 // pred_check
      _
    $region27: #{forward.11} parent=1 // pred_check_branch
      %26 = sbr.rel (0) target = $region29
    $region28: #{forward.11} parent=1 // pred_region
      _
    $region29: #{forward.11} parent=1 // pred_fallthru
      _
    %v27 = vld [vmem:[%s0] sm:$0xf]
    %v28 = vld [vmem:[%s1] sm:$0xff]
    %v29 = vld [vmem:[%s1 + $0x8] sm:$0xff]
    %v30 = vld [vmem:[%s1 + $0x10] sm:$0xff]
    %v31 = vld [vmem:[%s1 + $0x18] sm:$0xff]
    %v32 = vld [vmem:[%s1 + $0x20] sm:$0xff]
    %v33 = vld [vmem:[%s1 + $0x28] sm:$0xff]
    %v34 = vld [vmem:[%s1 + $0x30] sm:$0xff]
    %v35 = vld [vmem:[%s1 + $0x38] sm:$0xff]
    %v36 = vld [vmem:[%s1 + $0x40] sm:$0xff]
    %v37 = vld [vmem:[%s1 + $0x48] sm:$0xff]
    %v38 = vld [vmem:[%s1 + $0x50] sm:$0xff]
    %v39 = vld [vmem:[%s1 + $0x58] sm:$0xff]
    %v40 = vld [vmem:[%s1 + $0x60] sm:$0xff]
    %v41 = vld [vmem:[%s1 + $0x68] sm:$0xff]
    %v42 = vld [vmem:[%s1 + $0x70] sm:$0xff]
    %v43 = vld [vmem:[%s1 + $0x78] sm:$0xff]
    %v44 = vld [vmem:[%s1 + $0x80] sm:$0xff]
    %v45 = vld [vmem:[%s1 + $0x88] sm:$0xff]
    %v46 = vld [vmem:[%s1 + $0x90] sm:$0xff]
    %v47 = vld [vmem:[%s1 + $0x98] sm:$0xff]
    %v48 = vld [vmem:[%s1 + $0xa0] sm:$0xff]
    %v49 = vld [vmem:[%s1 + $0xa8] sm:$0xff]
    %v50 = vld [vmem:[%s1 + $0xb0] sm:$0xff]
    %v51 = vld [vmem:[%s1 + $0xb8] sm:$0xff]
    %v52 = vld [vmem:[%s1 + $0xc0] sm:$0xff]
    %v53 = vld [vmem:[%s1 + $0xc8] sm:$0xff]
    %v54 = vld [vmem:[%s1 + $0xd0] sm:$0xff]
    %v55 = vld [vmem:[%s1 + $0xd8] sm:$0xff]
    %v56 = vld [vmem:[%s1 + $0xe0] sm:$0xff]
    %v57 = vld [vmem:[%s1 + $0xe8] sm:$0xff]
    %v58 = vld [vmem:[%s1 + $0xf0] sm:$0xff]
    %v59 = vld [vmem:[%s1 + $0xf8] sm:$0xff]
    %v60 = vld [vmem:[%s1 + $0x100] sm:$0xff]
    %v61 = vld [vmem:[%s1 + $0x108] sm:$0xff]
    %v62 = vld [vmem:[%s1 + $0x110] sm:$0xff]
    %v63 = vld [vmem:[%s1 + $0x118] sm:$0xff]
    %v64 = vld [vmem:[%s1 + $0x120] sm:$0xff]
    %v65 = vld [vmem:[%s1 + $0x128] sm:$0xff]
    %v66 = vld [vmem:[%s1 + $0x130] sm:$0xff]
    %v67 = vld [vmem:[%s1 + $0x138] sm:$0xff]
    %v68 = vld [vmem:[%s1 + $0x140] sm:$0xff]
    %v69 = vld [vmem:[%s1 + $0x148] sm:$0xff]
    %v70 = vld [vmem:[%s1 + $0x150] sm:$0xff]
    %v71 = vld [vmem:[%s1 + $0x158] sm:$0xff]
    %v72 = vld [vmem:[%s1 + $0x160] sm:$0xff]
    %v73 = vld [vmem:[%s1 + $0x168] sm:$0xff]
    %v74 = vld [vmem:[%s1 + $0x170] sm:$0xff]
    %v75 = vld [vmem:[%s1 + $0x178] sm:$0xff]
    %v76 = vld [vmem:[%s1 + $0x180] sm:$0xff]
    %v77 = vld [vmem:[%s1 + $0x188] sm:$0xff]
    %v78 = vld [vmem:[%s1 + $0x190] sm:$0xff]
    %v79 = vld [vmem:[%s1 + $0x198] sm:$0xff]
    %v80 = vld [vmem:[%s1 + $0x1a0] sm:$0xff]
    %v81 = vld [vmem:[%s1 + $0x1a8] sm:$0xff]
    %v82 = vld [vmem:[%s1 + $0x1b0] sm:$0xff]
    %v83 = vld [vmem:[%s1 + $0x1b8] sm:$0xff]
    %v84 = vld [vmem:[%s1 + $0x1c0] sm:$0xff]
    %v85 = vld [vmem:[%s1 + $0x1c8] sm:$0xff]
    %v86 = vld [vmem:[%s1 + $0x1d0] sm:$0xff]
    %v87 = vld [vmem:[%s1 + $0x1d8] sm:$0xff]
    %v88 = vld [vmem:[%s1 + $0x1e0] sm:$0xff]
    %v89 = vld [vmem:[%s1 + $0x1e8] sm:$0xff]
    %v90 = vld [vmem:[%s1 + $0x1f0] sm:$0xff]
    %v91 = vld [vmem:[%s1 + $0x1f8] sm:$0xff]
    %v92 = vld [vmem:[%s2] sm:$0x3]
    %v94 = vperm.slane %v92, 0
    %v95 = vperm.slane %v92, 1
    %99 = vst [vmem:[#allocation1] ss:$9 sm:$0xff] %v27
    %v100 = vld [vmem:[#allocation1] sm:$0xff]
    %v101 = vld [vmem:[#allocation1 + $0x9] sm:$0xff]
    %v102 = vld [vmem:[#allocation1 + $0x12] sm:$0xff]
    %v103 = vld [vmem:[#allocation1 + $0x1b] sm:$0xff]
    %v172 = vunpack.c.l.b16 %v28
    %v173 = vunpack.c.h.b16 %v28
    %v174 = vunpack.c.l.b16 %v29
    %v175 = vunpack.c.h.b16 %v29
    %v176 = vunpack.c.l.b16 %v30
    %v177 = vunpack.c.h.b16 %v30
    %v178 = vunpack.c.l.b16 %v31
    %v179 = vunpack.c.h.b16 %v31
    %v180 = vunpack.c.l.b16 %v32
    %v181 = vunpack.c.h.b16 %v32
    %v182 = vunpack.c.l.b16 %v33
    %v183 = vunpack.c.h.b16 %v33
    %v184 = vunpack.c.l.b16 %v34
    %v185 = vunpack.c.h.b16 %v34
    %v186 = vunpack.c.l.b16 %v35
    %v187 = vunpack.c.h.b16 %v35
    %v188 = vunpack.c.l.b16 %v36
    %v189 = vunpack.c.h.b16 %v36
    %v190 = vunpack.c.l.b16 %v37
    %v191 = vunpack.c.h.b16 %v37
    %v192 = vunpack.c.l.b16 %v38
    %v193 = vunpack.c.h.b16 %v38
    %v194 = vunpack.c.l.b16 %v39
    %v195 = vunpack.c.h.b16 %v39
    %v196 = vunpack.c.l.b16 %v40
    %v197 = vunpack.c.h.b16 %v40
    %v198 = vunpack.c.l.b16 %v41
    %v199 = vunpack.c.h.b16 %v41
    %v200 = vunpack.c.l.b16 %v42
    %v201 = vunpack.c.h.b16 %v42
    %v202 = vunpack.c.l.b16 %v43
    %v203 = vunpack.c.h.b16 %v43
    %v204 = vunpack.c.l.b16 %v44
    %v205 = vunpack.c.h.b16 %v44
    %v206 = vunpack.c.l.b16 %v45
    %v207 = vunpack.c.h.b16 %v45
    %v208 = vunpack.c.l.b16 %v46
    %v209 = vunpack.c.h.b16 %v46
    %v210 = vunpack.c.l.b16 %v47
    %v211 = vunpack.c.h.b16 %v47
    %v212 = vunpack.c.l.b16 %v48
    %v213 = vunpack.c.h.b16 %v48
    %v214 = vunpack.c.l.b16 %v49
    %v215 = vunpack.c.h.b16 %v49
    %v216 = vunpack.c.l.b16 %v50
    %v217 = vunpack.c.h.b16 %v50
    %v218 = vunpack.c.l.b16 %v51
    %v219 = vunpack.c.h.b16 %v51
    %v220 = vunpack.c.l.b16 %v52
    %v221 = vunpack.c.h.b16 %v52
    %v222 = vunpack.c.l.b16 %v53
    %v223 = vunpack.c.h.b16 %v53
    %v224 = vunpack.c.l.b16 %v54
    %v225 = vunpack.c.h.b16 %v54
    %v226 = vunpack.c.l.b16 %v55
    %v227 = vunpack.c.h.b16 %v55
    %v228 = vunpack.c.l.b16 %v56
    %v229 = vunpack.c.h.b16 %v56
    %v230 = vunpack.c.l.b16 %v57
    %v231 = vunpack.c.h.b16 %v57
    %v232 = vunpack.c.l.b16 %v58
    %v233 = vunpack.c.h.b16 %v58
    %v234 = vunpack.c.l.b16 %v59
    %v235 = vunpack.c.h.b16 %v59
    %v236 = vunpack.c.l.b16 %v60
    %v237 = vunpack.c.h.b16 %v60
    %v238 = vunpack.c.l.b16 %v61
    %v239 = vunpack.c.h.b16 %v61
    %v240 = vunpack.c.l.b16 %v62
    %v241 = vunpack.c.h.b16 %v62
    %v242 = vunpack.c.l.b16 %v63
    %v243 = vunpack.c.h.b16 %v63
    %v244 = vunpack.c.l.b16 %v64
    %v245 = vunpack.c.h.b16 %v64
    %v246 = vunpack.c.l.b16 %v65
    %v247 = vunpack.c.h.b16 %v65
    %v248 = vunpack.c.l.b16 %v66
    %v249 = vunpack.c.h.b16 %v66
    %v250 = vunpack.c.l.b16 %v67
    %v251 = vunpack.c.h.b16 %v67
    %v252 = vunpack.c.l.b16 %v68
    %v253 = vunpack.c.h.b16 %v68
    %v254 = vunpack.c.l.b16 %v69
    %v255 = vunpack.c.h.b16 %v69
    %v256 = vunpack.c.l.b16 %v70
    %v257 = vunpack.c.h.b16 %v70
    %v258 = vunpack.c.l.b16 %v71
    %v259 = vunpack.c.h.b16 %v71
    %v260 = vunpack.c.l.b16 %v72
    %v261 = vunpack.c.h.b16 %v72
    %v262 = vunpack.c.l.b16 %v73
    %v263 = vunpack.c.h.b16 %v73
    %v264 = vunpack.c.l.b16 %v74
    %v265 = vunpack.c.h.b16 %v74
    %v266 = vunpack.c.l.b16 %v75
    %v267 = vunpack.c.h.b16 %v75
    %v268 = vunpack.c.l.b16 %v76
    %v269 = vunpack.c.h.b16 %v76
    %v270 = vunpack.c.l.b16 %v77
    %v271 = vunpack.c.h.b16 %v77
    %v272 = vunpack.c.l.b16 %v78
    %v273 = vunpack.c.h.b16 %v78
    %v274 = vunpack.c.l.b16 %v79
    %v275 = vunpack.c.h.b16 %v79
    %v276 = vunpack.c.l.b16 %v80
    %v277 = vunpack.c.h.b16 %v80
    %v278 = vunpack.c.l.b16 %v81
    %v279 = vunpack.c.h.b16 %v81
    %v280 = vunpack.c.l.b16 %v82
    %v281 = vunpack.c.h.b16 %v82
    %v282 = vunpack.c.l.b16 %v83
    %v283 = vunpack.c.h.b16 %v83
    %v284 = vunpack.c.l.b16 %v84
    %v285 = vunpack.c.h.b16 %v84
    %v286 = vunpack.c.l.b16 %v85
    %v287 = vunpack.c.h.b16 %v85
    %v288 = vunpack.c.l.b16 %v86
    %v289 = vunpack.c.h.b16 %v86
    %v290 = vunpack.c.l.b16 %v87
    %v291 = vunpack.c.h.b16 %v87
    %v292 = vunpack.c.l.b16 %v88
    %v293 = vunpack.c.h.b16 %v88
    %v294 = vunpack.c.l.b16 %v89
    %v295 = vunpack.c.h.b16 %v89
    %v296 = vunpack.c.l.b16 %v90
    %v297 = vunpack.c.h.b16 %v90
    %v298 = vunpack.c.l.b16 %v91
    %v299 = vunpack.c.h.b16 %v91
    %v300 = vpack.c.b16 %v174, %v172
    %v301 = vpack.c.b16 %v175, %v173
    %v302 = vpack.c.b16 %v178, %v176
    %v303 = vpack.c.b16 %v179, %v177
    %v304 = vpack.c.b16 %v182, %v180
    %v305 = vpack.c.b16 %v183, %v181
    %v306 = vpack.c.b16 %v186, %v184
    %v307 = vpack.c.b16 %v187, %v185
    %v308 = vpack.c.b16 %v190, %v188
    %v309 = vpack.c.b16 %v191, %v189
    %v310 = vpack.c.b16 %v194, %v192
    %v311 = vpack.c.b16 %v195, %v193
    %v312 = vpack.c.b16 %v198, %v196
    %v313 = vpack.c.b16 %v199, %v197
    %v314 = vpack.c.b16 %v202, %v200
    %v315 = vpack.c.b16 %v203, %v201
    %v316 = vpack.c.b16 %v206, %v204
    %v317 = vpack.c.b16 %v207, %v205
    %v318 = vpack.c.b16 %v210, %v208
    %v319 = vpack.c.b16 %v211, %v209
    %v320 = vpack.c.b16 %v214, %v212
    %v321 = vpack.c.b16 %v215, %v213
    %v322 = vpack.c.b16 %v218, %v216
    %v323 = vpack.c.b16 %v219, %v217
    %v324 = vpack.c.b16 %v222, %v220
    %v325 = vpack.c.b16 %v223, %v221
    %v326 = vpack.c.b16 %v226, %v224
    %v327 = vpack.c.b16 %v227, %v225
    %v328 = vpack.c.b16 %v230, %v228
    %v329 = vpack.c.b16 %v231, %v229
    %v330 = vpack.c.b16 %v234, %v232
    %v331 = vpack.c.b16 %v235, %v233
    %v332 = vpack.c.b16 %v238, %v236
    %v333 = vpack.c.b16 %v239, %v237
    %v334 = vpack.c.b16 %v242, %v240
    %v335 = vpack.c.b16 %v243, %v241
    %v336 = vpack.c.b16 %v246, %v244
    %v337 = vpack.c.b16 %v247, %v245
    %v338 = vpack.c.b16 %v250, %v248
    %v339 = vpack.c.b16 %v251, %v249
    %v340 = vpack.c.b16 %v254, %v252
    %v341 = vpack.c.b16 %v255, %v253
    %v342 = vpack.c.b16 %v258, %v256
    %v343 = vpack.c.b16 %v259, %v257
    %v344 = vpack.c.b16 %v262, %v260
    %v345 = vpack.c.b16 %v263, %v261
    %v346 = vpack.c.b16 %v266, %v264
    %v347 = vpack.c.b16 %v267, %v265
    %v348 = vpack.c.b16 %v270, %v268
    %v349 = vpack.c.b16 %v271, %v269
    %v350 = vpack.c.b16 %v274, %v272
    %v351 = vpack.c.b16 %v275, %v273
    %v352 = vpack.c.b16 %v278, %v276
    %v353 = vpack.c.b16 %v279, %v277
    %v354 = vpack.c.b16 %v282, %v280
    %v355 = vpack.c.b16 %v283, %v281
    %v356 = vpack.c.b16 %v286, %v284
    %v357 = vpack.c.b16 %v287, %v285
    %v358 = vpack.c.b16 %v290, %v288
    %v359 = vpack.c.b16 %v291, %v289
    %v360 = vpack.c.b16 %v294, %v292
    %v361 = vpack.c.b16 %v295, %v293
    %v362 = vpack.c.b16 %v298, %v296
    %v363 = vpack.c.b16 %v299, %v297
    %428 = vmatpush.bf16.msra.mxu0 %v314
    %429 = vmatpush.bf16.msra.mxu0 %v312
    %430 = vmatpush.bf16.msra.mxu0 %v310
    %431 = vmatpush.bf16.msra.mxu0 %v308
    %432 = vmatpush.bf16.msra.mxu0 %v306
    %433 = vmatpush.bf16.msra.mxu0 %v304
    %434 = vmatpush.bf16.msra.mxu0 %v302
    %435 = vmatpush.bf16.msra.mxu0 %v300
    %436 = vmatmul.bf16.gmra.mxu0 %v100
    %v437 = vpop.f32.mrf.mxu0
    %v438 = vadd.f32 %v94, %v437
    %v439 = vpop.f32.mrf.mxu0
    %440 = vdwg.mxu0
    %441 = vmatpush.bf16.msra.mxu0 %v330
    %442 = vmatpush.bf16.msra.mxu0 %v328
    %443 = vmatpush.bf16.msra.mxu0 %v326
    %444 = vmatpush.bf16.msra.mxu0 %v324
    %445 = vmatpush.bf16.msra.mxu0 %v322
    %446 = vmatpush.bf16.msra.mxu0 %v320
    %447 = vmatpush.bf16.msra.mxu0 %v318
    %448 = vmatpush.bf16.msra.mxu0 %v316
    %449 = vmatmul.bf16.gmra.mxu0 %v101
    %v450 = vpop.f32.mrf.mxu0
    %v451 = vadd.f32 %v438, %v450
    %v452 = vpop.f32.mrf.mxu0
    %453 = vdwg.mxu0
    %454 = vmatpush.bf16.msra.mxu0 %v346
    %455 = vmatpush.bf16.msra.mxu0 %v344
    %456 = vmatpush.bf16.msra.mxu0 %v342
    %457 = vmatpush.bf16.msra.mxu0 %v340
    %458 = vmatpush.bf16.msra.mxu0 %v338
    %459 = vmatpush.bf16.msra.mxu0 %v336
    %460 = vmatpush.bf16.msra.mxu0 %v334
    %461 = vmatpush.bf16.msra.mxu0 %v332
    %462 = vmatmul.bf16.gmra.mxu0 %v102
    %v463 = vpop.f32.mrf.mxu0
    %v464 = vadd.f32 %v451, %v463
    %v465 = vpop.f32.mrf.mxu0
    %466 = vdwg.mxu0
    %467 = vmatpush.bf16.msra.mxu0 %v362
    %468 = vmatpush.bf16.msra.mxu0 %v360
    %469 = vmatpush.bf16.msra.mxu0 %v358
    %470 = vmatpush.bf16.msra.mxu0 %v356
    %471 = vmatpush.bf16.msra.mxu0 %v354
    %472 = vmatpush.bf16.msra.mxu0 %v352
    %473 = vmatpush.bf16.msra.mxu0 %v350
    %474 = vmatpush.bf16.msra.mxu0 %v348
    %475 = vmatmul.bf16.gmra.mxu0 %v103
    %v476 = vpop.f32.mrf.mxu0
    %v477 = vadd.f32 %v464, %v476
    %v478 = vpop.f32.mrf.mxu0
    %479 = vdwg.mxu0
    %480 = vmatpush.bf16.msra.mxu0 %v315
    %481 = vmatpush.bf16.msra.mxu0 %v313
    %482 = vmatpush.bf16.msra.mxu0 %v311
    %483 = vmatpush.bf16.msra.mxu0 %v309
    %484 = vmatpush.bf16.msra.mxu0 %v307
    %485 = vmatpush.bf16.msra.mxu0 %v305
    %486 = vmatpush.bf16.msra.mxu0 %v303
    %487 = vmatpush.bf16.msra.mxu0 %v301
    %488 = vmatmul.bf16.gmra.mxu0 %v100
    %v489 = vpop.f32.mrf.mxu0
    %v490 = vadd.f32 %v95, %v489
    %v491 = vpop.f32.mrf.mxu0
    %492 = vdwg.mxu0
    %493 = vmatpush.bf16.msra.mxu0 %v331
    %494 = vmatpush.bf16.msra.mxu0 %v329
    %495 = vmatpush.bf16.msra.mxu0 %v327
    %496 = vmatpush.bf16.msra.mxu0 %v325
    %497 = vmatpush.bf16.msra.mxu0 %v323
    %498 = vmatpush.bf16.msra.mxu0 %v321
    %499 = vmatpush.bf16.msra.mxu0 %v319
    %500 = vmatpush.bf16.msra.mxu0 %v317
    %501 = vmatmul.bf16.gmra.mxu0 %v101
    %v502 = vpop.f32.mrf.mxu0
    %v503 = vadd.f32 %v490, %v502
    %v504 = vpop.f32.mrf.mxu0
    %505 = vdwg.mxu0
    %506 = vmatpush.bf16.msra.mxu0 %v347
    %507 = vmatpush.bf16.msra.mxu0 %v345
    %508 = vmatpush.bf16.msra.mxu0 %v343
    %509 = vmatpush.bf16.msra.mxu0 %v341
    %510 = vmatpush.bf16.msra.mxu0 %v339
    %511 = vmatpush.bf16.msra.mxu0 %v337
    %512 = vmatpush.bf16.msra.mxu0 %v335
    %513 = vmatpush.bf16.msra.mxu0 %v333
    %514 = vmatmul.bf16.gmra.mxu0 %v102
    %v515 = vpop.f32.mrf.mxu0
    %v516 = vadd.f32 %v503, %v515
    %v517 = vpop.f32.mrf.mxu0
    %518 = vdwg.mxu0
    %519 = vmatpush.bf16.msra.mxu0 %v363
    %520 = vmatpush.bf16.msra.mxu0 %v361
    %521 = vmatpush.bf16.msra.mxu0 %v359
    %522 = vmatpush.bf16.msra.mxu0 %v357
    %523 = vmatpush.bf16.msra.mxu0 %v355
    %524 = vmatpush.bf16.msra.mxu0 %v353
    %525 = vmatpush.bf16.msra.mxu0 %v351
    %526 = vmatpush.bf16.msra.mxu0 %v349
    %527 = vmatmul.bf16.gmra.mxu0 %v103
    %v528 = vpop.f32.mrf.mxu0
    %v529 = vadd.f32 %v516, %v528
    %v530 = vpop.f32.mrf.mxu0
    %531 = vdwg.mxu0
    %v532 = vmax.f32 %v477, 0.0
    %v533 = vmax.f32 %v529, 0.0
    %v534 = vpack.c.bf16 %v532, %v532
    %v535 = vpack.c.bf16 %v533, %v533
    %v536 = vld [vmem:[%s3] sm:$0xf]
    %v537 = vld [vmem:[%s3 + $0x4] sm:$0xf]
    %v538 = vld [vmem:[%s3 + $0x8] sm:$0xf]
    %v539 = vld [vmem:[%s3 + $0xc] sm:$0xf]
    %v540 = vld [vmem:[%s3 + $0x10] sm:$0xf]
    %v541 = vld [vmem:[%s3 + $0x14] sm:$0xf]
    %v542 = vld [vmem:[%s3 + $0x18] sm:$0xf]
    %v543 = vld [vmem:[%s3 + $0x1c] sm:$0xf]
    %v544 = vld [vmem:[%s3 + $0x20] sm:$0xf]
    %v545 = vld [vmem:[%s3 + $0x24] sm:$0xf]
    %v546 = vld [vmem:[%s3 + $0x28] sm:$0xf]
    %v547 = vld [vmem:[%s3 + $0x2c] sm:$0xf]
    %v548 = vld [vmem:[%s3 + $0x30] sm:$0xf]
    %v549 = vld [vmem:[%s3 + $0x34] sm:$0xf]
    %v550 = vld [vmem:[%s3 + $0x38] sm:$0xf]
    %v551 = vld [vmem:[%s3 + $0x3c] sm:$0xf]
    %v552 = vld [vmem:[%s3 + $0x40] sm:$0xf]
    %v553 = vld [vmem:[%s3 + $0x44] sm:$0xf]
    %v554 = vld [vmem:[%s3 + $0x48] sm:$0xf]
    %v555 = vld [vmem:[%s3 + $0x4c] sm:$0xf]
    %v556 = vld [vmem:[%s3 + $0x50] sm:$0xf]
    %v557 = vld [vmem:[%s3 + $0x54] sm:$0xf]
    %v558 = vld [vmem:[%s3 + $0x58] sm:$0xf]
    %v559 = vld [vmem:[%s3 + $0x5c] sm:$0xf]
    %v560 = vld [vmem:[%s3 + $0x60] sm:$0xf]
    %v561 = vld [vmem:[%s3 + $0x64] sm:$0xf]
    %v562 = vld [vmem:[%s3 + $0x68] sm:$0xf]
    %v563 = vld [vmem:[%s3 + $0x6c] sm:$0xf]
    %v564 = vld [vmem:[%s3 + $0x70] sm:$0xf]
    %v565 = vld [vmem:[%s3 + $0x74] sm:$0xf]
    %v566 = vld [vmem:[%s3 + $0x78] sm:$0xf]
    %v567 = vld [vmem:[%s3 + $0x7c] sm:$0xf]
    %v568 = vld [vmem:[%s4] sm:$0x1]
    %v570 = vperm.slane %v568, 0
    %v604 = vunpack.c.l.b16 %v536
    %v605 = vunpack.c.l.b16 %v537
    %v606 = vunpack.c.l.b16 %v538
    %v607 = vunpack.c.l.b16 %v539
    %v608 = vunpack.c.l.b16 %v540
    %v609 = vunpack.c.l.b16 %v541
    %v610 = vunpack.c.l.b16 %v542
    %v611 = vunpack.c.l.b16 %v543
    %v612 = vunpack.c.l.b16 %v544
    %v613 = vunpack.c.l.b16 %v545
    %v614 = vunpack.c.l.b16 %v546
    %v615 = vunpack.c.l.b16 %v547
    %v616 = vunpack.c.l.b16 %v548
    %v617 = vunpack.c.l.b16 %v549
    %v618 = vunpack.c.l.b16 %v550
    %v619 = vunpack.c.l.b16 %v551
    %v620 = vunpack.c.l.b16 %v552
    %v621 = vunpack.c.l.b16 %v553
    %v622 = vunpack.c.l.b16 %v554
    %v623 = vunpack.c.l.b16 %v555
    %v624 = vunpack.c.l.b16 %v556
    %v625 = vunpack.c.l.b16 %v557
    %v626 = vunpack.c.l.b16 %v558
    %v627 = vunpack.c.l.b16 %v559
    %v628 = vunpack.c.l.b16 %v560
    %v629 = vunpack.c.l.b16 %v561
    %v630 = vunpack.c.l.b16 %v562
    %v631 = vunpack.c.l.b16 %v563
    %v632 = vunpack.c.l.b16 %v564
    %v633 = vunpack.c.l.b16 %v565
    %v634 = vunpack.c.l.b16 %v566
    %v635 = vunpack.c.l.b16 %v567
    %v636 = vpack.c.b16 %v605, %v604
    %v637 = vpack.c.b16 %v607, %v606
    %v638 = vpack.c.b16 %v609, %v608
    %v639 = vpack.c.b16 %v611, %v610
    %v640 = vpack.c.b16 %v613, %v612
    %v641 = vpack.c.b16 %v615, %v614
    %v642 = vpack.c.b16 %v617, %v616
    %v643 = vpack.c.b16 %v619, %v618
    %v644 = vpack.c.b16 %v621, %v620
    %v645 = vpack.c.b16 %v623, %v622
    %v646 = vpack.c.b16 %v625, %v624
    %v647 = vpack.c.b16 %v627, %v626
    %v648 = vpack.c.b16 %v629, %v628
    %v649 = vpack.c.b16 %v631, %v630
    %v650 = vpack.c.b16 %v633, %v632
    %v651 = vpack.c.b16 %v635, %v634
    %668 = vmatpush.bf16.msra.mxu0 %v643
    %669 = vmatpush.bf16.msra.mxu0 %v642
    %670 = vmatpush.bf16.msra.mxu0 %v641
    %671 = vmatpush.bf16.msra.mxu0 %v640
    %672 = vmatpush.bf16.msra.mxu0 %v639
    %673 = vmatpush.bf16.msra.mxu0 %v638
    %674 = vmatpush.bf16.msra.mxu0 %v637
    %675 = vmatpush.bf16.msra.mxu0 %v636
    %676 = vmatmul.bf16.gmra.mxu0 %v534
    %v677 = vpop.f32.mrf.mxu0
    %v678 = vadd.f32 %v570, %v677
    %v679 = vpop.f32.mrf.mxu0
    %680 = vdwg.mxu0
    %681 = vmatpush.bf16.msra.mxu0 %v651
    %682 = vmatpush.bf16.msra.mxu0 %v650
    %683 = vmatpush.bf16.msra.mxu0 %v649
    %684 = vmatpush.bf16.msra.mxu0 %v648
    %685 = vmatpush.bf16.msra.mxu0 %v647
    %686 = vmatpush.bf16.msra.mxu0 %v646
    %687 = vmatpush.bf16.msra.mxu0 %v645
    %688 = vmatpush.bf16.msra.mxu0 %v644
    %689 = vmatmul.bf16.gmra.mxu0 %v535
    %v690 = vpop.f32.mrf.mxu0
    %v691 = vadd.f32 %v678, %v690
    %v692 = vpop.f32.mrf.mxu0
    %693 = vdwg.mxu0
    %v694 = vmax.f32 %v691, 0.0
    %v695 = vpack.c.bf16 %v694, %v694
    %v696 = vld [vmem:[%s5] sm:$0xf]
    %v697 = vld [vmem:[%s5 + $0x4] sm:$0xf]
    %v698 = vld [vmem:[%s5 + $0x8] sm:$0xf]
    %v699 = vld [vmem:[%s5 + $0xc] sm:$0xf]
    %v700 = vld [vmem:[%s5 + $0x10] sm:$0xf]
    %v701 = vld [vmem:[%s5 + $0x14] sm:$0xf]
    %v702 = vld [vmem:[%s5 + $0x18] sm:$0xf]
    %v703 = vld [vmem:[%s5 + $0x1c] sm:$0xf]
    %v704 = vld [vmem:[%s5 + $0x20] sm:$0xf]
    %v705 = vld [vmem:[%s5 + $0x24] sm:$0xf]
    %v706 = vld [vmem:[%s5 + $0x28] sm:$0xf]
    %v707 = vld [vmem:[%s5 + $0x2c] sm:$0xf]
    %v708 = vld [vmem:[%s5 + $0x30] sm:$0xf]
    %v709 = vld [vmem:[%s5 + $0x34] sm:$0xf]
    %v710 = vld [vmem:[%s5 + $0x38] sm:$0xf]
    %v711 = vld [vmem:[%s5 + $0x3c] sm:$0xf]
    %v712 = vld [vmem:[%s6] sm:$0x1]
    %v714 = vperm.slane %v712, 0
    %v732 = vunpack.c.l.b16 %v696
    %v733 = vunpack.c.l.b16 %v697
    %v734 = vunpack.c.l.b16 %v698
    %v735 = vunpack.c.l.b16 %v699
    %v736 = vunpack.c.l.b16 %v700
    %v737 = vunpack.c.l.b16 %v701
    %v738 = vunpack.c.l.b16 %v702
    %v739 = vunpack.c.l.b16 %v703
    %v740 = vunpack.c.l.b16 %v704
    %v741 = vunpack.c.l.b16 %v705
    %v742 = vunpack.c.l.b16 %v706
    %v743 = vunpack.c.l.b16 %v707
    %v744 = vunpack.c.l.b16 %v708
    %v745 = vunpack.c.l.b16 %v709
    %v746 = vunpack.c.l.b16 %v710
    %v747 = vunpack.c.l.b16 %v711
    %v748 = vpack.c.b16 %v733, %v732
    %v749 = vpack.c.b16 %v735, %v734
    %v750 = vpack.c.b16 %v737, %v736
    %v751 = vpack.c.b16 %v739, %v738
    %v752 = vpack.c.b16 %v741, %v740
    %v753 = vpack.c.b16 %v743, %v742
    %v754 = vpack.c.b16 %v745, %v744
    %v755 = vpack.c.b16 %v747, %v746
    %764 = vmatpush.bf16.msra.mxu0 %v755
    %765 = vmatpush.bf16.msra.mxu0 %v754
    %766 = vmatpush.bf16.msra.mxu0 %v753
    %767 = vmatpush.bf16.msra.mxu0 %v752
    %768 = vmatpush.bf16.msra.mxu0 %v751
    %769 = vmatpush.bf16.msra.mxu0 %v750
    %770 = vmatpush.bf16.msra.mxu0 %v749
    %771 = vmatpush.bf16.msra.mxu0 %v748
    %772 = vmatmul.bf16.gmra.mxu0 %v695
    %v773 = vpop.f32.mrf.mxu0
    %v774 = vadd.f32 %v714, %v773
    %v775 = vpop.f32.mrf.mxu0
    %776 = vdwg.mxu0
    %777 = vst [vmem:[#allocation2] sm:$0x3] %v774
    // Predicated region
    $region30: #{forward.11} parent=1 // pred_check
      _
    $region31: #{forward.11} parent=1 // pred_check_branch
      %779 = sbr.rel (0) target = $region33
    $region32: #{forward.11} parent=1 // pred_region
      %781 = vsyncadd [#allocation3], 0
      %s783 = sshll.u32 [#allocation2], 4
      %s784 = int_to_ptr.vmem [resolvable:$true] %s783
      %s785 = sshll.u32 %s7, 4
      %s786 = int_to_ptr.hbm [resolvable:$true] %s785
      %788 = dma.vmem_to_hbm [thread:$0]  %s784, 32, %s786, [#allocation3]
    $region33: #{forward.11} parent=1 // pred_fallthru
      _
    // Predicated region
    $region34: #{forward.11} parent=1 // pred_check
      _
    $region35: #{forward.11} parent=1 // pred_check_branch
      %790 = sbr.rel (0) target = $region37
    $region36: #{forward.11} parent=1 // pred_region
      %792 = dma.done [#allocation3], 32
    $region37: #{forward.11} parent=1 // pred_fallthru
      _
    %793 = vsyncpa [#allocation3], 1

// kernel: forward.10
$region0: #{forward.10}
  #allocation0 [shape = 'u32[]', space=smem, size = 0x4, offset = 0x4, fixed_abs, tag = 'smem constant byte address 0x4 - core index']
  #allocation1 [shape = 'u32[72,128]{1,0:T(1,128)}', space=vmem, size = 0x9000, scoped, tag = 'internal scratch']
  %s0 = inlined_call_operand.vmem [shape: bf16[32,2304], index: 0, kind: input, shape index: {}]
  %s1 = inlined_call_operand.vmem [shape: bf16[2304,512], index: 1, kind: input, shape index: {}]
  %s2 = inlined_call_operand.vmem [shape: f32[1,512], index: 2, kind: input, shape index: {}]
  %s3 = inlined_call_operand.vmem [shape: f32[1,512], index: 3, kind: input, shape index: {}]
  %s4 = inlined_call_operand.vmem [shape: f32[8,512], index: 4, kind: output, shape index: {}]
  %s5 = sld [smem:[#allocation0]]
  $region26: #{forward.10} parent=0
    _
  %s7 = ssub.s32 1, %s5
  %s8 = scalar_select 0, %s7, %s5
  // Predicated region
  $region2: #{forward.10} parent=0 // pred_check
    _
  $region3: #{forward.10} parent=0 // pred_check_branch
    %10 = sbr.rel (0) target = $region5
  $region4: #{forward.10} parent=0 // pred_region
    _
  $region5: #{forward.10} parent=0 // pred_fallthru
    _
  // Predicated region
  $region6: #{forward.10} parent=0 // pred_check
    _
  $region7: #{forward.10} parent=0 // pred_check_branch
    %12 = sbr.rel (0) target = $region9
  $region8: #{forward.10} parent=0 // pred_region
    _
  $region9: #{forward.10} parent=0 // pred_fallthru
    _
  // Predicated region
  $region10: #{forward.10} parent=0 // pred_check
    _
  $region11: #{forward.10} parent=0 // pred_check_branch
    %14 = sbr.rel (0) target = $region13
  $region12: #{forward.10} parent=0 // pred_region
    _
  $region13: #{forward.10} parent=0 // pred_fallthru
    _
  // Predicated region
  $region14: #{forward.10} parent=0 // pred_check
    _
  $region15: #{forward.10} parent=0 // pred_check_branch
    %16 = sbr.rel (0) target = $region17
  $region16: #{forward.10} parent=0 // pred_region
    _
  $region17: #{forward.10} parent=0 // pred_fallthru
    _
  %v17 = vld [vmem:[%s0] sm:$0xff]
  %v18 = vld [vmem:[%s0 + $0x8] sm:$0xff]
  %v19 = vld [vmem:[%s0 + $0x10] sm:$0xff]
  %v20 = vld [vmem:[%s0 + $0x18] sm:$0xff]
  %v21 = vld [vmem:[%s0 + $0x20] sm:$0xff]
  %v22 = vld [vmem:[%s0 + $0x28] sm:$0xff]
  %v23 = vld [vmem:[%s0 + $0x30] sm:$0xff]
  %v24 = vld [vmem:[%s0 + $0x38] sm:$0xff]
  %v25 = vld [vmem:[%s0 + $0x40] sm:$0xff]
  %v26 = vld [vmem:[%s0 + $0x48] sm:$0xff]
  %v27 = vld [vmem:[%s0 + $0x50] sm:$0xff]
  %v28 = vld [vmem:[%s0 + $0x58] sm:$0xff]
  %v29 = vld [vmem:[%s0 + $0x60] sm:$0xff]
  %v30 = vld [vmem:[%s0 + $0x68] sm:$0xff]
  %v31 = vld [vmem:[%s0 + $0x70] sm:$0xff]
  %v32 = vld [vmem:[%s0 + $0x78] sm:$0xff]
  %v33 = vld [vmem:[%s0 + $0x80] sm:$0xff]
  %v34 = vld [vmem:[%s0 + $0x88] sm:$0xff]
  %v35 = vld [vmem:[%s0 + $0x90] sm:$0xff]
  %v36 = vld [vmem:[%s0 + $0x98] sm:$0xff]
  %v37 = vld [vmem:[%s0 + $0xa0] sm:$0xff]
  %v38 = vld [vmem:[%s0 + $0xa8] sm:$0xff]
  %v39 = vld [vmem:[%s0 + $0xb0] sm:$0xff]
  %v40 = vld [vmem:[%s0 + $0xb8] sm:$0xff]
  %v41 = vld [vmem:[%s0 + $0xc0] sm:$0xff]
  %v42 = vld [vmem:[%s0 + $0xc8] sm:$0xff]
  %v43 = vld [vmem:[%s0 + $0xd0] sm:$0xff]
  %v44 = vld [vmem:[%s0 + $0xd8] sm:$0xff]
  %v45 = vld [vmem:[%s0 + $0xe0] sm:$0xff]
  %v46 = vld [vmem:[%s0 + $0xe8] sm:$0xff]
  %v47 = vld [vmem:[%s0 + $0xf0] sm:$0xff]
  %v48 = vld [vmem:[%s0 + $0xf8] sm:$0xff]
  %v49 = vld [vmem:[%s0 + $0x100] sm:$0xff]
  %v50 = vld [vmem:[%s0 + $0x108] sm:$0xff]
  %v51 = vld [vmem:[%s0 + $0x110] sm:$0xff]
  %v52 = vld [vmem:[%s0 + $0x118] sm:$0xff]
  %v53 = vld [vmem:[%s1] sm:$0xff]
  %v54 = vld [vmem:[%s1 + $0x8] sm:$0xff]
  %v55 = vld [vmem:[%s1 + $0x10] sm:$0xff]
  %v56 = vld [vmem:[%s1 + $0x18] sm:$0xff]
  %v57 = vld [vmem:[%s1 + $0x20] sm:$0xff]
  %v58 = vld [vmem:[%s1 + $0x28] sm:$0xff]
  %v59 = vld [vmem:[%s1 + $0x30] sm:$0xff]
  %v60 = vld [vmem:[%s1 + $0x38] sm:$0xff]
  %v61 = vld [vmem:[%s1 + $0x40] sm:$0xff]
  %v62 = vld [vmem:[%s1 + $0x48] sm:$0xff]
  %v63 = vld [vmem:[%s1 + $0x50] sm:$0xff]
  %v64 = vld [vmem:[%s1 + $0x58] sm:$0xff]
  %v65 = vld [vmem:[%s1 + $0x60] sm:$0xff]
  %v66 = vld [vmem:[%s1 + $0x68] sm:$0xff]
  %v67 = vld [vmem:[%s1 + $0x70] sm:$0xff]
  %v68 = vld [vmem:[%s1 + $0x78] sm:$0xff]
  %v69 = vld [vmem:[%s1 + $0x80] sm:$0xff]
  %v70 = vld [vmem:[%s1 + $0x88] sm:$0xff]
  %v71 = vld [vmem:[%s1 + $0x90] sm:$0xff]
  %v72 = vld [vmem:[%s1 + $0x98] sm:$0xff]
  %v73 = vld [vmem:[%s1 + $0xa0] sm:$0xff]
  %v74 = vld [vmem:[%s1 + $0xa8] sm:$0xff]
  %v75 = vld [vmem:[%s1 + $0xb0] sm:$0xff]
  %v76 = vld [vmem:[%s1 + $0xb8] sm:$0xff]
  %v77 = vld [vmem:[%s1 + $0xc0] sm:$0xff]
  %v78 = vld [vmem:[%s1 + $0xc8] sm:$0xff]
  %v79 = vld [vmem:[%s1 + $0xd0] sm:$0xff]
  %v80 = vld [vmem:[%s1 + $0xd8] sm:$0xff]
  %v81 = vld [vmem:[%s1 + $0xe0] sm:$0xff]
  %v82 = vld [vmem:[%s1 + $0xe8] sm:$0xff]
  %v83 = vld [vmem:[%s1 + $0xf0] sm:$0xff]
  %v84 = vld [vmem:[%s1 + $0xf8] sm:$0xff]
  %v85 = vld [vmem:[%s1 + $0x100] sm:$0xff]
  %v86 = vld [vmem:[%s1 + $0x108] sm:$0xff]
  %v87 = vld [vmem:[%s1 + $0x110] sm:$0xff]
  %v88 = vld [vmem:[%s1 + $0x118] sm:$0xff]
  %v89 = vld [vmem:[%s1 + $0x120] sm:$0xff]
  %v90 = vld [vmem:[%s1 + $0x128] sm:$0xff]
  %v91 = vld [vmem:[%s1 + $0x130] sm:$0xff]
  %v92 = vld [vmem:[%s1 + $0x138] sm:$0xff]
  %v93 = vld [vmem:[%s1 + $0x140] sm:$0xff]
  %v94 = vld [vmem:[%s1 + $0x148] sm:$0xff]
  %v95 = vld [vmem:[%s1 + $0x150] sm:$0xff]
  %v96 = vld [vmem:[%s1 + $0x158] sm:$0xff]
  %v97 = vld [vmem:[%s1 + $0x160] sm:$0xff]
  %v98 = vld [vmem:[%s1 + $0x168] sm:$0xff]
  %v99 = vld [vmem:[%s1 + $0x170] sm:$0xff]
  %v100 = vld [vmem:[%s1 + $0x178] sm:$0xff]
  %v101 = vld [vmem:[%s1 + $0x180] sm:$0xff]
  %v102 = vld [vmem:[%s1 + $0x188] sm:$0xff]
  %v103 = vld [vmem:[%s1 + $0x190] sm:$0xff]
  %v104 = vld [vmem:[%s1 + $0x198] sm:$0xff]
  %v105 = vld [vmem:[%s1 + $0x1a0] sm:$0xff]
  %v106 = vld [vmem:[%s1 + $0x1a8] sm:$0xff]
  %v107 = vld [vmem:[%s1 + $0x1b0] sm:$0xff]
  %v108 = vld [vmem:[%s1 + $0x1b8] sm:$0xff]
  %v109 = vld [vmem:[%s1 + $0x1c0] sm:$0xff]
  %v110 = vld [vmem:[%s1 + $0x1c8] sm:$0xff]
  %v111 = vld [vmem:[%s1 + $0x1d0] sm:$0xff]
  %v112 = vld [vmem:[%s1 + $0x1d8] sm:$0xff]
  %v113 = vld [vmem:[%s1 + $0x1e0] sm:$0xff]
  %v114 = vld [vmem:[%s1 + $0x1e8] sm:$0xff]
  %v115 = vld [vmem:[%s1 + $0x1f0] sm:$0xff]
  %v116 = vld [vmem:[%s1 + $0x1f8] sm:$0xff]
  %v117 = vld [vmem:[%s1 + $0x200] sm:$0xff]
  %v118 = vld [vmem:[%s1 + $0x208] sm:$0xff]
  %v119 = vld [vmem:[%s1 + $0x210] sm:$0xff]
  %v120 = vld [vmem:[%s1 + $0x218] sm:$0xff]
  %v121 = vld [vmem:[%s1 + $0x220] sm:$0xff]
  %v122 = vld [vmem:[%s1 + $0x228] sm:$0xff]
  %v123 = vld [vmem:[%s1 + $0x230] sm:$0xff]
  %v124 = vld [vmem:[%s1 + $0x238] sm:$0xff]
  %v125 = vld [vmem:[%s1 + $0x240] sm:$0xff]
  %v126 = vld [vmem:[%s1 + $0x248] sm:$0xff]
  %v127 = vld [vmem:[%s1 + $0x250] sm:$0xff]
  %v128 = vld [vmem:[%s1 + $0x258] sm:$0xff]
  %v129 = vld [vmem:[%s1 + $0x260] sm:$0xff]
  %v130 = vld [vmem:[%s1 + $0x268] sm:$0xff]
  %v131 = vld [vmem:[%s1 + $0x270] sm:$0xff]
  %v132 = vld [vmem:[%s1 + $0x278] sm:$0xff]
  %v133 = vld [vmem:[%s1 + $0x280] sm:$0xff]
  %v134 = vld [vmem:[%s1 + $0x288] sm:$0xff]
  %v135 = vld [vmem:[%s1 + $0x290] sm:$0xff]
  %v136 = vld [vmem:[%s1 + $0x298] sm:$0xff]
  %v137 = vld [vmem:[%s1 + $0x2a0] sm:$0xff]
  %v138 = vld [vmem:[%s1 + $0x2a8] sm:$0xff]
  %v139 = vld [vmem:[%s1 + $0x2b0] sm:$0xff]
  %v140 = vld [vmem:[%s1 + $0x2b8] sm:$0xff]
  %v141 = vld [vmem:[%s1 + $0x2c0] sm:$0xff]
  %v142 = vld [vmem:[%s1 + $0x2c8] sm:$0xff]
  %v143 = vld [vmem:[%s1 + $0x2d0] sm:$0xff]
  %v144 = vld [vmem:[%s1 + $0x2d8] sm:$0xff]
  %v145 = vld [vmem:[%s1 + $0x2e0] sm:$0xff]
  %v146 = vld [vmem:[%s1 + $0x2e8] sm:$0xff]
  %v147 = vld [vmem:[%s1 + $0x2f0] sm:$0xff]
  %v148 = vld [vmem:[%s1 + $0x2f8] sm:$0xff]
  %v149 = vld [vmem:[%s1 + $0x300] sm:$0xff]
  %v150 = vld [vmem:[%s1 + $0x308] sm:$0xff]
  %v151 = vld [vmem:[%s1 + $0x310] sm:$0xff]
  %v152 = vld [vmem:[%s1 + $0x318] sm:$0xff]
  %v153 = vld [vmem:[%s1 + $0x320] sm:$0xff]
  %v154 = vld [vmem:[%s1 + $0x328] sm:$0xff]
  %v155 = vld [vmem:[%s1 + $0x330] sm:$0xff]
  %v156 = vld [vmem:[%s1 + $0x338] sm:$0xff]
  %v157 = vld [vmem:[%s1 + $0x340] sm:$0xff]
  %v158 = vld [vmem:[%s1 + $0x348] sm:$0xff]
  %v159 = vld [vmem:[%s1 + $0x350] sm:$0xff]
  %v160 = vld [vmem:[%s1 + $0x358] sm:$0xff]
  %v161 = vld [vmem:[%s1 + $0x360] sm:$0xff]
  %v162 = vld [vmem:[%s1 + $0x368] sm:$0xff]
  %v163 = vld [vmem:[%s1 + $0x370] sm:$0xff]
  %v164 = vld [vmem:[%s1 + $0x378] sm:$0xff]
  %v165 = vld [vmem:[%s1 + $0x380] sm:$0xff]
  %v166 = vld [vmem:[%s1 + $0x388] sm:$0xff]
  %v167 = vld [vmem:[%s1 + $0x390] sm:$0xff]
  %v168 = vld [vmem:[%s1 + $0x398] sm:$0xff]
  %v169 = vld [vmem:[%s1 + $0x3a0] sm:$0xff]
  %v170 = vld [vmem:[%s1 + $0x3a8] sm:$0xff]
  %v171 = vld [vmem:[%s1 + $0x3b0] sm:$0xff]
  %v172 = vld [vmem:[%s1 + $0x3b8] sm:$0xff]
  %v173 = vld [vmem:[%s1 + $0x3c0] sm:$0xff]
  %v174 = vld [vmem:[%s1 + $0x3c8] sm:$0xff]
  %v175 = vld [vmem:[%s1 + $0x3d0] sm:$0xff]
  %v176 = vld [vmem:[%s1 + $0x3d8] sm:$0xff]
  %v177 = vld [vmem:[%s1 + $0x3e0] sm:$0xff]
  %v178 = vld [vmem:[%s1 + $0x3e8] sm:$0xff]
  %v179 = vld [vmem:[%s1 + $0x3f0] sm:$0xff]
  %v180 = vld [vmem:[%s1 + $0x3f8] sm:$0xff]
  %v181 = vld [vmem:[%s1 + $0x400] sm:$0xff]
  %v182 = vld [vmem:[%s1 + $0x408] sm:$0xff]
  %v183 = vld [vmem:[%s1 + $0x410] sm:$0xff]
  %v184 = vld [vmem:[%s1 + $0x418] sm:$0xff]
  %v185 = vld [vmem:[%s1 + $0x420] sm:$0xff]
  %v186 = vld [vmem:[%s1 + $0x428] sm:$0xff]
  %v187 = vld [vmem:[%s1 + $0x430] sm:$0xff]
  %v188 = vld [vmem:[%s1 + $0x438] sm:$0xff]
  %v189 = vld [vmem:[%s1 + $0x440] sm:$0xff]
  %v190 = vld [vmem:[%s1 + $0x448] sm:$0xff]
  %v191 = vld [vmem:[%s1 + $0x450] sm:$0xff]
  %v192 = vld [vmem:[%s1 + $0x458] sm:$0xff]
  %v193 = vld [vmem:[%s1 + $0x460] sm:$0xff]
  %v194 = vld [vmem:[%s1 + $0x468] sm:$0xff]
  %v195 = vld [vmem:[%s1 + $0x470] sm:$0xff]
  %v196 = vld [vmem:[%s1 + $0x478] sm:$0xff]
  %v197 = vld [vmem:[%s1 + $0x480] sm:$0xff]
  %v198 = vld [vmem:[%s1 + $0x488] sm:$0xff]
  %v199 = vld [vmem:[%s1 + $0x490] sm:$0xff]
  %v200 = vld [vmem:[%s1 + $0x498] sm:$0xff]
  %v201 = vld [vmem:[%s1 + $0x4a0] sm:$0xff]
  %v202 = vld [vmem:[%s1 + $0x4a8] sm:$0xff]
  %v203 = vld [vmem:[%s1 + $0x4b0] sm:$0xff]
  %v204 = vld [vmem:[%s1 + $0x4b8] sm:$0xff]
  %v205 = vld [vmem:[%s1 + $0x4c0] sm:$0xff]
  %v206 = vld [vmem:[%s1 + $0x4c8] sm:$0xff]
  %v207 = vld [vmem:[%s1 + $0x4d0] sm:$0xff]
  %v208 = vld [vmem:[%s1 + $0x4d8] sm:$0xff]
  %v209 = vld [vmem:[%s1 + $0x4e0] sm:$0xff]
  %v210 = vld [vmem:[%s1 + $0x4e8] sm:$0xff]
  %v211 = vld [vmem:[%s1 + $0x4f0] sm:$0xff]
  %v212 = vld [vmem:[%s1 + $0x4f8] sm:$0xff]
  %v213 = vld [vmem:[%s1 + $0x500] sm:$0xff]
  %v214 = vld [vmem:[%s1 + $0x508] sm:$0xff]
  %v215 = vld [vmem:[%s1 + $0x510] sm:$0xff]
  %v216 = vld [vmem:[%s1 + $0x518] sm:$0xff]
  %v217 = vld [vmem:[%s1 + $0x520] sm:$0xff]
  %v218 = vld [vmem:[%s1 + $0x528] sm:$0xff]
  %v219 = vld [vmem:[%s1 + $0x530] sm:$0xff]
  %v220 = vld [vmem:[%s1 + $0x538] sm:$0xff]
  %v221 = vld [vmem:[%s1 + $0x540] sm:$0xff]
  %v222 = vld [vmem:[%s1 + $0x548] sm:$0xff]
  %v223 = vld [vmem:[%s1 + $0x550] sm:$0xff]
  %v224 = vld [vmem:[%s1 + $0x558] sm:$0xff]
  %v225 = vld [vmem:[%s1 + $0x560] sm:$0xff]
  %v226 = vld [vmem:[%s1 + $0x568] sm:$0xff]
  %v227 = vld [vmem:[%s1 + $0x570] sm:$0xff]
  %v228 = vld [vmem:[%s1 + $0x578] sm:$0xff]
  %v229 = vld [vmem:[%s1 + $0x580] sm:$0xff]
  %v230 = vld [vmem:[%s1 + $0x588] sm:$0xff]
  %v231 = vld [vmem:[%s1 + $0x590] sm:$0xff]
  %v232 = vld [vmem:[%s1 + $0x598] sm:$0xff]
  %v233 = vld [vmem:[%s1 + $0x5a0] sm:$0xff]
  %v234 = vld [vmem:[%s1 + $0x5a8] sm:$0xff]
  %v235 = vld [vmem:[%s1 + $0x5b0] sm:$0xff]
  %v236 = vld [vmem:[%s1 + $0x5b8] sm:$0xff]
  %v237 = vld [vmem:[%s1 + $0x5c0] sm:$0xff]
  %v238 = vld [vmem:[%s1 + $0x5c8] sm:$0xff]
  %v239 = vld [vmem:[%s1 + $0x5d0] sm:$0xff]
  %v240 = vld [vmem:[%s1 + $0x5d8] sm:$0xff]
  %v241 = vld [vmem:[%s1 + $0x5e0] sm:$0xff]
  %v242 = vld [vmem:[%s1 + $0x5e8] sm:$0xff]
  %v243 = vld [vmem:[%s1 + $0x5f0] sm:$0xff]
  %v244 = vld [vmem:[%s1 + $0x5f8] sm:$0xff]
  %v245 = vld [vmem:[%s1 + $0x600] sm:$0xff]
  %v246 = vld [vmem:[%s1 + $0x608] sm:$0xff]
  %v247 = vld [vmem:[%s1 + $0x610] sm:$0xff]
  %v248 = vld [vmem:[%s1 + $0x618] sm:$0xff]
  %v249 = vld [vmem:[%s1 + $0x620] sm:$0xff]
  %v250 = vld [vmem:[%s1 + $0x628] sm:$0xff]
  %v251 = vld [vmem:[%s1 + $0x630] sm:$0xff]
  %v252 = vld [vmem:[%s1 + $0x638] sm:$0xff]
  %v253 = vld [vmem:[%s1 + $0x640] sm:$0xff]
  %v254 = vld [vmem:[%s1 + $0x648] sm:$0xff]
  %v255 = vld [vmem:[%s1 + $0x650] sm:$0xff]
  %v256 = vld [vmem:[%s1 + $0x658] sm:$0xff]
  %v257 = vld [vmem:[%s1 + $0x660] sm:$0xff]
  %v258 = vld [vmem:[%s1 + $0x668] sm:$0xff]
  %v259 = vld [vmem:[%s1 + $0x670] sm:$0xff]
  %v260 = vld [vmem:[%s1 + $0x678] sm:$0xff]
  %v261 = vld [vmem:[%s1 + $0x680] sm:$0xff]
  %v262 = vld [vmem:[%s1 + $0x688] sm:$0xff]
  %v263 = vld [vmem:[%s1 + $0x690] sm:$0xff]
  %v264 = vld [vmem:[%s1 + $0x698] sm:$0xff]
  %v265 = vld [vmem:[%s1 + $0x6a0] sm:$0xff]
  %v266 = vld [vmem:[%s1 + $0x6a8] sm:$0xff]
  %v267 = vld [vmem:[%s1 + $0x6b0] sm:$0xff]
  %v268 = vld [vmem:[%s1 + $0x6b8] sm:$0xff]
  %v269 = vld [vmem:[%s1 + $0x6c0] sm:$0xff]
  %v270 = vld [vmem:[%s1 + $0x6c8] sm:$0xff]
  %v271 = vld [vmem:[%s1 + $0x6d0] sm:$0xff]
  %v272 = vld [vmem:[%s1 + $0x6d8] sm:$0xff]
  %v273 = vld [vmem:[%s1 + $0x6e0] sm:$0xff]
  %v274 = vld [vmem:[%s1 + $0x6e8] sm:$0xff]
  %v275 = vld [vmem:[%s1 + $0x6f0] sm:$0xff]
  %v276 = vld [vmem:[%s1 + $0x6f8] sm:$0xff]
  %v277 = vld [vmem:[%s1 + $0x700] sm:$0xff]
  %v278 = vld [vmem:[%s1 + $0x708] sm:$0xff]
  %v279 = vld [vmem:[%s1 + $0x710] sm:$0xff]
  %v280 = vld [vmem:[%s1 + $0x718] sm:$0xff]
  %v281 = vld [vmem:[%s1 + $0x720] sm:$0xff]
  %v282 = vld [vmem:[%s1 + $0x728] sm:$0xff]
  %v283 = vld [vmem:[%s1 + $0x730] sm:$0xff]
  %v284 = vld [vmem:[%s1 + $0x738] sm:$0xff]
  %v285 = vld [vmem:[%s1 + $0x740] sm:$0xff]
  %v286 = vld [vmem:[%s1 + $0x748] sm:$0xff]
  %v287 = vld [vmem:[%s1 + $0x750] sm:$0xff]
  %v288 = vld [vmem:[%s1 + $0x758] sm:$0xff]
  %v289 = vld [vmem:[%s1 + $0x760] sm:$0xff]
  %v290 = vld [vmem:[%s1 + $0x768] sm:$0xff]
  %v291 = vld [vmem:[%s1 + $0x770] sm:$0xff]
  %v292 = vld [vmem:[%s1 + $0x778] sm:$0xff]
  %v293 = vld [vmem:[%s1 + $0x780] sm:$0xff]
  %v294 = vld [vmem:[%s1 + $0x788] sm:$0xff]
  %v295 = vld [vmem:[%s1 + $0x790] sm:$0xff]
  %v296 = vld [vmem:[%s1 + $0x798] sm:$0xff]
  %v297 = vld [vmem:[%s1 + $0x7a0] sm:$0xff]
  %v298 = vld [vmem:[%s1 + $0x7a8] sm:$0xff]
  %v299 = vld [vmem:[%s1 + $0x7b0] sm:$0xff]
  %v300 = vld [vmem:[%s1 + $0x7b8] sm:$0xff]
  %v301 = vld [vmem:[%s1 + $0x7c0] sm:$0xff]
  %v302 = vld [vmem:[%s1 + $0x7c8] sm:$0xff]
  %v303 = vld [vmem:[%s1 + $0x7d0] sm:$0xff]
  %v304 = vld [vmem:[%s1 + $0x7d8] sm:$0xff]
  %v305 = vld [vmem:[%s1 + $0x7e0] sm:$0xff]
  %v306 = vld [vmem:[%s1 + $0x7e8] sm:$0xff]
  %v307 = vld [vmem:[%s1 + $0x7f0] sm:$0xff]
  %v308 = vld [vmem:[%s1 + $0x7f8] sm:$0xff]
  %v309 = vld [vmem:[%s1 + $0x800] sm:$0xff]
  %v310 = vld [vmem:[%s1 + $0x808] sm:$0xff]
  %v311 = vld [vmem:[%s1 + $0x810] sm:$0xff]
  %v312 = vld [vmem:[%s1 + $0x818] sm:$0xff]
  %v313 = vld [vmem:[%s1 + $0x820] sm:$0xff]
  %v314 = vld [vmem:[%s1 + $0x828] sm:$0xff]
  %v315 = vld [vmem:[%s1 + $0x830] sm:$0xff]
  %v316 = vld [vmem:[%s1 + $0x838] sm:$0xff]
  %v317 = vld [vmem:[%s1 + $0x840] sm:$0xff]
  %v318 = vld [vmem:[%s1 + $0x848] sm:$0xff]
  %v319 = vld [vmem:[%s1 + $0x850] sm:$0xff]
  %v320 = vld [vmem:[%s1 + $0x858] sm:$0xff]
  %v321 = vld [vmem:[%s1 + $0x860] sm:$0xff]
  %v322 = vld [vmem:[%s1 + $0x868] sm:$0xff]
  %v323 = vld [vmem:[%s1 + $0x870] sm:$0xff]
  %v324 = vld [vmem:[%s1 + $0x878] sm:$0xff]
  %v325 = vld [vmem:[%s1 + $0x880] sm:$0xff]
  %v326 = vld [vmem:[%s1 + $0x888] sm:$0xff]
  %v327 = vld [vmem:[%s1 + $0x890] sm:$0xff]
  %v328 = vld [vmem:[%s1 + $0x898] sm:$0xff]
  %v329 = vld [vmem:[%s1 + $0x8a0] sm:$0xff]
  %v330 = vld [vmem:[%s1 + $0x8a8] sm:$0xff]
  %v331 = vld [vmem:[%s1 + $0x8b0] sm:$0xff]
  %v332 = vld [vmem:[%s1 + $0x8b8] sm:$0xff]
  %v333 = vld [vmem:[%s1 + $0x8c0] sm:$0xff]
  %v334 = vld [vmem:[%s1 + $0x8c8] sm:$0xff]
  %v335 = vld [vmem:[%s1 + $0x8d0] sm:$0xff]
  %v336 = vld [vmem:[%s1 + $0x8d8] sm:$0xff]
  %v337 = vld [vmem:[%s1 + $0x8e0] sm:$0xff]
  %v338 = vld [vmem:[%s1 + $0x8e8] sm:$0xff]
  %v339 = vld [vmem:[%s1 + $0x8f0] sm:$0xff]
  %v340 = vld [vmem:[%s1 + $0x8f8] sm:$0xff]
  %v341 = vld [vmem:[%s1 + $0x900] sm:$0xff]
  %v342 = vld [vmem:[%s1 + $0x908] sm:$0xff]
  %v343 = vld [vmem:[%s1 + $0x910] sm:$0xff]
  %v344 = vld [vmem:[%s1 + $0x918] sm:$0xff]
  %v345 = vld [vmem:[%s1 + $0x920] sm:$0xff]
  %v346 = vld [vmem:[%s1 + $0x928] sm:$0xff]
  %v347 = vld [vmem:[%s1 + $0x930] sm:$0xff]
  %v348 = vld [vmem:[%s1 + $0x938] sm:$0xff]
  %v349 = vld [vmem:[%s1 + $0x940] sm:$0xff]
  %v350 = vld [vmem:[%s1 + $0x948] sm:$0xff]
  %v351 = vld [vmem:[%s1 + $0x950] sm:$0xff]
  %v352 = vld [vmem:[%s1 + $0x958] sm:$0xff]
  %v353 = vld [vmem:[%s1 + $0x960] sm:$0xff]
  %v354 = vld [vmem:[%s1 + $0x968] sm:$0xff]
  %v355 = vld [vmem:[%s1 + $0x970] sm:$0xff]
  %v356 = vld [vmem:[%s1 + $0x978] sm:$0xff]
  %v357 = vld [vmem:[%s1 + $0x980] sm:$0xff]
  %v358 = vld [vmem:[%s1 + $0x988] sm:$0xff]
  %v359 = vld [vmem:[%s1 + $0x990] sm:$0xff]
  %v360 = vld [vmem:[%s1 + $0x998] sm:$0xff]
  %v361 = vld [vmem:[%s1 + $0x9a0] sm:$0xff]
  %v362 = vld [vmem:[%s1 + $0x9a8] sm:$0xff]
  %v363 = vld [vmem:[%s1 + $0x9b0] sm:$0xff]
  %v364 = vld [vmem:[%s1 + $0x9b8] sm:$0xff]
  %v365 = vld [vmem:[%s1 + $0x9c0] sm:$0xff]
  %v366 = vld [vmem:[%s1 + $0x9c8] sm:$0xff]
  %v367 = vld [vmem:[%s1 + $0x9d0] sm:$0xff]
  %v368 = vld [vmem:[%s1 + $0x9d8] sm:$0xff]
  %v369 = vld [vmem:[%s1 + $0x9e0] sm:$0xff]
  %v370 = vld [vmem:[%s1 + $0x9e8] sm:$0xff]
  %v371 = vld [vmem:[%s1 + $0x9f0] sm:$0xff]
  %v372 = vld [vmem:[%s1 + $0x9f8] sm:$0xff]
  %v373 = vld [vmem:[%s1 + $0xa00] sm:$0xff]
  %v374 = vld [vmem:[%s1 + $0xa08] sm:$0xff]
  %v375 = vld [vmem:[%s1 + $0xa10] sm:$0xff]
  %v376 = vld [vmem:[%s1 + $0xa18] sm:$0xff]
  %v377 = vld [vmem:[%s1 + $0xa20] sm:$0xff]
  %v378 = vld [vmem:[%s1 + $0xa28] sm:$0xff]
  %v379 = vld [vmem:[%s1 + $0xa30] sm:$0xff]
  %v380 = vld [vmem:[%s1 + $0xa38] sm:$0xff]
  %v381 = vld [vmem:[%s1 + $0xa40] sm:$0xff]
  %v382 = vld [vmem:[%s1 + $0xa48] sm:$0xff]
  %v383 = vld [vmem:[%s1 + $0xa50] sm:$0xff]
  %v384 = vld [vmem:[%s1 + $0xa58] sm:$0xff]
  %v385 = vld [vmem:[%s1 + $0xa60] sm:$0xff]
  %v386 = vld [vmem:[%s1 + $0xa68] sm:$0xff]
  %v387 = vld [vmem:[%s1 + $0xa70] sm:$0xff]
  %v388 = vld [vmem:[%s1 + $0xa78] sm:$0xff]
  %v389 = vld [vmem:[%s1 + $0xa80] sm:$0xff]
  %v390 = vld [vmem:[%s1 + $0xa88] sm:$0xff]
  %v391 = vld [vmem:[%s1 + $0xa90] sm:$0xff]
  %v392 = vld [vmem:[%s1 + $0xa98] sm:$0xff]
  %v393 = vld [vmem:[%s1 + $0xaa0] sm:$0xff]
  %v394 = vld [vmem:[%s1 + $0xaa8] sm:$0xff]
  %v395 = vld [vmem:[%s1 + $0xab0] sm:$0xff]
  %v396 = vld [vmem:[%s1 + $0xab8] sm:$0xff]
  %v397 = vld [vmem:[%s1 + $0xac0] sm:$0xff]
  %v398 = vld [vmem:[%s1 + $0xac8] sm:$0xff]
  %v399 = vld [vmem:[%s1 + $0xad0] sm:$0xff]
  %v400 = vld [vmem:[%s1 + $0xad8] sm:$0xff]
  %v401 = vld [vmem:[%s1 + $0xae0] sm:$0xff]
  %v402 = vld [vmem:[%s1 + $0xae8] sm:$0xff]
  %v403 = vld [vmem:[%s1 + $0xaf0] sm:$0xff]
  %v404 = vld [vmem:[%s1 + $0xaf8] sm:$0xff]
  %v405 = vld [vmem:[%s1 + $0xb00] sm:$0xff]
  %v406 = vld [vmem:[%s1 + $0xb08] sm:$0xff]
  %v407 = vld [vmem:[%s1 + $0xb10] sm:$0xff]
  %v408 = vld [vmem:[%s1 + $0xb18] sm:$0xff]
  %v409 = vld [vmem:[%s1 + $0xb20] sm:$0xff]
  %v410 = vld [vmem:[%s1 + $0xb28] sm:$0xff]
  %v411 = vld [vmem:[%s1 + $0xb30] sm:$0xff]
  %v412 = vld [vmem:[%s1 + $0xb38] sm:$0xff]
  %v413 = vld [vmem:[%s1 + $0xb40] sm:$0xff]
  %v414 = vld [vmem:[%s1 + $0xb48] sm:$0xff]
  %v415 = vld [vmem:[%s1 + $0xb50] sm:$0xff]
  %v416 = vld [vmem:[%s1 + $0xb58] sm:$0xff]
  %v417 = vld [vmem:[%s1 + $0xb60] sm:$0xff]
  %v418 = vld [vmem:[%s1 + $0xb68] sm:$0xff]
  %v419 = vld [vmem:[%s1 + $0xb70] sm:$0xff]
  %v420 = vld [vmem:[%s1 + $0xb78] sm:$0xff]
  %v421 = vld [vmem:[%s1 + $0xb80] sm:$0xff]
  %v422 = vld [vmem:[%s1 + $0xb88] sm:$0xff]
  %v423 = vld [vmem:[%s1 + $0xb90] sm:$0xff]
  %v424 = vld [vmem:[%s1 + $0xb98] sm:$0xff]
  %v425 = vld [vmem:[%s1 + $0xba0] sm:$0xff]
  %v426 = vld [vmem:[%s1 + $0xba8] sm:$0xff]
  %v427 = vld [vmem:[%s1 + $0xbb0] sm:$0xff]
  %v428 = vld [vmem:[%s1 + $0xbb8] sm:$0xff]
  %v429 = vld [vmem:[%s1 + $0xbc0] sm:$0xff]
  %v430 = vld [vmem:[%s1 + $0xbc8] sm:$0xff]
  %v431 = vld [vmem:[%s1 + $0xbd0] sm:$0xff]
  %v432 = vld [vmem:[%s1 + $0xbd8] sm:$0xff]
  %v433 = vld [vmem:[%s1 + $0xbe0] sm:$0xff]
  %v434 = vld [vmem:[%s1 + $0xbe8] sm:$0xff]
  %v435 = vld [vmem:[%s1 + $0xbf0] sm:$0xff]
  %v436 = vld [vmem:[%s1 + $0xbf8] sm:$0xff]
  %v437 = vld [vmem:[%s1 + $0xc00] sm:$0xff]
  %v438 = vld [vmem:[%s1 + $0xc08] sm:$0xff]
  %v439 = vld [vmem:[%s1 + $0xc10] sm:$0xff]
  %v440 = vld [vmem:[%s1 + $0xc18] sm:$0xff]
  %v441 = vld [vmem:[%s1 + $0xc20] sm:$0xff]
  %v442 = vld [vmem:[%s1 + $0xc28] sm:$0xff]
  %v443 = vld [vmem:[%s1 + $0xc30] sm:$0xff]
  %v444 = vld [vmem:[%s1 + $0xc38] sm:$0xff]
  %v445 = vld [vmem:[%s1 + $0xc40] sm:$0xff]
  %v446 = vld [vmem:[%s1 + $0xc48] sm:$0xff]
  %v447 = vld [vmem:[%s1 + $0xc50] sm:$0xff]
  %v448 = vld [vmem:[%s1 + $0xc58] sm:$0xff]
  %v449 = vld [vmem:[%s1 + $0xc60] sm:$0xff]
  %v450 = vld [vmem:[%s1 + $0xc68] sm:$0xff]
  %v451 = vld [vmem:[%s1 + $0xc70] sm:$0xff]
  %v452 = vld [vmem:[%s1 + $0xc78] sm:$0xff]
  %v453 = vld [vmem:[%s1 + $0xc80] sm:$0xff]
  %v454 = vld [vmem:[%s1 + $0xc88] sm:$0xff]
  %v455 = vld [vmem:[%s1 + $0xc90] sm:$0xff]
  %v456 = vld [vmem:[%s1 + $0xc98] sm:$0xff]
  %v457 = vld [vmem:[%s1 + $0xca0] sm:$0xff]
  %v458 = vld [vmem:[%s1 + $0xca8] sm:$0xff]
  %v459 = vld [vmem:[%s1 + $0xcb0] sm:$0xff]
  %v460 = vld [vmem:[%s1 + $0xcb8] sm:$0xff]
  %v461 = vld [vmem:[%s1 + $0xcc0] sm:$0xff]
  %v462 = vld [vmem:[%s1 + $0xcc8] sm:$0xff]
  %v463 = vld [vmem:[%s1 + $0xcd0] sm:$0xff]
  %v464 = vld [vmem:[%s1 + $0xcd8] sm:$0xff]
  %v465 = vld [vmem:[%s1 + $0xce0] sm:$0xff]
  %v466 = vld [vmem:[%s1 + $0xce8] sm:$0xff]
  %v467 = vld [vmem:[%s1 + $0xcf0] sm:$0xff]
  %v468 = vld [vmem:[%s1 + $0xcf8] sm:$0xff]
  %v469 = vld [vmem:[%s1 + $0xd00] sm:$0xff]
  %v470 = vld [vmem:[%s1 + $0xd08] sm:$0xff]
  %v471 = vld [vmem:[%s1 + $0xd10] sm:$0xff]
  %v472 = vld [vmem:[%s1 + $0xd18] sm:$0xff]
  %v473 = vld [vmem:[%s1 + $0xd20] sm:$0xff]
  %v474 = vld [vmem:[%s1 + $0xd28] sm:$0xff]
  %v475 = vld [vmem:[%s1 + $0xd30] sm:$0xff]
  %v476 = vld [vmem:[%s1 + $0xd38] sm:$0xff]
  %v477 = vld [vmem:[%s1 + $0xd40] sm:$0xff]
  %v478 = vld [vmem:[%s1 + $0xd48] sm:$0xff]
  %v479 = vld [vmem:[%s1 + $0xd50] sm:$0xff]
  %v480 = vld [vmem:[%s1 + $0xd58] sm:$0xff]
  %v481 = vld [vmem:[%s1 + $0xd60] sm:$0xff]
  %v482 = vld [vmem:[%s1 + $0xd68] sm:$0xff]
  %v483 = vld [vmem:[%s1 + $0xd70] sm:$0xff]
  %v484 = vld [vmem:[%s1 + $0xd78] sm:$0xff]
  %v485 = vld [vmem:[%s1 + $0xd80] sm:$0xff]
  %v486 = vld [vmem:[%s1 + $0xd88] sm:$0xff]
  %v487 = vld [vmem:[%s1 + $0xd90] sm:$0xff]
  %v488 = vld [vmem:[%s1 + $0xd98] sm:$0xff]
  %v489 = vld [vmem:[%s1 + $0xda0] sm:$0xff]
  %v490 = vld [vmem:[%s1 + $0xda8] sm:$0xff]
  %v491 = vld [vmem:[%s1 + $0xdb0] sm:$0xff]
  %v492 = vld [vmem:[%s1 + $0xdb8] sm:$0xff]
  %v493 = vld [vmem:[%s1 + $0xdc0] sm:$0xff]
  %v494 = vld [vmem:[%s1 + $0xdc8] sm:$0xff]
  %v495 = vld [vmem:[%s1 + $0xdd0] sm:$0xff]
  %v496 = vld [vmem:[%s1 + $0xdd8] sm:$0xff]
  %v497 = vld [vmem:[%s1 + $0xde0] sm:$0xff]
  %v498 = vld [vmem:[%s1 + $0xde8] sm:$0xff]
  %v499 = vld [vmem:[%s1 + $0xdf0] sm:$0xff]
  %v500 = vld [vmem:[%s1 + $0xdf8] sm:$0xff]
  %v501 = vld [vmem:[%s1 + $0xe00] sm:$0xff]
  %v502 = vld [vmem:[%s1 + $0xe08] sm:$0xff]
  %v503 = vld [vmem:[%s1 + $0xe10] sm:$0xff]
  %v504 = vld [vmem:[%s1 + $0xe18] sm:$0xff]
  %v505 = vld [vmem:[%s1 + $0xe20] sm:$0xff]
  %v506 = vld [vmem:[%s1 + $0xe28] sm:$0xff]
  %v507 = vld [vmem:[%s1 + $0xe30] sm:$0xff]
  %v508 = vld [vmem:[%s1 + $0xe38] sm:$0xff]
  %v509 = vld [vmem:[%s1 + $0xe40] sm:$0xff]
  %v510 = vld [vmem:[%s1 + $0xe48] sm:$0xff]
  %v511 = vld [vmem:[%s1 + $0xe50] sm:$0xff]
  %v512 = vld [vmem:[%s1 + $0xe58] sm:$0xff]
  %v513 = vld [vmem:[%s1 + $0xe60] sm:$0xff]
  %v514 = vld [vmem:[%s1 + $0xe68] sm:$0xff]
  %v515 = vld [vmem:[%s1 + $0xe70] sm:$0xff]
  %v516 = vld [vmem:[%s1 + $0xe78] sm:$0xff]
  %v517 = vld [vmem:[%s1 + $0xe80] sm:$0xff]
  %v518 = vld [vmem:[%s1 + $0xe88] sm:$0xff]
  %v519 = vld [vmem:[%s1 + $0xe90] sm:$0xff]
  %v520 = vld [vmem:[%s1 + $0xe98] sm:$0xff]
  %v521 = vld [vmem:[%s1 + $0xea0] sm:$0xff]
  %v522 = vld [vmem:[%s1 + $0xea8] sm:$0xff]
  %v523 = vld [vmem:[%s1 + $0xeb0] sm:$0xff]
  %v524 = vld [vmem:[%s1 + $0xeb8] sm:$0xff]
  %v525 = vld [vmem:[%s1 + $0xec0] sm:$0xff]
  %v526 = vld [vmem:[%s1 + $0xec8] sm:$0xff]
  %v527 = vld [vmem:[%s1 + $0xed0] sm:$0xff]
  %v528 = vld [vmem:[%s1 + $0xed8] sm:$0xff]
  %v529 = vld [vmem:[%s1 + $0xee0] sm:$0xff]
  %v530 = vld [vmem:[%s1 + $0xee8] sm:$0xff]
  %v531 = vld [vmem:[%s1 + $0xef0] sm:$0xff]
  %v532 = vld [vmem:[%s1 + $0xef8] sm:$0xff]
  %v533 = vld [vmem:[%s1 + $0xf00] sm:$0xff]
  %v534 = vld [vmem:[%s1 + $0xf08] sm:$0xff]
  %v535 = vld [vmem:[%s1 + $0xf10] sm:$0xff]
  %v536 = vld [vmem:[%s1 + $0xf18] sm:$0xff]
  %v537 = vld [vmem:[%s1 + $0xf20] sm:$0xff]
  %v538 = vld [vmem:[%s1 + $0xf28] sm:$0xff]
  %v539 = vld [vmem:[%s1 + $0xf30] sm:$0xff]
  %v540 = vld [vmem:[%s1 + $0xf38] sm:$0xff]
  %v541 = vld [vmem:[%s1 + $0xf40] sm:$0xff]
  %v542 = vld [vmem:[%s1 + $0xf48] sm:$0xff]
  %v543 = vld [vmem:[%s1 + $0xf50] sm:$0xff]
  %v544 = vld [vmem:[%s1 + $0xf58] sm:$0xff]
  %v545 = vld [vmem:[%s1 + $0xf60] sm:$0xff]
  %v546 = vld [vmem:[%s1 + $0xf68] sm:$0xff]
  %v547 = vld [vmem:[%s1 + $0xf70] sm:$0xff]
  %v548 = vld [vmem:[%s1 + $0xf78] sm:$0xff]
  %v549 = vld [vmem:[%s1 + $0xf80] sm:$0xff]
  %v550 = vld [vmem:[%s1 + $0xf88] sm:$0xff]
  %v551 = vld [vmem:[%s1 + $0xf90] sm:$0xff]
  %v552 = vld [vmem:[%s1 + $0xf98] sm:$0xff]
  %v553 = vld [vmem:[%s1 + $0xfa0] sm:$0xff]
  %v554 = vld [vmem:[%s1 + $0xfa8] sm:$0xff]
  %v555 = vld [vmem:[%s1 + $0xfb0] sm:$0xff]
  %v556 = vld [vmem:[%s1 + $0xfb8] sm:$0xff]
  %v557 = vld [vmem:[%s1 + $0xfc0] sm:$0xff]
  %v558 = vld [vmem:[%s1 + $0xfc8] sm:$0xff]
  %v559 = vld [vmem:[%s1 + $0xfd0] sm:$0xff]
  %v560 = vld [vmem:[%s1 + $0xfd8] sm:$0xff]
  %v561 = vld [vmem:[%s1 + $0xfe0] sm:$0xff]
  %v562 = vld [vmem:[%s1 + $0xfe8] sm:$0xff]
  %v563 = vld [vmem:[%s1 + $0xff0] sm:$0xff]
  %v564 = vld [vmem:[%s1 + $0xff8] sm:$0xff]
  %v565 = vld [vmem:[%s1 + $0x1000] sm:$0xff]
  %v566 = vld [vmem:[%s1 + $0x1008] sm:$0xff]
  %v567 = vld [vmem:[%s1 + $0x1010] sm:$0xff]
  %v568 = vld [vmem:[%s1 + $0x1018] sm:$0xff]
  %v569 = vld [vmem:[%s1 + $0x1020] sm:$0xff]
  %v570 = vld [vmem:[%s1 + $0x1028] sm:$0xff]
  %v571 = vld [vmem:[%s1 + $0x1030] sm:$0xff]
  %v572 = vld [vmem:[%s1 + $0x1038] sm:$0xff]
  %v573 = vld [vmem:[%s1 + $0x1040] sm:$0xff]
  %v574 = vld [vmem:[%s1 + $0x1048] sm:$0xff]
  %v575 = vld [vmem:[%s1 + $0x1050] sm:$0xff]
  %v576 = vld [vmem:[%s1 + $0x1058] sm:$0xff]
  %v577 = vld [vmem:[%s1 + $0x1060] sm:$0xff]
  %v578 = vld [vmem:[%s1 + $0x1068] sm:$0xff]
  %v579 = vld [vmem:[%s1 + $0x1070] sm:$0xff]
  %v580 = vld [vmem:[%s1 + $0x1078] sm:$0xff]
  %v581 = vld [vmem:[%s1 + $0x1080] sm:$0xff]
  %v582 = vld [vmem:[%s1 + $0x1088] sm:$0xff]
  %v583 = vld [vmem:[%s1 + $0x1090] sm:$0xff]
  %v584 = vld [vmem:[%s1 + $0x1098] sm:$0xff]
  %v585 = vld [vmem:[%s1 + $0x10a0] sm:$0xff]
  %v586 = vld [vmem:[%s1 + $0x10a8] sm:$0xff]
  %v587 = vld [vmem:[%s1 + $0x10b0] sm:$0xff]
  %v588 = vld [vmem:[%s1 + $0x10b8] sm:$0xff]
  %v589 = vld [vmem:[%s1 + $0x10c0] sm:$0xff]
  %v590 = vld [vmem:[%s1 + $0x10c8] sm:$0xff]
  %v591 = vld [vmem:[%s1 + $0x10d0] sm:$0xff]
  %v592 = vld [vmem:[%s1 + $0x10d8] sm:$0xff]
  %v593 = vld [vmem:[%s1 + $0x10e0] sm:$0xff]
  %v594 = vld [vmem:[%s1 + $0x10e8] sm:$0xff]
  %v595 = vld [vmem:[%s1 + $0x10f0] sm:$0xff]
  %v596 = vld [vmem:[%s1 + $0x10f8] sm:$0xff]
  %v597 = vld [vmem:[%s1 + $0x1100] sm:$0xff]
  %v598 = vld [vmem:[%s1 + $0x1108] sm:$0xff]
  %v599 = vld [vmem:[%s1 + $0x1110] sm:$0xff]
  %v600 = vld [vmem:[%s1 + $0x1118] sm:$0xff]
  %v601 = vld [vmem:[%s1 + $0x1120] sm:$0xff]
  %v602 = vld [vmem:[%s1 + $0x1128] sm:$0xff]
  %v603 = vld [vmem:[%s1 + $0x1130] sm:$0xff]
  %v604 = vld [vmem:[%s1 + $0x1138] sm:$0xff]
  %v605 = vld [vmem:[%s1 + $0x1140] sm:$0xff]
  %v606 = vld [vmem:[%s1 + $0x1148] sm:$0xff]
  %v607 = vld [vmem:[%s1 + $0x1150] sm:$0xff]
  %v608 = vld [vmem:[%s1 + $0x1158] sm:$0xff]
  %v609 = vld [vmem:[%s1 + $0x1160] sm:$0xff]
  %v610 = vld [vmem:[%s1 + $0x1168] sm:$0xff]
  %v611 = vld [vmem:[%s1 + $0x1170] sm:$0xff]
  %v612 = vld [vmem:[%s1 + $0x1178] sm:$0xff]
  %v613 = vld [vmem:[%s1 + $0x1180] sm:$0xff]
  %v614 = vld [vmem:[%s1 + $0x1188] sm:$0xff]
  %v615 = vld [vmem:[%s1 + $0x1190] sm:$0xff]
  %v616 = vld [vmem:[%s1 + $0x1198] sm:$0xff]
  %v617 = vld [vmem:[%s1 + $0x11a0] sm:$0xff]
  %v618 = vld [vmem:[%s1 + $0x11a8] sm:$0xff]
  %v619 = vld [vmem:[%s1 + $0x11b0] sm:$0xff]
  %v620 = vld [vmem:[%s1 + $0x11b8] sm:$0xff]
  %v621 = vld [vmem:[%s1 + $0x11c0] sm:$0xff]
  %v622 = vld [vmem:[%s1 + $0x11c8] sm:$0xff]
  %v623 = vld [vmem:[%s1 + $0x11d0] sm:$0xff]
  %v624 = vld [vmem:[%s1 + $0x11d8] sm:$0xff]
  %v625 = vld [vmem:[%s1 + $0x11e0] sm:$0xff]
  %v626 = vld [vmem:[%s1 + $0x11e8] sm:$0xff]
  %v627 = vld [vmem:[%s1 + $0x11f0] sm:$0xff]
  %v628 = vld [vmem:[%s1 + $0x11f8] sm:$0xff]
  %v665 = vunpack.c.l.b16 %v17
  %v666 = vunpack.c.h.b16 %v17
  %v667 = vunpack.c.l.b16 %v18
  %v668 = vunpack.c.h.b16 %v18
  %v669 = vunpack.c.l.b16 %v19
  %v670 = vunpack.c.h.b16 %v19
  %v671 = vunpack.c.l.b16 %v20
  %v672 = vunpack.c.h.b16 %v20
  %v673 = vunpack.c.l.b16 %v21
  %v674 = vunpack.c.h.b16 %v21
  %v675 = vunpack.c.l.b16 %v22
  %v676 = vunpack.c.h.b16 %v22
  %v677 = vunpack.c.l.b16 %v23
  %v678 = vunpack.c.h.b16 %v23
  %v679 = vunpack.c.l.b16 %v24
  %v680 = vunpack.c.h.b16 %v24
  %v681 = vunpack.c.l.b16 %v25
  %v682 = vunpack.c.h.b16 %v25
  %v683 = vunpack.c.l.b16 %v26
  %v684 = vunpack.c.h.b16 %v26
  %v685 = vunpack.c.l.b16 %v27
  %v686 = vunpack.c.h.b16 %v27
  %v687 = vunpack.c.l.b16 %v28
  %v688 = vunpack.c.h.b16 %v28
  %v689 = vunpack.c.l.b16 %v29
  %v690 = vunpack.c.h.b16 %v29
  %v691 = vunpack.c.l.b16 %v30
  %v692 = vunpack.c.h.b16 %v30
  %v693 = vunpack.c.l.b16 %v31
  %v694 = vunpack.c.h.b16 %v31
  %v695 = vunpack.c.l.b16 %v32
  %v696 = vunpack.c.h.b16 %v32
  %v697 = vunpack.c.l.b16 %v33
  %v698 = vunpack.c.h.b16 %v33
  %v699 = vunpack.c.l.b16 %v34
  %v700 = vunpack.c.h.b16 %v34
  %v701 = vunpack.c.l.b16 %v35
  %v702 = vunpack.c.h.b16 %v35
  %v703 = vunpack.c.l.b16 %v36
  %v704 = vunpack.c.h.b16 %v36
  %v705 = vunpack.c.l.b16 %v37
  %v706 = vunpack.c.h.b16 %v37
  %v707 = vunpack.c.l.b16 %v38
  %v708 = vunpack.c.h.b16 %v38
  %v709 = vunpack.c.l.b16 %v39
  %v710 = vunpack.c.h.b16 %v39
  %v711 = vunpack.c.l.b16 %v40
  %v712 = vunpack.c.h.b16 %v40
  %v713 = vunpack.c.l.b16 %v41
  %v714 = vunpack.c.h.b16 %v41
  %v715 = vunpack.c.l.b16 %v42
  %v716 = vunpack.c.h.b16 %v42
  %v717 = vunpack.c.l.b16 %v43
  %v718 = vunpack.c.h.b16 %v43
  %v719 = vunpack.c.l.b16 %v44
  %v720 = vunpack.c.h.b16 %v44
  %v721 = vunpack.c.l.b16 %v45
  %v722 = vunpack.c.h.b16 %v45
  %v723 = vunpack.c.l.b16 %v46
  %v724 = vunpack.c.h.b16 %v46
  %v725 = vunpack.c.l.b16 %v47
  %v726 = vunpack.c.h.b16 %v47
  %v727 = vunpack.c.l.b16 %v48
  %v728 = vunpack.c.h.b16 %v48
  %v729 = vunpack.c.l.b16 %v49
  %v730 = vunpack.c.h.b16 %v49
  %v731 = vunpack.c.l.b16 %v50
  %v732 = vunpack.c.h.b16 %v50
  %v733 = vunpack.c.l.b16 %v51
  %v734 = vunpack.c.h.b16 %v51
  %v735 = vunpack.c.l.b16 %v52
  %v736 = vunpack.c.h.b16 %v52
  %v737 = vpack.c.b16 %v683, %v665
  %v738 = vpack.c.b16 %v684, %v666
  %v739 = vpack.c.b16 %v685, %v667
  %v740 = vpack.c.b16 %v686, %v668
  %v741 = vpack.c.b16 %v687, %v669
  %v742 = vpack.c.b16 %v688, %v670
  %v743 = vpack.c.b16 %v689, %v671
  %v744 = vpack.c.b16 %v690, %v672
  %v745 = vpack.c.b16 %v691, %v673
  %v746 = vpack.c.b16 %v692, %v674
  %v747 = vpack.c.b16 %v693, %v675
  %v748 = vpack.c.b16 %v694, %v676
  %v749 = vpack.c.b16 %v695, %v677
  %v750 = vpack.c.b16 %v696, %v678
  %v751 = vpack.c.b16 %v697, %v679
  %v752 = vpack.c.b16 %v698, %v680
  %v753 = vpack.c.b16 %v699, %v681
  %v754 = vpack.c.b16 %v700, %v682
  %v755 = vpack.c.b16 %v719, %v701
  %v756 = vpack.c.b16 %v720, %v702
  %v757 = vpack.c.b16 %v721, %v703
  %v758 = vpack.c.b16 %v722, %v704
  %v759 = vpack.c.b16 %v723, %v705
  %v760 = vpack.c.b16 %v724, %v706
  %v761 = vpack.c.b16 %v725, %v707
  %v762 = vpack.c.b16 %v726, %v708
  %v763 = vpack.c.b16 %v727, %v709
  %v764 = vpack.c.b16 %v728, %v710
  %v765 = vpack.c.b16 %v729, %v711
  %v766 = vpack.c.b16 %v730, %v712
  %v767 = vpack.c.b16 %v731, %v713
  %v768 = vpack.c.b16 %v732, %v714
  %v769 = vpack.c.b16 %v733, %v715
  %v770 = vpack.c.b16 %v734, %v716
  %v771 = vpack.c.b16 %v735, %v717
  %v772 = vpack.c.b16 %v736, %v718
  %v1385 = vunpack.c.l.b16 %v53
  %v1386 = vunpack.c.h.b16 %v53
  %v1387 = vunpack.c.l.b16 %v54
  %v1388 = vunpack.c.h.b16 %v54
  %v1389 = vunpack.c.l.b16 %v55
  %v1390 = vunpack.c.h.b16 %v55
  %v1391 = vunpack.c.l.b16 %v56
  %v1392 = vunpack.c.h.b16 %v56
  %v1393 = vunpack.c.l.b16 %v57
  %v1394 = vunpack.c.h.b16 %v57
  %v1395 = vunpack.c.l.b16 %v58
  %v1396 = vunpack.c.h.b16 %v58
  %v1397 = vunpack.c.l.b16 %v59
  %v1398 = vunpack.c.h.b16 %v59
  %v1399 = vunpack.c.l.b16 %v60
  %v1400 = vunpack.c.h.b16 %v60
  %v1401 = vunpack.c.l.b16 %v61
  %v1402 = vunpack.c.h.b16 %v61
  %v1403 = vunpack.c.l.b16 %v62
  %v1404 = vunpack.c.h.b16 %v62
  %v1405 = vunpack.c.l.b16 %v63
  %v1406 = vunpack.c.h.b16 %v63
  %v1407 = vunpack.c.l.b16 %v64
  %v1408 = vunpack.c.h.b16 %v64
  %v1409 = vunpack.c.l.b16 %v65
  %v1410 = vunpack.c.h.b16 %v65
  %v1411 = vunpack.c.l.b16 %v66
  %v1412 = vunpack.c.h.b16 %v66
  %v1413 = vunpack.c.l.b16 %v67
  %v1414 = vunpack.c.h.b16 %v67
  %v1415 = vunpack.c.l.b16 %v68
  %v1416 = vunpack.c.h.b16 %v68
  %v1417 = vunpack.c.l.b16 %v69
  %v1418 = vunpack.c.h.b16 %v69
  %v1419 = vunpack.c.l.b16 %v70
  %v1420 = vunpack.c.h.b16 %v70
  %v1421 = vunpack.c.l.b16 %v71
  %v1422 = vunpack.c.h.b16 %v71
  %v1423 = vunpack.c.l.b16 %v72
  %v1424 = vunpack.c.h.b16 %v72
  %v1425 = vunpack.c.l.b16 %v73
  %v1426 = vunpack.c.h.b16 %v73
  %v1427 = vunpack.c.l.b16 %v74
  %v1428 = vunpack.c.h.b16 %v74
  %v1429 = vunpack.c.l.b16 %v75
  %v1430 = vunpack.c.h.b16 %v75
  %v1431 = vunpack.c.l.b16 %v76
  %v1432 = vunpack.c.h.b16 %v76
  %v1433 = vunpack.c.l.b16 %v77
  %v1434 = vunpack.c.h.b16 %v77
  %v1435 = vunpack.c.l.b16 %v78
  %v1436 = vunpack.c.h.b16 %v78
  %v1437 = vunpack.c.l.b16 %v79
  %v1438 = vunpack.c.h.b16 %v79
  %v1439 = vunpack.c.l.b16 %v80
  %v1440 = vunpack.c.h.b16 %v80
  %v1441 = vunpack.c.l.b16 %v81
  %v1442 = vunpack.c.h.b16 %v81
  %v1443 = vunpack.c.l.b16 %v82
  %v1444 = vunpack.c.h.b16 %v82
  %v1445 = vunpack.c.l.b16 %v83
  %v1446 = vunpack.c.h.b16 %v83
  %v1447 = vunpack.c.l.b16 %v84
  %v1448 = vunpack.c.h.b16 %v84
  %v1449 = vunpack.c.l.b16 %v85
  %v1450 = vunpack.c.h.b16 %v85
  %v1451 = vunpack.c.l.b16 %v86
  %v1452 = vunpack.c.h.b16 %v86
  %v1453 = vunpack.c.l.b16 %v87
  %v1454 = vunpack.c.h.b16 %v87
  %v1455 = vunpack.c.l.b16 %v88
  %v1456 = vunpack.c.h.b16 %v88
  %v1457 = vunpack.c.l.b16 %v89
  %v1458 = vunpack.c.h.b16 %v89
  %v1459 = vunpack.c.l.b16 %v90
  %v1460 = vunpack.c.h.b16 %v90
  %v1461 = vunpack.c.l.b16 %v91
  %v1462 = vunpack.c.h.b16 %v91
  %v1463 = vunpack.c.l.b16 %v92
  %v1464 = vunpack.c.h.b16 %v92
  %v1465 = vunpack.c.l.b16 %v93
  %v1466 = vunpack.c.h.b16 %v93
  %v1467 = vunpack.c.l.b16 %v94
  %v1468 = vunpack.c.h.b16 %v94
  %v1469 = vunpack.c.l.b16 %v95
  %v1470 = vunpack.c.h.b16 %v95
  %v1471 = vunpack.c.l.b16 %v96
  %v1472 = vunpack.c.h.b16 %v96
  %v1473 = vunpack.c.l.b16 %v97
  %v1474 = vunpack.c.h.b16 %v97
  %v1475 = vunpack.c.l.b16 %v98
  %v1476 = vunpack.c.h.b16 %v98
  %v1477 = vunpack.c.l.b16 %v99
  %v1478 = vunpack.c.h.b16 %v99
  %v1479 = vunpack.c.l.b16 %v100
  %v1480 = vunpack.c.h.b16 %v100
  %v1481 = vunpack.c.l.b16 %v101
  %v1482 = vunpack.c.h.b16 %v101
  %v1483 = vunpack.c.l.b16 %v102
  %v1484 = vunpack.c.h.b16 %v102
  %v1485 = vunpack.c.l.b16 %v103
  %v1486 = vunpack.c.h.b16 %v103
  %v1487 = vunpack.c.l.b16 %v104
  %v1488 = vunpack.c.h.b16 %v104
  %v1489 = vunpack.c.l.b16 %v105
  %v1490 = vunpack.c.h.b16 %v105
  %v1491 = vunpack.c.l.b16 %v106
  %v1492 = vunpack.c.h.b16 %v106
  %v1493 = vunpack.c.l.b16 %v107
  %v1494 = vunpack.c.h.b16 %v107
  %v1495 = vunpack.c.l.b16 %v108
  %v1496 = vunpack.c.h.b16 %v108
  %v1497 = vunpack.c.l.b16 %v109
  %v1498 = vunpack.c.h.b16 %v109
  %v1499 = vunpack.c.l.b16 %v110
  %v1500 = vunpack.c.h.b16 %v110
  %v1501 = vunpack.c.l.b16 %v111
  %v1502 = vunpack.c.h.b16 %v111
  %v1503 = vunpack.c.l.b16 %v112
  %v1504 = vunpack.c.h.b16 %v112
  %v1505 = vunpack.c.l.b16 %v113
  %v1506 = vunpack.c.h.b16 %v113
  %v1507 = vunpack.c.l.b16 %v114
  %v1508 = vunpack.c.h.b16 %v114
  %v1509 = vunpack.c.l.b16 %v115
  %v1510 = vunpack.c.h.b16 %v115
  %v1511 = vunpack.c.l.b16 %v116
  %v1512 = vunpack.c.h.b16 %v116
  %v1513 = vunpack.c.l.b16 %v117
  %v1514 = vunpack.c.h.b16 %v117
  %v1515 = vunpack.c.l.b16 %v118
  %v1516 = vunpack.c.h.b16 %v118
  %v1517 = vunpack.c.l.b16 %v119
  %v1518 = vunpack.c.h.b16 %v119
  %v1519 = vunpack.c.l.b16 %v120
  %v1520 = vunpack.c.h.b16 %v120
  %v1521 = vunpack.c.l.b16 %v121
  %v1522 = vunpack.c.h.b16 %v121
  %v1523 = vunpack.c.l.b16 %v122
  %v1524 = vunpack.c.h.b16 %v122
  %v1525 = vunpack.c.l.b16 %v123
  %v1526 = vunpack.c.h.b16 %v123
  %v1527 = vunpack.c.l.b16 %v124
  %v1528 = vunpack.c.h.b16 %v124
  %v1529 = vunpack.c.l.b16 %v125
  %v1530 = vunpack.c.h.b16 %v125
  %v1531 = vunpack.c.l.b16 %v126
  %v1532 = vunpack.c.h.b16 %v126
  %v1533 = vunpack.c.l.b16 %v127
  %v1534 = vunpack.c.h.b16 %v127
  %v1535 = vunpack.c.l.b16 %v128
  %v1536 = vunpack.c.h.b16 %v128
  %v1537 = vunpack.c.l.b16 %v129
  %v1538 = vunpack.c.h.b16 %v129
  %v1539 = vunpack.c.l.b16 %v130
  %v1540 = vunpack.c.h.b16 %v130
  %v1541 = vunpack.c.l.b16 %v131
  %v1542 = vunpack.c.h.b16 %v131
  %v1543 = vunpack.c.l.b16 %v132
  %v1544 = vunpack.c.h.b16 %v132
  %v1545 = vunpack.c.l.b16 %v133
  %v1546 = vunpack.c.h.b16 %v133
  %v1547 = vunpack.c.l.b16 %v134
  %v1548 = vunpack.c.h.b16 %v134
  %v1549 = vunpack.c.l.b16 %v135
  %v1550 = vunpack.c.h.b16 %v135
  %v1551 = vunpack.c.l.b16 %v136
  %v1552 = vunpack.c.h.b16 %v136
  %v1553 = vunpack.c.l.b16 %v137
  %v1554 = vunpack.c.h.b16 %v137
  %v1555 = vunpack.c.l.b16 %v138
  %v1556 = vunpack.c.h.b16 %v138
  %v1557 = vunpack.c.l.b16 %v139
  %v1558 = vunpack.c.h.b16 %v139
  %v1559 = vunpack.c.l.b16 %v140
  %v1560 = vunpack.c.h.b16 %v140
  %v1561 = vunpack.c.l.b16 %v141
  %v1562 = vunpack.c.h.b16 %v141
  %v1563 = vunpack.c.l.b16 %v142
  %v1564 = vunpack.c.h.b16 %v142
  %v1565 = vunpack.c.l.b16 %v143
  %v1566 = vunpack.c.h.b16 %v143
  %v1567 = vunpack.c.l.b16 %v144
  %v1568 = vunpack.c.h.b16 %v144
  %v1569 = vunpack.c.l.b16 %v145
  %v1570 = vunpack.c.h.b16 %v145
  %v1571 = vunpack.c.l.b16 %v146
  %v1572 = vunpack.c.h.b16 %v146
  %v1573 = vunpack.c.l.b16 %v147
  %v1574 = vunpack.c.h.b16 %v147
  %v1575 = vunpack.c.l.b16 %v148
  %v1576 = vunpack.c.h.b16 %v148
  %v1577 = vunpack.c.l.b16 %v149
  %v1578 = vunpack.c.h.b16 %v149
  %v1579 = vunpack.c.l.b16 %v150
  %v1580 = vunpack.c.h.b16 %v150
  %v1581 = vunpack.c.l.b16 %v151
  %v1582 = vunpack.c.h.b16 %v151
  %v1583 = vunpack.c.l.b16 %v152
  %v1584 = vunpack.c.h.b16 %v152
  %v1585 = vunpack.c.l.b16 %v153
  %v1586 = vunpack.c.h.b16 %v153
  %v1587 = vunpack.c.l.b16 %v154
  %v1588 = vunpack.c.h.b16 %v154
  %v1589 = vunpack.c.l.b16 %v155
  %v1590 = vunpack.c.h.b16 %v155
  %v1591 = vunpack.c.l.b16 %v156
  %v1592 = vunpack.c.h.b16 %v156
  %v1593 = vunpack.c.l.b16 %v157
  %v1594 = vunpack.c.h.b16 %v157
  %v1595 = vunpack.c.l.b16 %v158
  %v1596 = vunpack.c.h.b16 %v158
  %v1597 = vunpack.c.l.b16 %v159
  %v1598 = vunpack.c.h.b16 %v159
  %v1599 = vunpack.c.l.b16 %v160
  %v1600 = vunpack.c.h.b16 %v160
  %v1601 = vunpack.c.l.b16 %v161
  %v1602 = vunpack.c.h.b16 %v161
  %v1603 = vunpack.c.l.b16 %v162
  %v1604 = vunpack.c.h.b16 %v162
  %v1605 = vunpack.c.l.b16 %v163
  %v1606 = vunpack.c.h.b16 %v163
  %v1607 = vunpack.c.l.b16 %v164
  %v1608 = vunpack.c.h.b16 %v164
  %v1609 = vunpack.c.l.b16 %v165
  %v1610 = vunpack.c.h.b16 %v165
  %v1611 = vunpack.c.l.b16 %v166
  %v1612 = vunpack.c.h.b16 %v166
  %v1613 = vunpack.c.l.b16 %v167
  %v1614 = vunpack.c.h.b16 %v167
  %v1615 = vunpack.c.l.b16 %v168
  %v1616 = vunpack.c.h.b16 %v168
  %v1617 = vunpack.c.l.b16 %v169
  %v1618 = vunpack.c.h.b16 %v169
  %v1619 = vunpack.c.l.b16 %v170
  %v1620 = vunpack.c.h.b16 %v170
  %v1621 = vunpack.c.l.b16 %v171
  %v1622 = vunpack.c.h.b16 %v171
  %v1623 = vunpack.c.l.b16 %v172
  %v1624 = vunpack.c.h.b16 %v172
  %v1625 = vunpack.c.l.b16 %v173
  %v1626 = vunpack.c.h.b16 %v173
  %v1627 = vunpack.c.l.b16 %v174
  %v1628 = vunpack.c.h.b16 %v174
  %v1629 = vunpack.c.l.b16 %v175
  %v1630 = vunpack.c.h.b16 %v175
  %v1631 = vunpack.c.l.b16 %v176
  %v1632 = vunpack.c.h.b16 %v176
  %v1633 = vunpack.c.l.b16 %v177
  %v1634 = vunpack.c.h.b16 %v177
  %v1635 = vunpack.c.l.b16 %v178
  %v1636 = vunpack.c.h.b16 %v178
  %v1637 = vunpack.c.l.b16 %v179
  %v1638 = vunpack.c.h.b16 %v179
  %v1639 = vunpack.c.l.b16 %v180
  %v1640 = vunpack.c.h.b16 %v180
  %v1641 = vunpack.c.l.b16 %v181
  %v1642 = vunpack.c.h.b16 %v181
  %v1643 = vunpack.c.l.b16 %v182
  %v1644 = vunpack.c.h.b16 %v182
  %v1645 = vunpack.c.l.b16 %v183
  %v1646 = vunpack.c.h.b16 %v183
  %v1647 = vunpack.c.l.b16 %v184
  %v1648 = vunpack.c.h.b16 %v184
  %v1649 = vunpack.c.l.b16 %v185
  %v1650 = vunpack.c.h.b16 %v185
  %v1651 = vunpack.c.l.b16 %v186
  %v1652 = vunpack.c.h.b16 %v186
  %v1653 = vunpack.c.l.b16 %v187
  %v1654 = vunpack.c.h.b16 %v187
  %v1655 = vunpack.c.l.b16 %v188
  %v1656 = vunpack.c.h.b16 %v188
  %v1657 = vunpack.c.l.b16 %v189
  %v1658 = vunpack.c.h.b16 %v189
  %v1659 = vunpack.c.l.b16 %v190
  %v1660 = vunpack.c.h.b16 %v190
  %v1661 = vunpack.c.l.b16 %v191
  %v1662 = vunpack.c.h.b16 %v191
  %v1663 = vunpack.c.l.b16 %v192
  %v1664 = vunpack.c.h.b16 %v192
  %v1665 = vunpack.c.l.b16 %v193
  %v1666 = vunpack.c.h.b16 %v193
  %v1667 = vunpack.c.l.b16 %v194
  %v1668 = vunpack.c.h.b16 %v194
  %v1669 = vunpack.c.l.b16 %v195
  %v1670 = vunpack.c.h.b16 %v195
  %v1671 = vunpack.c.l.b16 %v196
  %v1672 = vunpack.c.h.b16 %v196
  %v1673 = vunpack.c.l.b16 %v197
  %v1674 = vunpack.c.h.b16 %v197
  %v1675 = vunpack.c.l.b16 %v198
  %v1676 = vunpack.c.h.b16 %v198
  %v1677 = vunpack.c.l.b16 %v199
  %v1678 = vunpack.c.h.b16 %v199
  %v1679 = vunpack.c.l.b16 %v200
  %v1680 = vunpack.c.h.b16 %v200
  %v1681 = vunpack.c.l.b16 %v201
  %v1682 = vunpack.c.h.b16 %v201
  %v1683 = vunpack.c.l.b16 %v202
  %v1684 = vunpack.c.h.b16 %v202
  %v1685 = vunpack.c.l.b16 %v203
  %v1686 = vunpack.c.h.b16 %v203
  %v1687 = vunpack.c.l.b16 %v204
  %v1688 = vunpack.c.h.b16 %v204
  %v1689 = vunpack.c.l.b16 %v205
  %v1690 = vunpack.c.h.b16 %v205
  %v1691 = vunpack.c.l.b16 %v206
  %v1692 = vunpack.c.h.b16 %v206
  %v1693 = vunpack.c.l.b16 %v207
  %v1694 = vunpack.c.h.b16 %v207
  %v1695 = vunpack.c.l.b16 %v208
  %v1696 = vunpack.c.h.b16 %v208
  %v1697 = vunpack.c.l.b16 %v209
  %v1698 = vunpack.c.h.b16 %v209
  %v1699 = vunpack.c.l.b16 %v210
  %v1700 = vunpack.c.h.b16 %v210
  %v1701 = vunpack.c.l.b16 %v211
  %v1702 = vunpack.c.h.b16 %v211
  %v1703 = vunpack.c.l.b16 %v212
  %v1704 = vunpack.c.h.b16 %v212
  %v1705 = vunpack.c.l.b16 %v213
  %v1706 = vunpack.c.h.b16 %v213
  %v1707 = vunpack.c.l.b16 %v214
  %v1708 = vunpack.c.h.b16 %v214
  %v1709 = vunpack.c.l.b16 %v215
  %v1710 = vunpack.c.h.b16 %v215
  %v1711 = vunpack.c.l.b16 %v216
  %v1712 = vunpack.c.h.b16 %v216
  %v1713 = vunpack.c.l.b16 %v217
  %v1714 = vunpack.c.h.b16 %v217
  %v1715 = vunpack.c.l.b16 %v218
  %v1716 = vunpack.c.h.b16 %v218
  %v1717 = vunpack.c.l.b16 %v219
  %v1718 = vunpack.c.h.b16 %v219
  %v1719 = vunpack.c.l.b16 %v220
  %v1720 = vunpack.c.h.b16 %v220
  %v1721 = vunpack.c.l.b16 %v221
  %v1722 = vunpack.c.h.b16 %v221
  %v1723 = vunpack.c.l.b16 %v222
  %v1724 = vunpack.c.h.b16 %v222
  %v1725 = vunpack.c.l.b16 %v223
  %v1726 = vunpack.c.h.b16 %v223
  %v1727 = vunpack.c.l.b16 %v224
  %v1728 = vunpack.c.h.b16 %v224
  %v1729 = vunpack.c.l.b16 %v225
  %v1730 = vunpack.c.h.b16 %v225
  %v1731 = vunpack.c.l.b16 %v226
  %v1732 = vunpack.c.h.b16 %v226
  %v1733 = vunpack.c.l.b16 %v227
  %v1734 = vunpack.c.h.b16 %v227
  %v1735 = vunpack.c.l.b16 %v228
  %v1736 = vunpack.c.h.b16 %v228
  %v1737 = vunpack.c.l.b16 %v229
  %v1738 = vunpack.c.h.b16 %v229
  %v1739 = vunpack.c.l.b16 %v230
  %v1740 = vunpack.c.h.b16 %v230
  %v1741 = vunpack.c.l.b16 %v231
  %v1742 = vunpack.c.h.b16 %v231
  %v1743 = vunpack.c.l.b16 %v232
  %v1744 = vunpack.c.h.b16 %v232
  %v1745 = vunpack.c.l.b16 %v233
  %v1746 = vunpack.c.h.b16 %v233
  %v1747 = vunpack.c.l.b16 %v234
  %v1748 = vunpack.c.h.b16 %v234
  %v1749 = vunpack.c.l.b16 %v235
  %v1750 = vunpack.c.h.b16 %v235
  %v1751 = vunpack.c.l.b16 %v236
  %v1752 = vunpack.c.h.b16 %v236
  %v1753 = vunpack.c.l.b16 %v237
  %v1754 = vunpack.c.h.b16 %v237
  %v1755 = vunpack.c.l.b16 %v238
  %v1756 = vunpack.c.h.b16 %v238
  %v1757 = vunpack.c.l.b16 %v239
  %v1758 = vunpack.c.h.b16 %v239
  %v1759 = vunpack.c.l.b16 %v240
  %v1760 = vunpack.c.h.b16 %v240
  %v1761 = vunpack.c.l.b16 %v241
  %v1762 = vunpack.c.h.b16 %v241
  %v1763 = vunpack.c.l.b16 %v242
  %v1764 = vunpack.c.h.b16 %v242
  %v1765 = vunpack.c.l.b16 %v243
  %v1766 = vunpack.c.h.b16 %v243
  %v1767 = vunpack.c.l.b16 %v244
  %v1768 = vunpack.c.h.b16 %v244
  %v1769 = vunpack.c.l.b16 %v245
  %v1770 = vunpack.c.h.b16 %v245
  %v1771 = vunpack.c.l.b16 %v246
  %v1772 = vunpack.c.h.b16 %v246
  %v1773 = vunpack.c.l.b16 %v247
  %v1774 = vunpack.c.h.b16 %v247
  %v1775 = vunpack.c.l.b16 %v248
  %v1776 = vunpack.c.h.b16 %v248
  %v1777 = vunpack.c.l.b16 %v249
  %v1778 = vunpack.c.h.b16 %v249
  %v1779 = vunpack.c.l.b16 %v250
  %v1780 = vunpack.c.h.b16 %v250
  %v1781 = vunpack.c.l.b16 %v251
  %v1782 = vunpack.c.h.b16 %v251
  %v1783 = vunpack.c.l.b16 %v252
  %v1784 = vunpack.c.h.b16 %v252
  %v1785 = vunpack.c.l.b16 %v253
  %v1786 = vunpack.c.h.b16 %v253
  %v1787 = vunpack.c.l.b16 %v254
  %v1788 = vunpack.c.h.b16 %v254
  %v1789 = vunpack.c.l.b16 %v255
  %v1790 = vunpack.c.h.b16 %v255
  %v1791 = vunpack.c.l.b16 %v256
  %v1792 = vunpack.c.h.b16 %v256
  %v1793 = vunpack.c.l.b16 %v257
  %v1794 = vunpack.c.h.b16 %v257
  %v1795 = vunpack.c.l.b16 %v258
  %v1796 = vunpack.c.h.b16 %v258
  %v1797 = vunpack.c.l.b16 %v259
  %v1798 = vunpack.c.h.b16 %v259
  %v1799 = vunpack.c.l.b16 %v260
  %v1800 = vunpack.c.h.b16 %v260
  %v1801 = vunpack.c.l.b16 %v261
  %v1802 = vunpack.c.h.b16 %v261
  %v1803 = vunpack.c.l.b16 %v262
  %v1804 = vunpack.c.h.b16 %v262
  %v1805 = vunpack.c.l.b16 %v263
  %v1806 = vunpack.c.h.b16 %v263
  %v1807 = vunpack.c.l.b16 %v264
  %v1808 = vunpack.c.h.b16 %v264
  %v1809 = vunpack.c.l.b16 %v265
  %v1810 = vunpack.c.h.b16 %v265
  %v1811 = vunpack.c.l.b16 %v266
  %v1812 = vunpack.c.h.b16 %v266
  %v1813 = vunpack.c.l.b16 %v267
  %v1814 = vunpack.c.h.b16 %v267
  %v1815 = vunpack.c.l.b16 %v268
  %v1816 = vunpack.c.h.b16 %v268
  %v1817 = vunpack.c.l.b16 %v269
  %v1818 = vunpack.c.h.b16 %v269
  %v1819 = vunpack.c.l.b16 %v270
  %v1820 = vunpack.c.h.b16 %v270
  %v1821 = vunpack.c.l.b16 %v271
  %v1822 = vunpack.c.h.b16 %v271
  %v1823 = vunpack.c.l.b16 %v272
  %v1824 = vunpack.c.h.b16 %v272
  %v1825 = vunpack.c.l.b16 %v273
  %v1826 = vunpack.c.h.b16 %v273
  %v1827 = vunpack.c.l.b16 %v274
  %v1828 = vunpack.c.h.b16 %v274
  %v1829 = vunpack.c.l.b16 %v275
  %v1830 = vunpack.c.h.b16 %v275
  %v1831 = vunpack.c.l.b16 %v276
  %v1832 = vunpack.c.h.b16 %v276
  %v1833 = vunpack.c.l.b16 %v277
  %v1834 = vunpack.c.h.b16 %v277
  %v1835 = vunpack.c.l.b16 %v278
  %v1836 = vunpack.c.h.b16 %v278
  %v1837 = vunpack.c.l.b16 %v279
  %v1838 = vunpack.c.h.b16 %v279
  %v1839 = vunpack.c.l.b16 %v280
  %v1840 = vunpack.c.h.b16 %v280
  %v1841 = vunpack.c.l.b16 %v281
  %v1842 = vunpack.c.h.b16 %v281
  %v1843 = vunpack.c.l.b16 %v282
  %v1844 = vunpack.c.h.b16 %v282
  %v1845 = vunpack.c.l.b16 %v283
  %v1846 = vunpack.c.h.b16 %v283
  %v1847 = vunpack.c.l.b16 %v284
  %v1848 = vunpack.c.h.b16 %v284
  %v1849 = vunpack.c.l.b16 %v285
  %v1850 = vunpack.c.h.b16 %v285
  %v1851 = vunpack.c.l.b16 %v286
  %v1852 = vunpack.c.h.b16 %v286
  %v1853 = vunpack.c.l.b16 %v287
  %v1854 = vunpack.c.h.b16 %v287
  %v1855 = vunpack.c.l.b16 %v288
  %v1856 = vunpack.c.h.b16 %v288
  %v1857 = vunpack.c.l.b16 %v289
  %v1858 = vunpack.c.h.b16 %v289
  %v1859 = vunpack.c.l.b16 %v290
  %v1860 = vunpack.c.h.b16 %v290
  %v1861 = vunpack.c.l.b16 %v291
  %v1862 = vunpack.c.h.b16 %v291
  %v1863 = vunpack.c.l.b16 %v292
  %v1864 = vunpack.c.h.b16 %v292
  %v1865 = vunpack.c.l.b16 %v293
  %v1866 = vunpack.c.h.b16 %v293
  %v1867 = vunpack.c.l.b16 %v294
  %v1868 = vunpack.c.h.b16 %v294
  %v1869 = vunpack.c.l.b16 %v295
  %v1870 = vunpack.c.h.b16 %v295
  %v1871 = vunpack.c.l.b16 %v296
  %v1872 = vunpack.c.h.b16 %v296
  %v1873 = vunpack.c.l.b16 %v297
  %v1874 = vunpack.c.h.b16 %v297
  %v1875 = vunpack.c.l.b16 %v298
  %v1876 = vunpack.c.h.b16 %v298
  %v1877 = vunpack.c.l.b16 %v299
  %v1878 = vunpack.c.h.b16 %v299
  %v1879 = vunpack.c.l.b16 %v300
  %v1880 = vunpack.c.h.b16 %v300
  %v1881 = vunpack.c.l.b16 %v301
  %v1882 = vunpack.c.h.b16 %v301
  %v1883 = vunpack.c.l.b16 %v302
  %v1884 = vunpack.c.h.b16 %v302
  %v1885 = vunpack.c.l.b16 %v303
  %v1886 = vunpack.c.h.b16 %v303
  %v1887 = vunpack.c.l.b16 %v304
  %v1888 = vunpack.c.h.b16 %v304
  %v1889 = vunpack.c.l.b16 %v305
  %v1890 = vunpack.c.h.b16 %v305
  %v1891 = vunpack.c.l.b16 %v306
  %v1892 = vunpack.c.h.b16 %v306
  %v1893 = vunpack.c.l.b16 %v307
  %v1894 = vunpack.c.h.b16 %v307
  %v1895 = vunpack.c.l.b16 %v308
  %v1896 = vunpack.c.h.b16 %v308
  %v1897 = vunpack.c.l.b16 %v309
  %v1898 = vunpack.c.h.b16 %v309
  %v1899 = vunpack.c.l.b16 %v310
  %v1900 = vunpack.c.h.b16 %v310
  %v1901 = vunpack.c.l.b16 %v311
  %v1902 = vunpack.c.h.b16 %v311
  %v1903 = vunpack.c.l.b16 %v312
  %v1904 = vunpack.c.h.b16 %v312
  %v1905 = vunpack.c.l.b16 %v313
  %v1906 = vunpack.c.h.b16 %v313
  %v1907 = vunpack.c.l.b16 %v314
  %v1908 = vunpack.c.h.b16 %v314
  %v1909 = vunpack.c.l.b16 %v315
  %v1910 = vunpack.c.h.b16 %v315
  %v1911 = vunpack.c.l.b16 %v316
  %v1912 = vunpack.c.h.b16 %v316
  %v1913 = vunpack.c.l.b16 %v317
  %v1914 = vunpack.c.h.b16 %v317
  %v1915 = vunpack.c.l.b16 %v318
  %v1916 = vunpack.c.h.b16 %v318
  %v1917 = vunpack.c.l.b16 %v319
  %v1918 = vunpack.c.h.b16 %v319
  %v1919 = vunpack.c.l.b16 %v320
  %v1920 = vunpack.c.h.b16 %v320
  %v1921 = vunpack.c.l.b16 %v321
  %v1922 = vunpack.c.h.b16 %v321
  %v1923 = vunpack.c.l.b16 %v322
  %v1924 = vunpack.c.h.b16 %v322
  %v1925 = vunpack.c.l.b16 %v323
  %v1926 = vunpack.c.h.b16 %v323
  %v1927 = vunpack.c.l.b16 %v324
  %v1928 = vunpack.c.h.b16 %v324
  %v1929 = vunpack.c.l.b16 %v325
  %v1930 = vunpack.c.h.b16 %v325
  %v1931 = vunpack.c.l.b16 %v326
  %v1932 = vunpack.c.h.b16 %v326
  %v1933 = vunpack.c.l.b16 %v327
  %v1934 = vunpack.c.h.b16 %v327
  %v1935 = vunpack.c.l.b16 %v328
  %v1936 = vunpack.c.h.b16 %v328
  %v1937 = vunpack.c.l.b16 %v329
  %v1938 = vunpack.c.h.b16 %v329
  %v1939 = vunpack.c.l.b16 %v330
  %v1940 = vunpack.c.h.b16 %v330
  %v1941 = vunpack.c.l.b16 %v331
  %v1942 = vunpack.c.h.b16 %v331
  %v1943 = vunpack.c.l.b16 %v332
  %v1944 = vunpack.c.h.b16 %v332
  %v1945 = vunpack.c.l.b16 %v333
  %v1946 = vunpack.c.h.b16 %v333
  %v1947 = vunpack.c.l.b16 %v334
  %v1948 = vunpack.c.h.b16 %v334
  %v1949 = vunpack.c.l.b16 %v335
  %v1950 = vunpack.c.h.b16 %v335
  %v1951 = vunpack.c.l.b16 %v336
  %v1952 = vunpack.c.h.b16 %v336
  %v1953 = vunpack.c.l.b16 %v337
  %v1954 = vunpack.c.h.b16 %v337
  %v1955 = vunpack.c.l.b16 %v338
  %v1956 = vunpack.c.h.b16 %v338
  %v1957 = vunpack.c.l.b16 %v339
  %v1958 = vunpack.c.h.b16 %v339
  %v1959 = vunpack.c.l.b16 %v340
  %v1960 = vunpack.c.h.b16 %v340
  %v1961 = vunpack.c.l.b16 %v341
  %v1962 = vunpack.c.h.b16 %v341
  %v1963 = vunpack.c.l.b16 %v342
  %v1964 = vunpack.c.h.b16 %v342
  %v1965 = vunpack.c.l.b16 %v343
  %v1966 = vunpack.c.h.b16 %v343
  %v1967 = vunpack.c.l.b16 %v344
  %v1968 = vunpack.c.h.b16 %v344
  %v1969 = vunpack.c.l.b16 %v345
  %v1970 = vunpack.c.h.b16 %v345
  %v1971 = vunpack.c.l.b16 %v346
  %v1972 = vunpack.c.h.b16 %v346
  %v1973 = vunpack.c.l.b16 %v347
  %v1974 = vunpack.c.h.b16 %v347
  %v1975 = vunpack.c.l.b16 %v348
  %v1976 = vunpack.c.h.b16 %v348
  %v1977 = vunpack.c.l.b16 %v349
  %v1978 = vunpack.c.h.b16 %v349
  %v1979 = vunpack.c.l.b16 %v350
  %v1980 = vunpack.c.h.b16 %v350
  %v1981 = vunpack.c.l.b16 %v351
  %v1982 = vunpack.c.h.b16 %v351
  %v1983 = vunpack.c.l.b16 %v352
  %v1984 = vunpack.c.h.b16 %v352
  %v1985 = vunpack.c.l.b16 %v353
  %v1986 = vunpack.c.h.b16 %v353
  %v1987 = vunpack.c.l.b16 %v354
  %v1988 = vunpack.c.h.b16 %v354
  %v1989 = vunpack.c.l.b16 %v355
  %v1990 = vunpack.c.h.b16 %v355
  %v1991 = vunpack.c.l.b16 %v356
  %v1992 = vunpack.c.h.b16 %v356
  %v1993 = vunpack.c.l.b16 %v357
  %v1994 = vunpack.c.h.b16 %v357
  %v1995 = vunpack.c.l.b16 %v358
  %v1996 = vunpack.c.h.b16 %v358
  %v1997 = vunpack.c.l.b16 %v359
  %v1998 = vunpack.c.h.b16 %v359
  %v1999 = vunpack.c.l.b16 %v360
  %v2000 = vunpack.c.h.b16 %v360
  %v2001 = vunpack.c.l.b16 %v361
  %v2002 = vunpack.c.h.b16 %v361
  %v2003 = vunpack.c.l.b16 %v362
  %v2004 = vunpack.c.h.b16 %v362
  %v2005 = vunpack.c.l.b16 %v363
  %v2006 = vunpack.c.h.b16 %v363
  %v2007 = vunpack.c.l.b16 %v364
  %v2008 = vunpack.c.h.b16 %v364
  %v2009 = vunpack.c.l.b16 %v365
  %v2010 = vunpack.c.h.b16 %v365
  %v2011 = vunpack.c.l.b16 %v366
  %v2012 = vunpack.c.h.b16 %v366
  %v2013 = vunpack.c.l.b16 %v367
  %v2014 = vunpack.c.h.b16 %v367
  %v2015 = vunpack.c.l.b16 %v368
  %v2016 = vunpack.c.h.b16 %v368
  %v2017 = vunpack.c.l.b16 %v369
  %v2018 = vunpack.c.h.b16 %v369
  %v2019 = vunpack.c.l.b16 %v370
  %v2020 = vunpack.c.h.b16 %v370
  %v2021 = vunpack.c.l.b16 %v371
  %v2022 = vunpack.c.h.b16 %v371
  %v2023 = vunpack.c.l.b16 %v372
  %v2024 = vunpack.c.h.b16 %v372
  %v2025 = vunpack.c.l.b16 %v373
  %v2026 = vunpack.c.h.b16 %v373
  %v2027 = vunpack.c.l.b16 %v374
  %v2028 = vunpack.c.h.b16 %v374
  %v2029 = vunpack.c.l.b16 %v375
  %v2030 = vunpack.c.h.b16 %v375
  %v2031 = vunpack.c.l.b16 %v376
  %v2032 = vunpack.c.h.b16 %v376
  %v2033 = vunpack.c.l.b16 %v377
  %v2034 = vunpack.c.h.b16 %v377
  %v2035 = vunpack.c.l.b16 %v378
  %v2036 = vunpack.c.h.b16 %v378
  %v2037 = vunpack.c.l.b16 %v379
  %v2038 = vunpack.c.h.b16 %v379
  %v2039 = vunpack.c.l.b16 %v380
  %v2040 = vunpack.c.h.b16 %v380
  %v2041 = vunpack.c.l.b16 %v381
  %v2042 = vunpack.c.h.b16 %v381
  %v2043 = vunpack.c.l.b16 %v382
  %v2044 = vunpack.c.h.b16 %v382
  %v2045 = vunpack.c.l.b16 %v383
  %v2046 = vunpack.c.h.b16 %v383
  %v2047 = vunpack.c.l.b16 %v384
  %v2048 = vunpack.c.h.b16 %v384
  %v2049 = vunpack.c.l.b16 %v385
  %v2050 = vunpack.c.h.b16 %v385
  %v2051 = vunpack.c.l.b16 %v386
  %v2052 = vunpack.c.h.b16 %v386
  %v2053 = vunpack.c.l.b16 %v387
  %v2054 = vunpack.c.h.b16 %v387
  %v2055 = vunpack.c.l.b16 %v388
  %v2056 = vunpack.c.h.b16 %v388
  %v2057 = vunpack.c.l.b16 %v389
  %v2058 = vunpack.c.h.b16 %v389
  %v2059 = vunpack.c.l.b16 %v390
  %v2060 = vunpack.c.h.b16 %v390
  %v2061 = vunpack.c.l.b16 %v391
  %v2062 = vunpack.c.h.b16 %v391
  %v2063 = vunpack.c.l.b16 %v392
  %v2064 = vunpack.c.h.b16 %v392
  %v2065 = vunpack.c.l.b16 %v393
  %v2066 = vunpack.c.h.b16 %v393
  %v2067 = vunpack.c.l.b16 %v394
  %v2068 = vunpack.c.h.b16 %v394
  %v2069 = vunpack.c.l.b16 %v395
  %v2070 = vunpack.c.h.b16 %v395
  %v2071 = vunpack.c.l.b16 %v396
  %v2072 = vunpack.c.h.b16 %v396
  %v2073 = vunpack.c.l.b16 %v397
  %v2074 = vunpack.c.h.b16 %v397
  %v2075 = vunpack.c.l.b16 %v398
  %v2076 = vunpack.c.h.b16 %v398
  %v2077 = vunpack.c.l.b16 %v399
  %v2078 = vunpack.c.h.b16 %v399
  %v2079 = vunpack.c.l.b16 %v400
  %v2080 = vunpack.c.h.b16 %v400
  %v2081 = vunpack.c.l.b16 %v401
  %v2082 = vunpack.c.h.b16 %v401
  %v2083 = vunpack.c.l.b16 %v402
  %v2084 = vunpack.c.h.b16 %v402
  %v2085 = vunpack.c.l.b16 %v403
  %v2086 = vunpack.c.h.b16 %v403
  %v2087 = vunpack.c.l.b16 %v404
  %v2088 = vunpack.c.h.b16 %v404
  %v2089 = vunpack.c.l.b16 %v405
  %v2090 = vunpack.c.h.b16 %v405
  %v2091 = vunpack.c.l.b16 %v406
  %v2092 = vunpack.c.h.b16 %v406
  %v2093 = vunpack.c.l.b16 %v407
  %v2094 = vunpack.c.h.b16 %v407
  %v2095 = vunpack.c.l.b16 %v408
  %v2096 = vunpack.c.h.b16 %v408
  %v2097 = vunpack.c.l.b16 %v409
  %v2098 = vunpack.c.h.b16 %v409
  %v2099 = vunpack.c.l.b16 %v410
  %v2100 = vunpack.c.h.b16 %v410
  %v2101 = vunpack.c.l.b16 %v411
  %v2102 = vunpack.c.h.b16 %v411
  %v2103 = vunpack.c.l.b16 %v412
  %v2104 = vunpack.c.h.b16 %v412
  %v2105 = vunpack.c.l.b16 %v413
  %v2106 = vunpack.c.h.b16 %v413
  %v2107 = vunpack.c.l.b16 %v414
  %v2108 = vunpack.c.h.b16 %v414
  %v2109 = vunpack.c.l.b16 %v415
  %v2110 = vunpack.c.h.b16 %v415
  %v2111 = vunpack.c.l.b16 %v416
  %v2112 = vunpack.c.h.b16 %v416
  %v2113 = vunpack.c.l.b16 %v417
  %v2114 = vunpack.c.h.b16 %v417
  %v2115 = vunpack.c.l.b16 %v418
  %v2116 = vunpack.c.h.b16 %v418
  %v2117 = vunpack.c.l.b16 %v419
  %v2118 = vunpack.c.h.b16 %v419
  %v2119 = vunpack.c.l.b16 %v420
  %v2120 = vunpack.c.h.b16 %v420
  %v2121 = vunpack.c.l.b16 %v421
  %v2122 = vunpack.c.h.b16 %v421
  %v2123 = vunpack.c.l.b16 %v422
  %v2124 = vunpack.c.h.b16 %v422
  %v2125 = vunpack.c.l.b16 %v423
  %v2126 = vunpack.c.h.b16 %v423
  %v2127 = vunpack.c.l.b16 %v424
  %v2128 = vunpack.c.h.b16 %v424
  %v2129 = vunpack.c.l.b16 %v425
  %v2130 = vunpack.c.h.b16 %v425
  %v2131 = vunpack.c.l.b16 %v426
  %v2132 = vunpack.c.h.b16 %v426
  %v2133 = vunpack.c.l.b16 %v427
  %v2134 = vunpack.c.h.b16 %v427
  %v2135 = vunpack.c.l.b16 %v428
  %v2136 = vunpack.c.h.b16 %v428
  %v2137 = vunpack.c.l.b16 %v429
  %v2138 = vunpack.c.h.b16 %v429
  %v2139 = vunpack.c.l.b16 %v430
  %v2140 = vunpack.c.h.b16 %v430
  %v2141 = vunpack.c.l.b16 %v431
  %v2142 = vunpack.c.h.b16 %v431
  %v2143 = vunpack.c.l.b16 %v432
  %v2144 = vunpack.c.h.b16 %v432
  %v2145 = vunpack.c.l.b16 %v433
  %v2146 = vunpack.c.h.b16 %v433
  %v2147 = vunpack.c.l.b16 %v434
  %v2148 = vunpack.c.h.b16 %v434
  %v2149 = vunpack.c.l.b16 %v435
  %v2150 = vunpack.c.h.b16 %v435
  %v2151 = vunpack.c.l.b16 %v436
  %v2152 = vunpack.c.h.b16 %v436
  %v2153 = vunpack.c.l.b16 %v437
  %v2154 = vunpack.c.h.b16 %v437
  %v2155 = vunpack.c.l.b16 %v438
  %v2156 = vunpack.c.h.b16 %v438
  %v2157 = vunpack.c.l.b16 %v439
  %v2158 = vunpack.c.h.b16 %v439
  %v2159 = vunpack.c.l.b16 %v440
  %v2160 = vunpack.c.h.b16 %v440
  %v2161 = vunpack.c.l.b16 %v441
  %v2162 = vunpack.c.h.b16 %v441
  %v2163 = vunpack.c.l.b16 %v442
  %v2164 = vunpack.c.h.b16 %v442
  %v2165 = vunpack.c.l.b16 %v443
  %v2166 = vunpack.c.h.b16 %v443
  %v2167 = vunpack.c.l.b16 %v444
  %v2168 = vunpack.c.h.b16 %v444
  %v2169 = vunpack.c.l.b16 %v445
  %v2170 = vunpack.c.h.b16 %v445
  %v2171 = vunpack.c.l.b16 %v446
  %v2172 = vunpack.c.h.b16 %v446
  %v2173 = vunpack.c.l.b16 %v447
  %v2174 = vunpack.c.h.b16 %v447
  %v2175 = vunpack.c.l.b16 %v448
  %v2176 = vunpack.c.h.b16 %v448
  %v2177 = vunpack.c.l.b16 %v449
  %v2178 = vunpack.c.h.b16 %v449
  %v2179 = vunpack.c.l.b16 %v450
  %v2180 = vunpack.c.h.b16 %v450
  %v2181 = vunpack.c.l.b16 %v451
  %v2182 = vunpack.c.h.b16 %v451
  %v2183 = vunpack.c.l.b16 %v452
  %v2184 = vunpack.c.h.b16 %v452
  %v2185 = vunpack.c.l.b16 %v453
  %v2186 = vunpack.c.h.b16 %v453
  %v2187 = vunpack.c.l.b16 %v454
  %v2188 = vunpack.c.h.b16 %v454
  %v2189 = vunpack.c.l.b16 %v455
  %v2190 = vunpack.c.h.b16 %v455
  %v2191 = vunpack.c.l.b16 %v456
  %v2192 = vunpack.c.h.b16 %v456
  %v2193 = vunpack.c.l.b16 %v457
  %v2194 = vunpack.c.h.b16 %v457
  %v2195 = vunpack.c.l.b16 %v458
  %v2196 = vunpack.c.h.b16 %v458
  %v2197 = vunpack.c.l.b16 %v459
  %v2198 = vunpack.c.h.b16 %v459
  %v2199 = vunpack.c.l.b16 %v460
  %v2200 = vunpack.c.h.b16 %v460
  %v2201 = vunpack.c.l.b16 %v461
  %v2202 = vunpack.c.h.b16 %v461
  %v2203 = vunpack.c.l.b16 %v462
  %v2204 = vunpack.c.h.b16 %v462
  %v2205 = vunpack.c.l.b16 %v463
  %v2206 = vunpack.c.h.b16 %v463
  %v2207 = vunpack.c.l.b16 %v464
  %v2208 = vunpack.c.h.b16 %v464
  %v2209 = vunpack.c.l.b16 %v465
  %v2210 = vunpack.c.h.b16 %v465
  %v2211 = vunpack.c.l.b16 %v466
  %v2212 = vunpack.c.h.b16 %v466
  %v2213 = vunpack.c.l.b16 %v467
  %v2214 = vunpack.c.h.b16 %v467
  %v2215 = vunpack.c.l.b16 %v468
  %v2216 = vunpack.c.h.b16 %v468
  %v2217 = vunpack.c.l.b16 %v469
  %v2218 = vunpack.c.h.b16 %v469
  %v2219 = vunpack.c.l.b16 %v470
  %v2220 = vunpack.c.h.b16 %v470
  %v2221 = vunpack.c.l.b16 %v471
  %v2222 = vunpack.c.h.b16 %v471
  %v2223 = vunpack.c.l.b16 %v472
  %v2224 = vunpack.c.h.b16 %v472
  %v2225 = vunpack.c.l.b16 %v473
  %v2226 = vunpack.c.h.b16 %v473
  %v2227 = vunpack.c.l.b16 %v474
  %v2228 = vunpack.c.h.b16 %v474
  %v2229 = vunpack.c.l.b16 %v475
  %v2230 = vunpack.c.h.b16 %v475
  %v2231 = vunpack.c.l.b16 %v476
  %v2232 = vunpack.c.h.b16 %v476
  %v2233 = vunpack.c.l.b16 %v477
  %v2234 = vunpack.c.h.b16 %v477
  %v2235 = vunpack.c.l.b16 %v478
  %v2236 = vunpack.c.h.b16 %v478
  %v2237 = vunpack.c.l.b16 %v479
  %v2238 = vunpack.c.h.b16 %v479
  %v2239 = vunpack.c.l.b16 %v480
  %v2240 = vunpack.c.h.b16 %v480
  %v2241 = vunpack.c.l.b16 %v481
  %v2242 = vunpack.c.h.b16 %v481
  %v2243 = vunpack.c.l.b16 %v482
  %v2244 = vunpack.c.h.b16 %v482
  %v2245 = vunpack.c.l.b16 %v483
  %v2246 = vunpack.c.h.b16 %v483
  %v2247 = vunpack.c.l.b16 %v484
  %v2248 = vunpack.c.h.b16 %v484
  %v2249 = vunpack.c.l.b16 %v485
  %v2250 = vunpack.c.h.b16 %v485
  %v2251 = vunpack.c.l.b16 %v486
  %v2252 = vunpack.c.h.b16 %v486
  %v2253 = vunpack.c.l.b16 %v487
  %v2254 = vunpack.c.h.b16 %v487
  %v2255 = vunpack.c.l.b16 %v488
  %v2256 = vunpack.c.h.b16 %v488
  %v2257 = vunpack.c.l.b16 %v489
  %v2258 = vunpack.c.h.b16 %v489
  %v2259 = vunpack.c.l.b16 %v490
  %v2260 = vunpack.c.h.b16 %v490
  %v2261 = vunpack.c.l.b16 %v491
  %v2262 = vunpack.c.h.b16 %v491
  %v2263 = vunpack.c.l.b16 %v492
  %v2264 = vunpack.c.h.b16 %v492
  %v2265 = vunpack.c.l.b16 %v493
  %v2266 = vunpack.c.h.b16 %v493
  %v2267 = vunpack.c.l.b16 %v494
  %v2268 = vunpack.c.h.b16 %v494
  %v2269 = vunpack.c.l.b16 %v495
  %v2270 = vunpack.c.h.b16 %v495
  %v2271 = vunpack.c.l.b16 %v496
  %v2272 = vunpack.c.h.b16 %v496
  %v2273 = vunpack.c.l.b16 %v497
  %v2274 = vunpack.c.h.b16 %v497
  %v2275 = vunpack.c.l.b16 %v498
  %v2276 = vunpack.c.h.b16 %v498
  %v2277 = vunpack.c.l.b16 %v499
  %v2278 = vunpack.c.h.b16 %v499
  %v2279 = vunpack.c.l.b16 %v500
  %v2280 = vunpack.c.h.b16 %v500
  %v2281 = vunpack.c.l.b16 %v501
  %v2282 = vunpack.c.h.b16 %v501
  %v2283 = vunpack.c.l.b16 %v502
  %v2284 = vunpack.c.h.b16 %v502
  %v2285 = vunpack.c.l.b16 %v503
  %v2286 = vunpack.c.h.b16 %v503
  %v2287 = vunpack.c.l.b16 %v504
  %v2288 = vunpack.c.h.b16 %v504
  %v2289 = vunpack.c.l.b16 %v505
  %v2290 = vunpack.c.h.b16 %v505
  %v2291 = vunpack.c.l.b16 %v506
  %v2292 = vunpack.c.h.b16 %v506
  %v2293 = vunpack.c.l.b16 %v507
  %v2294 = vunpack.c.h.b16 %v507
  %v2295 = vunpack.c.l.b16 %v508
  %v2296 = vunpack.c.h.b16 %v508
  %v2297 = vunpack.c.l.b16 %v509
  %v2298 = vunpack.c.h.b16 %v509
  %v2299 = vunpack.c.l.b16 %v510
  %v2300 = vunpack.c.h.b16 %v510
  %v2301 = vunpack.c.l.b16 %v511
  %v2302 = vunpack.c.h.b16 %v511
  %v2303 = vunpack.c.l.b16 %v512
  %v2304 = vunpack.c.h.b16 %v512
  %v2305 = vunpack.c.l.b16 %v513
  %v2306 = vunpack.c.h.b16 %v513
  %v2307 = vunpack.c.l.b16 %v514
  %v2308 = vunpack.c.h.b16 %v514
  %v2309 = vunpack.c.l.b16 %v515
  %v2310 = vunpack.c.h.b16 %v515
  %v2311 = vunpack.c.l.b16 %v516
  %v2312 = vunpack.c.h.b16 %v516
  %v2313 = vunpack.c.l.b16 %v517
  %v2314 = vunpack.c.h.b16 %v517
  %v2315 = vunpack.c.l.b16 %v518
  %v2316 = vunpack.c.h.b16 %v518
  %v2317 = vunpack.c.l.b16 %v519
  %v2318 = vunpack.c.h.b16 %v519
  %v2319 = vunpack.c.l.b16 %v520
  %v2320 = vunpack.c.h.b16 %v520
  %v2321 = vunpack.c.l.b16 %v521
  %v2322 = vunpack.c.h.b16 %v521
  %v2323 = vunpack.c.l.b16 %v522
  %v2324 = vunpack.c.h.b16 %v522
  %v2325 = vunpack.c.l.b16 %v523
  %v2326 = vunpack.c.h.b16 %v523
  %v2327 = vunpack.c.l.b16 %v524
  %v2328 = vunpack.c.h.b16 %v524
  %v2329 = vunpack.c.l.b16 %v525
  %v2330 = vunpack.c.h.b16 %v525
  %v2331 = vunpack.c.l.b16 %v526
  %v2332 = vunpack.c.h.b16 %v526
  %v2333 = vunpack.c.l.b16 %v527
  %v2334 = vunpack.c.h.b16 %v527
  %v2335 = vunpack.c.l.b16 %v528
  %v2336 = vunpack.c.h.b16 %v528
  %v2337 = vunpack.c.l.b16 %v529
  %v2338 = vunpack.c.h.b16 %v529
  %v2339 = vunpack.c.l.b16 %v530
  %v2340 = vunpack.c.h.b16 %v530
  %v2341 = vunpack.c.l.b16 %v531
  %v2342 = vunpack.c.h.b16 %v531
  %v2343 = vunpack.c.l.b16 %v532
  %v2344 = vunpack.c.h.b16 %v532
  %v2345 = vunpack.c.l.b16 %v533
  %v2346 = vunpack.c.h.b16 %v533
  %v2347 = vunpack.c.l.b16 %v534
  %v2348 = vunpack.c.h.b16 %v534
  %v2349 = vunpack.c.l.b16 %v535
  %v2350 = vunpack.c.h.b16 %v535
  %v2351 = vunpack.c.l.b16 %v536
  %v2352 = vunpack.c.h.b16 %v536
  %v2353 = vunpack.c.l.b16 %v537
  %v2354 = vunpack.c.h.b16 %v537
  %v2355 = vunpack.c.l.b16 %v538
  %v2356 = vunpack.c.h.b16 %v538
  %v2357 = vunpack.c.l.b16 %v539
  %v2358 = vunpack.c.h.b16 %v539
  %v2359 = vunpack.c.l.b16 %v540
  %v2360 = vunpack.c.h.b16 %v540
  %v2361 = vunpack.c.l.b16 %v541
  %v2362 = vunpack.c.h.b16 %v541
  %v2363 = vunpack.c.l.b16 %v542
  %v2364 = vunpack.c.h.b16 %v542
  %v2365 = vunpack.c.l.b16 %v543
  %v2366 = vunpack.c.h.b16 %v543
  %v2367 = vunpack.c.l.b16 %v544
  %v2368 = vunpack.c.h.b16 %v544
  %v2369 = vunpack.c.l.b16 %v545
  %v2370 = vunpack.c.h.b16 %v545
  %v2371 = vunpack.c.l.b16 %v546
  %v2372 = vunpack.c.h.b16 %v546
  %v2373 = vunpack.c.l.b16 %v547
  %v2374 = vunpack.c.h.b16 %v547
  %v2375 = vunpack.c.l.b16 %v548
  %v2376 = vunpack.c.h.b16 %v548
  %v2377 = vunpack.c.l.b16 %v549
  %v2378 = vunpack.c.h.b16 %v549
  %v2379 = vunpack.c.l.b16 %v550
  %v2380 = vunpack.c.h.b16 %v550
  %v2381 = vunpack.c.l.b16 %v551
  %v2382 = vunpack.c.h.b16 %v551
  %v2383 = vunpack.c.l.b16 %v552
  %v2384 = vunpack.c.h.b16 %v552
  %v2385 = vunpack.c.l.b16 %v553
  %v2386 = vunpack.c.h.b16 %v553
  %v2387 = vunpack.c.l.b16 %v554
  %v2388 = vunpack.c.h.b16 %v554
  %v2389 = vunpack.c.l.b16 %v555
  %v2390 = vunpack.c.h.b16 %v555
  %v2391 = vunpack.c.l.b16 %v556
  %v2392 = vunpack.c.h.b16 %v556
  %v2393 = vunpack.c.l.b16 %v557
  %v2394 = vunpack.c.h.b16 %v557
  %v2395 = vunpack.c.l.b16 %v558
  %v2396 = vunpack.c.h.b16 %v558
  %v2397 = vunpack.c.l.b16 %v559
  %v2398 = vunpack.c.h.b16 %v559
  %v2399 = vunpack.c.l.b16 %v560
  %v2400 = vunpack.c.h.b16 %v560
  %v2401 = vunpack.c.l.b16 %v561
  %v2402 = vunpack.c.h.b16 %v561
  %v2403 = vunpack.c.l.b16 %v562
  %v2404 = vunpack.c.h.b16 %v562
  %v2405 = vunpack.c.l.b16 %v563
  %v2406 = vunpack.c.h.b16 %v563
  %v2407 = vunpack.c.l.b16 %v564
  %v2408 = vunpack.c.h.b16 %v564
  %v2409 = vunpack.c.l.b16 %v565
  %v2410 = vunpack.c.h.b16 %v565
  %v2411 = vunpack.c.l.b16 %v566
  %v2412 = vunpack.c.h.b16 %v566
  %v2413 = vunpack.c.l.b16 %v567
  %v2414 = vunpack.c.h.b16 %v567
  %v2415 = vunpack.c.l.b16 %v568
  %v2416 = vunpack.c.h.b16 %v568
  %v2417 = vunpack.c.l.b16 %v569
  %v2418 = vunpack.c.h.b16 %v569
  %v2419 = vunpack.c.l.b16 %v570
  %v2420 = vunpack.c.h.b16 %v570
  %v2421 = vunpack.c.l.b16 %v571
  %v2422 = vunpack.c.h.b16 %v571
  %v2423 = vunpack.c.l.b16 %v572
  %v2424 = vunpack.c.h.b16 %v572
  %v2425 = vunpack.c.l.b16 %v573
  %v2426 = vunpack.c.h.b16 %v573
  %v2427 = vunpack.c.l.b16 %v574
  %v2428 = vunpack.c.h.b16 %v574
  %v2429 = vunpack.c.l.b16 %v575
  %v2430 = vunpack.c.h.b16 %v575
  %v2431 = vunpack.c.l.b16 %v576
  %v2432 = vunpack.c.h.b16 %v576
  %v2433 = vunpack.c.l.b16 %v577
  %v2434 = vunpack.c.h.b16 %v577
  %v2435 = vunpack.c.l.b16 %v578
  %v2436 = vunpack.c.h.b16 %v578
  %v2437 = vunpack.c.l.b16 %v579
  %v2438 = vunpack.c.h.b16 %v579
  %v2439 = vunpack.c.l.b16 %v580
  %v2440 = vunpack.c.h.b16 %v580
  %v2441 = vunpack.c.l.b16 %v581
  %v2442 = vunpack.c.h.b16 %v581
  %v2443 = vunpack.c.l.b16 %v582
  %v2444 = vunpack.c.h.b16 %v582
  %v2445 = vunpack.c.l.b16 %v583
  %v2446 = vunpack.c.h.b16 %v583
  %v2447 = vunpack.c.l.b16 %v584
  %v2448 = vunpack.c.h.b16 %v584
  %v2449 = vunpack.c.l.b16 %v585
  %v2450 = vunpack.c.h.b16 %v585
  %v2451 = vunpack.c.l.b16 %v586
  %v2452 = vunpack.c.h.b16 %v586
  %v2453 = vunpack.c.l.b16 %v587
  %v2454 = vunpack.c.h.b16 %v587
  %v2455 = vunpack.c.l.b16 %v588
  %v2456 = vunpack.c.h.b16 %v588
  %v2457 = vunpack.c.l.b16 %v589
  %v2458 = vunpack.c.h.b16 %v589
  %v2459 = vunpack.c.l.b16 %v590
  %v2460 = vunpack.c.h.b16 %v590
  %v2461 = vunpack.c.l.b16 %v591
  %v2462 = vunpack.c.h.b16 %v591
  %v2463 = vunpack.c.l.b16 %v592
  %v2464 = vunpack.c.h.b16 %v592
  %v2465 = vunpack.c.l.b16 %v593
  %v2466 = vunpack.c.h.b16 %v593
  %v2467 = vunpack.c.l.b16 %v594
  %v2468 = vunpack.c.h.b16 %v594
  %v2469 = vunpack.c.l.b16 %v595
  %v2470 = vunpack.c.h.b16 %v595
  %v2471 = vunpack.c.l.b16 %v596
  %v2472 = vunpack.c.h.b16 %v596
  %v2473 = vunpack.c.l.b16 %v597
  %v2474 = vunpack.c.h.b16 %v597
  %v2475 = vunpack.c.l.b16 %v598
  %v2476 = vunpack.c.h.b16 %v598
  %v2477 = vunpack.c.l.b16 %v599
  %v2478 = vunpack.c.h.b16 %v599
  %v2479 = vunpack.c.l.b16 %v600
  %v2480 = vunpack.c.h.b16 %v600
  %v2481 = vunpack.c.l.b16 %v601
  %v2482 = vunpack.c.h.b16 %v601
  %v2483 = vunpack.c.l.b16 %v602
  %v2484 = vunpack.c.h.b16 %v602
  %v2485 = vunpack.c.l.b16 %v603
  %v2486 = vunpack.c.h.b16 %v603
  %v2487 = vunpack.c.l.b16 %v604
  %v2488 = vunpack.c.h.b16 %v604
  %v2489 = vunpack.c.l.b16 %v605
  %v2490 = vunpack.c.h.b16 %v605
  %v2491 = vunpack.c.l.b16 %v606
  %v2492 = vunpack.c.h.b16 %v606
  %v2493 = vunpack.c.l.b16 %v607
  %v2494 = vunpack.c.h.b16 %v607
  %v2495 = vunpack.c.l.b16 %v608
  %v2496 = vunpack.c.h.b16 %v608
  %v2497 = vunpack.c.l.b16 %v609
  %v2498 = vunpack.c.h.b16 %v609
  %v2499 = vunpack.c.l.b16 %v610
  %v2500 = vunpack.c.h.b16 %v610
  %v2501 = vunpack.c.l.b16 %v611
  %v2502 = vunpack.c.h.b16 %v611
  %v2503 = vunpack.c.l.b16 %v612
  %v2504 = vunpack.c.h.b16 %v612
  %v2505 = vunpack.c.l.b16 %v613
  %v2506 = vunpack.c.h.b16 %v613
  %v2507 = vunpack.c.l.b16 %v614
  %v2508 = vunpack.c.h.b16 %v614
  %v2509 = vunpack.c.l.b16 %v615
  %v2510 = vunpack.c.h.b16 %v615
  %v2511 = vunpack.c.l.b16 %v616
  %v2512 = vunpack.c.h.b16 %v616
  %v2513 = vunpack.c.l.b16 %v617
  %v2514 = vunpack.c.h.b16 %v617
  %v2515 = vunpack.c.l.b16 %v618
  %v2516 = vunpack.c.h.b16 %v618
  %v2517 = vunpack.c.l.b16 %v619
  %v2518 = vunpack.c.h.b16 %v619
  %v2519 = vunpack.c.l.b16 %v620
  %v2520 = vunpack.c.h.b16 %v620
  %v2521 = vunpack.c.l.b16 %v621
  %v2522 = vunpack.c.h.b16 %v621
  %v2523 = vunpack.c.l.b16 %v622
  %v2524 = vunpack.c.h.b16 %v622
  %v2525 = vunpack.c.l.b16 %v623
  %v2526 = vunpack.c.h.b16 %v623
  %v2527 = vunpack.c.l.b16 %v624
  %v2528 = vunpack.c.h.b16 %v624
  %v2529 = vunpack.c.l.b16 %v625
  %v2530 = vunpack.c.h.b16 %v625
  %v2531 = vunpack.c.l.b16 %v626
  %v2532 = vunpack.c.h.b16 %v626
  %v2533 = vunpack.c.l.b16 %v627
  %v2534 = vunpack.c.h.b16 %v627
  %v2535 = vunpack.c.l.b16 %v628
  %v2536 = vunpack.c.h.b16 %v628
  %v2537 = vpack.c.b16 %v1389, %v1385
  %v2538 = vpack.c.b16 %v1390, %v1386
  %v2539 = vpack.c.b16 %v1391, %v1387
  %v2540 = vpack.c.b16 %v1392, %v1388
  %v2541 = vpack.c.b16 %v1397, %v1393
  %v2542 = vpack.c.b16 %v1398, %v1394
  %v2543 = vpack.c.b16 %v1399, %v1395
  %v2544 = vpack.c.b16 %v1400, %v1396
  %v2545 = vpack.c.b16 %v1405, %v1401
  %v2546 = vpack.c.b16 %v1406, %v1402
  %v2547 = vpack.c.b16 %v1407, %v1403
  %v2548 = vpack.c.b16 %v1408, %v1404
  %v2549 = vpack.c.b16 %v1413, %v1409
  %v2550 = vpack.c.b16 %v1414, %v1410
  %v2551 = vpack.c.b16 %v1415, %v1411
  %v2552 = vpack.c.b16 %v1416, %v1412
  %v2553 = vpack.c.b16 %v1421, %v1417
  %v2554 = vpack.c.b16 %v1422, %v1418
  %v2555 = vpack.c.b16 %v1423, %v1419
  %v2556 = vpack.c.b16 %v1424, %v1420
  %v2557 = vpack.c.b16 %v1429, %v1425
  %v2558 = vpack.c.b16 %v1430, %v1426
  %v2559 = vpack.c.b16 %v1431, %v1427
  %v2560 = vpack.c.b16 %v1432, %v1428
  %v2561 = vpack.c.b16 %v1437, %v1433
  %v2562 = vpack.c.b16 %v1438, %v1434
  %v2563 = vpack.c.b16 %v1439, %v1435
  %v2564 = vpack.c.b16 %v1440, %v1436
  %v2565 = vpack.c.b16 %v1445, %v1441
  %v2566 = vpack.c.b16 %v1446, %v1442
  %v2567 = vpack.c.b16 %v1447, %v1443
  %v2568 = vpack.c.b16 %v1448, %v1444
  %v2569 = vpack.c.b16 %v1453, %v1449
  %v2570 = vpack.c.b16 %v1454, %v1450
  %v2571 = vpack.c.b16 %v1455, %v1451
  %v2572 = vpack.c.b16 %v1456, %v1452
  %v2573 = vpack.c.b16 %v1461, %v1457
  %v2574 = vpack.c.b16 %v1462, %v1458
  %v2575 = vpack.c.b16 %v1463, %v1459
  %v2576 = vpack.c.b16 %v1464, %v1460
  %v2577 = vpack.c.b16 %v1469, %v1465
  %v2578 = vpack.c.b16 %v1470, %v1466
  %v2579 = vpack.c.b16 %v1471, %v1467
  %v2580 = vpack.c.b16 %v1472, %v1468
  %v2581 = vpack.c.b16 %v1477, %v1473
  %v2582 = vpack.c.b16 %v1478, %v1474
  %v2583 = vpack.c.b16 %v1479, %v1475
  %v2584 = vpack.c.b16 %v1480, %v1476
  %v2585 = vpack.c.b16 %v1485, %v1481
  %v2586 = vpack.c.b16 %v1486, %v1482
  %v2587 = vpack.c.b16 %v1487, %v1483
  %v2588 = vpack.c.b16 %v1488, %v1484
  %v2589 = vpack.c.b16 %v1493, %v1489
  %v2590 = vpack.c.b16 %v1494, %v1490
  %v2591 = vpack.c.b16 %v1495, %v1491
  %v2592 = vpack.c.b16 %v1496, %v1492
  %v2593 = vpack.c.b16 %v1501, %v1497
  %v2594 = vpack.c.b16 %v1502, %v1498
  %v2595 = vpack.c.b16 %v1503, %v1499
  %v2596 = vpack.c.b16 %v1504, %v1500
  %v2597 = vpack.c.b16 %v1509, %v1505
  %v2598 = vpack.c.b16 %v1510, %v1506
  %v2599 = vpack.c.b16 %v1511, %v1507
  %v2600 = vpack.c.b16 %v1512, %v1508
  %v2601 = vpack.c.b16 %v1517, %v1513
  %v2602 = vpack.c.b16 %v1518, %v1514
  %v2603 = vpack.c.b16 %v1519, %v1515
  %v2604 = vpack.c.b16 %v1520, %v1516
  %v2605 = vpack.c.b16 %v1525, %v1521
  %v2606 = vpack.c.b16 %v1526, %v1522
  %v2607 = vpack.c.b16 %v1527, %v1523
  %v2608 = vpack.c.b16 %v1528, %v1524
  %v2609 = vpack.c.b16 %v1533, %v1529
  %v2610 = vpack.c.b16 %v1534, %v1530
  %v2611 = vpack.c.b16 %v1535, %v1531
  %v2612 = vpack.c.b16 %v1536, %v1532
  %v2613 = vpack.c.b16 %v1541, %v1537
  %v2614 = vpack.c.b16 %v1542, %v1538
  %v2615 = vpack.c.b16 %v1543, %v1539
  %v2616 = vpack.c.b16 %v1544, %v1540
  %v2617 = vpack.c.b16 %v1549, %v1545
  %v2618 = vpack.c.b16 %v1550, %v1546
  %v2619 = vpack.c.b16 %v1551, %v1547
  %v2620 = vpack.c.b16 %v1552, %v1548
  %v2621 = vpack.c.b16 %v1557, %v1553
  %v2622 = vpack.c.b16 %v1558, %v1554
  %v2623 = vpack.c.b16 %v1559, %v1555
  %v2624 = vpack.c.b16 %v1560, %v1556
  %v2625 = vpack.c.b16 %v1565, %v1561
  %v2626 = vpack.c.b16 %v1566, %v1562
  %v2627 = vpack.c.b16 %v1567, %v1563
  %v2628 = vpack.c.b16 %v1568, %v1564
  %v2629 = vpack.c.b16 %v1573, %v1569
  %v2630 = vpack.c.b16 %v1574, %v1570
  %v2631 = vpack.c.b16 %v1575, %v1571
  %v2632 = vpack.c.b16 %v1576, %v1572
  %v2633 = vpack.c.b16 %v1581, %v1577
  %v2634 = vpack.c.b16 %v1582, %v1578
  %v2635 = vpack.c.b16 %v1583, %v1579
  %v2636 = vpack.c.b16 %v1584, %v1580
  %v2637 = vpack.c.b16 %v1589, %v1585
  %v2638 = vpack.c.b16 %v1590, %v1586
  %v2639 = vpack.c.b16 %v1591, %v1587
  %v2640 = vpack.c.b16 %v1592, %v1588
  %v2641 = vpack.c.b16 %v1597, %v1593
  %v2642 = vpack.c.b16 %v1598, %v1594
  %v2643 = vpack.c.b16 %v1599, %v1595
  %v2644 = vpack.c.b16 %v1600, %v1596
  %v2645 = vpack.c.b16 %v1605, %v1601
  %v2646 = vpack.c.b16 %v1606, %v1602
  %v2647 = vpack.c.b16 %v1607, %v1603
  %v2648 = vpack.c.b16 %v1608, %v1604
  %v2649 = vpack.c.b16 %v1613, %v1609
  %v2650 = vpack.c.b16 %v1614, %v1610
  %v2651 = vpack.c.b16 %v1615, %v1611
  %v2652 = vpack.c.b16 %v1616, %v1612
  %v2653 = vpack.c.b16 %v1621, %v1617
  %v2654 = vpack.c.b16 %v1622, %v1618
  %v2655 = vpack.c.b16 %v1623, %v1619
  %v2656 = vpack.c.b16 %v1624, %v1620
  %v2657 = vpack.c.b16 %v1629, %v1625
  %v2658 = vpack.c.b16 %v1630, %v1626
  %v2659 = vpack.c.b16 %v1631, %v1627
  %v2660 = vpack.c.b16 %v1632, %v1628
  %v2661 = vpack.c.b16 %v1637, %v1633
  %v2662 = vpack.c.b16 %v1638, %v1634
  %v2663 = vpack.c.b16 %v1639, %v1635
  %v2664 = vpack.c.b16 %v1640, %v1636
  %v2665 = vpack.c.b16 %v1645, %v1641
  %v2666 = vpack.c.b16 %v1646, %v1642
  %v2667 = vpack.c.b16 %v1647, %v1643
  %v2668 = vpack.c.b16 %v1648, %v1644
  %v2669 = vpack.c.b16 %v1653, %v1649
  %v2670 = vpack.c.b16 %v1654, %v1650
  %v2671 = vpack.c.b16 %v1655, %v1651
  %v2672 = vpack.c.b16 %v1656, %v1652
  %v2673 = vpack.c.b16 %v1661, %v1657
  %v2674 = vpack.c.b16 %v1662, %v1658
  %v2675 = vpack.c.b16 %v1663, %v1659
  %v2676 = vpack.c.b16 %v1664, %v1660
  %v2677 = vpack.c.b16 %v1669, %v1665
  %v2678 = vpack.c.b16 %v1670, %v1666
  %v2679 = vpack.c.b16 %v1671, %v1667
  %v2680 = vpack.c.b16 %v1672, %v1668
  %v2681 = vpack.c.b16 %v1677, %v1673
  %v2682 = vpack.c.b16 %v1678, %v1674
  %v2683 = vpack.c.b16 %v1679, %v1675
  %v2684 = vpack.c.b16 %v1680, %v1676
  %v2685 = vpack.c.b16 %v1685, %v1681
  %v2686 = vpack.c.b16 %v1686, %v1682
  %v2687 = vpack.c.b16 %v1687, %v1683
  %v2688 = vpack.c.b16 %v1688, %v1684
  %v2689 = vpack.c.b16 %v1693, %v1689
  %v2690 = vpack.c.b16 %v1694, %v1690
  %v2691 = vpack.c.b16 %v1695, %v1691
  %v2692 = vpack.c.b16 %v1696, %v1692
  %v2693 = vpack.c.b16 %v1701, %v1697
  %v2694 = vpack.c.b16 %v1702, %v1698
  %v2695 = vpack.c.b16 %v1703, %v1699
  %v2696 = vpack.c.b16 %v1704, %v1700
  %v2697 = vpack.c.b16 %v1709, %v1705
  %v2698 = vpack.c.b16 %v1710, %v1706
  %v2699 = vpack.c.b16 %v1711, %v1707
  %v2700 = vpack.c.b16 %v1712, %v1708
  %v2701 = vpack.c.b16 %v1717, %v1713
  %v2702 = vpack.c.b16 %v1718, %v1714
  %v2703 = vpack.c.b16 %v1719, %v1715
  %v2704 = vpack.c.b16 %v1720, %v1716
  %v2705 = vpack.c.b16 %v1725, %v1721
  %v2706 = vpack.c.b16 %v1726, %v1722
  %v2707 = vpack.c.b16 %v1727, %v1723
  %v2708 = vpack.c.b16 %v1728, %v1724
  %v2709 = vpack.c.b16 %v1733, %v1729
  %v2710 = vpack.c.b16 %v1734, %v1730
  %v2711 = vpack.c.b16 %v1735, %v1731
  %v2712 = vpack.c.b16 %v1736, %v1732
  %v2713 = vpack.c.b16 %v1741, %v1737
  %v2714 = vpack.c.b16 %v1742, %v1738
  %v2715 = vpack.c.b16 %v1743, %v1739
  %v2716 = vpack.c.b16 %v1744, %v1740
  %v2717 = vpack.c.b16 %v1749, %v1745
  %v2718 = vpack.c.b16 %v1750, %v1746
  %v2719 = vpack.c.b16 %v1751, %v1747
  %v2720 = vpack.c.b16 %v1752, %v1748
  %v2721 = vpack.c.b16 %v1757, %v1753
  %v2722 = vpack.c.b16 %v1758, %v1754
  %v2723 = vpack.c.b16 %v1759, %v1755
  %v2724 = vpack.c.b16 %v1760, %v1756
  %v2725 = vpack.c.b16 %v1765, %v1761
  %v2726 = vpack.c.b16 %v1766, %v1762
  %v2727 = vpack.c.b16 %v1767, %v1763
  %v2728 = vpack.c.b16 %v1768, %v1764
  %v2729 = vpack.c.b16 %v1773, %v1769
  %v2730 = vpack.c.b16 %v1774, %v1770
  %v2731 = vpack.c.b16 %v1775, %v1771
  %v2732 = vpack.c.b16 %v1776, %v1772
  %v2733 = vpack.c.b16 %v1781, %v1777
  %v2734 = vpack.c.b16 %v1782, %v1778
  %v2735 = vpack.c.b16 %v1783, %v1779
  %v2736 = vpack.c.b16 %v1784, %v1780
  %v2737 = vpack.c.b16 %v1789, %v1785
  %v2738 = vpack.c.b16 %v1790, %v1786
  %v2739 = vpack.c.b16 %v1791, %v1787
  %v2740 = vpack.c.b16 %v1792, %v1788
  %v2741 = vpack.c.b16 %v1797, %v1793
  %v2742 = vpack.c.b16 %v1798, %v1794
  %v2743 = vpack.c.b16 %v1799, %v1795
  %v2744 = vpack.c.b16 %v1800, %v1796
  %v2745 = vpack.c.b16 %v1805, %v1801
  %v2746 = vpack.c.b16 %v1806, %v1802
  %v2747 = vpack.c.b16 %v1807, %v1803
  %v2748 = vpack.c.b16 %v1808, %v1804
  %v2749 = vpack.c.b16 %v1813, %v1809
  %v2750 = vpack.c.b16 %v1814, %v1810
  %v2751 = vpack.c.b16 %v1815, %v1811
  %v2752 = vpack.c.b16 %v1816, %v1812
  %v2753 = vpack.c.b16 %v1821, %v1817
  %v2754 = vpack.c.b16 %v1822, %v1818
  %v2755 = vpack.c.b16 %v1823, %v1819
  %v2756 = vpack.c.b16 %v1824, %v1820
  %v2757 = vpack.c.b16 %v1829, %v1825
  %v2758 = vpack.c.b16 %v1830, %v1826
  %v2759 = vpack.c.b16 %v1831, %v1827
  %v2760 = vpack.c.b16 %v1832, %v1828
  %v2761 = vpack.c.b16 %v1837, %v1833
  %v2762 = vpack.c.b16 %v1838, %v1834
  %v2763 = vpack.c.b16 %v1839, %v1835
  %v2764 = vpack.c.b16 %v1840, %v1836
  %v2765 = vpack.c.b16 %v1845, %v1841
  %v2766 = vpack.c.b16 %v1846, %v1842
  %v2767 = vpack.c.b16 %v1847, %v1843
  %v2768 = vpack.c.b16 %v1848, %v1844
  %v2769 = vpack.c.b16 %v1853, %v1849
  %v2770 = vpack.c.b16 %v1854, %v1850
  %v2771 = vpack.c.b16 %v1855, %v1851
  %v2772 = vpack.c.b16 %v1856, %v1852
  %v2773 = vpack.c.b16 %v1861, %v1857
  %v2774 = vpack.c.b16 %v1862, %v1858
  %v2775 = vpack.c.b16 %v1863, %v1859
  %v2776 = vpack.c.b16 %v1864, %v1860
  %v2777 = vpack.c.b16 %v1869, %v1865
  %v2778 = vpack.c.b16 %v1870, %v1866
  %v2779 = vpack.c.b16 %v1871, %v1867
  %v2780 = vpack.c.b16 %v1872, %v1868
  %v2781 = vpack.c.b16 %v1877, %v1873
  %v2782 = vpack.c.b16 %v1878, %v1874
  %v2783 = vpack.c.b16 %v1879, %v1875
  %v2784 = vpack.c.b16 %v1880, %v1876
  %v2785 = vpack.c.b16 %v1885, %v1881
  %v2786 = vpack.c.b16 %v1886, %v1882
  %v2787 = vpack.c.b16 %v1887, %v1883
  %v2788 = vpack.c.b16 %v1888, %v1884
  %v2789 = vpack.c.b16 %v1893, %v1889
  %v2790 = vpack.c.b16 %v1894, %v1890
  %v2791 = vpack.c.b16 %v1895, %v1891
  %v2792 = vpack.c.b16 %v1896, %v1892
  %v2793 = vpack.c.b16 %v1901, %v1897
  %v2794 = vpack.c.b16 %v1902, %v1898
  %v2795 = vpack.c.b16 %v1903, %v1899
  %v2796 = vpack.c.b16 %v1904, %v1900
  %v2797 = vpack.c.b16 %v1909, %v1905
  %v2798 = vpack.c.b16 %v1910, %v1906
  %v2799 = vpack.c.b16 %v1911, %v1907
  %v2800 = vpack.c.b16 %v1912, %v1908
  %v2801 = vpack.c.b16 %v1917, %v1913
  %v2802 = vpack.c.b16 %v1918, %v1914
  %v2803 = vpack.c.b16 %v1919, %v1915
  %v2804 = vpack.c.b16 %v1920, %v1916
  %v2805 = vpack.c.b16 %v1925, %v1921
  %v2806 = vpack.c.b16 %v1926, %v1922
  %v2807 = vpack.c.b16 %v1927, %v1923
  %v2808 = vpack.c.b16 %v1928, %v1924
  %v2809 = vpack.c.b16 %v1933, %v1929
  %v2810 = vpack.c.b16 %v1934, %v1930
  %v2811 = vpack.c.b16 %v1935, %v1931
  %v2812 = vpack.c.b16 %v1936, %v1932
  %v2813 = vpack.c.b16 %v1941, %v1937
  %v2814 = vpack.c.b16 %v1942, %v1938
  %v2815 = vpack.c.b16 %v1943, %v1939
  %v2816 = vpack.c.b16 %v1944, %v1940
  %v2817 = vpack.c.b16 %v1949, %v1945
  %v2818 = vpack.c.b16 %v1950, %v1946
  %v2819 = vpack.c.b16 %v1951, %v1947
  %v2820 = vpack.c.b16 %v1952, %v1948
  %v2821 = vpack.c.b16 %v1957, %v1953
  %v2822 = vpack.c.b16 %v1958, %v1954
  %v2823 = vpack.c.b16 %v1959, %v1955
  %v2824 = vpack.c.b16 %v1960, %v1956
  %v2825 = vpack.c.b16 %v1965, %v1961
  %v2826 = vpack.c.b16 %v1966, %v1962
  %v2827 = vpack.c.b16 %v1967, %v1963
  %v2828 = vpack.c.b16 %v1968, %v1964
  %v2829 = vpack.c.b16 %v1973, %v1969
  %v2830 = vpack.c.b16 %v1974, %v1970
  %v2831 = vpack.c.b16 %v1975, %v1971
  %v2832 = vpack.c.b16 %v1976, %v1972
  %v2833 = vpack.c.b16 %v1981, %v1977
  %v2834 = vpack.c.b16 %v1982, %v1978
  %v2835 = vpack.c.b16 %v1983, %v1979
  %v2836 = vpack.c.b16 %v1984, %v1980
  %v2837 = vpack.c.b16 %v1989, %v1985
  %v2838 = vpack.c.b16 %v1990, %v1986
  %v2839 = vpack.c.b16 %v1991, %v1987
  %v2840 = vpack.c.b16 %v1992, %v1988
  %v2841 = vpack.c.b16 %v1997, %v1993
  %v2842 = vpack.c.b16 %v1998, %v1994
  %v2843 = vpack.c.b16 %v1999, %v1995
  %v2844 = vpack.c.b16 %v2000, %v1996
  %v2845 = vpack.c.b16 %v2005, %v2001
  %v2846 = vpack.c.b16 %v2006, %v2002
  %v2847 = vpack.c.b16 %v2007, %v2003
  %v2848 = vpack.c.b16 %v2008, %v2004
  %v2849 = vpack.c.b16 %v2013, %v2009
  %v2850 = vpack.c.b16 %v2014, %v2010
  %v2851 = vpack.c.b16 %v2015, %v2011
  %v2852 = vpack.c.b16 %v2016, %v2012
  %v2853 = vpack.c.b16 %v2021, %v2017
  %v2854 = vpack.c.b16 %v2022, %v2018
  %v2855 = vpack.c.b16 %v2023, %v2019
  %v2856 = vpack.c.b16 %v2024, %v2020
  %v2857 = vpack.c.b16 %v2029, %v2025
  %v2858 = vpack.c.b16 %v2030, %v2026
  %v2859 = vpack.c.b16 %v2031, %v2027
  %v2860 = vpack.c.b16 %v2032, %v2028
  %v2861 = vpack.c.b16 %v2037, %v2033
  %v2862 = vpack.c.b16 %v2038, %v2034
  %v2863 = vpack.c.b16 %v2039, %v2035
  %v2864 = vpack.c.b16 %v2040, %v2036
  %v2865 = vpack.c.b16 %v2045, %v2041
  %v2866 = vpack.c.b16 %v2046, %v2042
  %v2867 = vpack.c.b16 %v2047, %v2043
  %v2868 = vpack.c.b16 %v2048, %v2044
  %v2869 = vpack.c.b16 %v2053, %v2049
  %v2870 = vpack.c.b16 %v2054, %v2050
  %v2871 = vpack.c.b16 %v2055, %v2051
  %v2872 = vpack.c.b16 %v2056, %v2052
  %v2873 = vpack.c.b16 %v2061, %v2057
  %v2874 = vpack.c.b16 %v2062, %v2058
  %v2875 = vpack.c.b16 %v2063, %v2059
  %v2876 = vpack.c.b16 %v2064, %v2060
  %v2877 = vpack.c.b16 %v2069, %v2065
  %v2878 = vpack.c.b16 %v2070, %v2066
  %v2879 = vpack.c.b16 %v2071, %v2067
  %v2880 = vpack.c.b16 %v2072, %v2068
  %v2881 = vpack.c.b16 %v2077, %v2073
  %v2882 = vpack.c.b16 %v2078, %v2074
  %v2883 = vpack.c.b16 %v2079, %v2075
  %v2884 = vpack.c.b16 %v2080, %v2076
  %v2885 = vpack.c.b16 %v2085, %v2081
  %v2886 = vpack.c.b16 %v2086, %v2082
  %v2887 = vpack.c.b16 %v2087, %v2083
  %v2888 = vpack.c.b16 %v2088, %v2084
  %v2889 = vpack.c.b16 %v2093, %v2089
  %v2890 = vpack.c.b16 %v2094, %v2090
  %v2891 = vpack.c.b16 %v2095, %v2091
  %v2892 = vpack.c.b16 %v2096, %v2092
  %v2893 = vpack.c.b16 %v2101, %v2097
  %v2894 = vpack.c.b16 %v2102, %v2098
  %v2895 = vpack.c.b16 %v2103, %v2099
  %v2896 = vpack.c.b16 %v2104, %v2100
  %v2897 = vpack.c.b16 %v2109, %v2105
  %v2898 = vpack.c.b16 %v2110, %v2106
  %v2899 = vpack.c.b16 %v2111, %v2107
  %v2900 = vpack.c.b16 %v2112, %v2108
  %v2901 = vpack.c.b16 %v2117, %v2113
  %v2902 = vpack.c.b16 %v2118, %v2114
  %v2903 = vpack.c.b16 %v2119, %v2115
  %v2904 = vpack.c.b16 %v2120, %v2116
  %v2905 = vpack.c.b16 %v2125, %v2121
  %v2906 = vpack.c.b16 %v2126, %v2122
  %v2907 = vpack.c.b16 %v2127, %v2123
  %v2908 = vpack.c.b16 %v2128, %v2124
  %v2909 = vpack.c.b16 %v2133, %v2129
  %v2910 = vpack.c.b16 %v2134, %v2130
  %v2911 = vpack.c.b16 %v2135, %v2131
  %v2912 = vpack.c.b16 %v2136, %v2132
  %v2913 = vpack.c.b16 %v2141, %v2137
  %v2914 = vpack.c.b16 %v2142, %v2138
  %v2915 = vpack.c.b16 %v2143, %v2139
  %v2916 = vpack.c.b16 %v2144, %v2140
  %v2917 = vpack.c.b16 %v2149, %v2145
  %v2918 = vpack.c.b16 %v2150, %v2146
  %v2919 = vpack.c.b16 %v2151, %v2147
  %v2920 = vpack.c.b16 %v2152, %v2148
  %v2921 = vpack.c.b16 %v2157, %v2153
  %v2922 = vpack.c.b16 %v2158, %v2154
  %v2923 = vpack.c.b16 %v2159, %v2155
  %v2924 = vpack.c.b16 %v2160, %v2156
  %v2925 = vpack.c.b16 %v2165, %v2161
  %v2926 = vpack.c.b16 %v2166, %v2162
  %v2927 = vpack.c.b16 %v2167, %v2163
  %v2928 = vpack.c.b16 %v2168, %v2164
  %v2929 = vpack.c.b16 %v2173, %v2169
  %v2930 = vpack.c.b16 %v2174, %v2170
  %v2931 = vpack.c.b16 %v2175, %v2171
  %v2932 = vpack.c.b16 %v2176, %v2172
  %v2933 = vpack.c.b16 %v2181, %v2177
  %v2934 = vpack.c.b16 %v2182, %v2178
  %v2935 = vpack.c.b16 %v2183, %v2179
  %v2936 = vpack.c.b16 %v2184, %v2180
  %v2937 = vpack.c.b16 %v2189, %v2185
  %v2938 = vpack.c.b16 %v2190, %v2186
  %v2939 = vpack.c.b16 %v2191, %v2187
  %v2940 = vpack.c.b16 %v2192, %v2188
  %v2941 = vpack.c.b16 %v2197, %v2193
  %v2942 = vpack.c.b16 %v2198, %v2194
  %v2943 = vpack.c.b16 %v2199, %v2195
  %v2944 = vpack.c.b16 %v2200, %v2196
  %v2945 = vpack.c.b16 %v2205, %v2201
  %v2946 = vpack.c.b16 %v2206, %v2202
  %v2947 = vpack.c.b16 %v2207, %v2203
  %v2948 = vpack.c.b16 %v2208, %v2204
  %v2949 = vpack.c.b16 %v2213, %v2209
  %v2950 = vpack.c.b16 %v2214, %v2210
  %v2951 = vpack.c.b16 %v2215, %v2211
  %v2952 = vpack.c.b16 %v2216, %v2212
  %v2953 = vpack.c.b16 %v2221, %v2217
  %v2954 = vpack.c.b16 %v2222, %v2218
  %v2955 = vpack.c.b16 %v2223, %v2219
  %v2956 = vpack.c.b16 %v2224, %v2220
  %v2957 = vpack.c.b16 %v2229, %v2225
  %v2958 = vpack.c.b16 %v2230, %v2226
  %v2959 = vpack.c.b16 %v2231, %v2227
  %v2960 = vpack.c.b16 %v2232, %v2228
  %v2961 = vpack.c.b16 %v2237, %v2233
  %v2962 = vpack.c.b16 %v2238, %v2234
  %v2963 = vpack.c.b16 %v2239, %v2235
  %v2964 = vpack.c.b16 %v2240, %v2236
  %v2965 = vpack.c.b16 %v2245, %v2241
  %v2966 = vpack.c.b16 %v2246, %v2242
  %v2967 = vpack.c.b16 %v2247, %v2243
  %v2968 = vpack.c.b16 %v2248, %v2244
  %v2969 = vpack.c.b16 %v2253, %v2249
  %v2970 = vpack.c.b16 %v2254, %v2250
  %v2971 = vpack.c.b16 %v2255, %v2251
  %v2972 = vpack.c.b16 %v2256, %v2252
  %v2973 = vpack.c.b16 %v2261, %v2257
  %v2974 = vpack.c.b16 %v2262, %v2258
  %v2975 = vpack.c.b16 %v2263, %v2259
  %v2976 = vpack.c.b16 %v2264, %v2260
  %v2977 = vpack.c.b16 %v2269, %v2265
  %v2978 = vpack.c.b16 %v2270, %v2266
  %v2979 = vpack.c.b16 %v2271, %v2267
  %v2980 = vpack.c.b16 %v2272, %v2268
  %v2981 = vpack.c.b16 %v2277, %v2273
  %v2982 = vpack.c.b16 %v2278, %v2274
  %v2983 = vpack.c.b16 %v2279, %v2275
  %v2984 = vpack.c.b16 %v2280, %v2276
  %v2985 = vpack.c.b16 %v2285, %v2281
  %v2986 = vpack.c.b16 %v2286, %v2282
  %v2987 = vpack.c.b16 %v2287, %v2283
  %v2988 = vpack.c.b16 %v2288, %v2284
  %v2989 = vpack.c.b16 %v2293, %v2289
  %v2990 = vpack.c.b16 %v2294, %v2290
  %v2991 = vpack.c.b16 %v2295, %v2291
  %v2992 = vpack.c.b16 %v2296, %v2292
  %v2993 = vpack.c.b16 %v2301, %v2297
  %v2994 = vpack.c.b16 %v2302, %v2298
  %v2995 = vpack.c.b16 %v2303, %v2299
  %v2996 = vpack.c.b16 %v2304, %v2300
  %v2997 = vpack.c.b16 %v2309, %v2305
  %v2998 = vpack.c.b16 %v2310, %v2306
  %v2999 = vpack.c.b16 %v2311, %v2307
  %v3000 = vpack.c.b16 %v2312, %v2308
  %v3001 = vpack.c.b16 %v2317, %v2313
  %v3002 = vpack.c.b16 %v2318, %v2314
  %v3003 = vpack.c.b16 %v2319, %v2315
  %v3004 = vpack.c.b16 %v2320, %v2316
  %v3005 = vpack.c.b16 %v2325, %v2321
  %v3006 = vpack.c.b16 %v2326, %v2322
  %v3007 = vpack.c.b16 %v2327, %v2323
  %v3008 = vpack.c.b16 %v2328, %v2324
  %v3009 = vpack.c.b16 %v2333, %v2329
  %v3010 = vpack.c.b16 %v2334, %v2330
  %v3011 = vpack.c.b16 %v2335, %v2331
  %v3012 = vpack.c.b16 %v2336, %v2332
  %v3013 = vpack.c.b16 %v2341, %v2337
  %v3014 = vpack.c.b16 %v2342, %v2338
  %v3015 = vpack.c.b16 %v2343, %v2339
  %v3016 = vpack.c.b16 %v2344, %v2340
  %v3017 = vpack.c.b16 %v2349, %v2345
  %v3018 = vpack.c.b16 %v2350, %v2346
  %v3019 = vpack.c.b16 %v2351, %v2347
  %v3020 = vpack.c.b16 %v2352, %v2348
  %v3021 = vpack.c.b16 %v2357, %v2353
  %v3022 = vpack.c.b16 %v2358, %v2354
  %v3023 = vpack.c.b16 %v2359, %v2355
  %v3024 = vpack.c.b16 %v2360, %v2356
  %v3025 = vpack.c.b16 %v2365, %v2361
  %v3026 = vpack.c.b16 %v2366, %v2362
  %v3027 = vpack.c.b16 %v2367, %v2363
  %v3028 = vpack.c.b16 %v2368, %v2364
  %v3029 = vpack.c.b16 %v2373, %v2369
  %v3030 = vpack.c.b16 %v2374, %v2370
  %v3031 = vpack.c.b16 %v2375, %v2371
  %v3032 = vpack.c.b16 %v2376, %v2372
  %v3033 = vpack.c.b16 %v2381, %v2377
  %v3034 = vpack.c.b16 %v2382, %v2378
  %v3035 = vpack.c.b16 %v2383, %v2379
  %v3036 = vpack.c.b16 %v2384, %v2380
  %v3037 = vpack.c.b16 %v2389, %v2385
  %v3038 = vpack.c.b16 %v2390, %v2386
  %v3039 = vpack.c.b16 %v2391, %v2387
  %v3040 = vpack.c.b16 %v2392, %v2388
  %v3041 = vpack.c.b16 %v2397, %v2393
  %v3042 = vpack.c.b16 %v2398, %v2394
  %v3043 = vpack.c.b16 %v2399, %v2395
  %v3044 = vpack.c.b16 %v2400, %v2396
  %v3045 = vpack.c.b16 %v2405, %v2401
  %v3046 = vpack.c.b16 %v2406, %v2402
  %v3047 = vpack.c.b16 %v2407, %v2403
  %v3048 = vpack.c.b16 %v2408, %v2404
  %v3049 = vpack.c.b16 %v2413, %v2409
  %v3050 = vpack.c.b16 %v2414, %v2410
  %v3051 = vpack.c.b16 %v2415, %v2411
  %v3052 = vpack.c.b16 %v2416, %v2412
  %v3053 = vpack.c.b16 %v2421, %v2417
  %v3054 = vpack.c.b16 %v2422, %v2418
  %v3055 = vpack.c.b16 %v2423, %v2419
  %v3056 = vpack.c.b16 %v2424, %v2420
  %v3057 = vpack.c.b16 %v2429, %v2425
  %v3058 = vpack.c.b16 %v2430, %v2426
  %v3059 = vpack.c.b16 %v2431, %v2427
  %v3060 = vpack.c.b16 %v2432, %v2428
  %v3061 = vpack.c.b16 %v2437, %v2433
  %v3062 = vpack.c.b16 %v2438, %v2434
  %v3063 = vpack.c.b16 %v2439, %v2435
  %v3064 = vpack.c.b16 %v2440, %v2436
  %v3065 = vpack.c.b16 %v2445, %v2441
  %v3066 = vpack.c.b16 %v2446, %v2442
  %v3067 = vpack.c.b16 %v2447, %v2443
  %v3068 = vpack.c.b16 %v2448, %v2444
  %v3069 = vpack.c.b16 %v2453, %v2449
  %v3070 = vpack.c.b16 %v2454, %v2450
  %v3071 = vpack.c.b16 %v2455, %v2451
  %v3072 = vpack.c.b16 %v2456, %v2452
  %v3073 = vpack.c.b16 %v2461, %v2457
  %v3074 = vpack.c.b16 %v2462, %v2458
  %v3075 = vpack.c.b16 %v2463, %v2459
  %v3076 = vpack.c.b16 %v2464, %v2460
  %v3077 = vpack.c.b16 %v2469, %v2465
  %v3078 = vpack.c.b16 %v2470, %v2466
  %v3079 = vpack.c.b16 %v2471, %v2467
  %v3080 = vpack.c.b16 %v2472, %v2468
  %v3081 = vpack.c.b16 %v2477, %v2473
  %v3082 = vpack.c.b16 %v2478, %v2474
  %v3083 = vpack.c.b16 %v2479, %v2475
  %v3084 = vpack.c.b16 %v2480, %v2476
  %v3085 = vpack.c.b16 %v2485, %v2481
  %v3086 = vpack.c.b16 %v2486, %v2482
  %v3087 = vpack.c.b16 %v2487, %v2483
  %v3088 = vpack.c.b16 %v2488, %v2484
  %v3089 = vpack.c.b16 %v2493, %v2489
  %v3090 = vpack.c.b16 %v2494, %v2490
  %v3091 = vpack.c.b16 %v2495, %v2491
  %v3092 = vpack.c.b16 %v2496, %v2492
  %v3093 = vpack.c.b16 %v2501, %v2497
  %v3094 = vpack.c.b16 %v2502, %v2498
  %v3095 = vpack.c.b16 %v2503, %v2499
  %v3096 = vpack.c.b16 %v2504, %v2500
  %v3097 = vpack.c.b16 %v2509, %v2505
  %v3098 = vpack.c.b16 %v2510, %v2506
  %v3099 = vpack.c.b16 %v2511, %v2507
  %v3100 = vpack.c.b16 %v2512, %v2508
  %v3101 = vpack.c.b16 %v2517, %v2513
  %v3102 = vpack.c.b16 %v2518, %v2514
  %v3103 = vpack.c.b16 %v2519, %v2515
  %v3104 = vpack.c.b16 %v2520, %v2516
  %v3105 = vpack.c.b16 %v2525, %v2521
  %v3106 = vpack.c.b16 %v2526, %v2522
  %v3107 = vpack.c.b16 %v2527, %v2523
  %v3108 = vpack.c.b16 %v2528, %v2524
  %v3109 = vpack.c.b16 %v2533, %v2529
  %v3110 = vpack.c.b16 %v2534, %v2530
  %v3111 = vpack.c.b16 %v2535, %v2531
  %v3112 = vpack.c.b16 %v2536, %v2532
  %3689 = vmatpush.bf16.msra.mxu0 %v2565
  %3690 = vmatpush.bf16.msra.mxu0 %v2561
  %3691 = vmatpush.bf16.msra.mxu0 %v2557
  %3692 = vmatpush.bf16.msra.mxu0 %v2553
  %3693 = vmatpush.bf16.msra.mxu0 %v2549
  %3694 = vmatpush.bf16.msra.mxu0 %v2545
  %3695 = vmatpush.bf16.msra.mxu0 %v2541
  %3696 = vmatpush.bf16.msra.mxu0 %v2537
  %3697 = vmatmul.bf16.gmra.mxu0 %v737
  %v3698 = vpop.f32.mrf.mxu0
  %v3699 = vadd.f32 0.0, %v3698
  %v3700 = vpop.f32.mrf.mxu0
  %v3701 = vadd.f32 0.0, %v3700
  %3702 = vmatmul.bf16.gmra.mxu0 %v755
  %v3703 = vpop.f32.mrf.mxu0
  %v3704 = vadd.f32 0.0, %v3703
  %v3705 = vpop.f32.mrf.mxu0
  %v3706 = vadd.f32 0.0, %v3705
  %3707 = vdwg.mxu0
  %3708 = vmatpush.bf16.msra.mxu0 %v2597
  %3709 = vmatpush.bf16.msra.mxu0 %v2593
  %3710 = vmatpush.bf16.msra.mxu0 %v2589
  %3711 = vmatpush.bf16.msra.mxu0 %v2585
  %3712 = vmatpush.bf16.msra.mxu0 %v2581
  %3713 = vmatpush.bf16.msra.mxu0 %v2577
  %3714 = vmatpush.bf16.msra.mxu0 %v2573
  %3715 = vmatpush.bf16.msra.mxu0 %v2569
  %3716 = vmatmul.bf16.gmra.mxu0 %v738
  %v3717 = vpop.f32.mrf.mxu0
  %v3718 = vadd.f32 %v3699, %v3717
  %v3719 = vpop.f32.mrf.mxu0
  %v3720 = vadd.f32 %v3701, %v3719
  %3721 = vmatmul.bf16.gmra.mxu0 %v756
  %v3722 = vpop.f32.mrf.mxu0
  %v3723 = vadd.f32 %v3704, %v3722
  %v3724 = vpop.f32.mrf.mxu0
  %v3725 = vadd.f32 %v3706, %v3724
  %3726 = vdwg.mxu0
  %3727 = vmatpush.bf16.msra.mxu0 %v2629
  %3728 = vmatpush.bf16.msra.mxu0 %v2625
  %3729 = vmatpush.bf16.msra.mxu0 %v2621
  %3730 = vmatpush.bf16.msra.mxu0 %v2617
  %3731 = vmatpush.bf16.msra.mxu0 %v2613
  %3732 = vmatpush.bf16.msra.mxu0 %v2609
  %3733 = vmatpush.bf16.msra.mxu0 %v2605
  %3734 = vmatpush.bf16.msra.mxu0 %v2601
  %3735 = vmatmul.bf16.gmra.mxu0 %v739
  %v3736 = vpop.f32.mrf.mxu0
  %v3737 = vadd.f32 %v3718, %v3736
  %v3738 = vpop.f32.mrf.mxu0
  %v3739 = vadd.f32 %v3720, %v3738
  %3740 = vmatmul.bf16.gmra.mxu0 %v757
  %v3741 = vpop.f32.mrf.mxu0
  %v3742 = vadd.f32 %v3723, %v3741
  %v3743 = vpop.f32.mrf.mxu0
  %v3744 = vadd.f32 %v3725, %v3743
  %3745 = vdwg.mxu0
  %3746 = vmatpush.bf16.msra.mxu0 %v2661
  %3747 = vmatpush.bf16.msra.mxu0 %v2657
  %3748 = vmatpush.bf16.msra.mxu0 %v2653
  %3749 = vmatpush.bf16.msra.mxu0 %v2649
  %3750 = vmatpush.bf16.msra.mxu0 %v2645
  %3751 = vmatpush.bf16.msra.mxu0 %v2641
  %3752 = vmatpush.bf16.msra.mxu0 %v2637
  %3753 = vmatpush.bf16.msra.mxu0 %v2633
  %3754 = vmatmul.bf16.gmra.mxu0 %v740
  %v3755 = vpop.f32.mrf.mxu0
  %v3756 = vadd.f32 %v3737, %v3755
  %v3757 = vpop.f32.mrf.mxu0
  %v3758 = vadd.f32 %v3739, %v3757
  %3759 = vmatmul.bf16.gmra.mxu0 %v758
  %v3760 = vpop.f32.mrf.mxu0
  %v3761 = vadd.f32 %v3742, %v3760
  %v3762 = vpop.f32.mrf.mxu0
  %v3763 = vadd.f32 %v3744, %v3762
  %3764 = vdwg.mxu0
  %3765 = vmatpush.bf16.msra.mxu0 %v2693
  %3766 = vmatpush.bf16.msra.mxu0 %v2689
  %3767 = vmatpush.bf16.msra.mxu0 %v2685
  %3768 = vmatpush.bf16.msra.mxu0 %v2681
  %3769 = vmatpush.bf16.msra.mxu0 %v2677
  %3770 = vmatpush.bf16.msra.mxu0 %v2673
  %3771 = vmatpush.bf16.msra.mxu0 %v2669
  %3772 = vmatpush.bf16.msra.mxu0 %v2665
  %3773 = vmatmul.bf16.gmra.mxu0 %v741
  %v3774 = vpop.f32.mrf.mxu0
  %v3775 = vadd.f32 %v3756, %v3774
  %v3776 = vpop.f32.mrf.mxu0
  %v3777 = vadd.f32 %v3758, %v3776
  %3778 = vmatmul.bf16.gmra.mxu0 %v759
  %v3779 = vpop.f32.mrf.mxu0
  %v3780 = vadd.f32 %v3761, %v3779
  %v3781 = vpop.f32.mrf.mxu0
  %v3782 = vadd.f32 %v3763, %v3781
  %3783 = vdwg.mxu0
  %3784 = vmatpush.bf16.msra.mxu0 %v2725
  %3785 = vmatpush.bf16.msra.mxu0 %v2721
  %3786 = vmatpush.bf16.msra.mxu0 %v2717
  %3787 = vmatpush.bf16.msra.mxu0 %v2713
  %3788 = vmatpush.bf16.msra.mxu0 %v2709
  %3789 = vmatpush.bf16.msra.mxu0 %v2705
  %3790 = vmatpush.bf16.msra.mxu0 %v2701
  %3791 = vmatpush.bf16.msra.mxu0 %v2697
  %3792 = vmatmul.bf16.gmra.mxu0 %v742
  %v3793 = vpop.f32.mrf.mxu0
  %v3794 = vadd.f32 %v3775, %v3793
  %v3795 = vpop.f32.mrf.mxu0
  %v3796 = vadd.f32 %v3777, %v3795
  %3797 = vmatmul.bf16.gmra.mxu0 %v760
  %v3798 = vpop.f32.mrf.mxu0
  %v3799 = vadd.f32 %v3780, %v3798
  %v3800 = vpop.f32.mrf.mxu0
  %v3801 = vadd.f32 %v3782, %v3800
  %3802 = vdwg.mxu0
  %3803 = vmatpush.bf16.msra.mxu0 %v2757
  %3804 = vmatpush.bf16.msra.mxu0 %v2753
  %3805 = vmatpush.bf16.msra.mxu0 %v2749
  %3806 = vmatpush.bf16.msra.mxu0 %v2745
  %3807 = vmatpush.bf16.msra.mxu0 %v2741
  %3808 = vmatpush.bf16.msra.mxu0 %v2737
  %3809 = vmatpush.bf16.msra.mxu0 %v2733
  %3810 = vmatpush.bf16.msra.mxu0 %v2729
  %3811 = vmatmul.bf16.gmra.mxu0 %v743
  %v3812 = vpop.f32.mrf.mxu0
  %v3813 = vadd.f32 %v3794, %v3812
  %v3814 = vpop.f32.mrf.mxu0
  %v3815 = vadd.f32 %v3796, %v3814
  %3816 = vmatmul.bf16.gmra.mxu0 %v761
  %v3817 = vpop.f32.mrf.mxu0
  %v3818 = vadd.f32 %v3799, %v3817
  %v3819 = vpop.f32.mrf.mxu0
  %v3820 = vadd.f32 %v3801, %v3819
  %3821 = vdwg.mxu0
  %3822 = vmatpush.bf16.msra.mxu0 %v2789
  %3823 = vmatpush.bf16.msra.mxu0 %v2785
  %3824 = vmatpush.bf16.msra.mxu0 %v2781
  %3825 = vmatpush.bf16.msra.mxu0 %v2777
  %3826 = vmatpush.bf16.msra.mxu0 %v2773
  %3827 = vmatpush.bf16.msra.mxu0 %v2769
  %3828 = vmatpush.bf16.msra.mxu0 %v2765
  %3829 = vmatpush.bf16.msra.mxu0 %v2761
  %3830 = vmatmul.bf16.gmra.mxu0 %v744
  %v3831 = vpop.f32.mrf.mxu0
  %v3832 = vadd.f32 %v3813, %v3831
  %v3833 = vpop.f32.mrf.mxu0
  %v3834 = vadd.f32 %v3815, %v3833
  %3835 = vmatmul.bf16.gmra.mxu0 %v762
  %v3836 = vpop.f32.mrf.mxu0
  %v3837 = vadd.f32 %v3818, %v3836
  %v3838 = vpop.f32.mrf.mxu0
  %v3839 = vadd.f32 %v3820, %v3838
  %3840 = vdwg.mxu0
  %3841 = vmatpush.bf16.msra.mxu0 %v2821
  %3842 = vmatpush.bf16.msra.mxu0 %v2817
  %3843 = vmatpush.bf16.msra.mxu0 %v2813
  %3844 = vmatpush.bf16.msra.mxu0 %v2809
  %3845 = vmatpush.bf16.msra.mxu0 %v2805
  %3846 = vmatpush.bf16.msra.mxu0 %v2801
  %3847 = vmatpush.bf16.msra.mxu0 %v2797
  %3848 = vmatpush.bf16.msra.mxu0 %v2793
  %3849 = vmatmul.bf16.gmra.mxu0 %v745
  %v3850 = vpop.f32.mrf.mxu0
  %v3851 = vadd.f32 %v3832, %v3850
  %v3852 = vpop.f32.mrf.mxu0
  %v3853 = vadd.f32 %v3834, %v3852
  %3854 = vmatmul.bf16.gmra.mxu0 %v763
  %v3855 = vpop.f32.mrf.mxu0
  %v3856 = vadd.f32 %v3837, %v3855
  %v3857 = vpop.f32.mrf.mxu0
  %v3858 = vadd.f32 %v3839, %v3857
  %3859 = vdwg.mxu0
  %3860 = vmatpush.bf16.msra.mxu0 %v2853
  %3861 = vmatpush.bf16.msra.mxu0 %v2849
  %3862 = vmatpush.bf16.msra.mxu0 %v2845
  %3863 = vmatpush.bf16.msra.mxu0 %v2841
  %3864 = vmatpush.bf16.msra.mxu0 %v2837
  %3865 = vmatpush.bf16.msra.mxu0 %v2833
  %3866 = vmatpush.bf16.msra.mxu0 %v2829
  %3867 = vmatpush.bf16.msra.mxu0 %v2825
  %3868 = vmatmul.bf16.gmra.mxu0 %v746
  %v3869 = vpop.f32.mrf.mxu0
  %v3870 = vadd.f32 %v3851, %v3869
  %v3871 = vpop.f32.mrf.mxu0
  %v3872 = vadd.f32 %v3853, %v3871
  %3873 = vmatmul.bf16.gmra.mxu0 %v764
  %v3874 = vpop.f32.mrf.mxu0
  %v3875 = vadd.f32 %v3856, %v3874
  %v3876 = vpop.f32.mrf.mxu0
  %v3877 = vadd.f32 %v3858, %v3876
  %3878 = vdwg.mxu0
  %3879 = vmatpush.bf16.msra.mxu0 %v2885
  %3880 = vmatpush.bf16.msra.mxu0 %v2881
  %3881 = vmatpush.bf16.msra.mxu0 %v2877
  %3882 = vmatpush.bf16.msra.mxu0 %v2873
  %3883 = vmatpush.bf16.msra.mxu0 %v2869
  %3884 = vmatpush.bf16.msra.mxu0 %v2865
  %3885 = vmatpush.bf16.msra.mxu0 %v2861
  %3886 = vmatpush.bf16.msra.mxu0 %v2857
  %3887 = vmatmul.bf16.gmra.mxu0 %v747
  %v3888 = vpop.f32.mrf.mxu0
  %v3889 = vadd.f32 %v3870, %v3888
  %v3890 = vpop.f32.mrf.mxu0
  %v3891 = vadd.f32 %v3872, %v3890
  %3892 = vmatmul.bf16.gmra.mxu0 %v765
  %v3893 = vpop.f32.mrf.mxu0
  %v3894 = vadd.f32 %v3875, %v3893
  %v3895 = vpop.f32.mrf.mxu0
  %v3896 = vadd.f32 %v3877, %v3895
  %3897 = vdwg.mxu0
  %3898 = vmatpush.bf16.msra.mxu0 %v2917
  %3899 = vmatpush.bf16.msra.mxu0 %v2913
  %3900 = vmatpush.bf16.msra.mxu0 %v2909
  %3901 = vmatpush.bf16.msra.mxu0 %v2905
  %3902 = vmatpush.bf16.msra.mxu0 %v2901
  %3903 = vmatpush.bf16.msra.mxu0 %v2897
  %3904 = vmatpush.bf16.msra.mxu0 %v2893
  %3905 = vmatpush.bf16.msra.mxu0 %v2889
  %3906 = vmatmul.bf16.gmra.mxu0 %v748
  %v3907 = vpop.f32.mrf.mxu0
  %v3908 = vadd.f32 %v3889, %v3907
  %v3909 = vpop.f32.mrf.mxu0
  %v3910 = vadd.f32 %v3891, %v3909
  %3911 = vmatmul.bf16.gmra.mxu0 %v766
  %v3912 = vpop.f32.mrf.mxu0
  %v3913 = vadd.f32 %v3894, %v3912
  %v3914 = vpop.f32.mrf.mxu0
  %v3915 = vadd.f32 %v3896, %v3914
  %3916 = vdwg.mxu0
  %3917 = vmatpush.bf16.msra.mxu0 %v2949
  %3918 = vmatpush.bf16.msra.mxu0 %v2945
  %3919 = vmatpush.bf16.msra.mxu0 %v2941
  %3920 = vmatpush.bf16.msra.mxu0 %v2937
  %3921 = vmatpush.bf16.msra.mxu0 %v2933
  %3922 = vmatpush.bf16.msra.mxu0 %v2929
  %3923 = vmatpush.bf16.msra.mxu0 %v2925
  %3924 = vmatpush.bf16.msra.mxu0 %v2921
  %3925 = vmatmul.bf16.gmra.mxu0 %v749
  %v3926 = vpop.f32.mrf.mxu0
  %v3927 = vadd.f32 %v3908, %v3926
  %v3928 = vpop.f32.mrf.mxu0
  %v3929 = vadd.f32 %v3910, %v3928
  %3930 = vmatmul.bf16.gmra.mxu0 %v767
  %v3931 = vpop.f32.mrf.mxu0
  %v3932 = vadd.f32 %v3913, %v3931
  %v3933 = vpop.f32.mrf.mxu0
  %v3934 = vadd.f32 %v3915, %v3933
  %3935 = vdwg.mxu0
  %3936 = vmatpush.bf16.msra.mxu0 %v2981
  %3937 = vmatpush.bf16.msra.mxu0 %v2977
  %3938 = vmatpush.bf16.msra.mxu0 %v2973
  %3939 = vmatpush.bf16.msra.mxu0 %v2969
  %3940 = vmatpush.bf16.msra.mxu0 %v2965
  %3941 = vmatpush.bf16.msra.mxu0 %v2961
  %3942 = vmatpush.bf16.msra.mxu0 %v2957
  %3943 = vmatpush.bf16.msra.mxu0 %v2953
  %3944 = vmatmul.bf16.gmra.mxu0 %v750
  %v3945 = vpop.f32.mrf.mxu0
  %v3946 = vadd.f32 %v3927, %v3945
  %v3947 = vpop.f32.mrf.mxu0
  %v3948 = vadd.f32 %v3929, %v3947
  %3949 = vmatmul.bf16.gmra.mxu0 %v768
  %v3950 = vpop.f32.mrf.mxu0
  %v3951 = vadd.f32 %v3932, %v3950
  %v3952 = vpop.f32.mrf.mxu0
  %v3953 = vadd.f32 %v3934, %v3952
  %3954 = vdwg.mxu0
  %3955 = vmatpush.bf16.msra.mxu0 %v3013
  %3956 = vmatpush.bf16.msra.mxu0 %v3009
  %3957 = vmatpush.bf16.msra.mxu0 %v3005
  %3958 = vmatpush.bf16.msra.mxu0 %v3001
  %3959 = vmatpush.bf16.msra.mxu0 %v2997
  %3960 = vmatpush.bf16.msra.mxu0 %v2993
  %3961 = vmatpush.bf16.msra.mxu0 %v2989
  %3962 = vmatpush.bf16.msra.mxu0 %v2985
  %3963 = vmatmul.bf16.gmra.mxu0 %v751
  %v3964 = vpop.f32.mrf.mxu0
  %v3965 = vadd.f32 %v3946, %v3964
  %v3966 = vpop.f32.mrf.mxu0
  %v3967 = vadd.f32 %v3948, %v3966
  %3968 = vmatmul.bf16.gmra.mxu0 %v769
  %v3969 = vpop.f32.mrf.mxu0
  %v3970 = vadd.f32 %v3951, %v3969
  %v3971 = vpop.f32.mrf.mxu0
  %v3972 = vadd.f32 %v3953, %v3971
  %3973 = vdwg.mxu0
  %3974 = vmatpush.bf16.msra.mxu0 %v3045
  %3975 = vmatpush.bf16.msra.mxu0 %v3041
  %3976 = vmatpush.bf16.msra.mxu0 %v3037
  %3977 = vmatpush.bf16.msra.mxu0 %v3033
  %3978 = vmatpush.bf16.msra.mxu0 %v3029
  %3979 = vmatpush.bf16.msra.mxu0 %v3025
  %3980 = vmatpush.bf16.msra.mxu0 %v3021
  %3981 = vmatpush.bf16.msra.mxu0 %v3017
  %3982 = vmatmul.bf16.gmra.mxu0 %v752
  %v3983 = vpop.f32.mrf.mxu0
  %v3984 = vadd.f32 %v3965, %v3983
  %v3985 = vpop.f32.mrf.mxu0
  %v3986 = vadd.f32 %v3967, %v3985
  %3987 = vmatmul.bf16.gmra.mxu0 %v770
  %v3988 = vpop.f32.mrf.mxu0
  %v3989 = vadd.f32 %v3970, %v3988
  %v3990 = vpop.f32.mrf.mxu0
  %v3991 = vadd.f32 %v3972, %v3990
  %3992 = vdwg.mxu0
  %3993 = vmatpush.bf16.msra.mxu0 %v3077
  %3994 = vmatpush.bf16.msra.mxu0 %v3073
  %3995 = vmatpush.bf16.msra.mxu0 %v3069
  %3996 = vmatpush.bf16.msra.mxu0 %v3065
  %3997 = vmatpush.bf16.msra.mxu0 %v3061
  %3998 = vmatpush.bf16.msra.mxu0 %v3057
  %3999 = vmatpush.bf16.msra.mxu0 %v3053
  %4000 = vmatpush.bf16.msra.mxu0 %v3049
  %4001 = vmatmul.bf16.gmra.mxu0 %v753
  %v4002 = vpop.f32.mrf.mxu0
  %v4003 = vadd.f32 %v3984, %v4002
  %v4004 = vpop.f32.mrf.mxu0
  %v4005 = vadd.f32 %v3986, %v4004
  %4006 = vmatmul.bf16.gmra.mxu0 %v771
  %v4007 = vpop.f32.mrf.mxu0
  %v4008 = vadd.f32 %v3989, %v4007
  %v4009 = vpop.f32.mrf.mxu0
  %v4010 = vadd.f32 %v3991, %v4009
  %4011 = vdwg.mxu0
  %4012 = vmatpush.bf16.msra.mxu0 %v3109
  %4013 = vmatpush.bf16.msra.mxu0 %v3105
  %4014 = vmatpush.bf16.msra.mxu0 %v3101
  %4015 = vmatpush.bf16.msra.mxu0 %v3097
  %4016 = vmatpush.bf16.msra.mxu0 %v3093
  %4017 = vmatpush.bf16.msra.mxu0 %v3089
  %4018 = vmatpush.bf16.msra.mxu0 %v3085
  %4019 = vmatpush.bf16.msra.mxu0 %v3081
  %4020 = vmatmul.bf16.gmra.mxu0 %v754
  %v4021 = vpop.f32.mrf.mxu0
  %v4022 = vadd.f32 %v4003, %v4021
  %v4023 = vpop.f32.mrf.mxu0
  %v4024 = vadd.f32 %v4005, %v4023
  %4025 = vmatmul.bf16.gmra.mxu0 %v772
  %v4026 = vpop.f32.mrf.mxu0
  %v4027 = vadd.f32 %v4008, %v4026
  %v4028 = vpop.f32.mrf.mxu0
  %v4029 = vadd.f32 %v4010, %v4028
  %4030 = vdwg.mxu0
  %4031 = vmatpush.bf16.msra.mxu0 %v2566
  %4032 = vmatpush.bf16.msra.mxu0 %v2562
  %4033 = vmatpush.bf16.msra.mxu0 %v2558
  %4034 = vmatpush.bf16.msra.mxu0 %v2554
  %4035 = vmatpush.bf16.msra.mxu0 %v2550
  %4036 = vmatpush.bf16.msra.mxu0 %v2546
  %4037 = vmatpush.bf16.msra.mxu0 %v2542
  %4038 = vmatpush.bf16.msra.mxu0 %v2538
  %4039 = vmatmul.bf16.gmra.mxu0 %v737
  %v4040 = vpop.f32.mrf.mxu0
  %v4041 = vadd.f32 0.0, %v4040
  %v4042 = vpop.f32.mrf.mxu0
  %v4043 = vadd.f32 0.0, %v4042
  %4044 = vmatmul.bf16.gmra.mxu0 %v755
  %v4045 = vpop.f32.mrf.mxu0
  %v4046 = vadd.f32 0.0, %v4045
  %v4047 = vpop.f32.mrf.mxu0
  %v4048 = vadd.f32 0.0, %v4047
  %4049 = vdwg.mxu0
  %4050 = vmatpush.bf16.msra.mxu0 %v2598
  %4051 = vmatpush.bf16.msra.mxu0 %v2594
  %4052 = vmatpush.bf16.msra.mxu0 %v2590
  %4053 = vmatpush.bf16.msra.mxu0 %v2586
  %4054 = vmatpush.bf16.msra.mxu0 %v2582
  %4055 = vmatpush.bf16.msra.mxu0 %v2578
  %4056 = vmatpush.bf16.msra.mxu0 %v2574
  %4057 = vmatpush.bf16.msra.mxu0 %v2570
  %4058 = vmatmul.bf16.gmra.mxu0 %v738
  %v4059 = vpop.f32.mrf.mxu0
  %v4060 = vadd.f32 %v4041, %v4059
  %v4061 = vpop.f32.mrf.mxu0
  %v4062 = vadd.f32 %v4043, %v4061
  %4063 = vmatmul.bf16.gmra.mxu0 %v756
  %v4064 = vpop.f32.mrf.mxu0
  %v4065 = vadd.f32 %v4046, %v4064
  %v4066 = vpop.f32.mrf.mxu0
  %v4067 = vadd.f32 %v4048, %v4066
  %4068 = vdwg.mxu0
  %4069 = vmatpush.bf16.msra.mxu0 %v2630
  %4070 = vmatpush.bf16.msra.mxu0 %v2626
  %4071 = vmatpush.bf16.msra.mxu0 %v2622
  %4072 = vmatpush.bf16.msra.mxu0 %v2618
  %4073 = vmatpush.bf16.msra.mxu0 %v2614
  %4074 = vmatpush.bf16.msra.mxu0 %v2610
  %4075 = vmatpush.bf16.msra.mxu0 %v2606
  %4076 = vmatpush.bf16.msra.mxu0 %v2602
  %4077 = vmatmul.bf16.gmra.mxu0 %v739
  %v4078 = vpop.f32.mrf.mxu0
  %v4079 = vadd.f32 %v4060, %v4078
  %v4080 = vpop.f32.mrf.mxu0
  %v4081 = vadd.f32 %v4062, %v4080
  %4082 = vmatmul.bf16.gmra.mxu0 %v757
  %v4083 = vpop.f32.mrf.mxu0
  %v4084 = vadd.f32 %v4065, %v4083
  %v4085 = vpop.f32.mrf.mxu0
  %v4086 = vadd.f32 %v4067, %v4085
  %4087 = vdwg.mxu0
  %4088 = vmatpush.bf16.msra.mxu0 %v2662
  %4089 = vmatpush.bf16.msra.mxu0 %v2658
  %4090 = vmatpush.bf16.msra.mxu0 %v2654
  %4091 = vmatpush.bf16.msra.mxu0 %v2650
  %4092 = vmatpush.bf16.msra.mxu0 %v2646
  %4093 = vmatpush.bf16.msra.mxu0 %v2642
  %4094 = vmatpush.bf16.msra.mxu0 %v2638
  %4095 = vmatpush.bf16.msra.mxu0 %v2634
  %4096 = vmatmul.bf16.gmra.mxu0 %v740
  %v4097 = vpop.f32.mrf.mxu0
  %v4098 = vadd.f32 %v4079, %v4097
  %v4099 = vpop.f32.mrf.mxu0
  %v4100 = vadd.f32 %v4081, %v4099
  %4101 = vmatmul.bf16.gmra.mxu0 %v758
  %v4102 = vpop.f32.mrf.mxu0
  %v4103 = vadd.f32 %v4084, %v4102
  %v4104 = vpop.f32.mrf.mxu0
  %v4105 = vadd.f32 %v4086, %v4104
  %4106 = vdwg.mxu0
  %4107 = vmatpush.bf16.msra.mxu0 %v2694
  %4108 = vmatpush.bf16.msra.mxu0 %v2690
  %4109 = vmatpush.bf16.msra.mxu0 %v2686
  %4110 = vmatpush.bf16.msra.mxu0 %v2682
  %4111 = vmatpush.bf16.msra.mxu0 %v2678
  %4112 = vmatpush.bf16.msra.mxu0 %v2674
  %4113 = vmatpush.bf16.msra.mxu0 %v2670
  %4114 = vmatpush.bf16.msra.mxu0 %v2666
  %4115 = vmatmul.bf16.gmra.mxu0 %v741
  %v4116 = vpop.f32.mrf.mxu0
  %v4117 = vadd.f32 %v4098, %v4116
  %v4118 = vpop.f32.mrf.mxu0
  %v4119 = vadd.f32 %v4100, %v4118
  %4120 = vmatmul.bf16.gmra.mxu0 %v759
  %v4121 = vpop.f32.mrf.mxu0
  %v4122 = vadd.f32 %v4103, %v4121
  %v4123 = vpop.f32.mrf.mxu0
  %v4124 = vadd.f32 %v4105, %v4123
  %4125 = vdwg.mxu0
  %4126 = vmatpush.bf16.msra.mxu0 %v2726
  %4127 = vmatpush.bf16.msra.mxu0 %v2722
  %4128 = vmatpush.bf16.msra.mxu0 %v2718
  %4129 = vmatpush.bf16.msra.mxu0 %v2714
  %4130 = vmatpush.bf16.msra.mxu0 %v2710
  %4131 = vmatpush.bf16.msra.mxu0 %v2706
  %4132 = vmatpush.bf16.msra.mxu0 %v2702
  %4133 = vmatpush.bf16.msra.mxu0 %v2698
  %4134 = vmatmul.bf16.gmra.mxu0 %v742
  %v4135 = vpop.f32.mrf.mxu0
  %v4136 = vadd.f32 %v4117, %v4135
  %v4137 = vpop.f32.mrf.mxu0
  %v4138 = vadd.f32 %v4119, %v4137
  %4139 = vmatmul.bf16.gmra.mxu0 %v760
  %v4140 = vpop.f32.mrf.mxu0
  %v4141 = vadd.f32 %v4122, %v4140
  %v4142 = vpop.f32.mrf.mxu0
  %v4143 = vadd.f32 %v4124, %v4142
  %4144 = vdwg.mxu0
  %4145 = vmatpush.bf16.msra.mxu0 %v2758
  %4146 = vmatpush.bf16.msra.mxu0 %v2754
  %4147 = vmatpush.bf16.msra.mxu0 %v2750
  %4148 = vmatpush.bf16.msra.mxu0 %v2746
  %4149 = vmatpush.bf16.msra.mxu0 %v2742
  %4150 = vmatpush.bf16.msra.mxu0 %v2738
  %4151 = vmatpush.bf16.msra.mxu0 %v2734
  %4152 = vmatpush.bf16.msra.mxu0 %v2730
  %4153 = vmatmul.bf16.gmra.mxu0 %v743
  %v4154 = vpop.f32.mrf.mxu0
  %v4155 = vadd.f32 %v4136, %v4154
  %v4156 = vpop.f32.mrf.mxu0
  %v4157 = vadd.f32 %v4138, %v4156
  %4158 = vmatmul.bf16.gmra.mxu0 %v761
  %v4159 = vpop.f32.mrf.mxu0
  %v4160 = vadd.f32 %v4141, %v4159
  %v4161 = vpop.f32.mrf.mxu0
  %v4162 = vadd.f32 %v4143, %v4161
  %4163 = vdwg.mxu0
  %4164 = vmatpush.bf16.msra.mxu0 %v2790
  %4165 = vmatpush.bf16.msra.mxu0 %v2786
  %4166 = vmatpush.bf16.msra.mxu0 %v2782
  %4167 = vmatpush.bf16.msra.mxu0 %v2778
  %4168 = vmatpush.bf16.msra.mxu0 %v2774
  %4169 = vmatpush.bf16.msra.mxu0 %v2770
  %4170 = vmatpush.bf16.msra.mxu0 %v2766
  %4171 = vmatpush.bf16.msra.mxu0 %v2762
  %4172 = vmatmul.bf16.gmra.mxu0 %v744
  %v4173 = vpop.f32.mrf.mxu0
  %v4174 = vadd.f32 %v4155, %v4173
  %v4175 = vpop.f32.mrf.mxu0
  %v4176 = vadd.f32 %v4157, %v4175
  %4177 = vmatmul.bf16.gmra.mxu0 %v762
  %v4178 = vpop.f32.mrf.mxu0
  %v4179 = vadd.f32 %v4160, %v4178
  %v4180 = vpop.f32.mrf.mxu0
  %v4181 = vadd.f32 %v4162, %v4180
  %4182 = vdwg.mxu0
  %4183 = vmatpush.bf16.msra.mxu0 %v2822
  %4184 = vmatpush.bf16.msra.mxu0 %v2818
  %4185 = vmatpush.bf16.msra.mxu0 %v2814
  %4186 = vmatpush.bf16.msra.mxu0 %v2810
  %4187 = vmatpush.bf16.msra.mxu0 %v2806
  %4188 = vmatpush.bf16.msra.mxu0 %v2802
  %4189 = vmatpush.bf16.msra.mxu0 %v2798
  %4190 = vmatpush.bf16.msra.mxu0 %v2794
  %4191 = vmatmul.bf16.gmra.mxu0 %v745
  %v4192 = vpop.f32.mrf.mxu0
  %v4193 = vadd.f32 %v4174, %v4192
  %v4194 = vpop.f32.mrf.mxu0
  %v4195 = vadd.f32 %v4176, %v4194
  %4196 = vmatmul.bf16.gmra.mxu0 %v763
  %v4197 = vpop.f32.mrf.mxu0
  %v4198 = vadd.f32 %v4179, %v4197
  %v4199 = vpop.f32.mrf.mxu0
  %v4200 = vadd.f32 %v4181, %v4199
  %4201 = vdwg.mxu0
  %4202 = vmatpush.bf16.msra.mxu0 %v2854
  %4203 = vmatpush.bf16.msra.mxu0 %v2850
  %4204 = vmatpush.bf16.msra.mxu0 %v2846
  %4205 = vmatpush.bf16.msra.mxu0 %v2842
  %4206 = vmatpush.bf16.msra.mxu0 %v2838
  %4207 = vmatpush.bf16.msra.mxu0 %v2834
  %4208 = vmatpush.bf16.msra.mxu0 %v2830
  %4209 = vmatpush.bf16.msra.mxu0 %v2826
  %4210 = vmatmul.bf16.gmra.mxu0 %v746
  %v4211 = vpop.f32.mrf.mxu0
  %v4212 = vadd.f32 %v4193, %v4211
  %v4213 = vpop.f32.mrf.mxu0
  %v4214 = vadd.f32 %v4195, %v4213
  %4215 = vmatmul.bf16.gmra.mxu0 %v764
  %v4216 = vpop.f32.mrf.mxu0
  %v4217 = vadd.f32 %v4198, %v4216
  %v4218 = vpop.f32.mrf.mxu0
  %v4219 = vadd.f32 %v4200, %v4218
  %4220 = vdwg.mxu0
  %4221 = vmatpush.bf16.msra.mxu0 %v2886
  %4222 = vmatpush.bf16.msra.mxu0 %v2882
  %4223 = vmatpush.bf16.msra.mxu0 %v2878
  %4224 = vmatpush.bf16.msra.mxu0 %v2874
  %4225 = vmatpush.bf16.msra.mxu0 %v2870
  %4226 = vmatpush.bf16.msra.mxu0 %v2866
  %4227 = vmatpush.bf16.msra.mxu0 %v2862
  %4228 = vmatpush.bf16.msra.mxu0 %v2858
  %4229 = vmatmul.bf16.gmra.mxu0 %v747
  %v4230 = vpop.f32.mrf.mxu0
  %v4231 = vadd.f32 %v4212, %v4230
  %v4232 = vpop.f32.mrf.mxu0
  %v4233 = vadd.f32 %v4214, %v4232
  %4234 = vmatmul.bf16.gmra.mxu0 %v765
  %v4235 = vpop.f32.mrf.mxu0
  %v4236 = vadd.f32 %v4217, %v4235
  %v4237 = vpop.f32.mrf.mxu0
  %v4238 = vadd.f32 %v4219, %v4237
  %4239 = vdwg.mxu0
  %4240 = vmatpush.bf16.msra.mxu0 %v2918
  %4241 = vmatpush.bf16.msra.mxu0 %v2914
  %4242 = vmatpush.bf16.msra.mxu0 %v2910
  %4243 = vmatpush.bf16.msra.mxu0 %v2906
  %4244 = vmatpush.bf16.msra.mxu0 %v2902
  %4245 = vmatpush.bf16.msra.mxu0 %v2898
  %4246 = vmatpush.bf16.msra.mxu0 %v2894
  %4247 = vmatpush.bf16.msra.mxu0 %v2890
  %4248 = vmatmul.bf16.gmra.mxu0 %v748
  %v4249 = vpop.f32.mrf.mxu0
  %v4250 = vadd.f32 %v4231, %v4249
  %v4251 = vpop.f32.mrf.mxu0
  %v4252 = vadd.f32 %v4233, %v4251
  %4253 = vmatmul.bf16.gmra.mxu0 %v766
  %v4254 = vpop.f32.mrf.mxu0
  %v4255 = vadd.f32 %v4236, %v4254
  %v4256 = vpop.f32.mrf.mxu0
  %v4257 = vadd.f32 %v4238, %v4256
  %4258 = vdwg.mxu0
  %4259 = vmatpush.bf16.msra.mxu0 %v2950
  %4260 = vmatpush.bf16.msra.mxu0 %v2946
  %4261 = vmatpush.bf16.msra.mxu0 %v2942
  %4262 = vmatpush.bf16.msra.mxu0 %v2938
  %4263 = vmatpush.bf16.msra.mxu0 %v2934
  %4264 = vmatpush.bf16.msra.mxu0 %v2930
  %4265 = vmatpush.bf16.msra.mxu0 %v2926
  %4266 = vmatpush.bf16.msra.mxu0 %v2922
  %4267 = vmatmul.bf16.gmra.mxu0 %v749
  %v4268 = vpop.f32.mrf.mxu0
  %v4269 = vadd.f32 %v4250, %v4268
  %v4270 = vpop.f32.mrf.mxu0
  %v4271 = vadd.f32 %v4252, %v4270
  %4272 = vmatmul.bf16.gmra.mxu0 %v767
  %v4273 = vpop.f32.mrf.mxu0
  %v4274 = vadd.f32 %v4255, %v4273
  %v4275 = vpop.f32.mrf.mxu0
  %v4276 = vadd.f32 %v4257, %v4275
  %4277 = vdwg.mxu0
  %4278 = vmatpush.bf16.msra.mxu0 %v2982
  %4279 = vmatpush.bf16.msra.mxu0 %v2978
  %4280 = vmatpush.bf16.msra.mxu0 %v2974
  %4281 = vmatpush.bf16.msra.mxu0 %v2970
  %4282 = vmatpush.bf16.msra.mxu0 %v2966
  %4283 = vmatpush.bf16.msra.mxu0 %v2962
  %4284 = vmatpush.bf16.msra.mxu0 %v2958
  %4285 = vmatpush.bf16.msra.mxu0 %v2954
  %4286 = vmatmul.bf16.gmra.mxu0 %v750
  %v4287 = vpop.f32.mrf.mxu0
  %v4288 = vadd.f32 %v4269, %v4287
  %v4289 = vpop.f32.mrf.mxu0
  %v4290 = vadd.f32 %v4271, %v4289
  %4291 = vmatmul.bf16.gmra.mxu0 %v768
  %v4292 = vpop.f32.mrf.mxu0
  %v4293 = vadd.f32 %v4274, %v4292
  %v4294 = vpop.f32.mrf.mxu0
  %v4295 = vadd.f32 %v4276, %v4294
  %4296 = vdwg.mxu0
  %4297 = vmatpush.bf16.msra.mxu0 %v3014
  %4298 = vmatpush.bf16.msra.mxu0 %v3010
  %4299 = vmatpush.bf16.msra.mxu0 %v3006
  %4300 = vmatpush.bf16.msra.mxu0 %v3002
  %4301 = vmatpush.bf16.msra.mxu0 %v2998
  %4302 = vmatpush.bf16.msra.mxu0 %v2994
  %4303 = vmatpush.bf16.msra.mxu0 %v2990
  %4304 = vmatpush.bf16.msra.mxu0 %v2986
  %4305 = vmatmul.bf16.gmra.mxu0 %v751
  %v4306 = vpop.f32.mrf.mxu0
  %v4307 = vadd.f32 %v4288, %v4306
  %v4308 = vpop.f32.mrf.mxu0
  %v4309 = vadd.f32 %v4290, %v4308
  %4310 = vmatmul.bf16.gmra.mxu0 %v769
  %v4311 = vpop.f32.mrf.mxu0
  %v4312 = vadd.f32 %v4293, %v4311
  %v4313 = vpop.f32.mrf.mxu0
  %v4314 = vadd.f32 %v4295, %v4313
  %4315 = vdwg.mxu0
  %4316 = vmatpush.bf16.msra.mxu0 %v3046
  %4317 = vmatpush.bf16.msra.mxu0 %v3042
  %4318 = vmatpush.bf16.msra.mxu0 %v3038
  %4319 = vmatpush.bf16.msra.mxu0 %v3034
  %4320 = vmatpush.bf16.msra.mxu0 %v3030
  %4321 = vmatpush.bf16.msra.mxu0 %v3026
  %4322 = vmatpush.bf16.msra.mxu0 %v3022
  %4323 = vmatpush.bf16.msra.mxu0 %v3018
  %4324 = vmatmul.bf16.gmra.mxu0 %v752
  %v4325 = vpop.f32.mrf.mxu0
  %v4326 = vadd.f32 %v4307, %v4325
  %v4327 = vpop.f32.mrf.mxu0
  %v4328 = vadd.f32 %v4309, %v4327
  %4329 = vmatmul.bf16.gmra.mxu0 %v770
  %v4330 = vpop.f32.mrf.mxu0
  %v4331 = vadd.f32 %v4312, %v4330
  %v4332 = vpop.f32.mrf.mxu0
  %v4333 = vadd.f32 %v4314, %v4332
  %4334 = vdwg.mxu0
  %4335 = vmatpush.bf16.msra.mxu0 %v3078
  %4336 = vmatpush.bf16.msra.mxu0 %v3074
  %4337 = vmatpush.bf16.msra.mxu0 %v3070
  %4338 = vmatpush.bf16.msra.mxu0 %v3066
  %4339 = vmatpush.bf16.msra.mxu0 %v3062
  %4340 = vmatpush.bf16.msra.mxu0 %v3058
  %4341 = vmatpush.bf16.msra.mxu0 %v3054
  %4342 = vmatpush.bf16.msra.mxu0 %v3050
  %4343 = vmatmul.bf16.gmra.mxu0 %v753
  %v4344 = vpop.f32.mrf.mxu0
  %v4345 = vadd.f32 %v4326, %v4344
  %v4346 = vpop.f32.mrf.mxu0
  %v4347 = vadd.f32 %v4328, %v4346
  %4348 = vmatmul.bf16.gmra.mxu0 %v771
  %v4349 = vpop.f32.mrf.mxu0
  %v4350 = vadd.f32 %v4331, %v4349
  %v4351 = vpop.f32.mrf.mxu0
  %v4352 = vadd.f32 %v4333, %v4351
  %4353 = vdwg.mxu0
  %4354 = vmatpush.bf16.msra.mxu0 %v3110
  %4355 = vmatpush.bf16.msra.mxu0 %v3106
  %4356 = vmatpush.bf16.msra.mxu0 %v3102
  %4357 = vmatpush.bf16.msra.mxu0 %v3098
  %4358 = vmatpush.bf16.msra.mxu0 %v3094
  %4359 = vmatpush.bf16.msra.mxu0 %v3090
  %4360 = vmatpush.bf16.msra.mxu0 %v3086
  %4361 = vmatpush.bf16.msra.mxu0 %v3082
  %4362 = vmatmul.bf16.gmra.mxu0 %v754
  %v4363 = vpop.f32.mrf.mxu0
  %v4364 = vadd.f32 %v4345, %v4363
  %v4365 = vpop.f32.mrf.mxu0
  %v4366 = vadd.f32 %v4347, %v4365
  %4367 = vmatmul.bf16.gmra.mxu0 %v772
  %v4368 = vpop.f32.mrf.mxu0
  %v4369 = vadd.f32 %v4350, %v4368
  %v4370 = vpop.f32.mrf.mxu0
  %v4371 = vadd.f32 %v4352, %v4370
  %4372 = vdwg.mxu0
  %4373 = vmatpush.bf16.msra.mxu0 %v2567
  %4374 = vmatpush.bf16.msra.mxu0 %v2563
  %4375 = vmatpush.bf16.msra.mxu0 %v2559
  %4376 = vmatpush.bf16.msra.mxu0 %v2555
  %4377 = vmatpush.bf16.msra.mxu0 %v2551
  %4378 = vmatpush.bf16.msra.mxu0 %v2547
  %4379 = vmatpush.bf16.msra.mxu0 %v2543
  %4380 = vmatpush.bf16.msra.mxu0 %v2539
  %4381 = vmatmul.bf16.gmra.mxu0 %v737
  %v4382 = vpop.f32.mrf.mxu0
  %v4383 = vadd.f32 0.0, %v4382
  %v4384 = vpop.f32.mrf.mxu0
  %v4385 = vadd.f32 0.0, %v4384
  %4386 = vmatmul.bf16.gmra.mxu0 %v755
  %v4387 = vpop.f32.mrf.mxu0
  %v4388 = vadd.f32 0.0, %v4387
  %v4389 = vpop.f32.mrf.mxu0
  %v4390 = vadd.f32 0.0, %v4389
  %4391 = vdwg.mxu0
  %4392 = vmatpush.bf16.msra.mxu0 %v2599
  %4393 = vmatpush.bf16.msra.mxu0 %v2595
  %4394 = vmatpush.bf16.msra.mxu0 %v2591
  %4395 = vmatpush.bf16.msra.mxu0 %v2587
  %4396 = vmatpush.bf16.msra.mxu0 %v2583
  %4397 = vmatpush.bf16.msra.mxu0 %v2579
  %4398 = vmatpush.bf16.msra.mxu0 %v2575
  %4399 = vmatpush.bf16.msra.mxu0 %v2571
  %4400 = vmatmul.bf16.gmra.mxu0 %v738
  %v4401 = vpop.f32.mrf.mxu0
  %v4402 = vadd.f32 %v4383, %v4401
  %v4403 = vpop.f32.mrf.mxu0
  %v4404 = vadd.f32 %v4385, %v4403
  %4405 = vmatmul.bf16.gmra.mxu0 %v756
  %v4406 = vpop.f32.mrf.mxu0
  %v4407 = vadd.f32 %v4388, %v4406
  %v4408 = vpop.f32.mrf.mxu0
  %v4409 = vadd.f32 %v4390, %v4408
  %4410 = vdwg.mxu0
  %4411 = vmatpush.bf16.msra.mxu0 %v2631
  %4412 = vmatpush.bf16.msra.mxu0 %v2627
  %4413 = vmatpush.bf16.msra.mxu0 %v2623
  %4414 = vmatpush.bf16.msra.mxu0 %v2619
  %4415 = vmatpush.bf16.msra.mxu0 %v2615
  %4416 = vmatpush.bf16.msra.mxu0 %v2611
  %4417 = vmatpush.bf16.msra.mxu0 %v2607
  %4418 = vmatpush.bf16.msra.mxu0 %v2603
  %4419 = vmatmul.bf16.gmra.mxu0 %v739
  %v4420 = vpop.f32.mrf.mxu0
  %v4421 = vadd.f32 %v4402, %v4420
  %v4422 = vpop.f32.mrf.mxu0
  %v4423 = vadd.f32 %v4404, %v4422
  %4424 = vmatmul.bf16.gmra.mxu0 %v757
  %v4425 = vpop.f32.mrf.mxu0
  %v4426 = vadd.f32 %v4407, %v4425
  %v4427 = vpop.f32.mrf.mxu0
  %v4428 = vadd.f32 %v4409, %v4427
  %4429 = vdwg.mxu0
  %4430 = vmatpush.bf16.msra.mxu0 %v2663
  %4431 = vmatpush.bf16.msra.mxu0 %v2659
  %4432 = vmatpush.bf16.msra.mxu0 %v2655
  %4433 = vmatpush.bf16.msra.mxu0 %v2651
  %4434 = vmatpush.bf16.msra.mxu0 %v2647
  %4435 = vmatpush.bf16.msra.mxu0 %v2643
  %4436 = vmatpush.bf16.msra.mxu0 %v2639
  %4437 = vmatpush.bf16.msra.mxu0 %v2635
  %4438 = vmatmul.bf16.gmra.mxu0 %v740
  %v4439 = vpop.f32.mrf.mxu0
  %v4440 = vadd.f32 %v4421, %v4439
  %v4441 = vpop.f32.mrf.mxu0
  %v4442 = vadd.f32 %v4423, %v4441
  %4443 = vmatmul.bf16.gmra.mxu0 %v758
  %v4444 = vpop.f32.mrf.mxu0
  %v4445 = vadd.f32 %v4426, %v4444
  %v4446 = vpop.f32.mrf.mxu0
  %v4447 = vadd.f32 %v4428, %v4446
  %4448 = vdwg.mxu0
  %4449 = vmatpush.bf16.msra.mxu0 %v2695
  %4450 = vmatpush.bf16.msra.mxu0 %v2691
  %4451 = vmatpush.bf16.msra.mxu0 %v2687
  %4452 = vmatpush.bf16.msra.mxu0 %v2683
  %4453 = vmatpush.bf16.msra.mxu0 %v2679
  %4454 = vmatpush.bf16.msra.mxu0 %v2675
  %4455 = vmatpush.bf16.msra.mxu0 %v2671
  %4456 = vmatpush.bf16.msra.mxu0 %v2667
  %4457 = vmatmul.bf16.gmra.mxu0 %v741
  %v4458 = vpop.f32.mrf.mxu0
  %v4459 = vadd.f32 %v4440, %v4458
  %v4460 = vpop.f32.mrf.mxu0
  %v4461 = vadd.f32 %v4442, %v4460
  %4462 = vmatmul.bf16.gmra.mxu0 %v759
  %v4463 = vpop.f32.mrf.mxu0
  %v4464 = vadd.f32 %v4445, %v4463
  %v4465 = vpop.f32.mrf.mxu0
  %v4466 = vadd.f32 %v4447, %v4465
  %4467 = vdwg.mxu0
  %4468 = vmatpush.bf16.msra.mxu0 %v2727
  %4469 = vmatpush.bf16.msra.mxu0 %v2723
  %4470 = vmatpush.bf16.msra.mxu0 %v2719
  %4471 = vmatpush.bf16.msra.mxu0 %v2715
  %4472 = vmatpush.bf16.msra.mxu0 %v2711
  %4473 = vmatpush.bf16.msra.mxu0 %v2707
  %4474 = vmatpush.bf16.msra.mxu0 %v2703
  %4475 = vmatpush.bf16.msra.mxu0 %v2699
  %4476 = vmatmul.bf16.gmra.mxu0 %v742
  %v4477 = vpop.f32.mrf.mxu0
  %v4478 = vadd.f32 %v4459, %v4477
  %v4479 = vpop.f32.mrf.mxu0
  %v4480 = vadd.f32 %v4461, %v4479
  %4481 = vmatmul.bf16.gmra.mxu0 %v760
  %v4482 = vpop.f32.mrf.mxu0
  %v4483 = vadd.f32 %v4464, %v4482
  %v4484 = vpop.f32.mrf.mxu0
  %v4485 = vadd.f32 %v4466, %v4484
  %4486 = vdwg.mxu0
  %4487 = vmatpush.bf16.msra.mxu0 %v2759
  %4488 = vmatpush.bf16.msra.mxu0 %v2755
  %4489 = vmatpush.bf16.msra.mxu0 %v2751
  %4490 = vmatpush.bf16.msra.mxu0 %v2747
  %4491 = vmatpush.bf16.msra.mxu0 %v2743
  %4492 = vmatpush.bf16.msra.mxu0 %v2739
  %4493 = vmatpush.bf16.msra.mxu0 %v2735
  %4494 = vmatpush.bf16.msra.mxu0 %v2731
  %4495 = vmatmul.bf16.gmra.mxu0 %v743
  %v4496 = vpop.f32.mrf.mxu0
  %v4497 = vadd.f32 %v4478, %v4496
  %v4498 = vpop.f32.mrf.mxu0
  %v4499 = vadd.f32 %v4480, %v4498
  %4500 = vmatmul.bf16.gmra.mxu0 %v761
  %v4501 = vpop.f32.mrf.mxu0
  %v4502 = vadd.f32 %v4483, %v4501
  %v4503 = vpop.f32.mrf.mxu0
  %v4504 = vadd.f32 %v4485, %v4503
  %4505 = vdwg.mxu0
  %4506 = vmatpush.bf16.msra.mxu0 %v2791
  %4507 = vmatpush.bf16.msra.mxu0 %v2787
  %4508 = vmatpush.bf16.msra.mxu0 %v2783
  %4509 = vmatpush.bf16.msra.mxu0 %v2779
  %4510 = vmatpush.bf16.msra.mxu0 %v2775
  %4511 = vmatpush.bf16.msra.mxu0 %v2771
  %4512 = vmatpush.bf16.msra.mxu0 %v2767
  %4513 = vmatpush.bf16.msra.mxu0 %v2763
  %4514 = vmatmul.bf16.gmra.mxu0 %v744
  %v4515 = vpop.f32.mrf.mxu0
  %v4516 = vadd.f32 %v4497, %v4515
  %v4517 = vpop.f32.mrf.mxu0
  %v4518 = vadd.f32 %v4499, %v4517
  %4519 = vmatmul.bf16.gmra.mxu0 %v762
  %v4520 = vpop.f32.mrf.mxu0
  %v4521 = vadd.f32 %v4502, %v4520
  %v4522 = vpop.f32.mrf.mxu0
  %v4523 = vadd.f32 %v4504, %v4522
  %4524 = vdwg.mxu0
  %4525 = vmatpush.bf16.msra.mxu0 %v2823
  %4526 = vmatpush.bf16.msra.mxu0 %v2819
  %4527 = vmatpush.bf16.msra.mxu0 %v2815
  %4528 = vmatpush.bf16.msra.mxu0 %v2811
  %4529 = vmatpush.bf16.msra.mxu0 %v2807
  %4530 = vmatpush.bf16.msra.mxu0 %v2803
  %4531 = vmatpush.bf16.msra.mxu0 %v2799
  %4532 = vmatpush.bf16.msra.mxu0 %v2795
  %4533 = vmatmul.bf16.gmra.mxu0 %v745
  %v4534 = vpop.f32.mrf.mxu0
  %v4535 = vadd.f32 %v4516, %v4534
  %v4536 = vpop.f32.mrf.mxu0
  %v4537 = vadd.f32 %v4518, %v4536
  %4538 = vmatmul.bf16.gmra.mxu0 %v763
  %v4539 = vpop.f32.mrf.mxu0
  %v4540 = vadd.f32 %v4521, %v4539
  %v4541 = vpop.f32.mrf.mxu0
  %v4542 = vadd.f32 %v4523, %v4541
  %4543 = vdwg.mxu0
  %4544 = vmatpush.bf16.msra.mxu0 %v2855
  %4545 = vmatpush.bf16.msra.mxu0 %v2851
  %4546 = vmatpush.bf16.msra.mxu0 %v2847
  %4547 = vmatpush.bf16.msra.mxu0 %v2843
  %4548 = vmatpush.bf16.msra.mxu0 %v2839
  %4549 = vmatpush.bf16.msra.mxu0 %v2835
  %4550 = vmatpush.bf16.msra.mxu0 %v2831
  %4551 = vmatpush.bf16.msra.mxu0 %v2827
  %4552 = vmatmul.bf16.gmra.mxu0 %v746
  %v4553 = vpop.f32.mrf.mxu0
  %v4554 = vadd.f32 %v4535, %v4553
  %v4555 = vpop.f32.mrf.mxu0
  %v4556 = vadd.f32 %v4537, %v4555
  %4557 = vmatmul.bf16.gmra.mxu0 %v764
  %v4558 = vpop.f32.mrf.mxu0
  %v4559 = vadd.f32 %v4540, %v4558
  %v4560 = vpop.f32.mrf.mxu0
  %v4561 = vadd.f32 %v4542, %v4560
  %4562 = vdwg.mxu0
  %4563 = vmatpush.bf16.msra.mxu0 %v2887
  %4564 = vmatpush.bf16.msra.mxu0 %v2883
  %4565 = vmatpush.bf16.msra.mxu0 %v2879
  %4566 = vmatpush.bf16.msra.mxu0 %v2875
  %4567 = vmatpush.bf16.msra.mxu0 %v2871
  %4568 = vmatpush.bf16.msra.mxu0 %v2867
  %4569 = vmatpush.bf16.msra.mxu0 %v2863
  %4570 = vmatpush.bf16.msra.mxu0 %v2859
  %4571 = vmatmul.bf16.gmra.mxu0 %v747
  %v4572 = vpop.f32.mrf.mxu0
  %v4573 = vadd.f32 %v4554, %v4572
  %v4574 = vpop.f32.mrf.mxu0
  %v4575 = vadd.f32 %v4556, %v4574
  %4576 = vmatmul.bf16.gmra.mxu0 %v765
  %v4577 = vpop.f32.mrf.mxu0
  %v4578 = vadd.f32 %v4559, %v4577
  %v4579 = vpop.f32.mrf.mxu0
  %v4580 = vadd.f32 %v4561, %v4579
  %4581 = vdwg.mxu0
  %4582 = vmatpush.bf16.msra.mxu0 %v2919
  %4583 = vmatpush.bf16.msra.mxu0 %v2915
  %4584 = vmatpush.bf16.msra.mxu0 %v2911
  %4585 = vmatpush.bf16.msra.mxu0 %v2907
  %4586 = vmatpush.bf16.msra.mxu0 %v2903
  %4587 = vmatpush.bf16.msra.mxu0 %v2899
  %4588 = vmatpush.bf16.msra.mxu0 %v2895
  %4589 = vmatpush.bf16.msra.mxu0 %v2891
  %4590 = vmatmul.bf16.gmra.mxu0 %v748
  %v4591 = vpop.f32.mrf.mxu0
  %v4592 = vadd.f32 %v4573, %v4591
  %v4593 = vpop.f32.mrf.mxu0
  %v4594 = vadd.f32 %v4575, %v4593
  %4595 = vmatmul.bf16.gmra.mxu0 %v766
  %v4596 = vpop.f32.mrf.mxu0
  %v4597 = vadd.f32 %v4578, %v4596
  %v4598 = vpop.f32.mrf.mxu0
  %v4599 = vadd.f32 %v4580, %v4598
  %4600 = vdwg.mxu0
  %4601 = vmatpush.bf16.msra.mxu0 %v2951
  %4602 = vmatpush.bf16.msra.mxu0 %v2947
  %4603 = vmatpush.bf16.msra.mxu0 %v2943
  %4604 = vmatpush.bf16.msra.mxu0 %v2939
  %4605 = vmatpush.bf16.msra.mxu0 %v2935
  %4606 = vmatpush.bf16.msra.mxu0 %v2931
  %4607 = vmatpush.bf16.msra.mxu0 %v2927
  %4608 = vmatpush.bf16.msra.mxu0 %v2923
  %4609 = vmatmul.bf16.gmra.mxu0 %v749
  %v4610 = vpop.f32.mrf.mxu0
  %v4611 = vadd.f32 %v4592, %v4610
  %v4612 = vpop.f32.mrf.mxu0
  %v4613 = vadd.f32 %v4594, %v4612
  %4614 = vmatmul.bf16.gmra.mxu0 %v767
  %v4615 = vpop.f32.mrf.mxu0
  %v4616 = vadd.f32 %v4597, %v4615
  %v4617 = vpop.f32.mrf.mxu0
  %v4618 = vadd.f32 %v4599, %v4617
  %4619 = vdwg.mxu0
  %4620 = vmatpush.bf16.msra.mxu0 %v2983
  %4621 = vmatpush.bf16.msra.mxu0 %v2979
  %4622 = vmatpush.bf16.msra.mxu0 %v2975
  %4623 = vmatpush.bf16.msra.mxu0 %v2971
  %4624 = vmatpush.bf16.msra.mxu0 %v2967
  %4625 = vmatpush.bf16.msra.mxu0 %v2963
  %4626 = vmatpush.bf16.msra.mxu0 %v2959
  %4627 = vmatpush.bf16.msra.mxu0 %v2955
  %4628 = vmatmul.bf16.gmra.mxu0 %v750
  %v4629 = vpop.f32.mrf.mxu0
  %v4630 = vadd.f32 %v4611, %v4629
  %v4631 = vpop.f32.mrf.mxu0
  %v4632 = vadd.f32 %v4613, %v4631
  %4633 = vmatmul.bf16.gmra.mxu0 %v768
  %v4634 = vpop.f32.mrf.mxu0
  %v4635 = vadd.f32 %v4616, %v4634
  %v4636 = vpop.f32.mrf.mxu0
  %v4637 = vadd.f32 %v4618, %v4636
  %4638 = vdwg.mxu0
  %4639 = vmatpush.bf16.msra.mxu0 %v3015
  %4640 = vmatpush.bf16.msra.mxu0 %v3011
  %4641 = vmatpush.bf16.msra.mxu0 %v3007
  %4642 = vmatpush.bf16.msra.mxu0 %v3003
  %4643 = vmatpush.bf16.msra.mxu0 %v2999
  %4644 = vmatpush.bf16.msra.mxu0 %v2995
  %4645 = vmatpush.bf16.msra.mxu0 %v2991
  %4646 = vmatpush.bf16.msra.mxu0 %v2987
  %4647 = vmatmul.bf16.gmra.mxu0 %v751
  %v4648 = vpop.f32.mrf.mxu0
  %v4649 = vadd.f32 %v4630, %v4648
  %v4650 = vpop.f32.mrf.mxu0
  %v4651 = vadd.f32 %v4632, %v4650
  %4652 = vmatmul.bf16.gmra.mxu0 %v769
  %v4653 = vpop.f32.mrf.mxu0
  %v4654 = vadd.f32 %v4635, %v4653
  %v4655 = vpop.f32.mrf.mxu0
  %v4656 = vadd.f32 %v4637, %v4655
  %4657 = vdwg.mxu0
  %4658 = vmatpush.bf16.msra.mxu0 %v3047
  %4659 = vmatpush.bf16.msra.mxu0 %v3043
  %4660 = vmatpush.bf16.msra.mxu0 %v3039
  %4661 = vmatpush.bf16.msra.mxu0 %v3035
  %4662 = vmatpush.bf16.msra.mxu0 %v3031
  %4663 = vmatpush.bf16.msra.mxu0 %v3027
  %4664 = vmatpush.bf16.msra.mxu0 %v3023
  %4665 = vmatpush.bf16.msra.mxu0 %v3019
  %4666 = vmatmul.bf16.gmra.mxu0 %v752
  %v4667 = vpop.f32.mrf.mxu0
  %v4668 = vadd.f32 %v4649, %v4667
  %v4669 = vpop.f32.mrf.mxu0
  %v4670 = vadd.f32 %v4651, %v4669
  %4671 = vmatmul.bf16.gmra.mxu0 %v770
  %v4672 = vpop.f32.mrf.mxu0
  %v4673 = vadd.f32 %v4654, %v4672
  %v4674 = vpop.f32.mrf.mxu0
  %v4675 = vadd.f32 %v4656, %v4674
  %4676 = vdwg.mxu0
  %4677 = vmatpush.bf16.msra.mxu0 %v3079
  %4678 = vmatpush.bf16.msra.mxu0 %v3075
  %4679 = vmatpush.bf16.msra.mxu0 %v3071
  %4680 = vmatpush.bf16.msra.mxu0 %v3067
  %4681 = vmatpush.bf16.msra.mxu0 %v3063
  %4682 = vmatpush.bf16.msra.mxu0 %v3059
  %4683 = vmatpush.bf16.msra.mxu0 %v3055
  %4684 = vmatpush.bf16.msra.mxu0 %v3051
  %4685 = vmatmul.bf16.gmra.mxu0 %v753
  %v4686 = vpop.f32.mrf.mxu0
  %v4687 = vadd.f32 %v4668, %v4686
  %v4688 = vpop.f32.mrf.mxu0
  %v4689 = vadd.f32 %v4670, %v4688
  %4690 = vmatmul.bf16.gmra.mxu0 %v771
  %v4691 = vpop.f32.mrf.mxu0
  %v4692 = vadd.f32 %v4673, %v4691
  %v4693 = vpop.f32.mrf.mxu0
  %v4694 = vadd.f32 %v4675, %v4693
  %4695 = vdwg.mxu0
  %4696 = vmatpush.bf16.msra.mxu0 %v3111
  %4697 = vmatpush.bf16.msra.mxu0 %v3107
  %4698 = vmatpush.bf16.msra.mxu0 %v3103
  %4699 = vmatpush.bf16.msra.mxu0 %v3099
  %4700 = vmatpush.bf16.msra.mxu0 %v3095
  %4701 = vmatpush.bf16.msra.mxu0 %v3091
  %4702 = vmatpush.bf16.msra.mxu0 %v3087
  %4703 = vmatpush.bf16.msra.mxu0 %v3083
  %4704 = vmatmul.bf16.gmra.mxu0 %v754
  %v4705 = vpop.f32.mrf.mxu0
  %v4706 = vadd.f32 %v4687, %v4705
  %v4707 = vpop.f32.mrf.mxu0
  %v4708 = vadd.f32 %v4689, %v4707
  %4709 = vmatmul.bf16.gmra.mxu0 %v772
  %v4710 = vpop.f32.mrf.mxu0
  %v4711 = vadd.f32 %v4692, %v4710
  %v4712 = vpop.f32.mrf.mxu0
  %v4713 = vadd.f32 %v4694, %v4712
  %4714 = vdwg.mxu0
  %4715 = vmatpush.bf16.msra.mxu0 %v2568
  %4716 = vmatpush.bf16.msra.mxu0 %v2564
  %4717 = vmatpush.bf16.msra.mxu0 %v2560
  %4718 = vmatpush.bf16.msra.mxu0 %v2556
  %4719 = vmatpush.bf16.msra.mxu0 %v2552
  %4720 = vmatpush.bf16.msra.mxu0 %v2548
  %4721 = vmatpush.bf16.msra.mxu0 %v2544
  %4722 = vmatpush.bf16.msra.mxu0 %v2540
  %4723 = vmatmul.bf16.gmra.mxu0 %v737
  %v4724 = vpop.f32.mrf.mxu0
  %v4725 = vadd.f32 0.0, %v4724
  %v4726 = vpop.f32.mrf.mxu0
  %v4727 = vadd.f32 0.0, %v4726
  %4728 = vmatmul.bf16.gmra.mxu0 %v755
  %v4729 = vpop.f32.mrf.mxu0
  %v4730 = vadd.f32 0.0, %v4729
  %v4731 = vpop.f32.mrf.mxu0
  %v4732 = vadd.f32 0.0, %v4731
  %4733 = vdwg.mxu0
  %4734 = vmatpush.bf16.msra.mxu0 %v2600
  %4735 = vmatpush.bf16.msra.mxu0 %v2596
  %4736 = vmatpush.bf16.msra.mxu0 %v2592
  %4737 = vmatpush.bf16.msra.mxu0 %v2588
  %4738 = vmatpush.bf16.msra.mxu0 %v2584
  %4739 = vmatpush.bf16.msra.mxu0 %v2580
  %4740 = vmatpush.bf16.msra.mxu0 %v2576
  %4741 = vmatpush.bf16.msra.mxu0 %v2572
  %4742 = vmatmul.bf16.gmra.mxu0 %v738
  %v4743 = vpop.f32.mrf.mxu0
  %v4744 = vadd.f32 %v4725, %v4743
  %v4745 = vpop.f32.mrf.mxu0
  %v4746 = vadd.f32 %v4727, %v4745
  %4747 = vmatmul.bf16.gmra.mxu0 %v756
  %v4748 = vpop.f32.mrf.mxu0
  %v4749 = vadd.f32 %v4730, %v4748
  %v4750 = vpop.f32.mrf.mxu0
  %v4751 = vadd.f32 %v4732, %v4750
  %4752 = vdwg.mxu0
  %4753 = vmatpush.bf16.msra.mxu0 %v2632
  %4754 = vmatpush.bf16.msra.mxu0 %v2628
  %4755 = vmatpush.bf16.msra.mxu0 %v2624
  %4756 = vmatpush.bf16.msra.mxu0 %v2620
  %4757 = vmatpush.bf16.msra.mxu0 %v2616
  %4758 = vmatpush.bf16.msra.mxu0 %v2612
  %4759 = vmatpush.bf16.msra.mxu0 %v2608
  %4760 = vmatpush.bf16.msra.mxu0 %v2604
  %4761 = vmatmul.bf16.gmra.mxu0 %v739
  %v4762 = vpop.f32.mrf.mxu0
  %v4763 = vadd.f32 %v4744, %v4762
  %v4764 = vpop.f32.mrf.mxu0
  %v4765 = vadd.f32 %v4746, %v4764
  %4766 = vmatmul.bf16.gmra.mxu0 %v757
  %v4767 = vpop.f32.mrf.mxu0
  %v4768 = vadd.f32 %v4749, %v4767
  %v4769 = vpop.f32.mrf.mxu0
  %v4770 = vadd.f32 %v4751, %v4769
  %4771 = vdwg.mxu0
  %4772 = vmatpush.bf16.msra.mxu0 %v2664
  %4773 = vmatpush.bf16.msra.mxu0 %v2660
  %4774 = vmatpush.bf16.msra.mxu0 %v2656
  %4775 = vmatpush.bf16.msra.mxu0 %v2652
  %4776 = vmatpush.bf16.msra.mxu0 %v2648
  %4777 = vmatpush.bf16.msra.mxu0 %v2644
  %4778 = vmatpush.bf16.msra.mxu0 %v2640
  %4779 = vmatpush.bf16.msra.mxu0 %v2636
  %4780 = vmatmul.bf16.gmra.mxu0 %v740
  %v4781 = vpop.f32.mrf.mxu0
  %v4782 = vadd.f32 %v4763, %v4781
  %v4783 = vpop.f32.mrf.mxu0
  %v4784 = vadd.f32 %v4765, %v4783
  %4785 = vmatmul.bf16.gmra.mxu0 %v758
  %v4786 = vpop.f32.mrf.mxu0
  %v4787 = vadd.f32 %v4768, %v4786
  %v4788 = vpop.f32.mrf.mxu0
  %v4789 = vadd.f32 %v4770, %v4788
  %4790 = vdwg.mxu0
  %4791 = vmatpush.bf16.msra.mxu0 %v2696
  %4792 = vmatpush.bf16.msra.mxu0 %v2692
  %4793 = vmatpush.bf16.msra.mxu0 %v2688
  %4794 = vmatpush.bf16.msra.mxu0 %v2684
  %4795 = vmatpush.bf16.msra.mxu0 %v2680
  %4796 = vmatpush.bf16.msra.mxu0 %v2676
  %4797 = vmatpush.bf16.msra.mxu0 %v2672
  %4798 = vmatpush.bf16.msra.mxu0 %v2668
  %4799 = vmatmul.bf16.gmra.mxu0 %v741
  %v4800 = vpop.f32.mrf.mxu0
  %v4801 = vadd.f32 %v4782, %v4800
  %v4802 = vpop.f32.mrf.mxu0
  %v4803 = vadd.f32 %v4784, %v4802
  %4804 = vmatmul.bf16.gmra.mxu0 %v759
  %v4805 = vpop.f32.mrf.mxu0
  %v4806 = vadd.f32 %v4787, %v4805
  %v4807 = vpop.f32.mrf.mxu0
  %v4808 = vadd.f32 %v4789, %v4807
  %4809 = vdwg.mxu0
  %4810 = vmatpush.bf16.msra.mxu0 %v2728
  %4811 = vmatpush.bf16.msra.mxu0 %v2724
  %4812 = vmatpush.bf16.msra.mxu0 %v2720
  %4813 = vmatpush.bf16.msra.mxu0 %v2716
  %4814 = vmatpush.bf16.msra.mxu0 %v2712
  %4815 = vmatpush.bf16.msra.mxu0 %v2708
  %4816 = vmatpush.bf16.msra.mxu0 %v2704
  %4817 = vmatpush.bf16.msra.mxu0 %v2700
  %4818 = vmatmul.bf16.gmra.mxu0 %v742
  %v4819 = vpop.f32.mrf.mxu0
  %v4820 = vadd.f32 %v4801, %v4819
  %v4821 = vpop.f32.mrf.mxu0
  %v4822 = vadd.f32 %v4803, %v4821
  %4823 = vmatmul.bf16.gmra.mxu0 %v760
  %v4824 = vpop.f32.mrf.mxu0
  %v4825 = vadd.f32 %v4806, %v4824
  %v4826 = vpop.f32.mrf.mxu0
  %v4827 = vadd.f32 %v4808, %v4826
  %4828 = vdwg.mxu0
  %4829 = vmatpush.bf16.msra.mxu0 %v2760
  %4830 = vmatpush.bf16.msra.mxu0 %v2756
  %4831 = vmatpush.bf16.msra.mxu0 %v2752
  %4832 = vmatpush.bf16.msra.mxu0 %v2748
  %4833 = vmatpush.bf16.msra.mxu0 %v2744
  %4834 = vmatpush.bf16.msra.mxu0 %v2740
  %4835 = vmatpush.bf16.msra.mxu0 %v2736
  %4836 = vmatpush.bf16.msra.mxu0 %v2732
  %4837 = vmatmul.bf16.gmra.mxu0 %v743
  %v4838 = vpop.f32.mrf.mxu0
  %v4839 = vadd.f32 %v4820, %v4838
  %v4840 = vpop.f32.mrf.mxu0
  %v4841 = vadd.f32 %v4822, %v4840
  %4842 = vmatmul.bf16.gmra.mxu0 %v761
  %v4843 = vpop.f32.mrf.mxu0
  %v4844 = vadd.f32 %v4825, %v4843
  %v4845 = vpop.f32.mrf.mxu0
  %v4846 = vadd.f32 %v4827, %v4845
  %4847 = vdwg.mxu0
  %4848 = vmatpush.bf16.msra.mxu0 %v2792
  %4849 = vmatpush.bf16.msra.mxu0 %v2788
  %4850 = vmatpush.bf16.msra.mxu0 %v2784
  %4851 = vmatpush.bf16.msra.mxu0 %v2780
  %4852 = vmatpush.bf16.msra.mxu0 %v2776
  %4853 = vmatpush.bf16.msra.mxu0 %v2772
  %4854 = vmatpush.bf16.msra.mxu0 %v2768
  %4855 = vmatpush.bf16.msra.mxu0 %v2764
  %4856 = vmatmul.bf16.gmra.mxu0 %v744
  %v4857 = vpop.f32.mrf.mxu0
  %v4858 = vadd.f32 %v4839, %v4857
  %v4859 = vpop.f32.mrf.mxu0
  %v4860 = vadd.f32 %v4841, %v4859
  %4861 = vmatmul.bf16.gmra.mxu0 %v762
  %v4862 = vpop.f32.mrf.mxu0
  %v4863 = vadd.f32 %v4844, %v4862
  %v4864 = vpop.f32.mrf.mxu0
  %v4865 = vadd.f32 %v4846, %v4864
  %4866 = vdwg.mxu0
  %4867 = vmatpush.bf16.msra.mxu0 %v2824
  %4868 = vmatpush.bf16.msra.mxu0 %v2820
  %4869 = vmatpush.bf16.msra.mxu0 %v2816
  %4870 = vmatpush.bf16.msra.mxu0 %v2812
  %4871 = vmatpush.bf16.msra.mxu0 %v2808
  %4872 = vmatpush.bf16.msra.mxu0 %v2804
  %4873 = vmatpush.bf16.msra.mxu0 %v2800
  %4874 = vmatpush.bf16.msra.mxu0 %v2796
  %4875 = vmatmul.bf16.gmra.mxu0 %v745
  %v4876 = vpop.f32.mrf.mxu0
  %v4877 = vadd.f32 %v4858, %v4876
  %v4878 = vpop.f32.mrf.mxu0
  %v4879 = vadd.f32 %v4860, %v4878
  %4880 = vmatmul.bf16.gmra.mxu0 %v763
  %v4881 = vpop.f32.mrf.mxu0
  %v4882 = vadd.f32 %v4863, %v4881
  %v4883 = vpop.f32.mrf.mxu0
  %v4884 = vadd.f32 %v4865, %v4883
  %4885 = vdwg.mxu0
  %4886 = vmatpush.bf16.msra.mxu0 %v2856
  %4887 = vmatpush.bf16.msra.mxu0 %v2852
  %4888 = vmatpush.bf16.msra.mxu0 %v2848
  %4889 = vmatpush.bf16.msra.mxu0 %v2844
  %4890 = vmatpush.bf16.msra.mxu0 %v2840
  %4891 = vmatpush.bf16.msra.mxu0 %v2836
  %4892 = vmatpush.bf16.msra.mxu0 %v2832
  %4893 = vmatpush.bf16.msra.mxu0 %v2828
  %4894 = vmatmul.bf16.gmra.mxu0 %v746
  %v4895 = vpop.f32.mrf.mxu0
  %v4896 = vadd.f32 %v4877, %v4895
  %v4897 = vpop.f32.mrf.mxu0
  %v4898 = vadd.f32 %v4879, %v4897
  %4899 = vmatmul.bf16.gmra.mxu0 %v764
  %v4900 = vpop.f32.mrf.mxu0
  %v4901 = vadd.f32 %v4882, %v4900
  %v4902 = vpop.f32.mrf.mxu0
  %v4903 = vadd.f32 %v4884, %v4902
  %4904 = vdwg.mxu0
  %4905 = vmatpush.bf16.msra.mxu0 %v2888
  %4906 = vmatpush.bf16.msra.mxu0 %v2884
  %4907 = vmatpush.bf16.msra.mxu0 %v2880
  %4908 = vmatpush.bf16.msra.mxu0 %v2876
  %4909 = vmatpush.bf16.msra.mxu0 %v2872
  %4910 = vmatpush.bf16.msra.mxu0 %v2868
  %4911 = vmatpush.bf16.msra.mxu0 %v2864
  %4912 = vmatpush.bf16.msra.mxu0 %v2860
  %4913 = vmatmul.bf16.gmra.mxu0 %v747
  %v4914 = vpop.f32.mrf.mxu0
  %v4915 = vadd.f32 %v4896, %v4914
  %v4916 = vpop.f32.mrf.mxu0
  %v4917 = vadd.f32 %v4898, %v4916
  %4918 = vmatmul.bf16.gmra.mxu0 %v765
  %v4919 = vpop.f32.mrf.mxu0
  %v4920 = vadd.f32 %v4901, %v4919
  %v4921 = vpop.f32.mrf.mxu0
  %v4922 = vadd.f32 %v4903, %v4921
  %4923 = vdwg.mxu0
  %4924 = vmatpush.bf16.msra.mxu0 %v2920
  %4925 = vmatpush.bf16.msra.mxu0 %v2916
  %4926 = vmatpush.bf16.msra.mxu0 %v2912
  %4927 = vmatpush.bf16.msra.mxu0 %v2908
  %4928 = vmatpush.bf16.msra.mxu0 %v2904
  %4929 = vmatpush.bf16.msra.mxu0 %v2900
  %4930 = vmatpush.bf16.msra.mxu0 %v2896
  %4931 = vmatpush.bf16.msra.mxu0 %v2892
  %4932 = vmatmul.bf16.gmra.mxu0 %v748
  %v4933 = vpop.f32.mrf.mxu0
  %v4934 = vadd.f32 %v4915, %v4933
  %v4935 = vpop.f32.mrf.mxu0
  %v4936 = vadd.f32 %v4917, %v4935
  %4937 = vmatmul.bf16.gmra.mxu0 %v766
  %v4938 = vpop.f32.mrf.mxu0
  %v4939 = vadd.f32 %v4920, %v4938
  %v4940 = vpop.f32.mrf.mxu0
  %v4941 = vadd.f32 %v4922, %v4940
  %4942 = vdwg.mxu0
  %4943 = vmatpush.bf16.msra.mxu0 %v2952
  %4944 = vmatpush.bf16.msra.mxu0 %v2948
  %4945 = vmatpush.bf16.msra.mxu0 %v2944
  %4946 = vmatpush.bf16.msra.mxu0 %v2940
  %4947 = vmatpush.bf16.msra.mxu0 %v2936
  %4948 = vmatpush.bf16.msra.mxu0 %v2932
  %4949 = vmatpush.bf16.msra.mxu0 %v2928
  %4950 = vmatpush.bf16.msra.mxu0 %v2924
  %4951 = vmatmul.bf16.gmra.mxu0 %v749
  %v4952 = vpop.f32.mrf.mxu0
  %v4953 = vadd.f32 %v4934, %v4952
  %v4954 = vpop.f32.mrf.mxu0
  %v4955 = vadd.f32 %v4936, %v4954
  %4956 = vmatmul.bf16.gmra.mxu0 %v767
  %v4957 = vpop.f32.mrf.mxu0
  %v4958 = vadd.f32 %v4939, %v4957
  %v4959 = vpop.f32.mrf.mxu0
  %v4960 = vadd.f32 %v4941, %v4959
  %4961 = vdwg.mxu0
  %4962 = vmatpush.bf16.msra.mxu0 %v2984
  %4963 = vmatpush.bf16.msra.mxu0 %v2980
  %4964 = vmatpush.bf16.msra.mxu0 %v2976
  %4965 = vmatpush.bf16.msra.mxu0 %v2972
  %4966 = vmatpush.bf16.msra.mxu0 %v2968
  %4967 = vmatpush.bf16.msra.mxu0 %v2964
  %4968 = vmatpush.bf16.msra.mxu0 %v2960
  %4969 = vmatpush.bf16.msra.mxu0 %v2956
  %4970 = vmatmul.bf16.gmra.mxu0 %v750
  %v4971 = vpop.f32.mrf.mxu0
  %v4972 = vadd.f32 %v4953, %v4971
  %v4973 = vpop.f32.mrf.mxu0
  %v4974 = vadd.f32 %v4955, %v4973
  %4975 = vmatmul.bf16.gmra.mxu0 %v768
  %v4976 = vpop.f32.mrf.mxu0
  %v4977 = vadd.f32 %v4958, %v4976
  %v4978 = vpop.f32.mrf.mxu0
  %v4979 = vadd.f32 %v4960, %v4978
  %4980 = vdwg.mxu0
  %4981 = vmatpush.bf16.msra.mxu0 %v3016
  %4982 = vmatpush.bf16.msra.mxu0 %v3012
  %4983 = vmatpush.bf16.msra.mxu0 %v3008
  %4984 = vmatpush.bf16.msra.mxu0 %v3004
  %4985 = vmatpush.bf16.msra.mxu0 %v3000
  %4986 = vmatpush.bf16.msra.mxu0 %v2996
  %4987 = vmatpush.bf16.msra.mxu0 %v2992
  %4988 = vmatpush.bf16.msra.mxu0 %v2988
  %4989 = vmatmul.bf16.gmra.mxu0 %v751
  %v4990 = vpop.f32.mrf.mxu0
  %v4991 = vadd.f32 %v4972, %v4990
  %v4992 = vpop.f32.mrf.mxu0
  %v4993 = vadd.f32 %v4974, %v4992
  %4994 = vmatmul.bf16.gmra.mxu0 %v769
  %v4995 = vpop.f32.mrf.mxu0
  %v4996 = vadd.f32 %v4977, %v4995
  %v4997 = vpop.f32.mrf.mxu0
  %v4998 = vadd.f32 %v4979, %v4997
  %4999 = vdwg.mxu0
  %5000 = vmatpush.bf16.msra.mxu0 %v3048
  %5001 = vmatpush.bf16.msra.mxu0 %v3044
  %5002 = vmatpush.bf16.msra.mxu0 %v3040
  %5003 = vmatpush.bf16.msra.mxu0 %v3036
  %5004 = vmatpush.bf16.msra.mxu0 %v3032
  %5005 = vmatpush.bf16.msra.mxu0 %v3028
  %5006 = vmatpush.bf16.msra.mxu0 %v3024
  %5007 = vmatpush.bf16.msra.mxu0 %v3020
  %5008 = vmatmul.bf16.gmra.mxu0 %v752
  %v5009 = vpop.f32.mrf.mxu0
  %v5010 = vadd.f32 %v4991, %v5009
  %v5011 = vpop.f32.mrf.mxu0
  %v5012 = vadd.f32 %v4993, %v5011
  %5013 = vmatmul.bf16.gmra.mxu0 %v770
  %v5014 = vpop.f32.mrf.mxu0
  %v5015 = vadd.f32 %v4996, %v5014
  %v5016 = vpop.f32.mrf.mxu0
  %v5017 = vadd.f32 %v4998, %v5016
  %5018 = vdwg.mxu0
  %5019 = vmatpush.bf16.msra.mxu0 %v3080
  %5020 = vmatpush.bf16.msra.mxu0 %v3076
  %5021 = vmatpush.bf16.msra.mxu0 %v3072
  %5022 = vmatpush.bf16.msra.mxu0 %v3068
  %5023 = vmatpush.bf16.msra.mxu0 %v3064
  %5024 = vmatpush.bf16.msra.mxu0 %v3060
  %5025 = vmatpush.bf16.msra.mxu0 %v3056
  %5026 = vmatpush.bf16.msra.mxu0 %v3052
  %5027 = vmatmul.bf16.gmra.mxu0 %v753
  %v5028 = vpop.f32.mrf.mxu0
  %v5029 = vadd.f32 %v5010, %v5028
  %v5030 = vpop.f32.mrf.mxu0
  %v5031 = vadd.f32 %v5012, %v5030
  %5032 = vmatmul.bf16.gmra.mxu0 %v771
  %v5033 = vpop.f32.mrf.mxu0
  %v5034 = vadd.f32 %v5015, %v5033
  %v5035 = vpop.f32.mrf.mxu0
  %v5036 = vadd.f32 %v5017, %v5035
  %5037 = vdwg.mxu0
  %5038 = vmatpush.bf16.msra.mxu0 %v3112
  %5039 = vmatpush.bf16.msra.mxu0 %v3108
  %5040 = vmatpush.bf16.msra.mxu0 %v3104
  %5041 = vmatpush.bf16.msra.mxu0 %v3100
  %5042 = vmatpush.bf16.msra.mxu0 %v3096
  %5043 = vmatpush.bf16.msra.mxu0 %v3092
  %5044 = vmatpush.bf16.msra.mxu0 %v3088
  %5045 = vmatpush.bf16.msra.mxu0 %v3084
  %5046 = vmatmul.bf16.gmra.mxu0 %v754
  %v5047 = vpop.f32.mrf.mxu0
  %v5048 = vadd.f32 %v5029, %v5047
  %v5049 = vpop.f32.mrf.mxu0
  %v5050 = vadd.f32 %v5031, %v5049
  %5051 = vmatmul.bf16.gmra.mxu0 %v772
  %v5052 = vpop.f32.mrf.mxu0
  %v5053 = vadd.f32 %v5034, %v5052
  %v5054 = vpop.f32.mrf.mxu0
  %v5055 = vadd.f32 %v5036, %v5054
  %5056 = vdwg.mxu0
  %v5057 = vadd.f32 %v4022, %v4024
  %v5058 = vadd.f32 %v5057, %v4027
  %v5059 = vadd.f32 %v5058, %v4029
  %v5060 = vrot.slane %v5059, 4
  %v5061 = vadd.f32 %v5059, %v5060
  %v5062 = vrot.slane %v5061, 2
  %v5063 = vadd.f32 %v5061, %v5062
  %v5064 = vrot.slane %v5063, 1
  %v5065 = vadd.f32 %v5063, %v5064
  %v5066 = vadd.f32 %v4364, %v4366
  %v5067 = vadd.f32 %v5066, %v4369
  %v5068 = vadd.f32 %v5067, %v4371
  %v5069 = vrot.slane %v5068, 4
  %v5070 = vadd.f32 %v5068, %v5069
  %v5071 = vrot.slane %v5070, 2
  %v5072 = vadd.f32 %v5070, %v5071
  %v5073 = vrot.slane %v5072, 1
  %v5074 = vadd.f32 %v5072, %v5073
  %v5075 = vadd.f32 %v4706, %v4708
  %v5076 = vadd.f32 %v5075, %v4711
  %v5077 = vadd.f32 %v5076, %v4713
  %v5078 = vrot.slane %v5077, 4
  %v5079 = vadd.f32 %v5077, %v5078
  %v5080 = vrot.slane %v5079, 2
  %v5081 = vadd.f32 %v5079, %v5080
  %v5082 = vrot.slane %v5081, 1
  %v5083 = vadd.f32 %v5081, %v5082
  %v5084 = vadd.f32 %v5048, %v5050
  %v5085 = vadd.f32 %v5084, %v5053
  %v5086 = vadd.f32 %v5085, %v5055
  %v5087 = vrot.slane %v5086, 4
  %v5088 = vadd.f32 %v5086, %v5087
  %v5089 = vrot.slane %v5088, 2
  %v5090 = vadd.f32 %v5088, %v5089
  %v5091 = vrot.slane %v5090, 1
  %v5092 = vadd.f32 %v5090, %v5091
  %v5093 = vmul.f32 %v4022, %v4022
  %v5094 = vmul.f32 %v4364, %v4364
  %v5095 = vmul.f32 %v4706, %v4706
  %v5096 = vmul.f32 %v5048, %v5048
  %v5097 = vmul.f32 %v4024, %v4024
  %v5098 = vmul.f32 %v4366, %v4366
  %v5099 = vmul.f32 %v4708, %v4708
  %v5100 = vmul.f32 %v5050, %v5050
  %v5101 = vmul.f32 %v4027, %v4027
  %v5102 = vmul.f32 %v4369, %v4369
  %v5103 = vmul.f32 %v4711, %v4711
  %v5104 = vmul.f32 %v5053, %v5053
  %v5105 = vmul.f32 %v4029, %v4029
  %v5106 = vmul.f32 %v4371, %v4371
  %v5107 = vmul.f32 %v4713, %v4713
  %v5108 = vmul.f32 %v5055, %v5055
  %v5109 = vadd.f32 %v5093, %v5097
  %v5110 = vadd.f32 %v5109, %v5101
  %v5111 = vadd.f32 %v5110, %v5105
  %v5112 = vrot.slane %v5111, 4
  %v5113 = vadd.f32 %v5111, %v5112
  %v5114 = vrot.slane %v5113, 2
  %v5115 = vadd.f32 %v5113, %v5114
  %v5116 = vrot.slane %v5115, 1
  %v5117 = vadd.f32 %v5115, %v5116
  %v5118 = vadd.f32 %v5094, %v5098
  %v5119 = vadd.f32 %v5118, %v5102
  %v5120 = vadd.f32 %v5119, %v5106
  %v5121 = vrot.slane %v5120, 4
  %v5122 = vadd.f32 %v5120, %v5121
  %v5123 = vrot.slane %v5122, 2
  %v5124 = vadd.f32 %v5122, %v5123
  %v5125 = vrot.slane %v5124, 1
  %v5126 = vadd.f32 %v5124, %v5125
  %v5127 = vadd.f32 %v5095, %v5099
  %v5128 = vadd.f32 %v5127, %v5103
  %v5129 = vadd.f32 %v5128, %v5107
  %v5130 = vrot.slane %v5129, 4
  %v5131 = vadd.f32 %v5129, %v5130
  %v5132 = vrot.slane %v5131, 2
  %v5133 = vadd.f32 %v5131, %v5132
  %v5134 = vrot.slane %v5133, 1
  %v5135 = vadd.f32 %v5133, %v5134
  %v5136 = vadd.f32 %v5096, %v5100
  %v5137 = vadd.f32 %v5136, %v5104
  %v5138 = vadd.f32 %v5137, %v5108
  %v5139 = vrot.slane %v5138, 4
  %v5140 = vadd.f32 %v5138, %v5139
  %v5141 = vrot.slane %v5140, 2
  %v5142 = vadd.f32 %v5140, %v5141
  %v5143 = vrot.slane %v5142, 1
  %v5144 = vadd.f32 %v5142, %v5143
  %v5145 = vmul.f32 %v5065, 0.125
  %v5146 = vmul.f32 %v5074, 0.125
  %v5147 = vmul.f32 %v5083, 0.125
  %v5148 = vmul.f32 %v5092, 0.125
  %v5149 = vmul.f32 %v5117, 0.125
  %v5150 = vmul.f32 %v5126, 0.125
  %v5151 = vmul.f32 %v5135, 0.125
  %v5152 = vmul.f32 %v5144, 0.125
  %v5153 = vmul.f32 %v5145, %v5145
  %v5154 = vmul.f32 %v5146, %v5146
  %v5155 = vmul.f32 %v5147, %v5147
  %v5156 = vmul.f32 %v5148, %v5148
  %v5157 = vsub.f32 %v5149, %v5153
  %v5158 = vsub.f32 %v5150, %v5154
  %v5159 = vsub.f32 %v5151, %v5155
  %v5160 = vsub.f32 %v5152, %v5156
  %v5161 = vmax.f32 %v5157, 0.0
  %v5162 = vmax.f32 %v5158, 0.0
  %v5163 = vmax.f32 %v5159, 0.0
  %v5164 = vmax.f32 %v5160, 0.0
  %v5165 = vld [vmem:[%s2] sm:$0xf]
  %v5166 = vadd.f32 %v5161, 1e-05
  %v5167 = vadd.f32 %v5162, 1e-05
  %v5168 = vadd.f32 %v5163, 1e-05
  %v5169 = vadd.f32 %v5164, 1e-05
  %v5170 = vrsqrt.pop %v5166
  %v5171 = vmul.f32 %v5170, %v5166
  %v5172 = vmul.f32 %v5171, %v5170
  %v5173 = vmul.f32 0.5, %v5172
  %v5174 = vsub.f32 1.5, %v5173
  %v5175 = vmul.f32 %v5170, %v5174
  %vm5176 = vweird.f32 %v5166
  %vm5177 = vweird.f32 %v5170
  %vm5178 = vmor %vm5176, %vm5177
  %v5179 = vsel %vm5178, %v5170, %v5175
  %v5180 = vrsqrt.pop %v5167
  %v5181 = vmul.f32 %v5180, %v5167
  %v5182 = vmul.f32 %v5181, %v5180
  %v5183 = vmul.f32 0.5, %v5182
  %v5184 = vsub.f32 1.5, %v5183
  %v5185 = vmul.f32 %v5180, %v5184
  %vm5186 = vweird.f32 %v5167
  %vm5187 = vweird.f32 %v5180
  %vm5188 = vmor %vm5186, %vm5187
  %v5189 = vsel %vm5188, %v5180, %v5185
  %v5190 = vrsqrt.pop %v5168
  %v5191 = vmul.f32 %v5190, %v5168
  %v5192 = vmul.f32 %v5191, %v5190
  %v5193 = vmul.f32 0.5, %v5192
  %v5194 = vsub.f32 1.5, %v5193
  %v5195 = vmul.f32 %v5190, %v5194
  %vm5196 = vweird.f32 %v5168
  %vm5197 = vweird.f32 %v5190
  %vm5198 = vmor %vm5196, %vm5197
  %v5199 = vsel %vm5198, %v5190, %v5195
  %v5200 = vrsqrt.pop %v5169
  %v5201 = vmul.f32 %v5200, %v5169
  %v5202 = vmul.f32 %v5201, %v5200
  %v5203 = vmul.f32 0.5, %v5202
  %v5204 = vsub.f32 1.5, %v5203
  %v5205 = vmul.f32 %v5200, %v5204
  %vm5206 = vweird.f32 %v5169
  %vm5207 = vweird.f32 %v5200
  %vm5208 = vmor %vm5206, %vm5207
  %v5209 = vsel %vm5208, %v5200, %v5205
  %v5214 = vrot.slane %v5189, 7
  %v5215 = vrot.slane %v5199, 6
  %v5216 = vrot.slane %v5209, 5
  %vm5217 = vcmask 1040384
  %v5218 = vsel %vm5217, %v5179, %v5214
  %vm5219 = vcmask 1042434
  %v5220 = vsel %vm5219, %v5215, %v5216
  %vm5221 = vcmask 1041408
  %v5222 = vsel %vm5221, %v5218, %v5220
  %v5224 = vmul.f32 %v5165, %v5222
  %v5225 = vld [vmem:[%s3] sm:$0xf]
  %v5227 = vperm.slane %v5224, 0
  %v5228 = vperm.slane %v5224, 1
  %v5229 = vperm.slane %v5224, 2
  %v5230 = vperm.slane %v5224, 3
  %v5235 = vmul.f32 %v5145, %v5227
  %v5236 = vmul.f32 %v5146, %v5228
  %v5237 = vmul.f32 %v5147, %v5229
  %v5238 = vmul.f32 %v5148, %v5230
  %v5243 = vrot.slane %v5236, 7
  %v5244 = vrot.slane %v5237, 6
  %v5245 = vrot.slane %v5238, 5
  %v5246 = vsel %vm5217, %v5235, %v5243
  %v5247 = vsel %vm5219, %v5244, %v5245
  %v5248 = vsel %vm5221, %v5246, %v5247
  %v5250 = vsub.f32 %v5225, %v5248
  %v5251 = vmul.f32 %v4022, %v5227
  %v5252 = vmul.f32 %v4364, %v5228
  %v5253 = vmul.f32 %v4706, %v5229
  %v5254 = vmul.f32 %v5048, %v5230
  %v5255 = vmul.f32 %v4024, %v5227
  %v5256 = vmul.f32 %v4366, %v5228
  %v5257 = vmul.f32 %v4708, %v5229
  %v5258 = vmul.f32 %v5050, %v5230
  %v5259 = vmul.f32 %v4027, %v5227
  %v5260 = vmul.f32 %v4369, %v5228
  %v5261 = vmul.f32 %v4711, %v5229
  %v5262 = vmul.f32 %v5053, %v5230
  %v5263 = vmul.f32 %v4029, %v5227
  %v5264 = vmul.f32 %v4371, %v5228
  %v5265 = vmul.f32 %v4713, %v5229
  %v5266 = vmul.f32 %v5055, %v5230
  %v5268 = vperm.slane %v5250, 0
  %v5269 = vperm.slane %v5250, 1
  %v5270 = vperm.slane %v5250, 2
  %v5271 = vperm.slane %v5250, 3
  %v5276 = vadd.f32 %v5251, %v5268
  %v5277 = vadd.f32 %v5252, %v5269
  %v5278 = vadd.f32 %v5253, %v5270
  %v5279 = vadd.f32 %v5254, %v5271
  %v5280 = vadd.f32 %v5255, %v5268
  %v5281 = vadd.f32 %v5256, %v5269
  %v5282 = vadd.f32 %v5257, %v5270
  %v5283 = vadd.f32 %v5258, %v5271
  %v5284 = vadd.f32 %v5259, %v5268
  %v5285 = vadd.f32 %v5260, %v5269
  %v5286 = vadd.f32 %v5261, %v5270
  %v5287 = vadd.f32 %v5262, %v5271
  %v5288 = vadd.f32 %v5263, %v5268
  %v5289 = vadd.f32 %v5264, %v5269
  %v5290 = vadd.f32 %v5265, %v5270
  %v5291 = vadd.f32 %v5266, %v5271
  %v5292 = vmax.f32 %v5276, %v5280
  %v5293 = vmax.f32 %v5277, %v5281
  %v5294 = vmax.f32 %v5278, %v5282
  %v5295 = vmax.f32 %v5279, %v5283
  %v5296 = vmax.f32 %v5284, %v5288
  %v5297 = vmax.f32 %v5285, %v5289
  %v5298 = vmax.f32 %v5286, %v5290
  %v5299 = vmax.f32 %v5287, %v5291
  %v5300 = vmax.f32 %v5292, %v5296
  %v5301 = vmax.f32 %v5293, %v5297
  %v5302 = vmax.f32 %v5294, %v5298
  %v5303 = vmax.f32 %v5295, %v5299
  %5304 = vst [vmem:[%s4] sm:$0xff] %v5300
  %5305 = vst [vmem:[%s4 + $0x8] sm:$0xff] %v5301
  %5306 = vst [vmem:[%s4 + $0x10] sm:$0xff] %v5302
  %5307 = vst [vmem:[%s4 + $0x18] sm:$0xff] %v5303
  // Predicated region
  $region18: #{forward.10} parent=0 // pred_check
    _
  $region19: #{forward.10} parent=0 // pred_check_branch
    %5309 = sbr.rel (0) target = $region21
  $region20: #{forward.10} parent=0 // pred_region
    _
  $region21: #{forward.10} parent=0 // pred_fallthru
    _
  // Predicated region
  $region22: #{forward.10} parent=0 // pred_check
    _
  $region23: #{forward.10} parent=0 // pred_check_branch
    %5311 = sbr.rel (0) target = $region25
  $region24: #{forward.10} parent=0 // pred_region
    _
  $region25: #{forward.10} parent=0 // pred_fallthru
    _

</llo_original>
